<compile_context>
chip_gen: v6e
topology: v6e:2x2x1
jax: 0.10.0
libtpu: 0.0.40
codegen_flags: <defaults>
</compile_context>

<pallas_src>
import jax
import jax.numpy as jnp
from jax.experimental import pallas as pl
from jax.experimental.pallas import tpu as pltpu

# Problem sizes implied by the module (fc1 = Linear(32*4*8, .) behind a
# stride-2 conv => 8x16 input feature map with 256 channels).
_H, _W = 8, 16
_HP, _WP = _H + 2, _W + 2            # padded spatial extents
_M = _H * _W                          # 128 output pixels per image (stride 1)
_C0, _C1, _C2, _C3 = 256, 128, 64, 32
_H2, _W2 = _H // 2, _W // 2           # 4, 8 (stride-2 output)
_NFLAT = _H2 * _W2 * _C3              # 1024
_NH1 = 128                            # fc1 hidden, padded 100 -> 128
_NOUT = 2


# ---------------------------------------------------------------------------
# Fused kernel (one grid step == one image)
# ---------------------------------------------------------------------------
def _decoder_kernel(x_ref, w1_ref, b1_ref, w2_ref, b2_ref, w3_ref, b3_ref,
                    wf1_ref, bf1_ref, wf2_ref, bf2_ref,
                    o_ref,
                    xp1, pt1, xp2, pt2, xp3, pt3, flat):
    f32 = jnp.float32
    bf16 = jnp.bfloat16

    def conv3x3(xpad_ref, patch_ref, w_ref, b_ref):
        """3x3 stride-1 'same' conv + bias + ReLU as one im2col matmul."""
        cin = xpad_ref.shape[-1]
        for dy in range(3):
            for dx in range(3):
                tap = dy * 3 + dx
                win = xpad_ref[dy:dy + _H, dx:dx + _W, :]          # (8,16,cin) f32
                patch_ref[:, tap * cin:(tap + 1) * cin] = (
                    win.reshape(_M, cin).astype(bf16))
        acc = jnp.dot(patch_ref[...], w_ref[...],
                      preferred_element_type=f32)                   # (128, cout)
        return jnp.maximum(acc + b_ref[...], 0.0)

    # ---- conv1: 256 -> 128 -------------------------------------------------
    xp1[...] = jnp.zeros_like(xp1)
    xp1[1:1 + _H, 1:1 + _W, :] = x_ref[0]
    a1 = conv3x3(xp1, pt1, w1_ref, b1_ref)                          # (128, 128)

    # ---- conv2: 128 -> 64 ---------------------------------------------------
    xp2[...] = jnp.zeros_like(xp2)
    xp2[1:1 + _H, 1:1 + _W, :] = a1.reshape(_H, _W, _C1)
    a2 = conv3x3(xp2, pt2, w2_ref, b2_ref)                          # (128, 64)

    # ---- conv3: 64 -> 32 (stride-2 folded into the subsample below) --------
    xp3[...] = jnp.zeros_like(xp3)
    xp3[1:1 + _H, 1:1 + _W, :] = a2.reshape(_H, _W, _C2)
    a3 = conv3x3(xp3, pt3, w3_ref, b3_ref)                          # (128, 32)

    # stride-2 subsample + flatten: flat[(oy*8+ox)*32 + c] = a3[2oy*16+2ox, c].
    # fc1's rows were permuted at init so this order matches torch's
    # NCHW x.view(B, -1).
    for oy in range(_H2):
        for ox in range(_W2):
            k = oy * _W2 + ox
            r = (2 * oy) * _W + (2 * ox)
            flat[0:1, k * _C3:(k + 1) * _C3] = a3[r:r + 1, :]

    # ---- MLP head: relu(fc1) -> fc2 -> sigmoid ------------------------------
    h = jnp.dot(flat[...].astype(bf16), wf1_ref[...],
                preferred_element_type=f32)                         # (1, 128)
    h = jnp.maximum(h + bf1_ref[...], 0.0)
    y = jnp.dot(h.astype(bf16), wf2_ref[...],
                preferred_element_type=f32) + bf2_ref[...]          # (1, 2)
    o_ref[0] = 1.0 / (1.0 + jnp.exp(-y))


# ---------------------------------------------------------------------------
# Wrapper
# ---------------------------------------------------------------------------
def decoder_forward(params, x_nchw, short_cut=None):
    del short_cut                                   # unused (as in torch forward)
    B = x_nchw.shape[0]
    x = jnp.transpose(x_nchw, (0, 2, 3, 1)).astype(jnp.float32)     # NCHW -> NHWC

    def full(shape):
        return pl.BlockSpec(shape, lambda b: (0,) * len(shape))

    grid_spec = pltpu.PrefetchScalarGridSpec(
        num_scalar_prefetch=0,
        grid=(B,),
        in_specs=[
            pl.BlockSpec((1, _H, _W, _C0), lambda b: (b, 0, 0, 0)),  # x
            full((9 * _C0, _C1)), full((1, _C1)),                     # conv1
            full((9 * _C1, _C2)), full((1, _C2)),                     # conv2
            full((9 * _C2, _C3)), full((1, _C3)),                     # conv3
            full((_NFLAT, _NH1)), full((1, _NH1)),                    # fc1
            full((_NH1, _NOUT)), full((1, _NOUT)),                    # fc2
        ],
        out_specs=pl.BlockSpec((1, 1, _NOUT), lambda b: (b, 0, 0)),
        scratch_shapes=[
            pltpu.VMEM((_HP, _WP, _C0), jnp.float32),    # xp1 (padded act)
            pltpu.VMEM((_M, 9 * _C0), jnp.bfloat16),     # pt1 (im2col)
            pltpu.VMEM((_HP, _WP, _C1), jnp.float32),    # xp2
            pltpu.VMEM((_M, 9 * _C1), jnp.bfloat16),     # pt2
            pltpu.VMEM((_HP, _WP, _C2), jnp.float32),    # xp3
            pltpu.VMEM((_M, 9 * _C2), jnp.bfloat16),     # pt3
            pltpu.VMEM((1, _NFLAT), jnp.float32),        # flattened fc input
        ],
    )

    out = pl.pallas_call(
        _decoder_kernel,
        out_shape=jax.ShapeDtypeStruct((B, 1, _NOUT), jnp.float32),
        grid_spec=grid_spec,
        compiler_params=pltpu.CompilerParams(
            dimension_semantics=("parallel",)),
    )(x,
      params["cw1"], params["cb1"],
      params["cw2"], params["cb2"],
      params["cw3"], params["cb3"],
      params["fw1"], params["fb1"],
      params["fw2"], params["fb2"])
    return out.reshape(B, _NOUT)


# ---------------------------------------------------------------------------
# Parameters
# ---------------------------------------------------------------------------
def init_torch_style_params(key):
    """Fresh random params in (transposed-)torch layouts: conv HWIO
    (= torch OIHW transposed (2,3,1,0)), fc (in_features, out_features)
    (= torch weight.T). Scaled-normal init, not torch's kaiming_uniform."""
    ks = jax.random.split(key, 10)

    def conv_w(k, cin, cout):
        return jax.random.normal(k, (3, 3, cin, cout), jnp.float32) / jnp.sqrt(9.0 * cin)

    def lin_w(k, fin, fout):
        return jax.random.normal(k, (fin, fout), jnp.float32) / jnp.sqrt(float(fin))

    return {
        "cw1": conv_w(ks[0], _C0, _C1), "cb1": jax.random.normal(ks[1], (_C1,)) * 0.01,
        "cw2": conv_w(ks[2], _C1, _C2), "cb2": jax.random.normal(ks[3], (_C2,)) * 0.01,
        "cw3": conv_w(ks[4], _C2, _C3), "cb3": jax.random.normal(ks[5], (_C3,)) * 0.01,
        "fw1": lin_w(ks[6], _NFLAT, 100), "fb1": jax.random.normal(ks[7], (100,)) * 0.01,
        "fw2": lin_w(ks[8], 100, _NOUT), "fb2": jax.random.normal(ks[9], (_NOUT,)) * 0.01,
    }


def prepare_params(tp):
    """One-time weight folding (zero runtime cost):
       * conv HWIO (3,3,Cin,Cout) -> im2col rows (9*Cin, Cout), bf16
       * fc1 rows permuted from torch NCHW-flatten order (c*32 + h*8 + w) to the
         kernel's (h*8 + w)*32 + c order; out dim padded 100 -> 128 (zeros)
       * fc2 input rows padded 100 -> 128 with zeros; biases kept f32, (1, C)."""
    bf16 = jnp.bfloat16

    def conv_w(w):
        kh, kw, cin, cout = w.shape
        return w.reshape(kh * kw * cin, cout).astype(bf16)

    fw1 = tp["fw1"].reshape(_C3, _H2, _W2, 100).transpose(1, 2, 0, 3).reshape(_NFLAT, 100)
    fw1 = jnp.pad(fw1, ((0, 0), (0, _NH1 - 100))).astype(bf16)
    fb1 = jnp.pad(tp["fb1"], (0, _NH1 - 100)).reshape(1, _NH1).astype(jnp.float32)
    fw2 = jnp.pad(tp["fw2"], ((0, _NH1 - 100), (0, 0))).astype(bf16)

    return {
        "cw1": conv_w(tp["cw1"]), "cb1": tp["cb1"].reshape(1, _C1),
        "cw2": conv_w(tp["cw2"]), "cb2": tp["cb2"].reshape(1, _C2),
        "cw3": conv_w(tp["cw3"]), "cb3": tp["cb3"].reshape(1, _C3),
        "fw1": fw1, "fb1": fb1,
        "fw2": fw2, "fb2": tp["fb2"].reshape(1, _NOUT),
    }


# ---------------------------------------------------------------------------
# Plain-XLA reference (torch semantics) for a numerical self-check
# ---------------------------------------------------------------------------
def reference_forward(tp, x_nchw, short_cut=None):
    del short_cut
    x = jnp.transpose(x_nchw, (0, 2, 3, 1))

    def conv(x, w, b, stride):
        y = jax.lax.conv_general_dilated(
            x, w, window_strides=(stride, stride), padding=((1, 1), (1, 1)),
            dimension_numbers=("NHWC", "HWIO", "NHWC"))
        return jax.nn.relu(y + b)

    x = conv(x, tp["cw1"], tp["cb1"], 1)
    x = conv(x, tp["cw2"], tp["cb2"], 1)
    x = conv(x, tp["cw3"], tp["cb3"], 2)
    x = jnp.transpose(x, (0, 3, 1, 2)).reshape(x.shape[0], -1)   # torch x.view(B,-1)
    x = jax.nn.relu(x @ tp["fw1"] + tp["fb1"])
    x = x @ tp["fw2"] + tp["fb2"]
    return jax.nn.sigmoid(x)


if __name__ == "__main__":
    key = jax.random.PRNGKey(0)
    k_p, k_x, k_sc = jax.random.split(key, 3)

    torch_params = init_torch_style_params(k_p)
    params = prepare_params(torch_params)

    x = jax.random.normal(k_x, (2, _C0, _H, _W), jnp.float32)          # NCHW
    short_cut = jax.random.normal(k_sc, (2, 64, _H, _W), jnp.float32)  # unused

    out = jax.jit(decoder_forward)(params, x, short_cut)
    out = jax.block_until_ready(out)

    assert out.shape == (2, _NOUT) and out.dtype == jnp.float32
    assert bool(jnp.all((out >= 0.0) & (out <= 1.0)))

    # bf16 MXU operands in the kernel (f32 accumulation) => loose tolerance.
    ref = reference_forward(torch_params, x)
    err = float(jnp.max(jnp.abs(out - ref)))
    assert err < 5e-2, f"kernel vs reference mismatch: max abs err = {err}"

    print("KERNEL_OK")
</pallas_src>

<mosaic_0001>
module attributes {stable_mosaic.version = 11 : i64} {
  func.func @_decoder_kernel(%arg0: i32, %arg1: memref<1x8x16x256xf32, #tpu.memory_space<vmem>>, %arg2: memref<2304x128xbf16, #tpu.memory_space<vmem>>, %arg3: memref<1x128xf32, #tpu.memory_space<vmem>>, %arg4: memref<1152x64xbf16, #tpu.memory_space<vmem>>, %arg5: memref<1x64xf32, #tpu.memory_space<vmem>>, %arg6: memref<576x32xbf16, #tpu.memory_space<vmem>>, %arg7: memref<1x32xf32, #tpu.memory_space<vmem>>, %arg8: memref<1024x128xbf16, #tpu.memory_space<vmem>>, %arg9: memref<1x128xf32, #tpu.memory_space<vmem>>, %arg10: memref<128x2xbf16, #tpu.memory_space<vmem>>, %arg11: memref<1x2xf32, #tpu.memory_space<vmem>>, %arg12: memref<1x1x2xf32, #tpu.memory_space<vmem>>, %arg13: memref<10x18x256xf32, #tpu.memory_space<vmem>>, %arg14: memref<128x2304xbf16, #tpu.memory_space<vmem>>, %arg15: memref<10x18x128xf32, #tpu.memory_space<vmem>>, %arg16: memref<128x1152xbf16, #tpu.memory_space<vmem>>, %arg17: memref<10x18x64xf32, #tpu.memory_space<vmem>>, %arg18: memref<128x576xbf16, #tpu.memory_space<vmem>>, %arg19: memref<1x1024xf32, #tpu.memory_space<vmem>>) attributes {dimension_semantics = [#tpu.dimension_semantics<parallel>], iteration_bounds = array<i64: 2>, scalar_prefetch = 0 : i64, scratch_operands = 7 : i64, tpu.core_type = #tpu.core_type<tc>, window_params = [{transform_indices = @transform_0, window_bounds = array<i64: 1, 8, 16, 256>}, {pipeline_mode = #tpu.pipeline_mode<synchronous>, transform_indices = @transform_1, window_bounds = array<i64: 2304, 128>}, {pipeline_mode = #tpu.pipeline_mode<synchronous>, transform_indices = @transform_2, window_bounds = array<i64: 1, 128>}, {pipeline_mode = #tpu.pipeline_mode<synchronous>, transform_indices = @transform_3, window_bounds = array<i64: 1152, 64>}, {pipeline_mode = #tpu.pipeline_mode<synchronous>, transform_indices = @transform_4, window_bounds = array<i64: 1, 64>}, {pipeline_mode = #tpu.pipeline_mode<synchronous>, transform_indices = @transform_5, window_bounds = array<i64: 576, 32>}, {pipeline_mode = #tpu.pipeline_mode<synchronous>, transform_indices = @transform_6, window_bounds = array<i64: 1, 32>}, {pipeline_mode = #tpu.pipeline_mode<synchronous>, transform_indices = @transform_7, window_bounds = array<i64: 1024, 128>}, {pipeline_mode = #tpu.pipeline_mode<synchronous>, transform_indices = @transform_8, window_bounds = array<i64: 1, 128>}, {pipeline_mode = #tpu.pipeline_mode<synchronous>, transform_indices = @transform_9, window_bounds = array<i64: 128, 2>}, {pipeline_mode = #tpu.pipeline_mode<synchronous>, transform_indices = @transform_10, window_bounds = array<i64: 1, 2>}, {transform_indices = @transform_11, window_bounds = array<i64: 1, 1, 2>}]} {
    %cst = arith.constant 0.000000e+00 : f32
    %0 = vector.broadcast %cst : f32 to vector<10x18x256xf32>
    %c0 = arith.constant 0 : index
    %c0_0 = arith.constant 0 : index
    %c0_1 = arith.constant 0 : index
    %1 = vector.load %arg13[%c0, %c0_0, %c0_1] : memref<10x18x256xf32, #tpu.memory_space<vmem>>, vector<10x18x256xf32>
    tpu.vector_store %arg13[%c0, %c0_0, %c0_1], %0 {strides = array<i32>} : memref<10x18x256xf32, #tpu.memory_space<vmem>>, vector<10x18x256xf32>,
    %c0_2 = arith.constant 0 : index
    %c0_3 = arith.constant 0 : index
    %c0_4 = arith.constant 0 : index
    %c0_5 = arith.constant 0 : index
    %2 = vector.load %arg1[%c0_2, %c0_3, %c0_4, %c0_5] : memref<1x8x16x256xf32, #tpu.memory_space<vmem>>, vector<1x8x16x256xf32>
    %3 = vector.shape_cast %2 : vector<1x8x16x256xf32> to vector<8x16x256xf32>
    %c1 = arith.constant 1 : index
    %c1_6 = arith.constant 1 : index
    %c0_7 = arith.constant 0 : index
    %4 = vector.load %arg13[%c1, %c1_6, %c0_7] : memref<10x18x256xf32, #tpu.memory_space<vmem>>, vector<8x16x256xf32>
    tpu.vector_store %arg13[%c1, %c1_6, %c0_7], %3 {strides = array<i32>} : memref<10x18x256xf32, #tpu.memory_space<vmem>>, vector<8x16x256xf32>,
    %c0_8 = arith.constant 0 : index
    %c0_9 = arith.constant 0 : index
    %c0_10 = arith.constant 0 : index
    %5 = vector.load %arg13[%c0_8, %c0_9, %c0_10] : memref<10x18x256xf32, #tpu.memory_space<vmem>>, vector<8x16x256xf32>
    %6 = vector.shape_cast %5 : vector<8x16x256xf32> to vector<128x256xf32>
    %7 = arith.truncf %6 : vector<128x256xf32> to vector<128x256xbf16>
    %c0_11 = arith.constant 0 : index
    %c0_12 = arith.constant 0 : index
    %8 = vector.load %arg14[%c0_11, %c0_12] : memref<128x2304xbf16, #tpu.memory_space<vmem>>, vector<128x256xbf16>
    tpu.vector_store %arg14[%c0_11, %c0_12], %7 {strides = array<i32>} : memref<128x2304xbf16, #tpu.memory_space<vmem>>, vector<128x256xbf16>,
    %c0_13 = arith.constant 0 : index
    %c1_14 = arith.constant 1 : index
    %c0_15 = arith.constant 0 : index
    %9 = vector.load %arg13[%c0_13, %c1_14, %c0_15] : memref<10x18x256xf32, #tpu.memory_space<vmem>>, vector<8x16x256xf32>
    %10 = vector.shape_cast %9 : vector<8x16x256xf32> to vector<128x256xf32>
    %11 = arith.truncf %10 : vector<128x256xf32> to vector<128x256xbf16>
    %c0_16 = arith.constant 0 : index
    %c256 = arith.constant 256 : index
    %12 = vector.load %arg14[%c0_16, %c256] : memref<128x2304xbf16, #tpu.memory_space<vmem>>, vector<128x256xbf16>
    tpu.vector_store %arg14[%c0_16, %c256], %11 {strides = array<i32>} : memref<128x2304xbf16, #tpu.memory_space<vmem>>, vector<128x256xbf16>,
    %c0_17 = arith.constant 0 : index
    %c2 = arith.constant 2 : index
    %c0_18 = arith.constant 0 : index
    %13 = vector.load %arg13[%c0_17, %c2, %c0_18] : memref<10x18x256xf32, #tpu.memory_space<vmem>>, vector<8x16x256xf32>
    %14 = vector.shape_cast %13 : vector<8x16x256xf32> to vector<128x256xf32>
    %15 = arith.truncf %14 : vector<128x256xf32> to vector<128x256xbf16>
    %c0_19 = arith.constant 0 : index
    %c512 = arith.constant 512 : index
    %16 = vector.load %arg14[%c0_19, %c512] : memref<128x2304xbf16, #tpu.memory_space<vmem>>, vector<128x256xbf16>
    tpu.vector_store %arg14[%c0_19, %c512], %15 {strides = array<i32>} : memref<128x2304xbf16, #tpu.memory_space<vmem>>, vector<128x256xbf16>,
    %c1_20 = arith.constant 1 : index
    %c0_21 = arith.constant 0 : index
    %c0_22 = arith.constant 0 : index
    %17 = vector.load %arg13[%c1_20, %c0_21, %c0_22] : memref<10x18x256xf32, #tpu.memory_space<vmem>>, vector<8x16x256xf32>
    %18 = vector.shape_cast %17 : vector<8x16x256xf32> to vector<128x256xf32>
    %19 = arith.truncf %18 : vector<128x256xf32> to vector<128x256xbf16>
    %c0_23 = arith.constant 0 : index
    %c768 = arith.constant 768 : index
    %20 = vector.load %arg14[%c0_23, %c768] : memref<128x2304xbf16, #tpu.memory_space<vmem>>, vector<128x256xbf16>
    tpu.vector_store %arg14[%c0_23, %c768], %19 {strides = array<i32>} : memref<128x2304xbf16, #tpu.memory_space<vmem>>, vector<128x256xbf16>,
    %c1_24 = arith.constant 1 : index
    %c1_25 = arith.constant 1 : index
    %c0_26 = arith.constant 0 : index
    %21 = vector.load %arg13[%c1_24, %c1_25, %c0_26] : memref<10x18x256xf32, #tpu.memory_space<vmem>>, vector<8x16x256xf32>
    %22 = vector.shape_cast %21 : vector<8x16x256xf32> to vector<128x256xf32>
    %23 = arith.truncf %22 : vector<128x256xf32> to vector<128x256xbf16>
    %c0_27 = arith.constant 0 : index
    %c1024 = arith.constant 1024 : index
    %24 = vector.load %arg14[%c0_27, %c1024] : memref<128x2304xbf16, #tpu.memory_space<vmem>>, vector<128x256xbf16>
    tpu.vector_store %arg14[%c0_27, %c1024], %23 {strides = array<i32>} : memref<128x2304xbf16, #tpu.memory_space<vmem>>, vector<128x256xbf16>,
    %c1_28 = arith.constant 1 : index
    %c2_29 = arith.constant 2 : index
    %c0_30 = arith.constant 0 : index
    %25 = vector.load %arg13[%c1_28, %c2_29, %c0_30] : memref<10x18x256xf32, #tpu.memory_space<vmem>>, vector<8x16x256xf32>
    %26 = vector.shape_cast %25 : vector<8x16x256xf32> to vector<128x256xf32>
    %27 = arith.truncf %26 : vector<128x256xf32> to vector<128x256xbf16>
    %c0_31 = arith.constant 0 : index
    %c1280 = arith.constant 1280 : index
    %28 = vector.load %arg14[%c0_31, %c1280] : memref<128x2304xbf16, #tpu.memory_space<vmem>>, vector<128x256xbf16>
    tpu.vector_store %arg14[%c0_31, %c1280], %27 {strides = array<i32>} : memref<128x2304xbf16, #tpu.memory_space<vmem>>, vector<128x256xbf16>,
    %c2_32 = arith.constant 2 : index
    %c0_33 = arith.constant 0 : index
    %c0_34 = arith.constant 0 : index
    %29 = vector.load %arg13[%c2_32, %c0_33, %c0_34] : memref<10x18x256xf32, #tpu.memory_space<vmem>>, vector<8x16x256xf32>
    %30 = vector.shape_cast %29 : vector<8x16x256xf32> to vector<128x256xf32>
    %31 = arith.truncf %30 : vector<128x256xf32> to vector<128x256xbf16>
    %c0_35 = arith.constant 0 : index
    %c1536 = arith.constant 1536 : index
    %32 = vector.load %arg14[%c0_35, %c1536] : memref<128x2304xbf16, #tpu.memory_space<vmem>>, vector<128x256xbf16>
    tpu.vector_store %arg14[%c0_35, %c1536], %31 {strides = array<i32>} : memref<128x2304xbf16, #tpu.memory_space<vmem>>, vector<128x256xbf16>,
    %c2_36 = arith.constant 2 : index
    %c1_37 = arith.constant 1 : index
    %c0_38 = arith.constant 0 : index
    %33 = vector.load %arg13[%c2_36, %c1_37, %c0_38] : memref<10x18x256xf32, #tpu.memory_space<vmem>>, vector<8x16x256xf32>
    %34 = vector.shape_cast %33 : vector<8x16x256xf32> to vector<128x256xf32>
    %35 = arith.truncf %34 : vector<128x256xf32> to vector<128x256xbf16>
    %c0_39 = arith.constant 0 : index
    %c1792 = arith.constant 1792 : index
    %36 = vector.load %arg14[%c0_39, %c1792] : memref<128x2304xbf16, #tpu.memory_space<vmem>>, vector<128x256xbf16>
    tpu.vector_store %arg14[%c0_39, %c1792], %35 {strides = array<i32>} : memref<128x2304xbf16, #tpu.memory_space<vmem>>, vector<128x256xbf16>,
    %c2_40 = arith.constant 2 : index
    %c2_41 = arith.constant 2 : index
    %c0_42 = arith.constant 0 : index
    %37 = vector.load %arg13[%c2_40, %c2_41, %c0_42] : memref<10x18x256xf32, #tpu.memory_space<vmem>>, vector<8x16x256xf32>
    %38 = vector.shape_cast %37 : vector<8x16x256xf32> to vector<128x256xf32>
    %39 = arith.truncf %38 : vector<128x256xf32> to vector<128x256xbf16>
    %c0_43 = arith.constant 0 : index
    %c2048 = arith.constant 2048 : index
    %40 = vector.load %arg14[%c0_43, %c2048] : memref<128x2304xbf16, #tpu.memory_space<vmem>>, vector<128x256xbf16>
    tpu.vector_store %arg14[%c0_43, %c2048], %39 {strides = array<i32>} : memref<128x2304xbf16, #tpu.memory_space<vmem>>, vector<128x256xbf16>,
    %c0_44 = arith.constant 0 : index
    %c0_45 = arith.constant 0 : index
    %41 = vector.load %arg14[%c0_44, %c0_45] : memref<128x2304xbf16, #tpu.memory_space<vmem>>, vector<128x2304xbf16>
    %c0_46 = arith.constant 0 : index
    %c0_47 = arith.constant 0 : index
    %42 = vector.load %arg2[%c0_46, %c0_47] : memref<2304x128xbf16, #tpu.memory_space<vmem>>, vector<2304x128xbf16>
    %cst_48 = arith.constant dense<0.000000e+00> : vector<128x128xf32>
    %43 = tpu.matmul %41, %42, %cst_48 {dimension_numbers = #tpu.dot_dimension_numbers<[1], [0], [0], [1], [0, 0, 1, 1], [], []>} : vector<128x2304xbf16>, vector<2304x128xbf16>, vector<128x128xf32> -> vector<128x128xf32>
    %c0_49 = arith.constant 0 : index
    %c0_50 = arith.constant 0 : index
    %44 = vector.load %arg3[%c0_49, %c0_50] : memref<1x128xf32, #tpu.memory_space<vmem>>, vector<1x128xf32>
    %45 = vector.broadcast %44 : vector<1x128xf32> to vector<128x128xf32>
    %46 = arith.addf %43, %45 : vector<128x128xf32>
    %cst_51 = arith.constant 0.000000e+00 : f32
    %47 = vector.broadcast %cst_51 : f32 to vector<128x128xf32>
    %48 = arith.maximumf %46, %47 : vector<128x128xf32>
    %cst_52 = arith.constant 0.000000e+00 : f32
    %49 = vector.broadcast %cst_52 : f32 to vector<10x18x128xf32>
    %c0_53 = arith.constant 0 : index
    %c0_54 = arith.constant 0 : index
    %c0_55 = arith.constant 0 : index
    %50 = vector.load %arg15[%c0_53, %c0_54, %c0_55] : memref<10x18x128xf32, #tpu.memory_space<vmem>>, vector<10x18x128xf32>
    tpu.vector_store %arg15[%c0_53, %c0_54, %c0_55], %49 {strides = array<i32>} : memref<10x18x128xf32, #tpu.memory_space<vmem>>, vector<10x18x128xf32>,
    %51 = vector.shape_cast %48 : vector<128x128xf32> to vector<8x16x128xf32>
    %c1_56 = arith.constant 1 : index
    %c1_57 = arith.constant 1 : index
    %c0_58 = arith.constant 0 : index
    %52 = vector.load %arg15[%c1_56, %c1_57, %c0_58] : memref<10x18x128xf32, #tpu.memory_space<vmem>>, vector<8x16x128xf32>
    tpu.vector_store %arg15[%c1_56, %c1_57, %c0_58], %51 {strides = array<i32>} : memref<10x18x128xf32, #tpu.memory_space<vmem>>, vector<8x16x128xf32>,
    %c0_59 = arith.constant 0 : index
    %c0_60 = arith.constant 0 : index
    %c0_61 = arith.constant 0 : index
    %53 = vector.load %arg15[%c0_59, %c0_60, %c0_61] : memref<10x18x128xf32, #tpu.memory_space<vmem>>, vector<8x16x128xf32>
    %54 = vector.shape_cast %53 : vector<8x16x128xf32> to vector<128x128xf32>
    %55 = arith.truncf %54 : vector<128x128xf32> to vector<128x128xbf16>
    %c0_62 = arith.constant 0 : index
    %c0_63 = arith.constant 0 : index
    %56 = vector.load %arg16[%c0_62, %c0_63] : memref<128x1152xbf16, #tpu.memory_space<vmem>>, vector<128x128xbf16>
    tpu.vector_store %arg16[%c0_62, %c0_63], %55 {strides = array<i32>} : memref<128x1152xbf16, #tpu.memory_space<vmem>>, vector<128x128xbf16>,
    %c0_64 = arith.constant 0 : index
    %c1_65 = arith.constant 1 : index
    %c0_66 = arith.constant 0 : index
    %57 = vector.load %arg15[%c0_64, %c1_65, %c0_66] : memref<10x18x128xf32, #tpu.memory_space<vmem>>, vector<8x16x128xf32>
    %58 = vector.shape_cast %57 : vector<8x16x128xf32> to vector<128x128xf32>
    %59 = arith.truncf %58 : vector<128x128xf32> to vector<128x128xbf16>
    %c0_67 = arith.constant 0 : index
    %c128 = arith.constant 128 : index
    %60 = vector.load %arg16[%c0_67, %c128] : memref<128x1152xbf16, #tpu.memory_space<vmem>>, vector<128x128xbf16>
    tpu.vector_store %arg16[%c0_67, %c128], %59 {strides = array<i32>} : memref<128x1152xbf16, #tpu.memory_space<vmem>>, vector<128x128xbf16>,
    %c0_68 = arith.constant 0 : index
    %c2_69 = arith.constant 2 : index
    %c0_70 = arith.constant 0 : index
    %61 = vector.load %arg15[%c0_68, %c2_69, %c0_70] : memref<10x18x128xf32, #tpu.memory_space<vmem>>, vector<8x16x128xf32>
    %62 = vector.shape_cast %61 : vector<8x16x128xf32> to vector<128x128xf32>
    %63 = arith.truncf %62 : vector<128x128xf32> to vector<128x128xbf16>
    %c0_71 = arith.constant 0 : index
    %c256_72 = arith.constant 256 : index
    %64 = vector.load %arg16[%c0_71, %c256_72] : memref<128x1152xbf16, #tpu.memory_space<vmem>>, vector<128x128xbf16>
    tpu.vector_store %arg16[%c0_71, %c256_72], %63 {strides = array<i32>} : memref<128x1152xbf16, #tpu.memory_space<vmem>>, vector<128x128xbf16>,
    %c1_73 = arith.constant 1 : index
    %c0_74 = arith.constant 0 : index
    %c0_75 = arith.constant 0 : index
    %65 = vector.load %arg15[%c1_73, %c0_74, %c0_75] : memref<10x18x128xf32, #tpu.memory_space<vmem>>, vector<8x16x128xf32>
    %66 = vector.shape_cast %65 : vector<8x16x128xf32> to vector<128x128xf32>
    %67 = arith.truncf %66 : vector<128x128xf32> to vector<128x128xbf16>
    %c0_76 = arith.constant 0 : index
    %c384 = arith.constant 384 : index
    %68 = vector.load %arg16[%c0_76, %c384] : memref<128x1152xbf16, #tpu.memory_space<vmem>>, vector<128x128xbf16>
    tpu.vector_store %arg16[%c0_76, %c384], %67 {strides = array<i32>} : memref<128x1152xbf16, #tpu.memory_space<vmem>>, vector<128x128xbf16>,
    %c1_77 = arith.constant 1 : index
    %c1_78 = arith.constant 1 : index
    %c0_79 = arith.constant 0 : index
    %69 = vector.load %arg15[%c1_77, %c1_78, %c0_79] : memref<10x18x128xf32, #tpu.memory_space<vmem>>, vector<8x16x128xf32>
    %70 = vector.shape_cast %69 : vector<8x16x128xf32> to vector<128x128xf32>
    %71 = arith.truncf %70 : vector<128x128xf32> to vector<128x128xbf16>
    %c0_80 = arith.constant 0 : index
    %c512_81 = arith.constant 512 : index
    %72 = vector.load %arg16[%c0_80, %c512_81] : memref<128x1152xbf16, #tpu.memory_space<vmem>>, vector<128x128xbf16>
    tpu.vector_store %arg16[%c0_80, %c512_81], %71 {strides = array<i32>} : memref<128x1152xbf16, #tpu.memory_space<vmem>>, vector<128x128xbf16>,
    %c1_82 = arith.constant 1 : index
    %c2_83 = arith.constant 2 : index
    %c0_84 = arith.constant 0 : index
    %73 = vector.load %arg15[%c1_82, %c2_83, %c0_84] : memref<10x18x128xf32, #tpu.memory_space<vmem>>, vector<8x16x128xf32>
    %74 = vector.shape_cast %73 : vector<8x16x128xf32> to vector<128x128xf32>
    %75 = arith.truncf %74 : vector<128x128xf32> to vector<128x128xbf16>
    %c0_85 = arith.constant 0 : index
    %c640 = arith.constant 640 : index
    %76 = vector.load %arg16[%c0_85, %c640] : memref<128x1152xbf16, #tpu.memory_space<vmem>>, vector<128x128xbf16>
    tpu.vector_store %arg16[%c0_85, %c640], %75 {strides = array<i32>} : memref<128x1152xbf16, #tpu.memory_space<vmem>>, vector<128x128xbf16>,
    %c2_86 = arith.constant 2 : index
    %c0_87 = arith.constant 0 : index
    %c0_88 = arith.constant 0 : index
    %77 = vector.load %arg15[%c2_86, %c0_87, %c0_88] : memref<10x18x128xf32, #tpu.memory_space<vmem>>, vector<8x16x128xf32>
    %78 = vector.shape_cast %77 : vector<8x16x128xf32> to vector<128x128xf32>
    %79 = arith.truncf %78 : vector<128x128xf32> to vector<128x128xbf16>
    %c0_89 = arith.constant 0 : index
    %c768_90 = arith.constant 768 : index
    %80 = vector.load %arg16[%c0_89, %c768_90] : memref<128x1152xbf16, #tpu.memory_space<vmem>>, vector<128x128xbf16>
    tpu.vector_store %arg16[%c0_89, %c768_90], %79 {strides = array<i32>} : memref<128x1152xbf16, #tpu.memory_space<vmem>>, vector<128x128xbf16>,
    %c2_91 = arith.constant 2 : index
    %c1_92 = arith.constant 1 : index
    %c0_93 = arith.constant 0 : index
    %81 = vector.load %arg15[%c2_91, %c1_92, %c0_93] : memref<10x18x128xf32, #tpu.memory_space<vmem>>, vector<8x16x128xf32>
    %82 = vector.shape_cast %81 : vector<8x16x128xf32> to vector<128x128xf32>
    %83 = arith.truncf %82 : vector<128x128xf32> to vector<128x128xbf16>
    %c0_94 = arith.constant 0 : index
    %c896 = arith.constant 896 : index
    %84 = vector.load %arg16[%c0_94, %c896] : memref<128x1152xbf16, #tpu.memory_space<vmem>>, vector<128x128xbf16>
    tpu.vector_store %arg16[%c0_94, %c896], %83 {strides = array<i32>} : memref<128x1152xbf16, #tpu.memory_space<vmem>>, vector<128x128xbf16>,
    %c2_95 = arith.constant 2 : index
    %c2_96 = arith.constant 2 : index
    %c0_97 = arith.constant 0 : index
    %85 = vector.load %arg15[%c2_95, %c2_96, %c0_97] : memref<10x18x128xf32, #tpu.memory_space<vmem>>, vector<8x16x128xf32>
    %86 = vector.shape_cast %85 : vector<8x16x128xf32> to vector<128x128xf32>
    %87 = arith.truncf %86 : vector<128x128xf32> to vector<128x128xbf16>
    %c0_98 = arith.constant 0 : index
    %c1024_99 = arith.constant 1024 : index
    %88 = vector.load %arg16[%c0_98, %c1024_99] : memref<128x1152xbf16, #tpu.memory_space<vmem>>, vector<128x128xbf16>
    tpu.vector_store %arg16[%c0_98, %c1024_99], %87 {strides = array<i32>} : memref<128x1152xbf16, #tpu.memory_space<vmem>>, vector<128x128xbf16>,
    %c0_100 = arith.constant 0 : index
    %c0_101 = arith.constant 0 : index
    %89 = vector.load %arg16[%c0_100, %c0_101] : memref<128x1152xbf16, #tpu.memory_space<vmem>>, vector<128x1152xbf16>
    %c0_102 = arith.constant 0 : index
    %c0_103 = arith.constant 0 : index
    %90 = vector.load %arg4[%c0_102, %c0_103] : memref<1152x64xbf16, #tpu.memory_space<vmem>>, vector<1152x64xbf16>
    %cst_104 = arith.constant dense<0.000000e+00> : vector<128x64xf32>
    %91 = tpu.matmul %89, %90, %cst_104 {dimension_numbers = #tpu.dot_dimension_numbers<[1], [0], [0], [1], [0, 0, 1, 1], [], []>} : vector<128x1152xbf16>, vector<1152x64xbf16>, vector<128x64xf32> -> vector<128x64xf32>
    %c0_105 = arith.constant 0 : index
    %c0_106 = arith.constant 0 : index
    %92 = vector.load %arg5[%c0_105, %c0_106] : memref<1x64xf32, #tpu.memory_space<vmem>>, vector<1x64xf32>
    %93 = vector.broadcast %92 : vector<1x64xf32> to vector<128x64xf32>
    %94 = arith.addf %91, %93 : vector<128x64xf32>
    %cst_107 = arith.constant 0.000000e+00 : f32
    %95 = vector.broadcast %cst_107 : f32 to vector<128x64xf32>
    %96 = arith.maximumf %94, %95 : vector<128x64xf32>
    %cst_108 = arith.constant 0.000000e+00 : f32
    %97 = vector.broadcast %cst_108 : f32 to vector<10x18x64xf32>
    %c0_109 = arith.constant 0 : index
    %c0_110 = arith.constant 0 : index
    %c0_111 = arith.constant 0 : index
    %98 = vector.load %arg17[%c0_109, %c0_110, %c0_111] : memref<10x18x64xf32, #tpu.memory_space<vmem>>, vector<10x18x64xf32>
    tpu.vector_store %arg17[%c0_109, %c0_110, %c0_111], %97 {strides = array<i32>} : memref<10x18x64xf32, #tpu.memory_space<vmem>>, vector<10x18x64xf32>,
    %99 = vector.shape_cast %96 : vector<128x64xf32> to vector<8x16x64xf32>
    %c1_112 = arith.constant 1 : index
    %c1_113 = arith.constant 1 : index
    %c0_114 = arith.constant 0 : index
    %100 = vector.load %arg17[%c1_112, %c1_113, %c0_114] : memref<10x18x64xf32, #tpu.memory_space<vmem>>, vector<8x16x64xf32>
    tpu.vector_store %arg17[%c1_112, %c1_113, %c0_114], %99 {strides = array<i32>} : memref<10x18x64xf32, #tpu.memory_space<vmem>>, vector<8x16x64xf32>,
    %c0_115 = arith.constant 0 : index
    %c0_116 = arith.constant 0 : index
    %c0_117 = arith.constant 0 : index
    %101 = vector.load %arg17[%c0_115, %c0_116, %c0_117] : memref<10x18x64xf32, #tpu.memory_space<vmem>>, vector<8x16x64xf32>
    %102 = vector.shape_cast %101 : vector<8x16x64xf32> to vector<128x64xf32>
    %103 = arith.truncf %102 : vector<128x64xf32> to vector<128x64xbf16>
    %c0_118 = arith.constant 0 : index
    %c0_119 = arith.constant 0 : index
    %104 = vector.load %arg18[%c0_118, %c0_119] : memref<128x576xbf16, #tpu.memory_space<vmem>>, vector<128x64xbf16>
    tpu.vector_store %arg18[%c0_118, %c0_119], %103 {strides = array<i32>} : memref<128x576xbf16, #tpu.memory_space<vmem>>, vector<128x64xbf16>,
    %c0_120 = arith.constant 0 : index
    %c1_121 = arith.constant 1 : index
    %c0_122 = arith.constant 0 : index
    %105 = vector.load %arg17[%c0_120, %c1_121, %c0_122] : memref<10x18x64xf32, #tpu.memory_space<vmem>>, vector<8x16x64xf32>
    %106 = vector.shape_cast %105 : vector<8x16x64xf32> to vector<128x64xf32>
    %107 = arith.truncf %106 : vector<128x64xf32> to vector<128x64xbf16>
    %c0_123 = arith.constant 0 : index
    %c64 = arith.constant 64 : index
    %108 = vector.load %arg18[%c0_123, %c64] : memref<128x576xbf16, #tpu.memory_space<vmem>>, vector<128x64xbf16>
    tpu.vector_store %arg18[%c0_123, %c64], %107 {strides = array<i32>} : memref<128x576xbf16, #tpu.memory_space<vmem>>, vector<128x64xbf16>,
    %c0_124 = arith.constant 0 : index
    %c2_125 = arith.constant 2 : index
    %c0_126 = arith.constant 0 : index
    %109 = vector.load %arg17[%c0_124, %c2_125, %c0_126] : memref<10x18x64xf32, #tpu.memory_space<vmem>>, vector<8x16x64xf32>
    %110 = vector.shape_cast %109 : vector<8x16x64xf32> to vector<128x64xf32>
    %111 = arith.truncf %110 : vector<128x64xf32> to vector<128x64xbf16>
    %c0_127 = arith.constant 0 : index
    %c128_128 = arith.constant 128 : index
    %112 = vector.load %arg18[%c0_127, %c128_128] : memref<128x576xbf16, #tpu.memory_space<vmem>>, vector<128x64xbf16>
    tpu.vector_store %arg18[%c0_127, %c128_128], %111 {strides = array<i32>} : memref<128x576xbf16, #tpu.memory_space<vmem>>, vector<128x64xbf16>,
    %c1_129 = arith.constant 1 : index
    %c0_130 = arith.constant 0 : index
    %c0_131 = arith.constant 0 : index
    %113 = vector.load %arg17[%c1_129, %c0_130, %c0_131] : memref<10x18x64xf32, #tpu.memory_space<vmem>>, vector<8x16x64xf32>
    %114 = vector.shape_cast %113 : vector<8x16x64xf32> to vector<128x64xf32>
    %115 = arith.truncf %114 : vector<128x64xf32> to vector<128x64xbf16>
    %c0_132 = arith.constant 0 : index
    %c192 = arith.constant 192 : index
    %116 = vector.load %arg18[%c0_132, %c192] : memref<128x576xbf16, #tpu.memory_space<vmem>>, vector<128x64xbf16>
    tpu.vector_store %arg18[%c0_132, %c192], %115 {strides = array<i32>} : memref<128x576xbf16, #tpu.memory_space<vmem>>, vector<128x64xbf16>,
    %c1_133 = arith.constant 1 : index
    %c1_134 = arith.constant 1 : index
    %c0_135 = arith.constant 0 : index
    %117 = vector.load %arg17[%c1_133, %c1_134, %c0_135] : memref<10x18x64xf32, #tpu.memory_space<vmem>>, vector<8x16x64xf32>
    %118 = vector.shape_cast %117 : vector<8x16x64xf32> to vector<128x64xf32>
    %119 = arith.truncf %118 : vector<128x64xf32> to vector<128x64xbf16>
    %c0_136 = arith.constant 0 : index
    %c256_137 = arith.constant 256 : index
    %120 = vector.load %arg18[%c0_136, %c256_137] : memref<128x576xbf16, #tpu.memory_space<vmem>>, vector<128x64xbf16>
    tpu.vector_store %arg18[%c0_136, %c256_137], %119 {strides = array<i32>} : memref<128x576xbf16, #tpu.memory_space<vmem>>, vector<128x64xbf16>,
    %c1_138 = arith.constant 1 : index
    %c2_139 = arith.constant 2 : index
    %c0_140 = arith.constant 0 : index
    %121 = vector.load %arg17[%c1_138, %c2_139, %c0_140] : memref<10x18x64xf32, #tpu.memory_space<vmem>>, vector<8x16x64xf32>
    %122 = vector.shape_cast %121 : vector<8x16x64xf32> to vector<128x64xf32>
    %123 = arith.truncf %122 : vector<128x64xf32> to vector<128x64xbf16>
    %c0_141 = arith.constant 0 : index
    %c320 = arith.constant 320 : index
    %124 = vector.load %arg18[%c0_141, %c320] : memref<128x576xbf16, #tpu.memory_space<vmem>>, vector<128x64xbf16>
    tpu.vector_store %arg18[%c0_141, %c320], %123 {strides = array<i32>} : memref<128x576xbf16, #tpu.memory_space<vmem>>, vector<128x64xbf16>,
    %c2_142 = arith.constant 2 : index
    %c0_143 = arith.constant 0 : index
    %c0_144 = arith.constant 0 : index
    %125 = vector.load %arg17[%c2_142, %c0_143, %c0_144] : memref<10x18x64xf32, #tpu.memory_space<vmem>>, vector<8x16x64xf32>
    %126 = vector.shape_cast %125 : vector<8x16x64xf32> to vector<128x64xf32>
    %127 = arith.truncf %126 : vector<128x64xf32> to vector<128x64xbf16>
    %c0_145 = arith.constant 0 : index
    %c384_146 = arith.constant 384 : index
    %128 = vector.load %arg18[%c0_145, %c384_146] : memref<128x576xbf16, #tpu.memory_space<vmem>>, vector<128x64xbf16>
    tpu.vector_store %arg18[%c0_145, %c384_146], %127 {strides = array<i32>} : memref<128x576xbf16, #tpu.memory_space<vmem>>, vector<128x64xbf16>,
    %c2_147 = arith.constant 2 : index
    %c1_148 = arith.constant 1 : index
    %c0_149 = arith.constant 0 : index
    %129 = vector.load %arg17[%c2_147, %c1_148, %c0_149] : memref<10x18x64xf32, #tpu.memory_space<vmem>>, vector<8x16x64xf32>
    %130 = vector.shape_cast %129 : vector<8x16x64xf32> to vector<128x64xf32>
    %131 = arith.truncf %130 : vector<128x64xf32> to vector<128x64xbf16>
    %c0_150 = arith.constant 0 : index
    %c448 = arith.constant 448 : index
    %132 = vector.load %arg18[%c0_150, %c448] : memref<128x576xbf16, #tpu.memory_space<vmem>>, vector<128x64xbf16>
    tpu.vector_store %arg18[%c0_150, %c448], %131 {strides = array<i32>} : memref<128x576xbf16, #tpu.memory_space<vmem>>, vector<128x64xbf16>,
    %c2_151 = arith.constant 2 : index
    %c2_152 = arith.constant 2 : index
    %c0_153 = arith.constant 0 : index
    %133 = vector.load %arg17[%c2_151, %c2_152, %c0_153] : memref<10x18x64xf32, #tpu.memory_space<vmem>>, vector<8x16x64xf32>
    %134 = vector.shape_cast %133 : vector<8x16x64xf32> to vector<128x64xf32>
    %135 = arith.truncf %134 : vector<128x64xf32> to vector<128x64xbf16>
    %c0_154 = arith.constant 0 : index
    %c512_155 = arith.constant 512 : index
    %136 = vector.load %arg18[%c0_154, %c512_155] : memref<128x576xbf16, #tpu.memory_space<vmem>>, vector<128x64xbf16>
    tpu.vector_store %arg18[%c0_154, %c512_155], %135 {strides = array<i32>} : memref<128x576xbf16, #tpu.memory_space<vmem>>, vector<128x64xbf16>,
    %c0_156 = arith.constant 0 : index
    %c0_157 = arith.constant 0 : index
    %137 = vector.load %arg18[%c0_156, %c0_157] : memref<128x576xbf16, #tpu.memory_space<vmem>>, vector<128x576xbf16>
    %c0_158 = arith.constant 0 : index
    %c0_159 = arith.constant 0 : index
    %138 = vector.load %arg6[%c0_158, %c0_159] : memref<576x32xbf16, #tpu.memory_space<vmem>>, vector<576x32xbf16>
    %cst_160 = arith.constant dense<0.000000e+00> : vector<128x32xf32>
    %139 = tpu.matmul %137, %138, %cst_160 {dimension_numbers = #tpu.dot_dimension_numbers<[1], [0], [0], [1], [0, 0, 1, 1], [], []>} : vector<128x576xbf16>, vector<576x32xbf16>, vector<128x32xf32> -> vector<128x32xf32>
    %c0_161 = arith.constant 0 : index
    %c0_162 = arith.constant 0 : index
    %140 = vector.load %arg7[%c0_161, %c0_162] : memref<1x32xf32, #tpu.memory_space<vmem>>, vector<1x32xf32>
    %141 = vector.broadcast %140 : vector<1x32xf32> to vector<128x32xf32>
    %142 = arith.addf %139, %141 : vector<128x32xf32>
    %cst_163 = arith.constant 0.000000e+00 : f32
    %143 = vector.broadcast %cst_163 : f32 to vector<128x32xf32>
    %144 = arith.maximumf %142, %143 : vector<128x32xf32>
    %145 = vector.extract_strided_slice %144 {offsets = [0, 0], sizes = [1, 32], strides = [1, 1]} : vector<128x32xf32> to vector<1x32xf32>
    %c0_164 = arith.constant 0 : index
    %c0_165 = arith.constant 0 : index
    %146 = vector.load %arg19[%c0_164, %c0_165] : memref<1x1024xf32, #tpu.memory_space<vmem>>, vector<1x32xf32>
    tpu.vector_store %arg19[%c0_164, %c0_165], %145 {strides = array<i32>} : memref<1x1024xf32, #tpu.memory_space<vmem>>, vector<1x32xf32>,
    %147 = vector.extract_strided_slice %144 {offsets = [2, 0], sizes = [1, 32], strides = [1, 1]} : vector<128x32xf32> to vector<1x32xf32>
    %c0_166 = arith.constant 0 : index
    %c32 = arith.constant 32 : index
    %148 = vector.load %arg19[%c0_166, %c32] : memref<1x1024xf32, #tpu.memory_space<vmem>>, vector<1x32xf32>
    tpu.vector_store %arg19[%c0_166, %c32], %147 {strides = array<i32>} : memref<1x1024xf32, #tpu.memory_space<vmem>>, vector<1x32xf32>,
    %149 = vector.extract_strided_slice %144 {offsets = [4, 0], sizes = [1, 32], strides = [1, 1]} : vector<128x32xf32> to vector<1x32xf32>
    %c0_167 = arith.constant 0 : index
    %c64_168 = arith.constant 64 : index
    %150 = vector.load %arg19[%c0_167, %c64_168] : memref<1x1024xf32, #tpu.memory_space<vmem>>, vector<1x32xf32>
    tpu.vector_store %arg19[%c0_167, %c64_168], %149 {strides = array<i32>} : memref<1x1024xf32, #tpu.memory_space<vmem>>, vector<1x32xf32>,
    %151 = vector.extract_strided_slice %144 {offsets = [6, 0], sizes = [1, 32], strides = [1, 1]} : vector<128x32xf32> to vector<1x32xf32>
    %c0_169 = arith.constant 0 : index
    %c96 = arith.constant 96 : index
    %152 = vector.load %arg19[%c0_169, %c96] : memref<1x1024xf32, #tpu.memory_space<vmem>>, vector<1x32xf32>
    tpu.vector_store %arg19[%c0_169, %c96], %151 {strides = array<i32>} : memref<1x1024xf32, #tpu.memory_space<vmem>>, vector<1x32xf32>,
    %153 = vector.extract_strided_slice %144 {offsets = [8, 0], sizes = [1, 32], strides = [1, 1]} : vector<128x32xf32> to vector<1x32xf32>
    %c0_170 = arith.constant 0 : index
    %c128_171 = arith.constant 128 : index
    %154 = vector.load %arg19[%c0_170, %c128_171] : memref<1x1024xf32, #tpu.memory_space<vmem>>, vector<1x32xf32>
    tpu.vector_store %arg19[%c0_170, %c128_171], %153 {strides = array<i32>} : memref<1x1024xf32, #tpu.memory_space<vmem>>, vector<1x32xf32>,
    %155 = vector.extract_strided_slice %144 {offsets = [10, 0], sizes = [1, 32], strides = [1, 1]} : vector<128x32xf32> to vector<1x32xf32>
    %c0_172 = arith.constant 0 : index
    %c160 = arith.constant 160 : index
    %156 = vector.load %arg19[%c0_172, %c160] : memref<1x1024xf32, #tpu.memory_space<vmem>>, vector<1x32xf32>
    tpu.vector_store %arg19[%c0_172, %c160], %155 {strides = array<i32>} : memref<1x1024xf32, #tpu.memory_space<vmem>>, vector<1x32xf32>,
    %157 = vector.extract_strided_slice %144 {offsets = [12, 0], sizes = [1, 32], strides = [1, 1]} : vector<128x32xf32> to vector<1x32xf32>
    %c0_173 = arith.constant 0 : index
    %c192_174 = arith.constant 192 : index
    %158 = vector.load %arg19[%c0_173, %c192_174] : memref<1x1024xf32, #tpu.memory_space<vmem>>, vector<1x32xf32>
    tpu.vector_store %arg19[%c0_173, %c192_174], %157 {strides = array<i32>} : memref<1x1024xf32, #tpu.memory_space<vmem>>, vector<1x32xf32>,
    %159 = vector.extract_strided_slice %144 {offsets = [14, 0], sizes = [1, 32], strides = [1, 1]} : vector<128x32xf32> to vector<1x32xf32>
    %c0_175 = arith.constant 0 : index
    %c224 = arith.constant 224 : index
    %160 = vector.load %arg19[%c0_175, %c224] : memref<1x1024xf32, #tpu.memory_space<vmem>>, vector<1x32xf32>
    tpu.vector_store %arg19[%c0_175, %c224], %159 {strides = array<i32>} : memref<1x1024xf32, #tpu.memory_space<vmem>>, vector<1x32xf32>,
    %161 = vector.extract_strided_slice %144 {offsets = [32, 0], sizes = [1, 32], strides = [1, 1]} : vector<128x32xf32> to vector<1x32xf32>
    %c0_176 = arith.constant 0 : index
    %c256_177 = arith.constant 256 : index
    %162 = vector.load %arg19[%c0_176, %c256_177] : memref<1x1024xf32, #tpu.memory_space<vmem>>, vector<1x32xf32>
    tpu.vector_store %arg19[%c0_176, %c256_177], %161 {strides = array<i32>} : memref<1x1024xf32, #tpu.memory_space<vmem>>, vector<1x32xf32>,
    %163 = vector.extract_strided_slice %144 {offsets = [34, 0], sizes = [1, 32], strides = [1, 1]} : vector<128x32xf32> to vector<1x32xf32>
    %c0_178 = arith.constant 0 : index
    %c288 = arith.constant 288 : index
    %164 = vector.load %arg19[%c0_178, %c288] : memref<1x1024xf32, #tpu.memory_space<vmem>>, vector<1x32xf32>
    tpu.vector_store %arg19[%c0_178, %c288], %163 {strides = array<i32>} : memref<1x1024xf32, #tpu.memory_space<vmem>>, vector<1x32xf32>,
    %165 = vector.extract_strided_slice %144 {offsets = [36, 0], sizes = [1, 32], strides = [1, 1]} : vector<128x32xf32> to vector<1x32xf32>
    %c0_179 = arith.constant 0 : index
    %c320_180 = arith.constant 320 : index
    %166 = vector.load %arg19[%c0_179, %c320_180] : memref<1x1024xf32, #tpu.memory_space<vmem>>, vector<1x32xf32>
    tpu.vector_store %arg19[%c0_179, %c320_180], %165 {strides = array<i32>} : memref<1x1024xf32, #tpu.memory_space<vmem>>, vector<1x32xf32>,
    %167 = vector.extract_strided_slice %144 {offsets = [38, 0], sizes = [1, 32], strides = [1, 1]} : vector<128x32xf32> to vector<1x32xf32>
    %c0_181 = arith.constant 0 : index
    %c352 = arith.constant 352 : index
    %168 = vector.load %arg19[%c0_181, %c352] : memref<1x1024xf32, #tpu.memory_space<vmem>>, vector<1x32xf32>
    tpu.vector_store %arg19[%c0_181, %c352], %167 {strides = array<i32>} : memref<1x1024xf32, #tpu.memory_space<vmem>>, vector<1x32xf32>,
    %169 = vector.extract_strided_slice %144 {offsets = [40, 0], sizes = [1, 32], strides = [1, 1]} : vector<128x32xf32> to vector<1x32xf32>
    %c0_182 = arith.constant 0 : index
    %c384_183 = arith.constant 384 : index
    %170 = vector.load %arg19[%c0_182, %c384_183] : memref<1x1024xf32, #tpu.memory_space<vmem>>, vector<1x32xf32>
    tpu.vector_store %arg19[%c0_182, %c384_183], %169 {strides = array<i32>} : memref<1x1024xf32, #tpu.memory_space<vmem>>, vector<1x32xf32>,
    %171 = vector.extract_strided_slice %144 {offsets = [42, 0], sizes = [1, 32], strides = [1, 1]} : vector<128x32xf32> to vector<1x32xf32>
    %c0_184 = arith.constant 0 : index
    %c416 = arith.constant 416 : index
    %172 = vector.load %arg19[%c0_184, %c416] : memref<1x1024xf32, #tpu.memory_space<vmem>>, vector<1x32xf32>
    tpu.vector_store %arg19[%c0_184, %c416], %171 {strides = array<i32>} : memref<1x1024xf32, #tpu.memory_space<vmem>>, vector<1x32xf32>,
    %173 = vector.extract_strided_slice %144 {offsets = [44, 0], sizes = [1, 32], strides = [1, 1]} : vector<128x32xf32> to vector<1x32xf32>
    %c0_185 = arith.constant 0 : index
    %c448_186 = arith.constant 448 : index
    %174 = vector.load %arg19[%c0_185, %c448_186] : memref<1x1024xf32, #tpu.memory_space<vmem>>, vector<1x32xf32>
    tpu.vector_store %arg19[%c0_185, %c448_186], %173 {strides = array<i32>} : memref<1x1024xf32, #tpu.memory_space<vmem>>, vector<1x32xf32>,
    %175 = vector.extract_strided_slice %144 {offsets = [46, 0], sizes = [1, 32], strides = [1, 1]} : vector<128x32xf32> to vector<1x32xf32>
    %c0_187 = arith.constant 0 : index
    %c480 = arith.constant 480 : index
    %176 = vector.load %arg19[%c0_187, %c480] : memref<1x1024xf32, #tpu.memory_space<vmem>>, vector<1x32xf32>
    tpu.vector_store %arg19[%c0_187, %c480], %175 {strides = array<i32>} : memref<1x1024xf32, #tpu.memory_space<vmem>>, vector<1x32xf32>,
    %177 = vector.extract_strided_slice %144 {offsets = [64, 0], sizes = [1, 32], strides = [1, 1]} : vector<128x32xf32> to vector<1x32xf32>
    %c0_188 = arith.constant 0 : index
    %c512_189 = arith.constant 512 : index
    %178 = vector.load %arg19[%c0_188, %c512_189] : memref<1x1024xf32, #tpu.memory_space<vmem>>, vector<1x32xf32>
    tpu.vector_store %arg19[%c0_188, %c512_189], %177 {strides = array<i32>} : memref<1x1024xf32, #tpu.memory_space<vmem>>, vector<1x32xf32>,
    %179 = vector.extract_strided_slice %144 {offsets = [66, 0], sizes = [1, 32], strides = [1, 1]} : vector<128x32xf32> to vector<1x32xf32>
    %c0_190 = arith.constant 0 : index
    %c544 = arith.constant 544 : index
    %180 = vector.load %arg19[%c0_190, %c544] : memref<1x1024xf32, #tpu.memory_space<vmem>>, vector<1x32xf32>
    tpu.vector_store %arg19[%c0_190, %c544], %179 {strides = array<i32>} : memref<1x1024xf32, #tpu.memory_space<vmem>>, vector<1x32xf32>,
    %181 = vector.extract_strided_slice %144 {offsets = [68, 0], sizes = [1, 32], strides = [1, 1]} : vector<128x32xf32> to vector<1x32xf32>
    %c0_191 = arith.constant 0 : index
    %c576 = arith.constant 576 : index
    %182 = vector.load %arg19[%c0_191, %c576] : memref<1x1024xf32, #tpu.memory_space<vmem>>, vector<1x32xf32>
    tpu.vector_store %arg19[%c0_191, %c576], %181 {strides = array<i32>} : memref<1x1024xf32, #tpu.memory_space<vmem>>, vector<1x32xf32>,
    %183 = vector.extract_strided_slice %144 {offsets = [70, 0], sizes = [1, 32], strides = [1, 1]} : vector<128x32xf32> to vector<1x32xf32>
    %c0_192 = arith.constant 0 : index
    %c608 = arith.constant 608 : index
    %184 = vector.load %arg19[%c0_192, %c608] : memref<1x1024xf32, #tpu.memory_space<vmem>>, vector<1x32xf32>
    tpu.vector_store %arg19[%c0_192, %c608], %183 {strides = array<i32>} : memref<1x1024xf32, #tpu.memory_space<vmem>>, vector<1x32xf32>,
    %185 = vector.extract_strided_slice %144 {offsets = [72, 0], sizes = [1, 32], strides = [1, 1]} : vector<128x32xf32> to vector<1x32xf32>
    %c0_193 = arith.constant 0 : index
    %c640_194 = arith.constant 640 : index
    %186 = vector.load %arg19[%c0_193, %c640_194] : memref<1x1024xf32, #tpu.memory_space<vmem>>, vector<1x32xf32>
    tpu.vector_store %arg19[%c0_193, %c640_194], %185 {strides = array<i32>} : memref<1x1024xf32, #tpu.memory_space<vmem>>, vector<1x32xf32>,
    %187 = vector.extract_strided_slice %144 {offsets = [74, 0], sizes = [1, 32], strides = [1, 1]} : vector<128x32xf32> to vector<1x32xf32>
    %c0_195 = arith.constant 0 : index
    %c672 = arith.constant 672 : index
    %188 = vector.load %arg19[%c0_195, %c672] : memref<1x1024xf32, #tpu.memory_space<vmem>>, vector<1x32xf32>
    tpu.vector_store %arg19[%c0_195, %c672], %187 {strides = array<i32>} : memref<1x1024xf32, #tpu.memory_space<vmem>>, vector<1x32xf32>,
    %189 = vector.extract_strided_slice %144 {offsets = [76, 0], sizes = [1, 32], strides = [1, 1]} : vector<128x32xf32> to vector<1x32xf32>
    %c0_196 = arith.constant 0 : index
    %c704 = arith.constant 704 : index
    %190 = vector.load %arg19[%c0_196, %c704] : memref<1x1024xf32, #tpu.memory_space<vmem>>, vector<1x32xf32>
    tpu.vector_store %arg19[%c0_196, %c704], %189 {strides = array<i32>} : memref<1x1024xf32, #tpu.memory_space<vmem>>, vector<1x32xf32>,
    %191 = vector.extract_strided_slice %144 {offsets = [78, 0], sizes = [1, 32], strides = [1, 1]} : vector<128x32xf32> to vector<1x32xf32>
    %c0_197 = arith.constant 0 : index
    %c736 = arith.constant 736 : index
    %192 = vector.load %arg19[%c0_197, %c736] : memref<1x1024xf32, #tpu.memory_space<vmem>>, vector<1x32xf32>
    tpu.vector_store %arg19[%c0_197, %c736], %191 {strides = array<i32>} : memref<1x1024xf32, #tpu.memory_space<vmem>>, vector<1x32xf32>,
    %193 = vector.extract_strided_slice %144 {offsets = [96, 0], sizes = [1, 32], strides = [1, 1]} : vector<128x32xf32> to vector<1x32xf32>
    %c0_198 = arith.constant 0 : index
    %c768_199 = arith.constant 768 : index
    %194 = vector.load %arg19[%c0_198, %c768_199] : memref<1x1024xf32, #tpu.memory_space<vmem>>, vector<1x32xf32>
    tpu.vector_store %arg19[%c0_198, %c768_199], %193 {strides = array<i32>} : memref<1x1024xf32, #tpu.memory_space<vmem>>, vector<1x32xf32>,
    %195 = vector.extract_strided_slice %144 {offsets = [98, 0], sizes = [1, 32], strides = [1, 1]} : vector<128x32xf32> to vector<1x32xf32>
    %c0_200 = arith.constant 0 : index
    %c800 = arith.constant 800 : index
    %196 = vector.load %arg19[%c0_200, %c800] : memref<1x1024xf32, #tpu.memory_space<vmem>>, vector<1x32xf32>
    tpu.vector_store %arg19[%c0_200, %c800], %195 {strides = array<i32>} : memref<1x1024xf32, #tpu.memory_space<vmem>>, vector<1x32xf32>,
    %197 = vector.extract_strided_slice %144 {offsets = [100, 0], sizes = [1, 32], strides = [1, 1]} : vector<128x32xf32> to vector<1x32xf32>
    %c0_201 = arith.constant 0 : index
    %c832 = arith.constant 832 : index
    %198 = vector.load %arg19[%c0_201, %c832] : memref<1x1024xf32, #tpu.memory_space<vmem>>, vector<1x32xf32>
    tpu.vector_store %arg19[%c0_201, %c832], %197 {strides = array<i32>} : memref<1x1024xf32, #tpu.memory_space<vmem>>, vector<1x32xf32>,
    %199 = vector.extract_strided_slice %144 {offsets = [102, 0], sizes = [1, 32], strides = [1, 1]} : vector<128x32xf32> to vector<1x32xf32>
    %c0_202 = arith.constant 0 : index
    %c864 = arith.constant 864 : index
    %200 = vector.load %arg19[%c0_202, %c864] : memref<1x1024xf32, #tpu.memory_space<vmem>>, vector<1x32xf32>
    tpu.vector_store %arg19[%c0_202, %c864], %199 {strides = array<i32>} : memref<1x1024xf32, #tpu.memory_space<vmem>>, vector<1x32xf32>,
    %201 = vector.extract_strided_slice %144 {offsets = [104, 0], sizes = [1, 32], strides = [1, 1]} : vector<128x32xf32> to vector<1x32xf32>
    %c0_203 = arith.constant 0 : index
    %c896_204 = arith.constant 896 : index
    %202 = vector.load %arg19[%c0_203, %c896_204] : memref<1x1024xf32, #tpu.memory_space<vmem>>, vector<1x32xf32>
    tpu.vector_store %arg19[%c0_203, %c896_204], %201 {strides = array<i32>} : memref<1x1024xf32, #tpu.memory_space<vmem>>, vector<1x32xf32>,
    %203 = vector.extract_strided_slice %144 {offsets = [106, 0], sizes = [1, 32], strides = [1, 1]} : vector<128x32xf32> to vector<1x32xf32>
    %c0_205 = arith.constant 0 : index
    %c928 = arith.constant 928 : index
    %204 = vector.load %arg19[%c0_205, %c928] : memref<1x1024xf32, #tpu.memory_space<vmem>>, vector<1x32xf32>
    tpu.vector_store %arg19[%c0_205, %c928], %203 {strides = array<i32>} : memref<1x1024xf32, #tpu.memory_space<vmem>>, vector<1x32xf32>,
    %205 = vector.extract_strided_slice %144 {offsets = [108, 0], sizes = [1, 32], strides = [1, 1]} : vector<128x32xf32> to vector<1x32xf32>
    %c0_206 = arith.constant 0 : index
    %c960 = arith.constant 960 : index
    %206 = vector.load %arg19[%c0_206, %c960] : memref<1x1024xf32, #tpu.memory_space<vmem>>, vector<1x32xf32>
    tpu.vector_store %arg19[%c0_206, %c960], %205 {strides = array<i32>} : memref<1x1024xf32, #tpu.memory_space<vmem>>, vector<1x32xf32>,
    %207 = vector.extract_strided_slice %144 {offsets = [110, 0], sizes = [1, 32], strides = [1, 1]} : vector<128x32xf32> to vector<1x32xf32>
    %c0_207 = arith.constant 0 : index
    %c992 = arith.constant 992 : index
    %208 = vector.load %arg19[%c0_207, %c992] : memref<1x1024xf32, #tpu.memory_space<vmem>>, vector<1x32xf32>
    tpu.vector_store %arg19[%c0_207, %c992], %207 {strides = array<i32>} : memref<1x1024xf32, #tpu.memory_space<vmem>>, vector<1x32xf32>,
    %c0_208 = arith.constant 0 : index
    %c0_209 = arith.constant 0 : index
    %209 = vector.load %arg19[%c0_208, %c0_209] : memref<1x1024xf32, #tpu.memory_space<vmem>>, vector<1x1024xf32>
    %210 = arith.truncf %209 : vector<1x1024xf32> to vector<1x1024xbf16>
    %c0_210 = arith.constant 0 : index
    %c0_211 = arith.constant 0 : index
    %211 = vector.load %arg8[%c0_210, %c0_211] : memref<1024x128xbf16, #tpu.memory_space<vmem>>, vector<1024x128xbf16>
    %cst_212 = arith.constant dense<0.000000e+00> : vector<1x128xf32>
    %212 = tpu.matmul %210, %211, %cst_212 {dimension_numbers = #tpu.dot_dimension_numbers<[1], [0], [0], [1], [0, 0, 1, 1], [], []>} : vector<1x1024xbf16>, vector<1024x128xbf16>, vector<1x128xf32> -> vector<1x128xf32>
    %c0_213 = arith.constant 0 : index
    %c0_214 = arith.constant 0 : index
    %213 = vector.load %arg9[%c0_213, %c0_214] : memref<1x128xf32, #tpu.memory_space<vmem>>, vector<1x128xf32>
    %214 = arith.addf %212, %213 : vector<1x128xf32>
    %cst_215 = arith.constant 0.000000e+00 : f32
    %215 = vector.broadcast %cst_215 : f32 to vector<1x128xf32>
    %216 = arith.maximumf %214, %215 : vector<1x128xf32>
    %217 = arith.truncf %216 : vector<1x128xf32> to vector<1x128xbf16>
    %c0_216 = arith.constant 0 : index
    %c0_217 = arith.constant 0 : index
    %218 = vector.load %arg10[%c0_216, %c0_217] : memref<128x2xbf16, #tpu.memory_space<vmem>>, vector<128x2xbf16>
    %cst_218 = arith.constant dense<0.000000e+00> : vector<1x2xf32>
    %219 = tpu.matmul %217, %218, %cst_218 {dimension_numbers = #tpu.dot_dimension_numbers<[1], [0], [0], [1], [0, 0, 1, 1], [], []>} : vector<1x128xbf16>, vector<128x2xbf16>, vector<1x2xf32> -> vector<1x2xf32>
    %c0_219 = arith.constant 0 : index
    %c0_220 = arith.constant 0 : index
    %220 = vector.load %arg11[%c0_219, %c0_220] : memref<1x2xf32, #tpu.memory_space<vmem>>, vector<1x2xf32>
    %221 = arith.addf %219, %220 : vector<1x2xf32>
    %cst_221 = arith.constant 0.000000e+00 : f32
    %222 = vector.broadcast %cst_221 : f32 to vector<1x2xf32>
    %223 = arith.subf %222, %221 : vector<1x2xf32>
    %224 = math.exp %223 : vector<1x2xf32>
    %cst_222 = arith.constant 1.000000e+00 : f32
    %225 = vector.broadcast %cst_222 : f32 to vector<1x2xf32>
    %226 = arith.addf %225, %224 : vector<1x2xf32>
    %cst_223 = arith.constant 1.000000e+00 : f32
    %227 = vector.broadcast %cst_223 : f32 to vector<1x2xf32>
    %228 = arith.divf %227, %226 : vector<1x2xf32>
    %c0_224 = arith.constant 0 : index
    %c0_225 = arith.constant 0 : index
    %c0_226 = arith.constant 0 : index
    %229 = vector.load %arg12[%c0_224, %c0_225, %c0_226] : memref<1x1x2xf32, #tpu.memory_space<vmem>>, vector<1x1x2xf32>
    %230 = vector.shape_cast %229 : vector<1x1x2xf32> to vector<1x2xf32>
    %231 = vector.shape_cast %228 : vector<1x2xf32> to vector<1x1x2xf32>
    tpu.vector_store %arg12[%c0_224, %c0_225, %c0_226], %231 {strides = array<i32>} : memref<1x1x2xf32, #tpu.memory_space<vmem>>, vector<1x1x2xf32>,
    return
  }
  func.func @transform_0(%arg0: i32) -> (i32, i32, i32, i32) {
    %c0_i32 = arith.constant 0 : i32
    %c0_i32_0 = arith.constant 0 : i32
    %c0_i32_1 = arith.constant 0 : i32
    %c0_i32_2 = arith.constant 0 : i32
    return %arg0, %c0_i32, %c0_i32_0, %c0_i32_1 : i32, i32, i32, i32
  }
  func.func @transform_1(%arg0: i32) -> (i32, i32) {
    %c0_i32 = arith.constant 0 : i32
    %c0_i32_0 = arith.constant 0 : i32
    %c0_i32_1 = arith.constant 0 : i32
    return %c0_i32, %c0_i32_0 : i32, i32
  }
  func.func @transform_2(%arg0: i32) -> (i32, i32) {
    %c0_i32 = arith.constant 0 : i32
    %c0_i32_0 = arith.constant 0 : i32
    %c0_i32_1 = arith.constant 0 : i32
    return %c0_i32, %c0_i32_0 : i32, i32
  }
  func.func @transform_3(%arg0: i32) -> (i32, i32) {
    %c0_i32 = arith.constant 0 : i32
    %c0_i32_0 = arith.constant 0 : i32
    %c0_i32_1 = arith.constant 0 : i32
    return %c0_i32, %c0_i32_0 : i32, i32
  }
  func.func @transform_4(%arg0: i32) -> (i32, i32) {
    %c0_i32 = arith.constant 0 : i32
    %c0_i32_0 = arith.constant 0 : i32
    %c0_i32_1 = arith.constant 0 : i32
    return %c0_i32, %c0_i32_0 : i32, i32
  }
  func.func @transform_5(%arg0: i32) -> (i32, i32) {
    %c0_i32 = arith.constant 0 : i32
    %c0_i32_0 = arith.constant 0 : i32
    %c0_i32_1 = arith.constant 0 : i32
    return %c0_i32, %c0_i32_0 : i32, i32
  }
  func.func @transform_6(%arg0: i32) -> (i32, i32) {
    %c0_i32 = arith.constant 0 : i32
    %c0_i32_0 = arith.constant 0 : i32
    %c0_i32_1 = arith.constant 0 : i32
    return %c0_i32, %c0_i32_0 : i32, i32
  }
  func.func @transform_7(%arg0: i32) -> (i32, i32) {
    %c0_i32 = arith.constant 0 : i32
    %c0_i32_0 = arith.constant 0 : i32
    %c0_i32_1 = arith.constant 0 : i32
    return %c0_i32, %c0_i32_0 : i32, i32
  }
  func.func @transform_8(%arg0: i32) -> (i32, i32) {
    %c0_i32 = arith.constant 0 : i32
    %c0_i32_0 = arith.constant 0 : i32
    %c0_i32_1 = arith.constant 0 : i32
    return %c0_i32, %c0_i32_0 : i32, i32
  }
  func.func @transform_9(%arg0: i32) -> (i32, i32) {
    %c0_i32 = arith.constant 0 : i32
    %c0_i32_0 = arith.constant 0 : i32
    %c0_i32_1 = arith.constant 0 : i32
    return %c0_i32, %c0_i32_0 : i32, i32
  }
  func.func @transform_10(%arg0: i32) -> (i32, i32) {
    %c0_i32 = arith.constant 0 : i32
    %c0_i32_0 = arith.constant 0 : i32
    %c0_i32_1 = arith.constant 0 : i32
    return %c0_i32, %c0_i32_0 : i32, i32
  }
  func.func @transform_11(%arg0: i32) -> (i32, i32, i32) {
    %c0_i32 = arith.constant 0 : i32
    %c0_i32_0 = arith.constant 0 : i32
    %c0_i32_1 = arith.constant 0 : i32
    return %arg0, %c0_i32, %c0_i32_0 : i32, i32, i32
  }
}

</mosaic_0001>

<llo_original>
// kernel: decoder_forward.1
$region0: #{decoder_forward.1}
  #allocation0 [shape = 'u32[]', space=smem, size = 0x4, offset = 0x4, fixed_abs, tag = 'smem constant byte address 0x4 - core index']
  #allocation1 [shape = 'u32[144,128]{1,0:T(1,128)}', space=vmem, size = 0x12000, scoped, tag = 'internal scratch']
  #allocation2 [shape = 'f32[10,18,256]{2,1,0:T(8,128)}', space=vmem, size = 0x3c000, scoped, tag = 'scratch operand']
  #allocation3 [shape = 'bf16[128,2304]{1,0:T(8,128)(2,1)}', space=vmem, size = 0x90000, scoped, tag = 'scratch operand']
  #allocation4 [shape = 'f32[10,18,128]{2,1,0:T(8,128)}', space=vmem, size = 0x1e000, scoped, tag = 'scratch operand']
  #allocation5 [shape = 'bf16[128,1152]{1,0:T(8,128)(2,1)}', space=vmem, size = 0x48000, scoped, tag = 'scratch operand']
  #allocation6 [shape = 'f32[10,18,64]{2,1,0:T(8,128)}', space=vmem, size = 0x1e000, scoped, tag = 'scratch operand']
  #allocation7 [shape = 'bf16[128,576]{1,0:T(8,128)(2,1)}', space=vmem, size = 0x28000, scoped, tag = 'scratch operand']
  #allocation8 [shape = 'f32[1,1024]{1,0:T(1,128)}', space=vmem, size = 0x1000, scoped, tag = 'scratch operand']
  %s0 = inlined_call_operand.hbm [shape: f32[2,8,16,256], index: 0, kind: input, shape index: {}]
  %s1 = inlined_call_operand.vmem [shape: bf16[2304,128], index: 1, kind: input, shape index: {}]
  %s2 = inlined_call_operand.vmem [shape: f32[1,128], index: 2, kind: input, shape index: {}]
  %s3 = inlined_call_operand.vmem [shape: bf16[1152,64], index: 3, kind: input, shape index: {}]
  %s4 = inlined_call_operand.vmem [shape: f32[1,64], index: 4, kind: input, shape index: {}]
  %s5 = inlined_call_operand.vmem [shape: bf16[576,32], index: 5, kind: input, shape index: {}]
  %s6 = inlined_call_operand.vmem [shape: f32[1,32], index: 6, kind: input, shape index: {}]
  %s7 = inlined_call_operand.hbm [shape: bf16[1024,128], index: 7, kind: input, shape index: {}]
  %s8 = inlined_call_operand.vmem [shape: f32[1,128], index: 8, kind: input, shape index: {}]
  %s9 = inlined_call_operand.vmem [shape: bf16[128,2], index: 9, kind: input, shape index: {}]
  %s10 = inlined_call_operand.vmem [shape: f32[1,2], index: 10, kind: input, shape index: {}]
  %s11 = inlined_call_operand.hbm [shape: f32[2,1,2], index: 11, kind: output, shape index: {}]
  %s12 = sld [smem:[#allocation0]]
  $region85: #{decoder_forward.1} parent=0
    _
  %s14 = ssub.s32 1, %s12
  %s15 = scalar_select 0, %s14, %s12
  $region1: #{decoder_forward.1} parent=0
    #allocation9 [shape = 'u8[262144]{0}', space=vmem, size = 0x40000, scoped, tag = 'input window, operand 0']
    #allocation10 [shape = 's32[2]{0}', space=sflag, size = 0x8, scoped, tag = 'scoped memory for decoder_forward.1']
    #allocation11 [shape = 's32[2]{0}', space=sflag, size = 0x8, scoped, tag = 'scoped memory for decoder_forward.1']
    #allocation12 [shape = 'u8[262144]{0}', space=vmem, size = 0x40000, scoped, tag = 'input window, operand 7, single buffered']
    #allocation13 [shape = 's32[1]{0}', space=sflag, size = 0x4, scoped, tag = 'scoped memory for decoder_forward.1']
    #allocation14 [shape = 'u8[1024]{0}', space=vmem, size = 0x400, scoped, tag = 'output window, operand 0']
    %16 = vsyncpa [#allocation10], 0
    %s17 = scalar_lea.sflag [#allocation10], 1
    %18 = vsyncpa %s17, 0
    %19 = vsyncpa [#allocation13], 0
    %20 = vsyncpa [#allocation11], 0
    %s21 = scalar_lea.sflag [#allocation11], 1
    %22 = vsyncpa %s21, 0
    loop: start=0, step=1, limit=4
    $region2: #{decoder_forward.1} parent=1 // loop_pre_header
      _
    $region3: #{decoder_forward.1} parent=1 // loop_header
      %s24 = sphi 0, %s28
      %p25 = scmp.ge.s32.totalorder %s24, 4
      %s34 = sphi 0, %s36
      %s37 = sphi 0, %s34
      %s38 = sphi 0, %s37
      %s54 = sphi 0, %s38
      %s58 = sphi 0, %s58
      %s60 = sphi 0, %s58
      %s61 = sphi 0, %s60
      %s75 = sphi 0, %s61
      %s79 = sphi 0, %s79
      %s81 = sphi 0, %s79
      %s82 = sphi 0, %s81
      %s96 = sphi 0, %s82
      %s100 = sphi 0, %s100
      %s102 = sphi 0, %s100
      %s103 = sphi 0, %s102
      %s117 = sphi 0, %s103
      %s121 = sphi 0, %s121
      %s123 = sphi 0, %s121
      %s124 = sphi 0, %s123
      %s138 = sphi 0, %s124
      %s142 = sphi 0, %s142
      %s144 = sphi 0, %s142
      %s145 = sphi 0, %s144
      %s159 = sphi 0, %s145
      %s163 = sphi 0, %s163
      %s165 = sphi 0, %s163
      %s166 = sphi 0, %s165
      %s180 = sphi 0, %s166
      %s184 = sphi 0, %s184
      %s186 = sphi 0, %s184
      %s187 = sphi 0, %s186
      %s201 = sphi 0, %s187
      %s205 = sphi 0, %s205
      %s207 = sphi 0, %s205
      %s208 = sphi 0, %s207
      %s222 = sphi 0, %s208
      %s226 = sphi 0, %s226
      %s228 = sphi 0, %s226
      %s229 = sphi 0, %s228
      %s243 = sphi 0, %s229
      %s247 = sphi 0, %s247
      %s249 = sphi 0, %s247
      %s250 = sphi 0, %s249
      %s264 = sphi 0, %s250
      %s270 = sphi 0, %s272
      %s273 = sphi 0, %s270
      %s274 = sphi 0, %s273
      %s290 = sphi 0, %s274
    $region4: #{decoder_forward.1} parent=1 // loop_header_branch
      %27 = sbr.rel (%p25) target = $region8
    $region5: #{decoder_forward.1} parent=1 // loop_body
      %s29 = ssub.s32 %s24, 1
      %s30 = ssub.s32 %s24, 2
      %s31 = sadd.s32 %s24, 1
      %s32 = ssub.s32 %s24, %s31
      %p33 = scmp.eq.s32.totalorder %s32, 0
      %s35 = sadd.s32 %s34, 1
      %s36 = scalar_select %p33, %s34, %s35
      %p39 = pneg %p33
      %p40 = scmp.eq.s32.totalorder %s24, 1
      %p41 = por %p39, %p40
      %p42 = scmp.ne.s32.totalorder %s34, %s37
      %p43 = scmp.eq.s32.totalorder %s24, 0
      %p44 = por %p42, %p43
      %p45 = scmp.ne.s32.totalorder %s34, %s37
      %p46 = scmp.eq.s32.totalorder %s29, 1
      %p47 = por %p45, %p46
      %p48 = scmp.ne.s32.totalorder %s37, %s38
      %p49 = scmp.eq.s32.totalorder %s29, 0
      %p50 = por %p48, %p49
      %p51 = scmp.ne.s32.totalorder %s37, %s38
      %p52 = scmp.eq.s32.totalorder %s30, 1
      %p53 = por %p51, %p52
      %p55 = scmp.ne.s32.totalorder %s38, %s54
      %p56 = scmp.eq.s32.totalorder %s30, 0
      %p57 = por %p55, %p56
      %s59 = sadd.s32 %s58, 1
      %p62 = scmp.eq.s32.totalorder %s24, 1
      %p63 = scmp.ne.s32.totalorder %s58, %s60
      %p64 = scmp.eq.s32.totalorder %s24, 0
      %p65 = por %p63, %p64
      %p66 = scmp.ne.s32.totalorder %s58, %s60
      %p67 = scmp.eq.s32.totalorder %s29, 1
      %p68 = por %p66, %p67
      %p69 = scmp.ne.s32.totalorder %s60, %s61
      %p70 = scmp.eq.s32.totalorder %s29, 0
      %p71 = por %p69, %p70
      %p72 = scmp.ne.s32.totalorder %s60, %s61
      %p73 = scmp.eq.s32.totalorder %s30, 1
      %p74 = por %p72, %p73
      %p76 = scmp.ne.s32.totalorder %s61, %s75
      %p77 = scmp.eq.s32.totalorder %s30, 0
      %p78 = por %p76, %p77
      %s80 = sadd.s32 %s79, 1
      %p83 = scmp.eq.s32.totalorder %s24, 1
      %p84 = scmp.ne.s32.totalorder %s79, %s81
      %p85 = scmp.eq.s32.totalorder %s24, 0
      %p86 = por %p84, %p85
      %p87 = scmp.ne.s32.totalorder %s79, %s81
      %p88 = scmp.eq.s32.totalorder %s29, 1
      %p89 = por %p87, %p88
      %p90 = scmp.ne.s32.totalorder %s81, %s82
      %p91 = scmp.eq.s32.totalorder %s29, 0
      %p92 = por %p90, %p91
      %p93 = scmp.ne.s32.totalorder %s81, %s82
      %p94 = scmp.eq.s32.totalorder %s30, 1
      %p95 = por %p93, %p94
      %p97 = scmp.ne.s32.totalorder %s82, %s96
      %p98 = scmp.eq.s32.totalorder %s30, 0
      %p99 = por %p97, %p98
      %s101 = sadd.s32 %s100, 1
      %p104 = scmp.eq.s32.totalorder %s24, 1
      %p105 = scmp.ne.s32.totalorder %s100, %s102
      %p106 = scmp.eq.s32.totalorder %s24, 0
      %p107 = por %p105, %p106
      %p108 = scmp.ne.s32.totalorder %s100, %s102
      %p109 = scmp.eq.s32.totalorder %s29, 1
      %p110 = por %p108, %p109
      %p111 = scmp.ne.s32.totalorder %s102, %s103
      %p112 = scmp.eq.s32.totalorder %s29, 0
      %p113 = por %p111, %p112
      %p114 = scmp.ne.s32.totalorder %s102, %s103
      %p115 = scmp.eq.s32.totalorder %s30, 1
      %p116 = por %p114, %p115
      %p118 = scmp.ne.s32.totalorder %s103, %s117
      %p119 = scmp.eq.s32.totalorder %s30, 0
      %p120 = por %p118, %p119
      %s122 = sadd.s32 %s121, 1
      %p125 = scmp.eq.s32.totalorder %s24, 1
      %p126 = scmp.ne.s32.totalorder %s121, %s123
      %p127 = scmp.eq.s32.totalorder %s24, 0
      %p128 = por %p126, %p127
      %p129 = scmp.ne.s32.totalorder %s121, %s123
      %p130 = scmp.eq.s32.totalorder %s29, 1
      %p131 = por %p129, %p130
      %p132 = scmp.ne.s32.totalorder %s123, %s124
      %p133 = scmp.eq.s32.totalorder %s29, 0
      %p134 = por %p132, %p133
      %p135 = scmp.ne.s32.totalorder %s123, %s124
      %p136 = scmp.eq.s32.totalorder %s30, 1
      %p137 = por %p135, %p136
      %p139 = scmp.ne.s32.totalorder %s124, %s138
      %p140 = scmp.eq.s32.totalorder %s30, 0
      %p141 = por %p139, %p140
      %s143 = sadd.s32 %s142, 1
      %p146 = scmp.eq.s32.totalorder %s24, 1
      %p147 = scmp.ne.s32.totalorder %s142, %s144
      %p148 = scmp.eq.s32.totalorder %s24, 0
      %p149 = por %p147, %p148
      %p150 = scmp.ne.s32.totalorder %s142, %s144
      %p151 = scmp.eq.s32.totalorder %s29, 1
      %p152 = por %p150, %p151
      %p153 = scmp.ne.s32.totalorder %s144, %s145
      %p154 = scmp.eq.s32.totalorder %s29, 0
      %p155 = por %p153, %p154
      %p156 = scmp.ne.s32.totalorder %s144, %s145
      %p157 = scmp.eq.s32.totalorder %s30, 1
      %p158 = por %p156, %p157
      %p160 = scmp.ne.s32.totalorder %s145, %s159
      %p161 = scmp.eq.s32.totalorder %s30, 0
      %p162 = por %p160, %p161
      %s164 = sadd.s32 %s163, 1
      %p167 = scmp.eq.s32.totalorder %s24, 1
      %p168 = scmp.ne.s32.totalorder %s163, %s165
      %p169 = scmp.eq.s32.totalorder %s24, 0
      %p170 = por %p168, %p169
      %p171 = scmp.ne.s32.totalorder %s163, %s165
      %p172 = scmp.eq.s32.totalorder %s29, 1
      %p173 = por %p171, %p172
      %p174 = scmp.ne.s32.totalorder %s165, %s166
      %p175 = scmp.eq.s32.totalorder %s29, 0
      %p176 = por %p174, %p175
      %p177 = scmp.ne.s32.totalorder %s165, %s166
      %p178 = scmp.eq.s32.totalorder %s30, 1
      %p179 = por %p177, %p178
      %p181 = scmp.ne.s32.totalorder %s166, %s180
      %p182 = scmp.eq.s32.totalorder %s30, 0
      %p183 = por %p181, %p182
      %s185 = sadd.s32 %s184, 1
      %p188 = scmp.eq.s32.totalorder %s24, 1
      %p189 = scmp.ne.s32.totalorder %s184, %s186
      %p190 = scmp.eq.s32.totalorder %s24, 0
      %p191 = por %p189, %p190
      %p192 = scmp.ne.s32.totalorder %s184, %s186
      %p193 = scmp.eq.s32.totalorder %s29, 1
      %p194 = por %p192, %p193
      %p195 = scmp.ne.s32.totalorder %s186, %s187
      %p196 = scmp.eq.s32.totalorder %s29, 0
      %p197 = por %p195, %p196
      %p198 = scmp.ne.s32.totalorder %s186, %s187
      %p199 = scmp.eq.s32.totalorder %s30, 1
      %p200 = por %p198, %p199
      %p202 = scmp.ne.s32.totalorder %s187, %s201
      %p203 = scmp.eq.s32.totalorder %s30, 0
      %p204 = por %p202, %p203
      %s206 = sadd.s32 %s205, 1
      %p209 = scmp.eq.s32.totalorder %s24, 1
      %p210 = scmp.ne.s32.totalorder %s205, %s207
      %p211 = scmp.eq.s32.totalorder %s24, 0
      %p212 = por %p210, %p211
      %p213 = scmp.ne.s32.totalorder %s205, %s207
      %p214 = scmp.eq.s32.totalorder %s29, 1
      %p215 = por %p213, %p214
      %p216 = scmp.ne.s32.totalorder %s207, %s208
      %p217 = scmp.eq.s32.totalorder %s29, 0
      %p218 = por %p216, %p217
      %p219 = scmp.ne.s32.totalorder %s207, %s208
      %p220 = scmp.eq.s32.totalorder %s30, 1
      %p221 = por %p219, %p220
      %p223 = scmp.ne.s32.totalorder %s208, %s222
      %p224 = scmp.eq.s32.totalorder %s30, 0
      %p225 = por %p223, %p224
      %s227 = sadd.s32 %s226, 1
      %p230 = scmp.eq.s32.totalorder %s24, 1
      %p231 = scmp.ne.s32.totalorder %s226, %s228
      %p232 = scmp.eq.s32.totalorder %s24, 0
      %p233 = por %p231, %p232
      %p234 = scmp.ne.s32.totalorder %s226, %s228
      %p235 = scmp.eq.s32.totalorder %s29, 1
      %p236 = por %p234, %p235
      %p237 = scmp.ne.s32.totalorder %s228, %s229
      %p238 = scmp.eq.s32.totalorder %s29, 0
      %p239 = por %p237, %p238
      %p240 = scmp.ne.s32.totalorder %s228, %s229
      %p241 = scmp.eq.s32.totalorder %s30, 1
      %p242 = por %p240, %p241
      %p244 = scmp.ne.s32.totalorder %s229, %s243
      %p245 = scmp.eq.s32.totalorder %s30, 0
      %p246 = por %p244, %p245
      %s248 = sadd.s32 %s247, 1
      %p251 = scmp.eq.s32.totalorder %s24, 1
      %p252 = scmp.ne.s32.totalorder %s247, %s249
      %p253 = scmp.eq.s32.totalorder %s24, 0
      %p254 = por %p252, %p253
      %p255 = scmp.ne.s32.totalorder %s247, %s249
      %p256 = scmp.eq.s32.totalorder %s29, 1
      %p257 = por %p255, %p256
      %p258 = scmp.ne.s32.totalorder %s249, %s250
      %p259 = scmp.eq.s32.totalorder %s29, 0
      %p260 = por %p258, %p259
      %p261 = scmp.ne.s32.totalorder %s249, %s250
      %p262 = scmp.eq.s32.totalorder %s30, 1
      %p263 = por %p261, %p262
      %p265 = scmp.ne.s32.totalorder %s250, %s264
      %p266 = scmp.eq.s32.totalorder %s30, 0
      %p267 = por %p265, %p266
      %s268 = ssub.s32 %s24, %s31
      %p269 = scmp.eq.s32.totalorder %s268, 0
      %s271 = sadd.s32 %s270, 1
      %s272 = scalar_select %p269, %s270, %s271
      %p275 = pneg %p269
      %p276 = scmp.eq.s32.totalorder %s24, 1
      %p277 = por %p275, %p276
      %p278 = scmp.ne.s32.totalorder %s270, %s273
      %p279 = scmp.eq.s32.totalorder %s24, 0
      %p280 = por %p278, %p279
      %p281 = scmp.ne.s32.totalorder %s270, %s273
      %p282 = scmp.eq.s32.totalorder %s29, 1
      %p283 = por %p281, %p282
      %p284 = scmp.ne.s32.totalorder %s273, %s274
      %p285 = scmp.eq.s32.totalorder %s29, 0
      %p286 = por %p284, %p285
      %p287 = scmp.ne.s32.totalorder %s273, %s274
      %p288 = scmp.eq.s32.totalorder %s30, 1
      %p289 = por %p287, %p288
      %p291 = scmp.ne.s32.totalorder %s274, %s290
      %p292 = scmp.eq.s32.totalorder %s30, 0
      %p293 = por %p291, %p292
      %p294 = scmp.le.s32.totalorder 1, %s24
      %p295 = scmp.lt.s32.totalorder %s24, 3
      %p296 = pnand %p294, %p295
      %p297 = pneg %p296
      // Predicated region
      $region9: #{decoder_forward.1} parent=5 // pred_check
        _
      $region10: #{decoder_forward.1} parent=5 // pred_check_branch
        %299 = sbr.rel (%p296) target = $region12
      $region11: #{decoder_forward.1} parent=5 // pred_region
        %s300 = ssub.s32 %s24, 1
        // Predicated region
        $region13: #{decoder_forward.1} parent=11 // pred_check
          %p301 = pneg %p71
        $region14: #{decoder_forward.1} parent=11 // pred_check_branch
          %303 = sbr.rel (%p301) target = $region16
        $region15: #{decoder_forward.1} parent=11 // pred_region
          _
        $region16: #{decoder_forward.1} parent=11 // pred_fallthru
          _
        // Predicated region
        $region17: #{decoder_forward.1} parent=11 // pred_check
          %p304 = pneg %p92
        $region18: #{decoder_forward.1} parent=11 // pred_check_branch
          %306 = sbr.rel (%p304) target = $region20
        $region19: #{decoder_forward.1} parent=11 // pred_region
          _
        $region20: #{decoder_forward.1} parent=11 // pred_fallthru
          _
        // Predicated region
        $region21: #{decoder_forward.1} parent=11 // pred_check
          %p307 = pneg %p113
        $region22: #{decoder_forward.1} parent=11 // pred_check_branch
          %309 = sbr.rel (%p307) target = $region24
        $region23: #{decoder_forward.1} parent=11 // pred_region
          _
        $region24: #{decoder_forward.1} parent=11 // pred_fallthru
          _
        // Predicated region
        $region25: #{decoder_forward.1} parent=11 // pred_check
          %p310 = pneg %p134
        $region26: #{decoder_forward.1} parent=11 // pred_check_branch
          %312 = sbr.rel (%p310) target = $region28
        $region27: #{decoder_forward.1} parent=11 // pred_region
          _
        $region28: #{decoder_forward.1} parent=11 // pred_fallthru
          _
        // Predicated region
        $region29: #{decoder_forward.1} parent=11 // pred_check
          %p313 = pneg %p155
        $region30: #{decoder_forward.1} parent=11 // pred_check_branch
          %315 = sbr.rel (%p313) target = $region32
        $region31: #{decoder_forward.1} parent=11 // pred_region
          _
        $region32: #{decoder_forward.1} parent=11 // pred_fallthru
          _
        // Predicated region
        $region33: #{decoder_forward.1} parent=11 // pred_check
          %p316 = pneg %p176
        $region34: #{decoder_forward.1} parent=11 // pred_check_branch
          %318 = sbr.rel (%p316) target = $region36
        $region35: #{decoder_forward.1} parent=11 // pred_region
          _
        $region36: #{decoder_forward.1} parent=11 // pred_fallthru
          _
        // Predicated region
        $region37: #{decoder_forward.1} parent=11 // pred_check
          %p319 = pneg %p197
        $region38: #{decoder_forward.1} parent=11 // pred_check_branch
          %321 = sbr.rel (%p319) target = $region40
        $region39: #{decoder_forward.1} parent=11 // pred_region
          %s323 = ssub.s32 8192, 8192
          %324 = vsyncadd [#allocation13], %s323
          %s325 = sshll.u32 [#allocation12], 4
          %s326 = int_to_ptr.vmem [resolvable:$true] %s325
          %331 = dma.hbm_to_vmem [thread:$0]  %s7, 8192, %s326, [#allocation13], 64, 64, 4
        $region40: #{decoder_forward.1} parent=11 // pred_fallthru
          _
        // Predicated region
        $region41: #{decoder_forward.1} parent=11 // pred_check
          %p332 = pneg %p218
        $region42: #{decoder_forward.1} parent=11 // pred_check_branch
          %334 = sbr.rel (%p332) target = $region44
        $region43: #{decoder_forward.1} parent=11 // pred_region
          _
        $region44: #{decoder_forward.1} parent=11 // pred_fallthru
          _
        // Predicated region
        $region45: #{decoder_forward.1} parent=11 // pred_check
          %p335 = pneg %p239
        $region46: #{decoder_forward.1} parent=11 // pred_check_branch
          %337 = sbr.rel (%p335) target = $region48
        $region47: #{decoder_forward.1} parent=11 // pred_region
          _
        $region48: #{decoder_forward.1} parent=11 // pred_fallthru
          _
        // Predicated region
        $region49: #{decoder_forward.1} parent=11 // pred_check
          %p338 = pneg %p260
        $region50: #{decoder_forward.1} parent=11 // pred_check_branch
          %340 = sbr.rel (%p338) target = $region52
        $region51: #{decoder_forward.1} parent=11 // pred_region
          _
        $region52: #{decoder_forward.1} parent=11 // pred_fallthru
          _
      $region12: #{decoder_forward.1} parent=5 // pred_fallthru
        _
      %p341 = scmp.lt.s32.totalorder %s24, 2
      // Predicated region
      $region53: #{decoder_forward.1} parent=5 // pred_check
        %p342 = pneg %p341
      $region54: #{decoder_forward.1} parent=5 // pred_check_branch
        %344 = sbr.rel (%p342) target = $region56
      $region55: #{decoder_forward.1} parent=5 // pred_region
        // Predicated region
        $region57: #{decoder_forward.1} parent=55 // pred_check
          %p345 = pneg %p44
        $region58: #{decoder_forward.1} parent=55 // pred_check_branch
          %347 = sbr.rel (%p345) target = $region60
        $region59: #{decoder_forward.1} parent=55 // pred_region
          %s348 = sand.u32 %s34, 1
          %s349 = scalar_lea.sflag [#allocation10], %s348
          %s350 = sand.u32 %s34, 1
          %s351 = smul.addr %s350, 256
          %s352 = scalar_lea.vmem [#allocation9], %s351
          %s354 = ssub.s32 4096, 4096
          %355 = vsyncadd %s349, %s354
          %s356 = smul.addr %s24, 32
          %s357 = smul.addr %s356, 128
          %s358 = scalar_lea.hbm %s0, %s357
          %s359 = sshll.u32 %s352, 4
          %s360 = int_to_ptr.vmem [resolvable:$true] %s359
          %365 = dma.hbm_to_vmem [thread:$0]  %s358, 4096, %s360, %s349, 256, 256, 16
        $region60: #{decoder_forward.1} parent=55 // pred_fallthru
          _
      $region56: #{decoder_forward.1} parent=5 // pred_fallthru
        _
      %p366 = scmp.le.s32.totalorder 1, %s24
      %p367 = scmp.lt.s32.totalorder %s24, 3
      %p368 = pnand %p366, %p367
      %p369 = pneg %p368
      // Predicated region
      $region61: #{decoder_forward.1} parent=5 // pred_check
        _
      $region62: #{decoder_forward.1} parent=5 // pred_check_branch
        %371 = sbr.rel (%p368) target = $region64
      $region63: #{decoder_forward.1} parent=5 // pred_region
        %s372 = ssub.s32 %s24, 1
        %s373 = sand.u32 %s37, 1
        %s374 = scalar_lea.sflag [#allocation10], %s373
        %s375 = sand.u32 %s37, 1
        %s376 = smul.addr %s375, 256
        %s377 = scalar_lea.vmem [#allocation9], %s376
        // Predicated region
        $region65: #{decoder_forward.1} parent=63 // pred_check
          %p378 = pneg %p50
        $region66: #{decoder_forward.1} parent=63 // pred_check_branch
          %380 = sbr.rel (%p378) target = $region68
        $region67: #{decoder_forward.1} parent=63 // pred_region
          %381 = dma.done %s374, 4096
        $region68: #{decoder_forward.1} parent=63 // pred_fallthru
          _
        // Predicated region
        $region69: #{decoder_forward.1} parent=63 // pred_check
          %p382 = pneg %p197
        $region70: #{decoder_forward.1} parent=63 // pred_check_branch
          %384 = sbr.rel (%p382) target = $region72
        $region71: #{decoder_forward.1} parent=63 // pred_region
          %385 = dma.done [#allocation13], 8192
        $region72: #{decoder_forward.1} parent=63 // pred_fallthru
          _
        %s386 = sand.u32 %s37, 1
        %s387 = scalar_lea.sflag [#allocation10], %s386
        %s388 = sand.u32 %s37, 1
        %s389 = smul.addr %s388, 256
        %s390 = scalar_lea.vmem [#allocation9], %s389
        %p391 = pneg %p50
        %p392 = pneg %p47
        %p393 = pneg %p71
        %p394 = pneg %p68
        %p395 = pneg %p92
        %p396 = pneg %p89
        %p397 = pneg %p113
        %p398 = pneg %p110
        %p399 = pneg %p134
        %p400 = pneg %p131
        %p401 = pneg %p155
        %p402 = pneg %p152
        %p403 = pneg %p176
        %p404 = pneg %p173
        %p405 = pneg %p197
        %p406 = pneg %p194
        %p407 = pneg %p218
        %p408 = pneg %p215
        %p409 = pneg %p239
        %p410 = pneg %p236
        %p411 = pneg %p260
        %p412 = pneg %p257
        %p413 = pneg %p286
        %p414 = pneg %p283
        %s415 = sand.u32 %s273, 1
        %s416 = scalar_lea.sflag [#allocation11], %s415
        %s417 = sand.u32 %s273, 1
        %s418 = scalar_lea.vmem [#allocation14], %s417
        %420 = vst [vmem:[#allocation2] sm:$0xff] 0.0
        %421 = vst [vmem:[#allocation2 + $0x8] sm:$0xff] 0.0
        %422 = vst [vmem:[#allocation2 + $0x10] sm:$0xff] 0.0
        %423 = vst [vmem:[#allocation2 + $0x18] sm:$0xff] 0.0
        %424 = vst [vmem:[#allocation2 + $0x20] sm:$0x3] 0.0
        %425 = vst [vmem:[#allocation2 + $0x28] sm:$0x3] 0.0
        %426 = vst [vmem:[#allocation2 + $0x30] sm:$0xff] 0.0
        %427 = vst [vmem:[#allocation2 + $0x38] sm:$0xff] 0.0
        %428 = vst [vmem:[#allocation2 + $0x40] sm:$0xff] 0.0
        %429 = vst [vmem:[#allocation2 + $0x48] sm:$0xff] 0.0
        %430 = vst [vmem:[#allocation2 + $0x50] sm:$0x3] 0.0
        %431 = vst [vmem:[#allocation2 + $0x58] sm:$0x3] 0.0
        %432 = vst [vmem:[#allocation2 + $0x60] sm:$0xff] 0.0
        %433 = vst [vmem:[#allocation2 + $0x68] sm:$0xff] 0.0
        %434 = vst [vmem:[#allocation2 + $0x70] sm:$0xff] 0.0
        %435 = vst [vmem:[#allocation2 + $0x78] sm:$0xff] 0.0
        %436 = vst [vmem:[#allocation2 + $0x80] sm:$0x3] 0.0
        %437 = vst [vmem:[#allocation2 + $0x88] sm:$0x3] 0.0
        %438 = vst [vmem:[#allocation2 + $0x90] sm:$0xff] 0.0
        %439 = vst [vmem:[#allocation2 + $0x98] sm:$0xff] 0.0
        %440 = vst [vmem:[#allocation2 + $0xa0] sm:$0xff] 0.0
        %441 = vst [vmem:[#allocation2 + $0xa8] sm:$0xff] 0.0
        %442 = vst [vmem:[#allocation2 + $0xb0] sm:$0x3] 0.0
        %443 = vst [vmem:[#allocation2 + $0xb8] sm:$0x3] 0.0
        %444 = vst [vmem:[#allocation2 + $0xc0] sm:$0xff] 0.0
        %445 = vst [vmem:[#allocation2 + $0xc8] sm:$0xff] 0.0
        %446 = vst [vmem:[#allocation2 + $0xd0] sm:$0xff] 0.0
        %447 = vst [vmem:[#allocation2 + $0xd8] sm:$0xff] 0.0
        %448 = vst [vmem:[#allocation2 + $0xe0] sm:$0x3] 0.0
        %449 = vst [vmem:[#allocation2 + $0xe8] sm:$0x3] 0.0
        %450 = vst [vmem:[#allocation2 + $0xf0] sm:$0xff] 0.0
        %451 = vst [vmem:[#allocation2 + $0xf8] sm:$0xff] 0.0
        %452 = vst [vmem:[#allocation2 + $0x100] sm:$0xff] 0.0
        %453 = vst [vmem:[#allocation2 + $0x108] sm:$0xff] 0.0
        %454 = vst [vmem:[#allocation2 + $0x110] sm:$0x3] 0.0
        %455 = vst [vmem:[#allocation2 + $0x118] sm:$0x3] 0.0
        %456 = vst [vmem:[#allocation2 + $0x120] sm:$0xff] 0.0
        %457 = vst [vmem:[#allocation2 + $0x128] sm:$0xff] 0.0
        %458 = vst [vmem:[#allocation2 + $0x130] sm:$0xff] 0.0
        %459 = vst [vmem:[#allocation2 + $0x138] sm:$0xff] 0.0
        %460 = vst [vmem:[#allocation2 + $0x140] sm:$0x3] 0.0
        %461 = vst [vmem:[#allocation2 + $0x148] sm:$0x3] 0.0
        %462 = vst [vmem:[#allocation2 + $0x150] sm:$0xff] 0.0
        %463 = vst [vmem:[#allocation2 + $0x158] sm:$0xff] 0.0
        %464 = vst [vmem:[#allocation2 + $0x160] sm:$0xff] 0.0
        %465 = vst [vmem:[#allocation2 + $0x168] sm:$0xff] 0.0
        %466 = vst [vmem:[#allocation2 + $0x170] sm:$0x3] 0.0
        %467 = vst [vmem:[#allocation2 + $0x178] sm:$0x3] 0.0
        %468 = vst [vmem:[#allocation2 + $0x180] sm:$0xff] 0.0
        %469 = vst [vmem:[#allocation2 + $0x188] sm:$0xff] 0.0
        %470 = vst [vmem:[#allocation2 + $0x190] sm:$0xff] 0.0
        %471 = vst [vmem:[#allocation2 + $0x198] sm:$0xff] 0.0
        %472 = vst [vmem:[#allocation2 + $0x1a0] sm:$0x3] 0.0
        %473 = vst [vmem:[#allocation2 + $0x1a8] sm:$0x3] 0.0
        %474 = vst [vmem:[#allocation2 + $0x1b0] sm:$0xff] 0.0
        %475 = vst [vmem:[#allocation2 + $0x1b8] sm:$0xff] 0.0
        %476 = vst [vmem:[#allocation2 + $0x1c0] sm:$0xff] 0.0
        %477 = vst [vmem:[#allocation2 + $0x1c8] sm:$0xff] 0.0
        %478 = vst [vmem:[#allocation2 + $0x1d0] sm:$0x3] 0.0
        %479 = vst [vmem:[#allocation2 + $0x1d8] sm:$0x3] 0.0
        %v480 = vld [vmem:[%s377] sm:$0xff]
        %v481 = vld [vmem:[%s377 + $0x8] sm:$0xff]
        %v482 = vld [vmem:[%s377 + $0x10] sm:$0xff]
        %v483 = vld [vmem:[%s377 + $0x18] sm:$0xff]
        %v484 = vld [vmem:[%s377 + $0x20] sm:$0xff]
        %v485 = vld [vmem:[%s377 + $0x28] sm:$0xff]
        %v486 = vld [vmem:[%s377 + $0x30] sm:$0xff]
        %v487 = vld [vmem:[%s377 + $0x38] sm:$0xff]
        %v488 = vld [vmem:[%s377 + $0x40] sm:$0xff]
        %v489 = vld [vmem:[%s377 + $0x48] sm:$0xff]
        %v490 = vld [vmem:[%s377 + $0x50] sm:$0xff]
        %v491 = vld [vmem:[%s377 + $0x58] sm:$0xff]
        %v492 = vld [vmem:[%s377 + $0x60] sm:$0xff]
        %v493 = vld [vmem:[%s377 + $0x68] sm:$0xff]
        %v494 = vld [vmem:[%s377 + $0x70] sm:$0xff]
        %v495 = vld [vmem:[%s377 + $0x78] sm:$0xff]
        %v496 = vld [vmem:[%s377 + $0x80] sm:$0xff]
        %v497 = vld [vmem:[%s377 + $0x88] sm:$0xff]
        %v498 = vld [vmem:[%s377 + $0x90] sm:$0xff]
        %v499 = vld [vmem:[%s377 + $0x98] sm:$0xff]
        %v500 = vld [vmem:[%s377 + $0xa0] sm:$0xff]
        %v501 = vld [vmem:[%s377 + $0xa8] sm:$0xff]
        %v502 = vld [vmem:[%s377 + $0xb0] sm:$0xff]
        %v503 = vld [vmem:[%s377 + $0xb8] sm:$0xff]
        %v504 = vld [vmem:[%s377 + $0xc0] sm:$0xff]
        %v505 = vld [vmem:[%s377 + $0xc8] sm:$0xff]
        %v506 = vld [vmem:[%s377 + $0xd0] sm:$0xff]
        %v507 = vld [vmem:[%s377 + $0xd8] sm:$0xff]
        %v508 = vld [vmem:[%s377 + $0xe0] sm:$0xff]
        %v509 = vld [vmem:[%s377 + $0xe8] sm:$0xff]
        %v510 = vld [vmem:[%s377 + $0xf0] sm:$0xff]
        %v511 = vld [vmem:[%s377 + $0xf8] sm:$0xff]
        %vm544 = vcmask 1040384
        %v545 = vrot.slane %v480, 7
        %v546 = vrot.slane %v481, 7
        %v547 = vrot.slane %v482, 7
        %v548 = vsel %vm544, %v545, %v547
        %v549 = vrot.slane %v483, 7
        %v550 = vsel %vm544, %v546, %v549
        %v551 = vrot.slane %v484, 7
        %v552 = vrot.slane %v485, 7
        %v553 = vrot.slane %v486, 7
        %v554 = vsel %vm544, %v551, %v553
        %v555 = vrot.slane %v487, 7
        %v556 = vsel %vm544, %v552, %v555
        %v557 = vrot.slane %v488, 7
        %v558 = vrot.slane %v489, 7
        %v559 = vrot.slane %v490, 7
        %v560 = vsel %vm544, %v557, %v559
        %v561 = vrot.slane %v491, 7
        %v562 = vsel %vm544, %v558, %v561
        %v563 = vrot.slane %v492, 7
        %v564 = vrot.slane %v493, 7
        %v565 = vrot.slane %v494, 7
        %v566 = vsel %vm544, %v563, %v565
        %v567 = vrot.slane %v495, 7
        %v568 = vsel %vm544, %v564, %v567
        %v569 = vrot.slane %v496, 7
        %v570 = vrot.slane %v497, 7
        %v571 = vrot.slane %v498, 7
        %v572 = vsel %vm544, %v569, %v571
        %v573 = vrot.slane %v499, 7
        %v574 = vsel %vm544, %v570, %v573
        %v575 = vrot.slane %v500, 7
        %v576 = vrot.slane %v501, 7
        %v577 = vrot.slane %v502, 7
        %v578 = vsel %vm544, %v575, %v577
        %v579 = vrot.slane %v503, 7
        %v580 = vsel %vm544, %v576, %v579
        %v581 = vrot.slane %v504, 7
        %v582 = vrot.slane %v505, 7
        %v583 = vrot.slane %v506, 7
        %v584 = vsel %vm544, %v581, %v583
        %v585 = vrot.slane %v507, 7
        %v586 = vsel %vm544, %v582, %v585
        %v587 = vrot.slane %v508, 7
        %v588 = vrot.slane %v509, 7
        %v589 = vrot.slane %v510, 7
        %v590 = vsel %vm544, %v587, %v589
        %v591 = vrot.slane %v511, 7
        %v592 = vsel %vm544, %v588, %v591
        %s641 = scalar_lea.vmem [#allocation2], 48
        %642 = vst [vmem:[%s641] sm:$0xfe] %v545
        %643 = vst [vmem:[%s641 + $0x8] sm:$0xfe] %v546
        %644 = vst [vmem:[%s641 + $0x10] sm:$0xff] %v548
        %645 = vst [vmem:[%s641 + $0x18] sm:$0xff] %v550
        %646 = vst [vmem:[%s641 + $0x20] sm:$0x1] %v547
        %647 = vst [vmem:[%s641 + $0x28] sm:$0x1] %v549
        %648 = vst [vmem:[%s641 + $0x30] sm:$0xfe] %v551
        %649 = vst [vmem:[%s641 + $0x38] sm:$0xfe] %v552
        %650 = vst [vmem:[%s641 + $0x40] sm:$0xff] %v554
        %651 = vst [vmem:[%s641 + $0x48] sm:$0xff] %v556
        %652 = vst [vmem:[%s641 + $0x50] sm:$0x1] %v553
        %653 = vst [vmem:[%s641 + $0x58] sm:$0x1] %v555
        %654 = vst [vmem:[%s641 + $0x60] sm:$0xfe] %v557
        %655 = vst [vmem:[%s641 + $0x68] sm:$0xfe] %v558
        %656 = vst [vmem:[%s641 + $0x70] sm:$0xff] %v560
        %657 = vst [vmem:[%s641 + $0x78] sm:$0xff] %v562
        %658 = vst [vmem:[%s641 + $0x80] sm:$0x1] %v559
        %659 = vst [vmem:[%s641 + $0x88] sm:$0x1] %v561
        %660 = vst [vmem:[%s641 + $0x90] sm:$0xfe] %v563
        %661 = vst [vmem:[%s641 + $0x98] sm:$0xfe] %v564
        %662 = vst [vmem:[%s641 + $0xa0] sm:$0xff] %v566
        %663 = vst [vmem:[%s641 + $0xa8] sm:$0xff] %v568
        %664 = vst [vmem:[%s641 + $0xb0] sm:$0x1] %v565
        %665 = vst [vmem:[%s641 + $0xb8] sm:$0x1] %v567
        %666 = vst [vmem:[%s641 + $0xc0] sm:$0xfe] %v569
        %667 = vst [vmem:[%s641 + $0xc8] sm:$0xfe] %v570
        %668 = vst [vmem:[%s641 + $0xd0] sm:$0xff] %v572
        %669 = vst [vmem:[%s641 + $0xd8] sm:$0xff] %v574
        %670 = vst [vmem:[%s641 + $0xe0] sm:$0x1] %v571
        %671 = vst [vmem:[%s641 + $0xe8] sm:$0x1] %v573
        %672 = vst [vmem:[%s641 + $0xf0] sm:$0xfe] %v575
        %673 = vst [vmem:[%s641 + $0xf8] sm:$0xfe] %v576
        %674 = vst [vmem:[%s641 + $0x100] sm:$0xff] %v578
        %675 = vst [vmem:[%s641 + $0x108] sm:$0xff] %v580
        %676 = vst [vmem:[%s641 + $0x110] sm:$0x1] %v577
        %677 = vst [vmem:[%s641 + $0x118] sm:$0x1] %v579
        %678 = vst [vmem:[%s641 + $0x120] sm:$0xfe] %v581
        %679 = vst [vmem:[%s641 + $0x128] sm:$0xfe] %v582
        %680 = vst [vmem:[%s641 + $0x130] sm:$0xff] %v584
        %681 = vst [vmem:[%s641 + $0x138] sm:$0xff] %v586
        %682 = vst [vmem:[%s641 + $0x140] sm:$0x1] %v583
        %683 = vst [vmem:[%s641 + $0x148] sm:$0x1] %v585
        %684 = vst [vmem:[%s641 + $0x150] sm:$0xfe] %v587
        %685 = vst [vmem:[%s641 + $0x158] sm:$0xfe] %v588
        %686 = vst [vmem:[%s641 + $0x160] sm:$0xff] %v590
        %687 = vst [vmem:[%s641 + $0x168] sm:$0xff] %v592
        %688 = vst [vmem:[%s641 + $0x170] sm:$0x1] %v589
        %689 = vst [vmem:[%s641 + $0x178] sm:$0x1] %v591
        %v690 = vld [vmem:[#allocation2] sm:$0xff]
        %v691 = vld [vmem:[#allocation2 + $0x8] sm:$0xff]
        %v692 = vld [vmem:[#allocation2 + $0x10] sm:$0xff]
        %v693 = vld [vmem:[#allocation2 + $0x18] sm:$0xff]
        %v694 = vld [vmem:[#allocation2 + $0x30] sm:$0xff]
        %v695 = vld [vmem:[#allocation2 + $0x38] sm:$0xff]
        %v696 = vld [vmem:[#allocation2 + $0x40] sm:$0xff]
        %v697 = vld [vmem:[#allocation2 + $0x48] sm:$0xff]
        %v698 = vld [vmem:[#allocation2 + $0x60] sm:$0xff]
        %v699 = vld [vmem:[#allocation2 + $0x68] sm:$0xff]
        %v700 = vld [vmem:[#allocation2 + $0x70] sm:$0xff]
        %v701 = vld [vmem:[#allocation2 + $0x78] sm:$0xff]
        %v702 = vld [vmem:[#allocation2 + $0x90] sm:$0xff]
        %v703 = vld [vmem:[#allocation2 + $0x98] sm:$0xff]
        %v704 = vld [vmem:[#allocation2 + $0xa0] sm:$0xff]
        %v705 = vld [vmem:[#allocation2 + $0xa8] sm:$0xff]
        %v706 = vld [vmem:[#allocation2 + $0xc0] sm:$0xff]
        %v707 = vld [vmem:[#allocation2 + $0xc8] sm:$0xff]
        %v708 = vld [vmem:[#allocation2 + $0xd0] sm:$0xff]
        %v709 = vld [vmem:[#allocation2 + $0xd8] sm:$0xff]
        %v710 = vld [vmem:[#allocation2 + $0xf0] sm:$0xff]
        %v711 = vld [vmem:[#allocation2 + $0xf8] sm:$0xff]
        %v712 = vld [vmem:[#allocation2 + $0x100] sm:$0xff]
        %v713 = vld [vmem:[#allocation2 + $0x108] sm:$0xff]
        %v714 = vld [vmem:[#allocation2 + $0x120] sm:$0xff]
        %v715 = vld [vmem:[#allocation2 + $0x128] sm:$0xff]
        %v716 = vld [vmem:[#allocation2 + $0x130] sm:$0xff]
        %v717 = vld [vmem:[#allocation2 + $0x138] sm:$0xff]
        %v718 = vld [vmem:[#allocation2 + $0x150] sm:$0xff]
        %v719 = vld [vmem:[#allocation2 + $0x158] sm:$0xff]
        %v720 = vld [vmem:[#allocation2 + $0x160] sm:$0xff]
        %v721 = vld [vmem:[#allocation2 + $0x168] sm:$0xff]
        %v722 = vpack.c.bf16 %v692, %v690
        %v723 = vpack.c.bf16 %v693, %v691
        %v724 = vpack.c.bf16 %v696, %v694
        %v725 = vpack.c.bf16 %v697, %v695
        %v726 = vpack.c.bf16 %v700, %v698
        %v727 = vpack.c.bf16 %v701, %v699
        %v728 = vpack.c.bf16 %v704, %v702
        %v729 = vpack.c.bf16 %v705, %v703
        %v730 = vpack.c.bf16 %v708, %v706
        %v731 = vpack.c.bf16 %v709, %v707
        %v732 = vpack.c.bf16 %v712, %v710
        %v733 = vpack.c.bf16 %v713, %v711
        %v734 = vpack.c.bf16 %v716, %v714
        %v735 = vpack.c.bf16 %v717, %v715
        %v736 = vpack.c.bf16 %v720, %v718
        %v737 = vpack.c.bf16 %v721, %v719
        %v754 = vunpack.c.l.b16 %v722
        %v755 = vunpack.c.l.b16 %v723
        %v756 = vunpack.c.h.b16 %v722
        %v757 = vunpack.c.h.b16 %v723
        %v758 = vunpack.c.l.b16 %v724
        %v759 = vunpack.c.l.b16 %v725
        %v760 = vunpack.c.h.b16 %v724
        %v761 = vunpack.c.h.b16 %v725
        %v762 = vunpack.c.l.b16 %v726
        %v763 = vunpack.c.l.b16 %v727
        %v764 = vunpack.c.h.b16 %v726
        %v765 = vunpack.c.h.b16 %v727
        %v766 = vunpack.c.l.b16 %v728
        %v767 = vunpack.c.l.b16 %v729
        %v768 = vunpack.c.h.b16 %v728
        %v769 = vunpack.c.h.b16 %v729
        %v770 = vunpack.c.l.b16 %v730
        %v771 = vunpack.c.l.b16 %v731
        %v772 = vunpack.c.h.b16 %v730
        %v773 = vunpack.c.h.b16 %v731
        %v774 = vunpack.c.l.b16 %v732
        %v775 = vunpack.c.l.b16 %v733
        %v776 = vunpack.c.h.b16 %v732
        %v777 = vunpack.c.h.b16 %v733
        %v778 = vunpack.c.l.b16 %v734
        %v779 = vunpack.c.l.b16 %v735
        %v780 = vunpack.c.h.b16 %v734
        %v781 = vunpack.c.h.b16 %v735
        %v782 = vunpack.c.l.b16 %v736
        %v783 = vunpack.c.l.b16 %v737
        %v784 = vunpack.c.h.b16 %v736
        %v785 = vunpack.c.h.b16 %v737
        %v786 = vpack.c.b16 %v755, %v754
        %v787 = vpack.c.b16 %v757, %v756
        %v788 = vpack.c.b16 %v759, %v758
        %v789 = vpack.c.b16 %v761, %v760
        %v790 = vpack.c.b16 %v763, %v762
        %v791 = vpack.c.b16 %v765, %v764
        %v792 = vpack.c.b16 %v767, %v766
        %v793 = vpack.c.b16 %v769, %v768
        %v794 = vpack.c.b16 %v771, %v770
        %v795 = vpack.c.b16 %v773, %v772
        %v796 = vpack.c.b16 %v775, %v774
        %v797 = vpack.c.b16 %v777, %v776
        %v798 = vpack.c.b16 %v779, %v778
        %v799 = vpack.c.b16 %v781, %v780
        %v800 = vpack.c.b16 %v783, %v782
        %v801 = vpack.c.b16 %v785, %v784
        %818 = vst [vmem:[#allocation3] sm:$0xff] %v786
        %819 = vst [vmem:[#allocation3 + $0x48] sm:$0xff] %v787
        %820 = vst [vmem:[#allocation3 + $0x90] sm:$0xff] %v788
        %821 = vst [vmem:[#allocation3 + $0xd8] sm:$0xff] %v789
        %822 = vst [vmem:[#allocation3 + $0x120] sm:$0xff] %v790
        %823 = vst [vmem:[#allocation3 + $0x168] sm:$0xff] %v791
        %824 = vst [vmem:[#allocation3 + $0x1b0] sm:$0xff] %v792
        %825 = vst [vmem:[#allocation3 + $0x1f8] sm:$0xff] %v793
        %826 = vst [vmem:[#allocation3 + $0x240] sm:$0xff] %v794
        %827 = vst [vmem:[#allocation3 + $0x288] sm:$0xff] %v795
        %828 = vst [vmem:[#allocation3 + $0x2d0] sm:$0xff] %v796
        %829 = vst [vmem:[#allocation3 + $0x318] sm:$0xff] %v797
        %830 = vst [vmem:[#allocation3 + $0x360] sm:$0xff] %v798
        %831 = vst [vmem:[#allocation3 + $0x3a8] sm:$0xff] %v799
        %832 = vst [vmem:[#allocation3 + $0x3f0] sm:$0xff] %v800
        %833 = vst [vmem:[#allocation3 + $0x438] sm:$0xff] %v801
        %v834 = vld [vmem:[#allocation2] sm:$0xfe]
        %v835 = vld [vmem:[#allocation2 + $0x8] sm:$0xfe]
        %v836 = vld [vmem:[#allocation2 + $0x10] sm:$0xff]
        %v837 = vld [vmem:[#allocation2 + $0x18] sm:$0xff]
        %v838 = vld [vmem:[#allocation2 + $0x20] sm:$0x1]
        %v839 = vld [vmem:[#allocation2 + $0x28] sm:$0x1]
        %v840 = vld [vmem:[#allocation2 + $0x30] sm:$0xfe]
        %v841 = vld [vmem:[#allocation2 + $0x38] sm:$0xfe]
        %v842 = vld [vmem:[#allocation2 + $0x40] sm:$0xff]
        %v843 = vld [vmem:[#allocation2 + $0x48] sm:$0xff]
        %v844 = vld [vmem:[#allocation2 + $0x50] sm:$0x1]
        %v845 = vld [vmem:[#allocation2 + $0x58] sm:$0x1]
        %v846 = vld [vmem:[#allocation2 + $0x60] sm:$0xfe]
        %v847 = vld [vmem:[#allocation2 + $0x68] sm:$0xfe]
        %v848 = vld [vmem:[#allocation2 + $0x70] sm:$0xff]
        %v849 = vld [vmem:[#allocation2 + $0x78] sm:$0xff]
        %v850 = vld [vmem:[#allocation2 + $0x80] sm:$0x1]
        %v851 = vld [vmem:[#allocation2 + $0x88] sm:$0x1]
        %v852 = vld [vmem:[#allocation2 + $0x90] sm:$0xfe]
        %v853 = vld [vmem:[#allocation2 + $0x98] sm:$0xfe]
        %v854 = vld [vmem:[#allocation2 + $0xa0] sm:$0xff]
        %v855 = vld [vmem:[#allocation2 + $0xa8] sm:$0xff]
        %v856 = vld [vmem:[#allocation2 + $0xb0] sm:$0x1]
        %v857 = vld [vmem:[#allocation2 + $0xb8] sm:$0x1]
        %v858 = vld [vmem:[#allocation2 + $0xc0] sm:$0xfe]
        %v859 = vld [vmem:[#allocation2 + $0xc8] sm:$0xfe]
        %v860 = vld [vmem:[#allocation2 + $0xd0] sm:$0xff]
        %v861 = vld [vmem:[#allocation2 + $0xd8] sm:$0xff]
        %v862 = vld [vmem:[#allocation2 + $0xe0] sm:$0x1]
        %v863 = vld [vmem:[#allocation2 + $0xe8] sm:$0x1]
        %v864 = vld [vmem:[#allocation2 + $0xf0] sm:$0xfe]
        %v865 = vld [vmem:[#allocation2 + $0xf8] sm:$0xfe]
        %v866 = vld [vmem:[#allocation2 + $0x100] sm:$0xff]
        %v867 = vld [vmem:[#allocation2 + $0x108] sm:$0xff]
        %v868 = vld [vmem:[#allocation2 + $0x110] sm:$0x1]
        %v869 = vld [vmem:[#allocation2 + $0x118] sm:$0x1]
        %v870 = vld [vmem:[#allocation2 + $0x120] sm:$0xfe]
        %v871 = vld [vmem:[#allocation2 + $0x128] sm:$0xfe]
        %v872 = vld [vmem:[#allocation2 + $0x130] sm:$0xff]
        %v873 = vld [vmem:[#allocation2 + $0x138] sm:$0xff]
        %v874 = vld [vmem:[#allocation2 + $0x140] sm:$0x1]
        %v875 = vld [vmem:[#allocation2 + $0x148] sm:$0x1]
        %v876 = vld [vmem:[#allocation2 + $0x150] sm:$0xfe]
        %v877 = vld [vmem:[#allocation2 + $0x158] sm:$0xfe]
        %v878 = vld [vmem:[#allocation2 + $0x160] sm:$0xff]
        %v879 = vld [vmem:[#allocation2 + $0x168] sm:$0xff]
        %v880 = vld [vmem:[#allocation2 + $0x170] sm:$0x1]
        %v881 = vld [vmem:[#allocation2 + $0x178] sm:$0x1]
        %vm930 = vcmask 1046528
        %v931 = vrot.slane %v834, 1
        %v932 = vrot.slane %v836, 1
        %v933 = vsel %vm930, %v931, %v932
        %v934 = vrot.slane %v835, 1
        %v935 = vrot.slane %v837, 1
        %v936 = vsel %vm930, %v934, %v935
        %v937 = vrot.slane %v838, 1
        %v938 = vsel %vm930, %v932, %v937
        %v939 = vrot.slane %v839, 1
        %v940 = vsel %vm930, %v935, %v939
        %v941 = vrot.slane %v840, 1
        %v942 = vrot.slane %v842, 1
        %v943 = vsel %vm930, %v941, %v942
        %v944 = vrot.slane %v841, 1
        %v945 = vrot.slane %v843, 1
        %v946 = vsel %vm930, %v944, %v945
        %v947 = vrot.slane %v844, 1
        %v948 = vsel %vm930, %v942, %v947
        %v949 = vrot.slane %v845, 1
        %v950 = vsel %vm930, %v945, %v949
        %v951 = vrot.slane %v846, 1
        %v952 = vrot.slane %v848, 1
        %v953 = vsel %vm930, %v951, %v952
        %v954 = vrot.slane %v847, 1
        %v955 = vrot.slane %v849, 1
        %v956 = vsel %vm930, %v954, %v955
        %v957 = vrot.slane %v850, 1
        %v958 = vsel %vm930, %v952, %v957
        %v959 = vrot.slane %v851, 1
        %v960 = vsel %vm930, %v955, %v959
        %v961 = vrot.slane %v852, 1
        %v962 = vrot.slane %v854, 1
        %v963 = vsel %vm930, %v961, %v962
        %v964 = vrot.slane %v853, 1
        %v965 = vrot.slane %v855, 1
        %v966 = vsel %vm930, %v964, %v965
        %v967 = vrot.slane %v856, 1
        %v968 = vsel %vm930, %v962, %v967
        %v969 = vrot.slane %v857, 1
        %v970 = vsel %vm930, %v965, %v969
        %v971 = vrot.slane %v858, 1
        %v972 = vrot.slane %v860, 1
        %v973 = vsel %vm930, %v971, %v972
        %v974 = vrot.slane %v859, 1
        %v975 = vrot.slane %v861, 1
        %v976 = vsel %vm930, %v974, %v975
        %v977 = vrot.slane %v862, 1
        %v978 = vsel %vm930, %v972, %v977
        %v979 = vrot.slane %v863, 1
        %v980 = vsel %vm930, %v975, %v979
        %v981 = vrot.slane %v864, 1
        %v982 = vrot.slane %v866, 1
        %v983 = vsel %vm930, %v981, %v982
        %v984 = vrot.slane %v865, 1
        %v985 = vrot.slane %v867, 1
        %v986 = vsel %vm930, %v984, %v985
        %v987 = vrot.slane %v868, 1
        %v988 = vsel %vm930, %v982, %v987
        %v989 = vrot.slane %v869, 1
        %v990 = vsel %vm930, %v985, %v989
        %v991 = vrot.slane %v870, 1
        %v992 = vrot.slane %v872, 1
        %v993 = vsel %vm930, %v991, %v992
        %v994 = vrot.slane %v871, 1
        %v995 = vrot.slane %v873, 1
        %v996 = vsel %vm930, %v994, %v995
        %v997 = vrot.slane %v874, 1
        %v998 = vsel %vm930, %v992, %v997
        %v999 = vrot.slane %v875, 1
        %v1000 = vsel %vm930, %v995, %v999
        %v1001 = vrot.slane %v876, 1
        %v1002 = vrot.slane %v878, 1
        %v1003 = vsel %vm930, %v1001, %v1002
        %v1004 = vrot.slane %v877, 1
        %v1005 = vrot.slane %v879, 1
        %v1006 = vsel %vm930, %v1004, %v1005
        %v1007 = vrot.slane %v880, 1
        %v1008 = vsel %vm930, %v1002, %v1007
        %v1009 = vrot.slane %v881, 1
        %v1010 = vsel %vm930, %v1005, %v1009
        %v1043 = vpack.c.bf16 %v938, %v933
        %v1044 = vpack.c.bf16 %v940, %v936
        %v1045 = vpack.c.bf16 %v948, %v943
        %v1046 = vpack.c.bf16 %v950, %v946
        %v1047 = vpack.c.bf16 %v958, %v953
        %v1048 = vpack.c.bf16 %v960, %v956
        %v1049 = vpack.c.bf16 %v968, %v963
        %v1050 = vpack.c.bf16 %v970, %v966
        %v1051 = vpack.c.bf16 %v978, %v973
        %v1052 = vpack.c.bf16 %v980, %v976
        %v1053 = vpack.c.bf16 %v988, %v983
        %v1054 = vpack.c.bf16 %v990, %v986
        %v1055 = vpack.c.bf16 %v998, %v993
        %v1056 = vpack.c.bf16 %v1000, %v996
        %v1057 = vpack.c.bf16 %v1008, %v1003
        %v1058 = vpack.c.bf16 %v1010, %v1006
        %v1075 = vunpack.c.l.b16 %v1043
        %v1076 = vunpack.c.l.b16 %v1044
        %v1077 = vunpack.c.h.b16 %v1043
        %v1078 = vunpack.c.h.b16 %v1044
        %v1079 = vunpack.c.l.b16 %v1045
        %v1080 = vunpack.c.l.b16 %v1046
        %v1081 = vunpack.c.h.b16 %v1045
        %v1082 = vunpack.c.h.b16 %v1046
        %v1083 = vunpack.c.l.b16 %v1047
        %v1084 = vunpack.c.l.b16 %v1048
        %v1085 = vunpack.c.h.b16 %v1047
        %v1086 = vunpack.c.h.b16 %v1048
        %v1087 = vunpack.c.l.b16 %v1049
        %v1088 = vunpack.c.l.b16 %v1050
        %v1089 = vunpack.c.h.b16 %v1049
        %v1090 = vunpack.c.h.b16 %v1050
        %v1091 = vunpack.c.l.b16 %v1051
        %v1092 = vunpack.c.l.b16 %v1052
        %v1093 = vunpack.c.h.b16 %v1051
        %v1094 = vunpack.c.h.b16 %v1052
        %v1095 = vunpack.c.l.b16 %v1053
        %v1096 = vunpack.c.l.b16 %v1054
        %v1097 = vunpack.c.h.b16 %v1053
        %v1098 = vunpack.c.h.b16 %v1054
        %v1099 = vunpack.c.l.b16 %v1055
        %v1100 = vunpack.c.l.b16 %v1056
        %v1101 = vunpack.c.h.b16 %v1055
        %v1102 = vunpack.c.h.b16 %v1056
        %v1103 = vunpack.c.l.b16 %v1057
        %v1104 = vunpack.c.l.b16 %v1058
        %v1105 = vunpack.c.h.b16 %v1057
        %v1106 = vunpack.c.h.b16 %v1058
        %v1107 = vpack.c.b16 %v1076, %v1075
        %v1108 = vpack.c.b16 %v1078, %v1077
        %v1109 = vpack.c.b16 %v1080, %v1079
        %v1110 = vpack.c.b16 %v1082, %v1081
        %v1111 = vpack.c.b16 %v1084, %v1083
        %v1112 = vpack.c.b16 %v1086, %v1085
        %v1113 = vpack.c.b16 %v1088, %v1087
        %v1114 = vpack.c.b16 %v1090, %v1089
        %v1115 = vpack.c.b16 %v1092, %v1091
        %v1116 = vpack.c.b16 %v1094, %v1093
        %v1117 = vpack.c.b16 %v1096, %v1095
        %v1118 = vpack.c.b16 %v1098, %v1097
        %v1119 = vpack.c.b16 %v1100, %v1099
        %v1120 = vpack.c.b16 %v1102, %v1101
        %v1121 = vpack.c.b16 %v1104, %v1103
        %v1122 = vpack.c.b16 %v1106, %v1105
        %1139 = vst [vmem:[#allocation3 + $0x8] sm:$0xff] %v1107
        %1140 = vst [vmem:[#allocation3 + $0x50] sm:$0xff] %v1108
        %1141 = vst [vmem:[#allocation3 + $0x98] sm:$0xff] %v1109
        %1142 = vst [vmem:[#allocation3 + $0xe0] sm:$0xff] %v1110
        %1143 = vst [vmem:[#allocation3 + $0x128] sm:$0xff] %v1111
        %1144 = vst [vmem:[#allocation3 + $0x170] sm:$0xff] %v1112
        %1145 = vst [vmem:[#allocation3 + $0x1b8] sm:$0xff] %v1113
        %1146 = vst [vmem:[#allocation3 + $0x200] sm:$0xff] %v1114
        %1147 = vst [vmem:[#allocation3 + $0x248] sm:$0xff] %v1115
        %1148 = vst [vmem:[#allocation3 + $0x290] sm:$0xff] %v1116
        %1149 = vst [vmem:[#allocation3 + $0x2d8] sm:$0xff] %v1117
        %1150 = vst [vmem:[#allocation3 + $0x320] sm:$0xff] %v1118
        %1151 = vst [vmem:[#allocation3 + $0x368] sm:$0xff] %v1119
        %1152 = vst [vmem:[#allocation3 + $0x3b0] sm:$0xff] %v1120
        %1153 = vst [vmem:[#allocation3 + $0x3f8] sm:$0xff] %v1121
        %1154 = vst [vmem:[#allocation3 + $0x440] sm:$0xff] %v1122
        %v1155 = vld [vmem:[#allocation2] sm:$0xfc]
        %v1156 = vld [vmem:[#allocation2 + $0x8] sm:$0xfc]
        %v1157 = vld [vmem:[#allocation2 + $0x10] sm:$0xff]
        %v1158 = vld [vmem:[#allocation2 + $0x18] sm:$0xff]
        %v1159 = vld [vmem:[#allocation2 + $0x20] sm:$0x3]
        %v1160 = vld [vmem:[#allocation2 + $0x28] sm:$0x3]
        %v1161 = vld [vmem:[#allocation2 + $0x30] sm:$0xfc]
        %v1162 = vld [vmem:[#allocation2 + $0x38] sm:$0xfc]
        %v1163 = vld [vmem:[#allocation2 + $0x40] sm:$0xff]
        %v1164 = vld [vmem:[#allocation2 + $0x48] sm:$0xff]
        %v1165 = vld [vmem:[#allocation2 + $0x50] sm:$0x3]
        %v1166 = vld [vmem:[#allocation2 + $0x58] sm:$0x3]
        %v1167 = vld [vmem:[#allocation2 + $0x60] sm:$0xfc]
        %v1168 = vld [vmem:[#allocation2 + $0x68] sm:$0xfc]
        %v1169 = vld [vmem:[#allocation2 + $0x70] sm:$0xff]
        %v1170 = vld [vmem:[#allocation2 + $0x78] sm:$0xff]
        %v1171 = vld [vmem:[#allocation2 + $0x80] sm:$0x3]
        %v1172 = vld [vmem:[#allocation2 + $0x88] sm:$0x3]
        %v1173 = vld [vmem:[#allocation2 + $0x90] sm:$0xfc]
        %v1174 = vld [vmem:[#allocation2 + $0x98] sm:$0xfc]
        %v1175 = vld [vmem:[#allocation2 + $0xa0] sm:$0xff]
        %v1176 = vld [vmem:[#allocation2 + $0xa8] sm:$0xff]
        %v1177 = vld [vmem:[#allocation2 + $0xb0] sm:$0x3]
        %v1178 = vld [vmem:[#allocation2 + $0xb8] sm:$0x3]
        %v1179 = vld [vmem:[#allocation2 + $0xc0] sm:$0xfc]
        %v1180 = vld [vmem:[#allocation2 + $0xc8] sm:$0xfc]
        %v1181 = vld [vmem:[#allocation2 + $0xd0] sm:$0xff]
        %v1182 = vld [vmem:[#allocation2 + $0xd8] sm:$0xff]
        %v1183 = vld [vmem:[#allocation2 + $0xe0] sm:$0x3]
        %v1184 = vld [vmem:[#allocation2 + $0xe8] sm:$0x3]
        %v1185 = vld [vmem:[#allocation2 + $0xf0] sm:$0xfc]
        %v1186 = vld [vmem:[#allocation2 + $0xf8] sm:$0xfc]
        %v1187 = vld [vmem:[#allocation2 + $0x100] sm:$0xff]
        %v1188 = vld [vmem:[#allocation2 + $0x108] sm:$0xff]
        %v1189 = vld [vmem:[#allocation2 + $0x110] sm:$0x3]
        %v1190 = vld [vmem:[#allocation2 + $0x118] sm:$0x3]
        %v1191 = vld [vmem:[#allocation2 + $0x120] sm:$0xfc]
        %v1192 = vld [vmem:[#allocation2 + $0x128] sm:$0xfc]
        %v1193 = vld [vmem:[#allocation2 + $0x130] sm:$0xff]
        %v1194 = vld [vmem:[#allocation2 + $0x138] sm:$0xff]
        %v1195 = vld [vmem:[#allocation2 + $0x140] sm:$0x3]
        %v1196 = vld [vmem:[#allocation2 + $0x148] sm:$0x3]
        %v1197 = vld [vmem:[#allocation2 + $0x150] sm:$0xfc]
        %v1198 = vld [vmem:[#allocation2 + $0x158] sm:$0xfc]
        %v1199 = vld [vmem:[#allocation2 + $0x160] sm:$0xff]
        %v1200 = vld [vmem:[#allocation2 + $0x168] sm:$0xff]
        %v1201 = vld [vmem:[#allocation2 + $0x170] sm:$0x3]
        %v1202 = vld [vmem:[#allocation2 + $0x178] sm:$0x3]
        %vm1251 = vcmask 1045504
        %v1252 = vrot.slane %v1155, 2
        %v1253 = vrot.slane %v1157, 2
        %v1254 = vsel %vm1251, %v1252, %v1253
        %v1255 = vrot.slane %v1156, 2
        %v1256 = vrot.slane %v1158, 2
        %v1257 = vsel %vm1251, %v1255, %v1256
        %v1258 = vrot.slane %v1159, 2
        %v1259 = vsel %vm1251, %v1253, %v1258
        %v1260 = vrot.slane %v1160, 2
        %v1261 = vsel %vm1251, %v1256, %v1260
        %v1262 = vrot.slane %v1161, 2
        %v1263 = vrot.slane %v1163, 2
        %v1264 = vsel %vm1251, %v1262, %v1263
        %v1265 = vrot.slane %v1162, 2
        %v1266 = vrot.slane %v1164, 2
        %v1267 = vsel %vm1251, %v1265, %v1266
        %v1268 = vrot.slane %v1165, 2
        %v1269 = vsel %vm1251, %v1263, %v1268
        %v1270 = vrot.slane %v1166, 2
        %v1271 = vsel %vm1251, %v1266, %v1270
        %v1272 = vrot.slane %v1167, 2
        %v1273 = vrot.slane %v1169, 2
        %v1274 = vsel %vm1251, %v1272, %v1273
        %v1275 = vrot.slane %v1168, 2
        %v1276 = vrot.slane %v1170, 2
        %v1277 = vsel %vm1251, %v1275, %v1276
        %v1278 = vrot.slane %v1171, 2
        %v1279 = vsel %vm1251, %v1273, %v1278
        %v1280 = vrot.slane %v1172, 2
        %v1281 = vsel %vm1251, %v1276, %v1280
        %v1282 = vrot.slane %v1173, 2
        %v1283 = vrot.slane %v1175, 2
        %v1284 = vsel %vm1251, %v1282, %v1283
        %v1285 = vrot.slane %v1174, 2
        %v1286 = vrot.slane %v1176, 2
        %v1287 = vsel %vm1251, %v1285, %v1286
        %v1288 = vrot.slane %v1177, 2
        %v1289 = vsel %vm1251, %v1283, %v1288
        %v1290 = vrot.slane %v1178, 2
        %v1291 = vsel %vm1251, %v1286, %v1290
        %v1292 = vrot.slane %v1179, 2
        %v1293 = vrot.slane %v1181, 2
        %v1294 = vsel %vm1251, %v1292, %v1293
        %v1295 = vrot.slane %v1180, 2
        %v1296 = vrot.slane %v1182, 2
        %v1297 = vsel %vm1251, %v1295, %v1296
        %v1298 = vrot.slane %v1183, 2
        %v1299 = vsel %vm1251, %v1293, %v1298
        %v1300 = vrot.slane %v1184, 2
        %v1301 = vsel %vm1251, %v1296, %v1300
        %v1302 = vrot.slane %v1185, 2
        %v1303 = vrot.slane %v1187, 2
        %v1304 = vsel %vm1251, %v1302, %v1303
        %v1305 = vrot.slane %v1186, 2
        %v1306 = vrot.slane %v1188, 2
        %v1307 = vsel %vm1251, %v1305, %v1306
        %v1308 = vrot.slane %v1189, 2
        %v1309 = vsel %vm1251, %v1303, %v1308
        %v1310 = vrot.slane %v1190, 2
        %v1311 = vsel %vm1251, %v1306, %v1310
        %v1312 = vrot.slane %v1191, 2
        %v1313 = vrot.slane %v1193, 2
        %v1314 = vsel %vm1251, %v1312, %v1313
        %v1315 = vrot.slane %v1192, 2
        %v1316 = vrot.slane %v1194, 2
        %v1317 = vsel %vm1251, %v1315, %v1316
        %v1318 = vrot.slane %v1195, 2
        %v1319 = vsel %vm1251, %v1313, %v1318
        %v1320 = vrot.slane %v1196, 2
        %v1321 = vsel %vm1251, %v1316, %v1320
        %v1322 = vrot.slane %v1197, 2
        %v1323 = vrot.slane %v1199, 2
        %v1324 = vsel %vm1251, %v1322, %v1323
        %v1325 = vrot.slane %v1198, 2
        %v1326 = vrot.slane %v1200, 2
        %v1327 = vsel %vm1251, %v1325, %v1326
        %v1328 = vrot.slane %v1201, 2
        %v1329 = vsel %vm1251, %v1323, %v1328
        %v1330 = vrot.slane %v1202, 2
        %v1331 = vsel %vm1251, %v1326, %v1330
        %v1364 = vpack.c.bf16 %v1259, %v1254
        %v1365 = vpack.c.bf16 %v1261, %v1257
        %v1366 = vpack.c.bf16 %v1269, %v1264
        %v1367 = vpack.c.bf16 %v1271, %v1267
        %v1368 = vpack.c.bf16 %v1279, %v1274
        %v1369 = vpack.c.bf16 %v1281, %v1277
        %v1370 = vpack.c.bf16 %v1289, %v1284
        %v1371 = vpack.c.bf16 %v1291, %v1287
        %v1372 = vpack.c.bf16 %v1299, %v1294
        %v1373 = vpack.c.bf16 %v1301, %v1297
        %v1374 = vpack.c.bf16 %v1309, %v1304
        %v1375 = vpack.c.bf16 %v1311, %v1307
        %v1376 = vpack.c.bf16 %v1319, %v1314
        %v1377 = vpack.c.bf16 %v1321, %v1317
        %v1378 = vpack.c.bf16 %v1329, %v1324
        %v1379 = vpack.c.bf16 %v1331, %v1327
        %v1396 = vunpack.c.l.b16 %v1364
        %v1397 = vunpack.c.l.b16 %v1365
        %v1398 = vunpack.c.h.b16 %v1364
        %v1399 = vunpack.c.h.b16 %v1365
        %v1400 = vunpack.c.l.b16 %v1366
        %v1401 = vunpack.c.l.b16 %v1367
        %v1402 = vunpack.c.h.b16 %v1366
        %v1403 = vunpack.c.h.b16 %v1367
        %v1404 = vunpack.c.l.b16 %v1368
        %v1405 = vunpack.c.l.b16 %v1369
        %v1406 = vunpack.c.h.b16 %v1368
        %v1407 = vunpack.c.h.b16 %v1369
        %v1408 = vunpack.c.l.b16 %v1370
        %v1409 = vunpack.c.l.b16 %v1371
        %v1410 = vunpack.c.h.b16 %v1370
        %v1411 = vunpack.c.h.b16 %v1371
        %v1412 = vunpack.c.l.b16 %v1372
        %v1413 = vunpack.c.l.b16 %v1373
        %v1414 = vunpack.c.h.b16 %v1372
        %v1415 = vunpack.c.h.b16 %v1373
        %v1416 = vunpack.c.l.b16 %v1374
        %v1417 = vunpack.c.l.b16 %v1375
        %v1418 = vunpack.c.h.b16 %v1374
        %v1419 = vunpack.c.h.b16 %v1375
        %v1420 = vunpack.c.l.b16 %v1376
        %v1421 = vunpack.c.l.b16 %v1377
        %v1422 = vunpack.c.h.b16 %v1376
        %v1423 = vunpack.c.h.b16 %v1377
        %v1424 = vunpack.c.l.b16 %v1378
        %v1425 = vunpack.c.l.b16 %v1379
        %v1426 = vunpack.c.h.b16 %v1378
        %v1427 = vunpack.c.h.b16 %v1379
        %v1428 = vpack.c.b16 %v1397, %v1396
        %v1429 = vpack.c.b16 %v1399, %v1398
        %v1430 = vpack.c.b16 %v1401, %v1400
        %v1431 = vpack.c.b16 %v1403, %v1402
        %v1432 = vpack.c.b16 %v1405, %v1404
        %v1433 = vpack.c.b16 %v1407, %v1406
        %v1434 = vpack.c.b16 %v1409, %v1408
        %v1435 = vpack.c.b16 %v1411, %v1410
        %v1436 = vpack.c.b16 %v1413, %v1412
        %v1437 = vpack.c.b16 %v1415, %v1414
        %v1438 = vpack.c.b16 %v1417, %v1416
        %v1439 = vpack.c.b16 %v1419, %v1418
        %v1440 = vpack.c.b16 %v1421, %v1420
        %v1441 = vpack.c.b16 %v1423, %v1422
        %v1442 = vpack.c.b16 %v1425, %v1424
        %v1443 = vpack.c.b16 %v1427, %v1426
        %1460 = vst [vmem:[#allocation3 + $0x10] sm:$0xff] %v1428
        %1461 = vst [vmem:[#allocation3 + $0x58] sm:$0xff] %v1429
        %1462 = vst [vmem:[#allocation3 + $0xa0] sm:$0xff] %v1430
        %1463 = vst [vmem:[#allocation3 + $0xe8] sm:$0xff] %v1431
        %1464 = vst [vmem:[#allocation3 + $0x130] sm:$0xff] %v1432
        %1465 = vst [vmem:[#allocation3 + $0x178] sm:$0xff] %v1433
        %1466 = vst [vmem:[#allocation3 + $0x1c0] sm:$0xff] %v1434
        %1467 = vst [vmem:[#allocation3 + $0x208] sm:$0xff] %v1435
        %1468 = vst [vmem:[#allocation3 + $0x250] sm:$0xff] %v1436
        %1469 = vst [vmem:[#allocation3 + $0x298] sm:$0xff] %v1437
        %1470 = vst [vmem:[#allocation3 + $0x2e0] sm:$0xff] %v1438
        %1471 = vst [vmem:[#allocation3 + $0x328] sm:$0xff] %v1439
        %1472 = vst [vmem:[#allocation3 + $0x370] sm:$0xff] %v1440
        %1473 = vst [vmem:[#allocation3 + $0x3b8] sm:$0xff] %v1441
        %1474 = vst [vmem:[#allocation3 + $0x400] sm:$0xff] %v1442
        %1475 = vst [vmem:[#allocation3 + $0x448] sm:$0xff] %v1443
        %v1476 = vld [vmem:[%s641] sm:$0xff]
        %v1477 = vld [vmem:[%s641 + $0x8] sm:$0xff]
        %v1478 = vld [vmem:[%s641 + $0x10] sm:$0xff]
        %v1479 = vld [vmem:[%s641 + $0x18] sm:$0xff]
        %v1480 = vld [vmem:[%s641 + $0x30] sm:$0xff]
        %v1481 = vld [vmem:[%s641 + $0x38] sm:$0xff]
        %v1482 = vld [vmem:[%s641 + $0x40] sm:$0xff]
        %v1483 = vld [vmem:[%s641 + $0x48] sm:$0xff]
        %v1484 = vld [vmem:[%s641 + $0x60] sm:$0xff]
        %v1485 = vld [vmem:[%s641 + $0x68] sm:$0xff]
        %v1486 = vld [vmem:[%s641 + $0x70] sm:$0xff]
        %v1487 = vld [vmem:[%s641 + $0x78] sm:$0xff]
        %v1488 = vld [vmem:[%s641 + $0x90] sm:$0xff]
        %v1489 = vld [vmem:[%s641 + $0x98] sm:$0xff]
        %v1490 = vld [vmem:[%s641 + $0xa0] sm:$0xff]
        %v1491 = vld [vmem:[%s641 + $0xa8] sm:$0xff]
        %v1492 = vld [vmem:[%s641 + $0xc0] sm:$0xff]
        %v1493 = vld [vmem:[%s641 + $0xc8] sm:$0xff]
        %v1494 = vld [vmem:[%s641 + $0xd0] sm:$0xff]
        %v1495 = vld [vmem:[%s641 + $0xd8] sm:$0xff]
        %v1496 = vld [vmem:[%s641 + $0xf0] sm:$0xff]
        %v1497 = vld [vmem:[%s641 + $0xf8] sm:$0xff]
        %v1498 = vld [vmem:[%s641 + $0x100] sm:$0xff]
        %v1499 = vld [vmem:[%s641 + $0x108] sm:$0xff]
        %v1500 = vld [vmem:[%s641 + $0x120] sm:$0xff]
        %v1501 = vld [vmem:[%s641 + $0x128] sm:$0xff]
        %v1502 = vld [vmem:[%s641 + $0x130] sm:$0xff]
        %v1503 = vld [vmem:[%s641 + $0x138] sm:$0xff]
        %v1504 = vld [vmem:[%s641 + $0x150] sm:$0xff]
        %v1505 = vld [vmem:[%s641 + $0x158] sm:$0xff]
        %v1506 = vld [vmem:[%s641 + $0x160] sm:$0xff]
        %v1507 = vld [vmem:[%s641 + $0x168] sm:$0xff]
        %v1508 = vpack.c.bf16 %v1478, %v1476
        %v1509 = vpack.c.bf16 %v1479, %v1477
        %v1510 = vpack.c.bf16 %v1482, %v1480
        %v1511 = vpack.c.bf16 %v1483, %v1481
        %v1512 = vpack.c.bf16 %v1486, %v1484
        %v1513 = vpack.c.bf16 %v1487, %v1485
        %v1514 = vpack.c.bf16 %v1490, %v1488
        %v1515 = vpack.c.bf16 %v1491, %v1489
        %v1516 = vpack.c.bf16 %v1494, %v1492
        %v1517 = vpack.c.bf16 %v1495, %v1493
        %v1518 = vpack.c.bf16 %v1498, %v1496
        %v1519 = vpack.c.bf16 %v1499, %v1497
        %v1520 = vpack.c.bf16 %v1502, %v1500
        %v1521 = vpack.c.bf16 %v1503, %v1501
        %v1522 = vpack.c.bf16 %v1506, %v1504
        %v1523 = vpack.c.bf16 %v1507, %v1505
        %v1540 = vunpack.c.l.b16 %v1508
        %v1541 = vunpack.c.l.b16 %v1509
        %v1542 = vunpack.c.h.b16 %v1508
        %v1543 = vunpack.c.h.b16 %v1509
        %v1544 = vunpack.c.l.b16 %v1510
        %v1545 = vunpack.c.l.b16 %v1511
        %v1546 = vunpack.c.h.b16 %v1510
        %v1547 = vunpack.c.h.b16 %v1511
        %v1548 = vunpack.c.l.b16 %v1512
        %v1549 = vunpack.c.l.b16 %v1513
        %v1550 = vunpack.c.h.b16 %v1512
        %v1551 = vunpack.c.h.b16 %v1513
        %v1552 = vunpack.c.l.b16 %v1514
        %v1553 = vunpack.c.l.b16 %v1515
        %v1554 = vunpack.c.h.b16 %v1514
        %v1555 = vunpack.c.h.b16 %v1515
        %v1556 = vunpack.c.l.b16 %v1516
        %v1557 = vunpack.c.l.b16 %v1517
        %v1558 = vunpack.c.h.b16 %v1516
        %v1559 = vunpack.c.h.b16 %v1517
        %v1560 = vunpack.c.l.b16 %v1518
        %v1561 = vunpack.c.l.b16 %v1519
        %v1562 = vunpack.c.h.b16 %v1518
        %v1563 = vunpack.c.h.b16 %v1519
        %v1564 = vunpack.c.l.b16 %v1520
        %v1565 = vunpack.c.l.b16 %v1521
        %v1566 = vunpack.c.h.b16 %v1520
        %v1567 = vunpack.c.h.b16 %v1521
        %v1568 = vunpack.c.l.b16 %v1522
        %v1569 = vunpack.c.l.b16 %v1523
        %v1570 = vunpack.c.h.b16 %v1522
        %v1571 = vunpack.c.h.b16 %v1523
        %v1572 = vpack.c.b16 %v1541, %v1540
        %v1573 = vpack.c.b16 %v1543, %v1542
        %v1574 = vpack.c.b16 %v1545, %v1544
        %v1575 = vpack.c.b16 %v1547, %v1546
        %v1576 = vpack.c.b16 %v1549, %v1548
        %v1577 = vpack.c.b16 %v1551, %v1550
        %v1578 = vpack.c.b16 %v1553, %v1552
        %v1579 = vpack.c.b16 %v1555, %v1554
        %v1580 = vpack.c.b16 %v1557, %v1556
        %v1581 = vpack.c.b16 %v1559, %v1558
        %v1582 = vpack.c.b16 %v1561, %v1560
        %v1583 = vpack.c.b16 %v1563, %v1562
        %v1584 = vpack.c.b16 %v1565, %v1564
        %v1585 = vpack.c.b16 %v1567, %v1566
        %v1586 = vpack.c.b16 %v1569, %v1568
        %v1587 = vpack.c.b16 %v1571, %v1570
        %1604 = vst [vmem:[#allocation3 + $0x18] sm:$0xff] %v1572
        %1605 = vst [vmem:[#allocation3 + $0x60] sm:$0xff] %v1573
        %1606 = vst [vmem:[#allocation3 + $0xa8] sm:$0xff] %v1574
        %1607 = vst [vmem:[#allocation3 + $0xf0] sm:$0xff] %v1575
        %1608 = vst [vmem:[#allocation3 + $0x138] sm:$0xff] %v1576
        %1609 = vst [vmem:[#allocation3 + $0x180] sm:$0xff] %v1577
        %1610 = vst [vmem:[#allocation3 + $0x1c8] sm:$0xff] %v1578
        %1611 = vst [vmem:[#allocation3 + $0x210] sm:$0xff] %v1579
        %1612 = vst [vmem:[#allocation3 + $0x258] sm:$0xff] %v1580
        %1613 = vst [vmem:[#allocation3 + $0x2a0] sm:$0xff] %v1581
        %1614 = vst [vmem:[#allocation3 + $0x2e8] sm:$0xff] %v1582
        %1615 = vst [vmem:[#allocation3 + $0x330] sm:$0xff] %v1583
        %1616 = vst [vmem:[#allocation3 + $0x378] sm:$0xff] %v1584
        %1617 = vst [vmem:[#allocation3 + $0x3c0] sm:$0xff] %v1585
        %1618 = vst [vmem:[#allocation3 + $0x408] sm:$0xff] %v1586
        %1619 = vst [vmem:[#allocation3 + $0x450] sm:$0xff] %v1587
        %v1620 = vld [vmem:[%s641] sm:$0xfe]
        %v1621 = vld [vmem:[%s641 + $0x8] sm:$0xfe]
        %v1622 = vld [vmem:[%s641 + $0x10] sm:$0xff]
        %v1623 = vld [vmem:[%s641 + $0x18] sm:$0xff]
        %v1624 = vld [vmem:[%s641 + $0x20] sm:$0x1]
        %v1625 = vld [vmem:[%s641 + $0x28] sm:$0x1]
        %v1626 = vld [vmem:[%s641 + $0x30] sm:$0xfe]
        %v1627 = vld [vmem:[%s641 + $0x38] sm:$0xfe]
        %v1628 = vld [vmem:[%s641 + $0x40] sm:$0xff]
        %v1629 = vld [vmem:[%s641 + $0x48] sm:$0xff]
        %v1630 = vld [vmem:[%s641 + $0x50] sm:$0x1]
        %v1631 = vld [vmem:[%s641 + $0x58] sm:$0x1]
        %v1632 = vld [vmem:[%s641 + $0x60] sm:$0xfe]
        %v1633 = vld [vmem:[%s641 + $0x68] sm:$0xfe]
        %v1634 = vld [vmem:[%s641 + $0x70] sm:$0xff]
        %v1635 = vld [vmem:[%s641 + $0x78] sm:$0xff]
        %v1636 = vld [vmem:[%s641 + $0x80] sm:$0x1]
        %v1637 = vld [vmem:[%s641 + $0x88] sm:$0x1]
        %v1638 = vld [vmem:[%s641 + $0x90] sm:$0xfe]
        %v1639 = vld [vmem:[%s641 + $0x98] sm:$0xfe]
        %v1640 = vld [vmem:[%s641 + $0xa0] sm:$0xff]
        %v1641 = vld [vmem:[%s641 + $0xa8] sm:$0xff]
        %v1642 = vld [vmem:[%s641 + $0xb0] sm:$0x1]
        %v1643 = vld [vmem:[%s641 + $0xb8] sm:$0x1]
        %v1644 = vld [vmem:[%s641 + $0xc0] sm:$0xfe]
        %v1645 = vld [vmem:[%s641 + $0xc8] sm:$0xfe]
        %v1646 = vld [vmem:[%s641 + $0xd0] sm:$0xff]
        %v1647 = vld [vmem:[%s641 + $0xd8] sm:$0xff]
        %v1648 = vld [vmem:[%s641 + $0xe0] sm:$0x1]
        %v1649 = vld [vmem:[%s641 + $0xe8] sm:$0x1]
        %v1650 = vld [vmem:[%s641 + $0xf0] sm:$0xfe]
        %v1651 = vld [vmem:[%s641 + $0xf8] sm:$0xfe]
        %v1652 = vld [vmem:[%s641 + $0x100] sm:$0xff]
        %v1653 = vld [vmem:[%s641 + $0x108] sm:$0xff]
        %v1654 = vld [vmem:[%s641 + $0x110] sm:$0x1]
        %v1655 = vld [vmem:[%s641 + $0x118] sm:$0x1]
        %v1656 = vld [vmem:[%s641 + $0x120] sm:$0xfe]
        %v1657 = vld [vmem:[%s641 + $0x128] sm:$0xfe]
        %v1658 = vld [vmem:[%s641 + $0x130] sm:$0xff]
        %v1659 = vld [vmem:[%s641 + $0x138] sm:$0xff]
        %v1660 = vld [vmem:[%s641 + $0x140] sm:$0x1]
        %v1661 = vld [vmem:[%s641 + $0x148] sm:$0x1]
        %v1662 = vld [vmem:[%s641 + $0x150] sm:$0xfe]
        %v1663 = vld [vmem:[%s641 + $0x158] sm:$0xfe]
        %v1664 = vld [vmem:[%s641 + $0x160] sm:$0xff]
        %v1665 = vld [vmem:[%s641 + $0x168] sm:$0xff]
        %v1666 = vld [vmem:[%s641 + $0x170] sm:$0x1]
        %v1667 = vld [vmem:[%s641 + $0x178] sm:$0x1]
        %v1716 = vrot.slane %v1620, 1
        %v1717 = vrot.slane %v1622, 1
        %v1718 = vsel %vm930, %v1716, %v1717
        %v1719 = vrot.slane %v1621, 1
        %v1720 = vrot.slane %v1623, 1
        %v1721 = vsel %vm930, %v1719, %v1720
        %v1722 = vrot.slane %v1624, 1
        %v1723 = vsel %vm930, %v1717, %v1722
        %v1724 = vrot.slane %v1625, 1
        %v1725 = vsel %vm930, %v1720, %v1724
        %v1726 = vrot.slane %v1626, 1
        %v1727 = vrot.slane %v1628, 1
        %v1728 = vsel %vm930, %v1726, %v1727
        %v1729 = vrot.slane %v1627, 1
        %v1730 = vrot.slane %v1629, 1
        %v1731 = vsel %vm930, %v1729, %v1730
        %v1732 = vrot.slane %v1630, 1
        %v1733 = vsel %vm930, %v1727, %v1732
        %v1734 = vrot.slane %v1631, 1
        %v1735 = vsel %vm930, %v1730, %v1734
        %v1736 = vrot.slane %v1632, 1
        %v1737 = vrot.slane %v1634, 1
        %v1738 = vsel %vm930, %v1736, %v1737
        %v1739 = vrot.slane %v1633, 1
        %v1740 = vrot.slane %v1635, 1
        %v1741 = vsel %vm930, %v1739, %v1740
        %v1742 = vrot.slane %v1636, 1
        %v1743 = vsel %vm930, %v1737, %v1742
        %v1744 = vrot.slane %v1637, 1
        %v1745 = vsel %vm930, %v1740, %v1744
        %v1746 = vrot.slane %v1638, 1
        %v1747 = vrot.slane %v1640, 1
        %v1748 = vsel %vm930, %v1746, %v1747
        %v1749 = vrot.slane %v1639, 1
        %v1750 = vrot.slane %v1641, 1
        %v1751 = vsel %vm930, %v1749, %v1750
        %v1752 = vrot.slane %v1642, 1
        %v1753 = vsel %vm930, %v1747, %v1752
        %v1754 = vrot.slane %v1643, 1
        %v1755 = vsel %vm930, %v1750, %v1754
        %v1756 = vrot.slane %v1644, 1
        %v1757 = vrot.slane %v1646, 1
        %v1758 = vsel %vm930, %v1756, %v1757
        %v1759 = vrot.slane %v1645, 1
        %v1760 = vrot.slane %v1647, 1
        %v1761 = vsel %vm930, %v1759, %v1760
        %v1762 = vrot.slane %v1648, 1
        %v1763 = vsel %vm930, %v1757, %v1762
        %v1764 = vrot.slane %v1649, 1
        %v1765 = vsel %vm930, %v1760, %v1764
        %v1766 = vrot.slane %v1650, 1
        %v1767 = vrot.slane %v1652, 1
        %v1768 = vsel %vm930, %v1766, %v1767
        %v1769 = vrot.slane %v1651, 1
        %v1770 = vrot.slane %v1653, 1
        %v1771 = vsel %vm930, %v1769, %v1770
        %v1772 = vrot.slane %v1654, 1
        %v1773 = vsel %vm930, %v1767, %v1772
        %v1774 = vrot.slane %v1655, 1
        %v1775 = vsel %vm930, %v1770, %v1774
        %v1776 = vrot.slane %v1656, 1
        %v1777 = vrot.slane %v1658, 1
        %v1778 = vsel %vm930, %v1776, %v1777
        %v1779 = vrot.slane %v1657, 1
        %v1780 = vrot.slane %v1659, 1
        %v1781 = vsel %vm930, %v1779, %v1780
        %v1782 = vrot.slane %v1660, 1
        %v1783 = vsel %vm930, %v1777, %v1782
        %v1784 = vrot.slane %v1661, 1
        %v1785 = vsel %vm930, %v1780, %v1784
        %v1786 = vrot.slane %v1662, 1
        %v1787 = vrot.slane %v1664, 1
        %v1788 = vsel %vm930, %v1786, %v1787
        %v1789 = vrot.slane %v1663, 1
        %v1790 = vrot.slane %v1665, 1
        %v1791 = vsel %vm930, %v1789, %v1790
        %v1792 = vrot.slane %v1666, 1
        %v1793 = vsel %vm930, %v1787, %v1792
        %v1794 = vrot.slane %v1667, 1
        %v1795 = vsel %vm930, %v1790, %v1794
        %v1828 = vpack.c.bf16 %v1723, %v1718
        %v1829 = vpack.c.bf16 %v1725, %v1721
        %v1830 = vpack.c.bf16 %v1733, %v1728
        %v1831 = vpack.c.bf16 %v1735, %v1731
        %v1832 = vpack.c.bf16 %v1743, %v1738
        %v1833 = vpack.c.bf16 %v1745, %v1741
        %v1834 = vpack.c.bf16 %v1753, %v1748
        %v1835 = vpack.c.bf16 %v1755, %v1751
        %v1836 = vpack.c.bf16 %v1763, %v1758
        %v1837 = vpack.c.bf16 %v1765, %v1761
        %v1838 = vpack.c.bf16 %v1773, %v1768
        %v1839 = vpack.c.bf16 %v1775, %v1771
        %v1840 = vpack.c.bf16 %v1783, %v1778
        %v1841 = vpack.c.bf16 %v1785, %v1781
        %v1842 = vpack.c.bf16 %v1793, %v1788
        %v1843 = vpack.c.bf16 %v1795, %v1791
        %v1860 = vunpack.c.l.b16 %v1828
        %v1861 = vunpack.c.l.b16 %v1829
        %v1862 = vunpack.c.h.b16 %v1828
        %v1863 = vunpack.c.h.b16 %v1829
        %v1864 = vunpack.c.l.b16 %v1830
        %v1865 = vunpack.c.l.b16 %v1831
        %v1866 = vunpack.c.h.b16 %v1830
        %v1867 = vunpack.c.h.b16 %v1831
        %v1868 = vunpack.c.l.b16 %v1832
        %v1869 = vunpack.c.l.b16 %v1833
        %v1870 = vunpack.c.h.b16 %v1832
        %v1871 = vunpack.c.h.b16 %v1833
        %v1872 = vunpack.c.l.b16 %v1834
        %v1873 = vunpack.c.l.b16 %v1835
        %v1874 = vunpack.c.h.b16 %v1834
        %v1875 = vunpack.c.h.b16 %v1835
        %v1876 = vunpack.c.l.b16 %v1836
        %v1877 = vunpack.c.l.b16 %v1837
        %v1878 = vunpack.c.h.b16 %v1836
        %v1879 = vunpack.c.h.b16 %v1837
        %v1880 = vunpack.c.l.b16 %v1838
        %v1881 = vunpack.c.l.b16 %v1839
        %v1882 = vunpack.c.h.b16 %v1838
        %v1883 = vunpack.c.h.b16 %v1839
        %v1884 = vunpack.c.l.b16 %v1840
        %v1885 = vunpack.c.l.b16 %v1841
        %v1886 = vunpack.c.h.b16 %v1840
        %v1887 = vunpack.c.h.b16 %v1841
        %v1888 = vunpack.c.l.b16 %v1842
        %v1889 = vunpack.c.l.b16 %v1843
        %v1890 = vunpack.c.h.b16 %v1842
        %v1891 = vunpack.c.h.b16 %v1843
        %v1892 = vpack.c.b16 %v1861, %v1860
        %v1893 = vpack.c.b16 %v1863, %v1862
        %v1894 = vpack.c.b16 %v1865, %v1864
        %v1895 = vpack.c.b16 %v1867, %v1866
        %v1896 = vpack.c.b16 %v1869, %v1868
        %v1897 = vpack.c.b16 %v1871, %v1870
        %v1898 = vpack.c.b16 %v1873, %v1872
        %v1899 = vpack.c.b16 %v1875, %v1874
        %v1900 = vpack.c.b16 %v1877, %v1876
        %v1901 = vpack.c.b16 %v1879, %v1878
        %v1902 = vpack.c.b16 %v1881, %v1880
        %v1903 = vpack.c.b16 %v1883, %v1882
        %v1904 = vpack.c.b16 %v1885, %v1884
        %v1905 = vpack.c.b16 %v1887, %v1886
        %v1906 = vpack.c.b16 %v1889, %v1888
        %v1907 = vpack.c.b16 %v1891, %v1890
        %1924 = vst [vmem:[#allocation3 + $0x20] sm:$0xff] %v1892
        %1925 = vst [vmem:[#allocation3 + $0x68] sm:$0xff] %v1893
        %1926 = vst [vmem:[#allocation3 + $0xb0] sm:$0xff] %v1894
        %1927 = vst [vmem:[#allocation3 + $0xf8] sm:$0xff] %v1895
        %1928 = vst [vmem:[#allocation3 + $0x140] sm:$0xff] %v1896
        %1929 = vst [vmem:[#allocation3 + $0x188] sm:$0xff] %v1897
        %1930 = vst [vmem:[#allocation3 + $0x1d0] sm:$0xff] %v1898
        %1931 = vst [vmem:[#allocation3 + $0x218] sm:$0xff] %v1899
        %1932 = vst [vmem:[#allocation3 + $0x260] sm:$0xff] %v1900
        %1933 = vst [vmem:[#allocation3 + $0x2a8] sm:$0xff] %v1901
        %1934 = vst [vmem:[#allocation3 + $0x2f0] sm:$0xff] %v1902
        %1935 = vst [vmem:[#allocation3 + $0x338] sm:$0xff] %v1903
        %1936 = vst [vmem:[#allocation3 + $0x380] sm:$0xff] %v1904
        %1937 = vst [vmem:[#allocation3 + $0x3c8] sm:$0xff] %v1905
        %1938 = vst [vmem:[#allocation3 + $0x410] sm:$0xff] %v1906
        %1939 = vst [vmem:[#allocation3 + $0x458] sm:$0xff] %v1907
        %v1940 = vld [vmem:[%s641] sm:$0xfc]
        %v1941 = vld [vmem:[%s641 + $0x8] sm:$0xfc]
        %v1942 = vld [vmem:[%s641 + $0x10] sm:$0xff]
        %v1943 = vld [vmem:[%s641 + $0x18] sm:$0xff]
        %v1944 = vld [vmem:[%s641 + $0x20] sm:$0x3]
        %v1945 = vld [vmem:[%s641 + $0x28] sm:$0x3]
        %v1946 = vld [vmem:[%s641 + $0x30] sm:$0xfc]
        %v1947 = vld [vmem:[%s641 + $0x38] sm:$0xfc]
        %v1948 = vld [vmem:[%s641 + $0x40] sm:$0xff]
        %v1949 = vld [vmem:[%s641 + $0x48] sm:$0xff]
        %v1950 = vld [vmem:[%s641 + $0x50] sm:$0x3]
        %v1951 = vld [vmem:[%s641 + $0x58] sm:$0x3]
        %v1952 = vld [vmem:[%s641 + $0x60] sm:$0xfc]
        %v1953 = vld [vmem:[%s641 + $0x68] sm:$0xfc]
        %v1954 = vld [vmem:[%s641 + $0x70] sm:$0xff]
        %v1955 = vld [vmem:[%s641 + $0x78] sm:$0xff]
        %v1956 = vld [vmem:[%s641 + $0x80] sm:$0x3]
        %v1957 = vld [vmem:[%s641 + $0x88] sm:$0x3]
        %v1958 = vld [vmem:[%s641 + $0x90] sm:$0xfc]
        %v1959 = vld [vmem:[%s641 + $0x98] sm:$0xfc]
        %v1960 = vld [vmem:[%s641 + $0xa0] sm:$0xff]
        %v1961 = vld [vmem:[%s641 + $0xa8] sm:$0xff]
        %v1962 = vld [vmem:[%s641 + $0xb0] sm:$0x3]
        %v1963 = vld [vmem:[%s641 + $0xb8] sm:$0x3]
        %v1964 = vld [vmem:[%s641 + $0xc0] sm:$0xfc]
        %v1965 = vld [vmem:[%s641 + $0xc8] sm:$0xfc]
        %v1966 = vld [vmem:[%s641 + $0xd0] sm:$0xff]
        %v1967 = vld [vmem:[%s641 + $0xd8] sm:$0xff]
        %v1968 = vld [vmem:[%s641 + $0xe0] sm:$0x3]
        %v1969 = vld [vmem:[%s641 + $0xe8] sm:$0x3]
        %v1970 = vld [vmem:[%s641 + $0xf0] sm:$0xfc]
        %v1971 = vld [vmem:[%s641 + $0xf8] sm:$0xfc]
        %v1972 = vld [vmem:[%s641 + $0x100] sm:$0xff]
        %v1973 = vld [vmem:[%s641 + $0x108] sm:$0xff]
        %v1974 = vld [vmem:[%s641 + $0x110] sm:$0x3]
        %v1975 = vld [vmem:[%s641 + $0x118] sm:$0x3]
        %v1976 = vld [vmem:[%s641 + $0x120] sm:$0xfc]
        %v1977 = vld [vmem:[%s641 + $0x128] sm:$0xfc]
        %v1978 = vld [vmem:[%s641 + $0x130] sm:$0xff]
        %v1979 = vld [vmem:[%s641 + $0x138] sm:$0xff]
        %v1980 = vld [vmem:[%s641 + $0x140] sm:$0x3]
        %v1981 = vld [vmem:[%s641 + $0x148] sm:$0x3]
        %v1982 = vld [vmem:[%s641 + $0x150] sm:$0xfc]
        %v1983 = vld [vmem:[%s641 + $0x158] sm:$0xfc]
        %v1984 = vld [vmem:[%s641 + $0x160] sm:$0xff]
        %v1985 = vld [vmem:[%s641 + $0x168] sm:$0xff]
        %v1986 = vld [vmem:[%s641 + $0x170] sm:$0x3]
        %v1987 = vld [vmem:[%s641 + $0x178] sm:$0x3]
        %v2036 = vrot.slane %v1940, 2
        %v2037 = vrot.slane %v1942, 2
        %v2038 = vsel %vm1251, %v2036, %v2037
        %v2039 = vrot.slane %v1941, 2
        %v2040 = vrot.slane %v1943, 2
        %v2041 = vsel %vm1251, %v2039, %v2040
        %v2042 = vrot.slane %v1944, 2
        %v2043 = vsel %vm1251, %v2037, %v2042
        %v2044 = vrot.slane %v1945, 2
        %v2045 = vsel %vm1251, %v2040, %v2044
        %v2046 = vrot.slane %v1946, 2
        %v2047 = vrot.slane %v1948, 2
        %v2048 = vsel %vm1251, %v2046, %v2047
        %v2049 = vrot.slane %v1947, 2
        %v2050 = vrot.slane %v1949, 2
        %v2051 = vsel %vm1251, %v2049, %v2050
        %v2052 = vrot.slane %v1950, 2
        %v2053 = vsel %vm1251, %v2047, %v2052
        %v2054 = vrot.slane %v1951, 2
        %v2055 = vsel %vm1251, %v2050, %v2054
        %v2056 = vrot.slane %v1952, 2
        %v2057 = vrot.slane %v1954, 2
        %v2058 = vsel %vm1251, %v2056, %v2057
        %v2059 = vrot.slane %v1953, 2
        %v2060 = vrot.slane %v1955, 2
        %v2061 = vsel %vm1251, %v2059, %v2060
        %v2062 = vrot.slane %v1956, 2
        %v2063 = vsel %vm1251, %v2057, %v2062
        %v2064 = vrot.slane %v1957, 2
        %v2065 = vsel %vm1251, %v2060, %v2064
        %v2066 = vrot.slane %v1958, 2
        %v2067 = vrot.slane %v1960, 2
        %v2068 = vsel %vm1251, %v2066, %v2067
        %v2069 = vrot.slane %v1959, 2
        %v2070 = vrot.slane %v1961, 2
        %v2071 = vsel %vm1251, %v2069, %v2070
        %v2072 = vrot.slane %v1962, 2
        %v2073 = vsel %vm1251, %v2067, %v2072
        %v2074 = vrot.slane %v1963, 2
        %v2075 = vsel %vm1251, %v2070, %v2074
        %v2076 = vrot.slane %v1964, 2
        %v2077 = vrot.slane %v1966, 2
        %v2078 = vsel %vm1251, %v2076, %v2077
        %v2079 = vrot.slane %v1965, 2
        %v2080 = vrot.slane %v1967, 2
        %v2081 = vsel %vm1251, %v2079, %v2080
        %v2082 = vrot.slane %v1968, 2
        %v2083 = vsel %vm1251, %v2077, %v2082
        %v2084 = vrot.slane %v1969, 2
        %v2085 = vsel %vm1251, %v2080, %v2084
        %v2086 = vrot.slane %v1970, 2
        %v2087 = vrot.slane %v1972, 2
        %v2088 = vsel %vm1251, %v2086, %v2087
        %v2089 = vrot.slane %v1971, 2
        %v2090 = vrot.slane %v1973, 2
        %v2091 = vsel %vm1251, %v2089, %v2090
        %v2092 = vrot.slane %v1974, 2
        %v2093 = vsel %vm1251, %v2087, %v2092
        %v2094 = vrot.slane %v1975, 2
        %v2095 = vsel %vm1251, %v2090, %v2094
        %v2096 = vrot.slane %v1976, 2
        %v2097 = vrot.slane %v1978, 2
        %v2098 = vsel %vm1251, %v2096, %v2097
        %v2099 = vrot.slane %v1977, 2
        %v2100 = vrot.slane %v1979, 2
        %v2101 = vsel %vm1251, %v2099, %v2100
        %v2102 = vrot.slane %v1980, 2
        %v2103 = vsel %vm1251, %v2097, %v2102
        %v2104 = vrot.slane %v1981, 2
        %v2105 = vsel %vm1251, %v2100, %v2104
        %v2106 = vrot.slane %v1982, 2
        %v2107 = vrot.slane %v1984, 2
        %v2108 = vsel %vm1251, %v2106, %v2107
        %v2109 = vrot.slane %v1983, 2
        %v2110 = vrot.slane %v1985, 2
        %v2111 = vsel %vm1251, %v2109, %v2110
        %v2112 = vrot.slane %v1986, 2
        %v2113 = vsel %vm1251, %v2107, %v2112
        %v2114 = vrot.slane %v1987, 2
        %v2115 = vsel %vm1251, %v2110, %v2114
        %v2148 = vpack.c.bf16 %v2043, %v2038
        %v2149 = vpack.c.bf16 %v2045, %v2041
        %v2150 = vpack.c.bf16 %v2053, %v2048
        %v2151 = vpack.c.bf16 %v2055, %v2051
        %v2152 = vpack.c.bf16 %v2063, %v2058
        %v2153 = vpack.c.bf16 %v2065, %v2061
        %v2154 = vpack.c.bf16 %v2073, %v2068
        %v2155 = vpack.c.bf16 %v2075, %v2071
        %v2156 = vpack.c.bf16 %v2083, %v2078
        %v2157 = vpack.c.bf16 %v2085, %v2081
        %v2158 = vpack.c.bf16 %v2093, %v2088
        %v2159 = vpack.c.bf16 %v2095, %v2091
        %v2160 = vpack.c.bf16 %v2103, %v2098
        %v2161 = vpack.c.bf16 %v2105, %v2101
        %v2162 = vpack.c.bf16 %v2113, %v2108
        %v2163 = vpack.c.bf16 %v2115, %v2111
        %v2180 = vunpack.c.l.b16 %v2148
        %v2181 = vunpack.c.l.b16 %v2149
        %v2182 = vunpack.c.h.b16 %v2148
        %v2183 = vunpack.c.h.b16 %v2149
        %v2184 = vunpack.c.l.b16 %v2150
        %v2185 = vunpack.c.l.b16 %v2151
        %v2186 = vunpack.c.h.b16 %v2150
        %v2187 = vunpack.c.h.b16 %v2151
        %v2188 = vunpack.c.l.b16 %v2152
        %v2189 = vunpack.c.l.b16 %v2153
        %v2190 = vunpack.c.h.b16 %v2152
        %v2191 = vunpack.c.h.b16 %v2153
        %v2192 = vunpack.c.l.b16 %v2154
        %v2193 = vunpack.c.l.b16 %v2155
        %v2194 = vunpack.c.h.b16 %v2154
        %v2195 = vunpack.c.h.b16 %v2155
        %v2196 = vunpack.c.l.b16 %v2156
        %v2197 = vunpack.c.l.b16 %v2157
        %v2198 = vunpack.c.h.b16 %v2156
        %v2199 = vunpack.c.h.b16 %v2157
        %v2200 = vunpack.c.l.b16 %v2158
        %v2201 = vunpack.c.l.b16 %v2159
        %v2202 = vunpack.c.h.b16 %v2158
        %v2203 = vunpack.c.h.b16 %v2159
        %v2204 = vunpack.c.l.b16 %v2160
        %v2205 = vunpack.c.l.b16 %v2161
        %v2206 = vunpack.c.h.b16 %v2160
        %v2207 = vunpack.c.h.b16 %v2161
        %v2208 = vunpack.c.l.b16 %v2162
        %v2209 = vunpack.c.l.b16 %v2163
        %v2210 = vunpack.c.h.b16 %v2162
        %v2211 = vunpack.c.h.b16 %v2163
        %v2212 = vpack.c.b16 %v2181, %v2180
        %v2213 = vpack.c.b16 %v2183, %v2182
        %v2214 = vpack.c.b16 %v2185, %v2184
        %v2215 = vpack.c.b16 %v2187, %v2186
        %v2216 = vpack.c.b16 %v2189, %v2188
        %v2217 = vpack.c.b16 %v2191, %v2190
        %v2218 = vpack.c.b16 %v2193, %v2192
        %v2219 = vpack.c.b16 %v2195, %v2194
        %v2220 = vpack.c.b16 %v2197, %v2196
        %v2221 = vpack.c.b16 %v2199, %v2198
        %v2222 = vpack.c.b16 %v2201, %v2200
        %v2223 = vpack.c.b16 %v2203, %v2202
        %v2224 = vpack.c.b16 %v2205, %v2204
        %v2225 = vpack.c.b16 %v2207, %v2206
        %v2226 = vpack.c.b16 %v2209, %v2208
        %v2227 = vpack.c.b16 %v2211, %v2210
        %2244 = vst [vmem:[#allocation3 + $0x28] sm:$0xff] %v2212
        %2245 = vst [vmem:[#allocation3 + $0x70] sm:$0xff] %v2213
        %2246 = vst [vmem:[#allocation3 + $0xb8] sm:$0xff] %v2214
        %2247 = vst [vmem:[#allocation3 + $0x100] sm:$0xff] %v2215
        %2248 = vst [vmem:[#allocation3 + $0x148] sm:$0xff] %v2216
        %2249 = vst [vmem:[#allocation3 + $0x190] sm:$0xff] %v2217
        %2250 = vst [vmem:[#allocation3 + $0x1d8] sm:$0xff] %v2218
        %2251 = vst [vmem:[#allocation3 + $0x220] sm:$0xff] %v2219
        %2252 = vst [vmem:[#allocation3 + $0x268] sm:$0xff] %v2220
        %2253 = vst [vmem:[#allocation3 + $0x2b0] sm:$0xff] %v2221
        %2254 = vst [vmem:[#allocation3 + $0x2f8] sm:$0xff] %v2222
        %2255 = vst [vmem:[#allocation3 + $0x340] sm:$0xff] %v2223
        %2256 = vst [vmem:[#allocation3 + $0x388] sm:$0xff] %v2224
        %2257 = vst [vmem:[#allocation3 + $0x3d0] sm:$0xff] %v2225
        %2258 = vst [vmem:[#allocation3 + $0x418] sm:$0xff] %v2226
        %2259 = vst [vmem:[#allocation3 + $0x460] sm:$0xff] %v2227
        %s2260 = scalar_lea.vmem [#allocation2], 96
        %v2261 = vld [vmem:[%s2260] sm:$0xff]
        %v2262 = vld [vmem:[%s2260 + $0x8] sm:$0xff]
        %v2263 = vld [vmem:[%s2260 + $0x10] sm:$0xff]
        %v2264 = vld [vmem:[%s2260 + $0x18] sm:$0xff]
        %v2265 = vld [vmem:[%s2260 + $0x30] sm:$0xff]
        %v2266 = vld [vmem:[%s2260 + $0x38] sm:$0xff]
        %v2267 = vld [vmem:[%s2260 + $0x40] sm:$0xff]
        %v2268 = vld [vmem:[%s2260 + $0x48] sm:$0xff]
        %v2269 = vld [vmem:[%s2260 + $0x60] sm:$0xff]
        %v2270 = vld [vmem:[%s2260 + $0x68] sm:$0xff]
        %v2271 = vld [vmem:[%s2260 + $0x70] sm:$0xff]
        %v2272 = vld [vmem:[%s2260 + $0x78] sm:$0xff]
        %v2273 = vld [vmem:[%s2260 + $0x90] sm:$0xff]
        %v2274 = vld [vmem:[%s2260 + $0x98] sm:$0xff]
        %v2275 = vld [vmem:[%s2260 + $0xa0] sm:$0xff]
        %v2276 = vld [vmem:[%s2260 + $0xa8] sm:$0xff]
        %v2277 = vld [vmem:[%s2260 + $0xc0] sm:$0xff]
        %v2278 = vld [vmem:[%s2260 + $0xc8] sm:$0xff]
        %v2279 = vld [vmem:[%s2260 + $0xd0] sm:$0xff]
        %v2280 = vld [vmem:[%s2260 + $0xd8] sm:$0xff]
        %v2281 = vld [vmem:[%s2260 + $0xf0] sm:$0xff]
        %v2282 = vld [vmem:[%s2260 + $0xf8] sm:$0xff]
        %v2283 = vld [vmem:[%s2260 + $0x100] sm:$0xff]
        %v2284 = vld [vmem:[%s2260 + $0x108] sm:$0xff]
        %v2285 = vld [vmem:[%s2260 + $0x120] sm:$0xff]
        %v2286 = vld [vmem:[%s2260 + $0x128] sm:$0xff]
        %v2287 = vld [vmem:[%s2260 + $0x130] sm:$0xff]
        %v2288 = vld [vmem:[%s2260 + $0x138] sm:$0xff]
        %v2289 = vld [vmem:[%s2260 + $0x150] sm:$0xff]
        %v2290 = vld [vmem:[%s2260 + $0x158] sm:$0xff]
        %v2291 = vld [vmem:[%s2260 + $0x160] sm:$0xff]
        %v2292 = vld [vmem:[%s2260 + $0x168] sm:$0xff]
        %v2293 = vpack.c.bf16 %v2263, %v2261
        %v2294 = vpack.c.bf16 %v2264, %v2262
        %v2295 = vpack.c.bf16 %v2267, %v2265
        %v2296 = vpack.c.bf16 %v2268, %v2266
        %v2297 = vpack.c.bf16 %v2271, %v2269
        %v2298 = vpack.c.bf16 %v2272, %v2270
        %v2299 = vpack.c.bf16 %v2275, %v2273
        %v2300 = vpack.c.bf16 %v2276, %v2274
        %v2301 = vpack.c.bf16 %v2279, %v2277
        %v2302 = vpack.c.bf16 %v2280, %v2278
        %v2303 = vpack.c.bf16 %v2283, %v2281
        %v2304 = vpack.c.bf16 %v2284, %v2282
        %v2305 = vpack.c.bf16 %v2287, %v2285
        %v2306 = vpack.c.bf16 %v2288, %v2286
        %v2307 = vpack.c.bf16 %v2291, %v2289
        %v2308 = vpack.c.bf16 %v2292, %v2290
        %v2325 = vunpack.c.l.b16 %v2293
        %v2326 = vunpack.c.l.b16 %v2294
        %v2327 = vunpack.c.h.b16 %v2293
        %v2328 = vunpack.c.h.b16 %v2294
        %v2329 = vunpack.c.l.b16 %v2295
        %v2330 = vunpack.c.l.b16 %v2296
        %v2331 = vunpack.c.h.b16 %v2295
        %v2332 = vunpack.c.h.b16 %v2296
        %v2333 = vunpack.c.l.b16 %v2297
        %v2334 = vunpack.c.l.b16 %v2298
        %v2335 = vunpack.c.h.b16 %v2297
        %v2336 = vunpack.c.h.b16 %v2298
        %v2337 = vunpack.c.l.b16 %v2299
        %v2338 = vunpack.c.l.b16 %v2300
        %v2339 = vunpack.c.h.b16 %v2299
        %v2340 = vunpack.c.h.b16 %v2300
        %v2341 = vunpack.c.l.b16 %v2301
        %v2342 = vunpack.c.l.b16 %v2302
        %v2343 = vunpack.c.h.b16 %v2301
        %v2344 = vunpack.c.h.b16 %v2302
        %v2345 = vunpack.c.l.b16 %v2303
        %v2346 = vunpack.c.l.b16 %v2304
        %v2347 = vunpack.c.h.b16 %v2303
        %v2348 = vunpack.c.h.b16 %v2304
        %v2349 = vunpack.c.l.b16 %v2305
        %v2350 = vunpack.c.l.b16 %v2306
        %v2351 = vunpack.c.h.b16 %v2305
        %v2352 = vunpack.c.h.b16 %v2306
        %v2353 = vunpack.c.l.b16 %v2307
        %v2354 = vunpack.c.l.b16 %v2308
        %v2355 = vunpack.c.h.b16 %v2307
        %v2356 = vunpack.c.h.b16 %v2308
        %v2357 = vpack.c.b16 %v2326, %v2325
        %v2358 = vpack.c.b16 %v2328, %v2327
        %v2359 = vpack.c.b16 %v2330, %v2329
        %v2360 = vpack.c.b16 %v2332, %v2331
        %v2361 = vpack.c.b16 %v2334, %v2333
        %v2362 = vpack.c.b16 %v2336, %v2335
        %v2363 = vpack.c.b16 %v2338, %v2337
        %v2364 = vpack.c.b16 %v2340, %v2339
        %v2365 = vpack.c.b16 %v2342, %v2341
        %v2366 = vpack.c.b16 %v2344, %v2343
        %v2367 = vpack.c.b16 %v2346, %v2345
        %v2368 = vpack.c.b16 %v2348, %v2347
        %v2369 = vpack.c.b16 %v2350, %v2349
        %v2370 = vpack.c.b16 %v2352, %v2351
        %v2371 = vpack.c.b16 %v2354, %v2353
        %v2372 = vpack.c.b16 %v2356, %v2355
        %2389 = vst [vmem:[#allocation3 + $0x30] sm:$0xff] %v2357
        %2390 = vst [vmem:[#allocation3 + $0x78] sm:$0xff] %v2358
        %2391 = vst [vmem:[#allocation3 + $0xc0] sm:$0xff] %v2359
        %2392 = vst [vmem:[#allocation3 + $0x108] sm:$0xff] %v2360
        %2393 = vst [vmem:[#allocation3 + $0x150] sm:$0xff] %v2361
        %2394 = vst [vmem:[#allocation3 + $0x198] sm:$0xff] %v2362
        %2395 = vst [vmem:[#allocation3 + $0x1e0] sm:$0xff] %v2363
        %2396 = vst [vmem:[#allocation3 + $0x228] sm:$0xff] %v2364
        %2397 = vst [vmem:[#allocation3 + $0x270] sm:$0xff] %v2365
        %2398 = vst [vmem:[#allocation3 + $0x2b8] sm:$0xff] %v2366
        %2399 = vst [vmem:[#allocation3 + $0x300] sm:$0xff] %v2367
        %2400 = vst [vmem:[#allocation3 + $0x348] sm:$0xff] %v2368
        %2401 = vst [vmem:[#allocation3 + $0x390] sm:$0xff] %v2369
        %2402 = vst [vmem:[#allocation3 + $0x3d8] sm:$0xff] %v2370
        %2403 = vst [vmem:[#allocation3 + $0x420] sm:$0xff] %v2371
        %2404 = vst [vmem:[#allocation3 + $0x468] sm:$0xff] %v2372
        %v2405 = vld [vmem:[%s2260] sm:$0xfe]
        %v2406 = vld [vmem:[%s2260 + $0x8] sm:$0xfe]
        %v2407 = vld [vmem:[%s2260 + $0x10] sm:$0xff]
        %v2408 = vld [vmem:[%s2260 + $0x18] sm:$0xff]
        %v2409 = vld [vmem:[%s2260 + $0x20] sm:$0x1]
        %v2410 = vld [vmem:[%s2260 + $0x28] sm:$0x1]
        %v2411 = vld [vmem:[%s2260 + $0x30] sm:$0xfe]
        %v2412 = vld [vmem:[%s2260 + $0x38] sm:$0xfe]
        %v2413 = vld [vmem:[%s2260 + $0x40] sm:$0xff]
        %v2414 = vld [vmem:[%s2260 + $0x48] sm:$0xff]
        %v2415 = vld [vmem:[%s2260 + $0x50] sm:$0x1]
        %v2416 = vld [vmem:[%s2260 + $0x58] sm:$0x1]
        %v2417 = vld [vmem:[%s2260 + $0x60] sm:$0xfe]
        %v2418 = vld [vmem:[%s2260 + $0x68] sm:$0xfe]
        %v2419 = vld [vmem:[%s2260 + $0x70] sm:$0xff]
        %v2420 = vld [vmem:[%s2260 + $0x78] sm:$0xff]
        %v2421 = vld [vmem:[%s2260 + $0x80] sm:$0x1]
        %v2422 = vld [vmem:[%s2260 + $0x88] sm:$0x1]
        %v2423 = vld [vmem:[%s2260 + $0x90] sm:$0xfe]
        %v2424 = vld [vmem:[%s2260 + $0x98] sm:$0xfe]
        %v2425 = vld [vmem:[%s2260 + $0xa0] sm:$0xff]
        %v2426 = vld [vmem:[%s2260 + $0xa8] sm:$0xff]
        %v2427 = vld [vmem:[%s2260 + $0xb0] sm:$0x1]
        %v2428 = vld [vmem:[%s2260 + $0xb8] sm:$0x1]
        %v2429 = vld [vmem:[%s2260 + $0xc0] sm:$0xfe]
        %v2430 = vld [vmem:[%s2260 + $0xc8] sm:$0xfe]
        %v2431 = vld [vmem:[%s2260 + $0xd0] sm:$0xff]
        %v2432 = vld [vmem:[%s2260 + $0xd8] sm:$0xff]
        %v2433 = vld [vmem:[%s2260 + $0xe0] sm:$0x1]
        %v2434 = vld [vmem:[%s2260 + $0xe8] sm:$0x1]
        %v2435 = vld [vmem:[%s2260 + $0xf0] sm:$0xfe]
        %v2436 = vld [vmem:[%s2260 + $0xf8] sm:$0xfe]
        %v2437 = vld [vmem:[%s2260 + $0x100] sm:$0xff]
        %v2438 = vld [vmem:[%s2260 + $0x108] sm:$0xff]
        %v2439 = vld [vmem:[%s2260 + $0x110] sm:$0x1]
        %v2440 = vld [vmem:[%s2260 + $0x118] sm:$0x1]
        %v2441 = vld [vmem:[%s2260 + $0x120] sm:$0xfe]
        %v2442 = vld [vmem:[%s2260 + $0x128] sm:$0xfe]
        %v2443 = vld [vmem:[%s2260 + $0x130] sm:$0xff]
        %v2444 = vld [vmem:[%s2260 + $0x138] sm:$0xff]
        %v2445 = vld [vmem:[%s2260 + $0x140] sm:$0x1]
        %v2446 = vld [vmem:[%s2260 + $0x148] sm:$0x1]
        %v2447 = vld [vmem:[%s2260 + $0x150] sm:$0xfe]
        %v2448 = vld [vmem:[%s2260 + $0x158] sm:$0xfe]
        %v2449 = vld [vmem:[%s2260 + $0x160] sm:$0xff]
        %v2450 = vld [vmem:[%s2260 + $0x168] sm:$0xff]
        %v2451 = vld [vmem:[%s2260 + $0x170] sm:$0x1]
        %v2452 = vld [vmem:[%s2260 + $0x178] sm:$0x1]
        %v2501 = vrot.slane %v2405, 1
        %v2502 = vrot.slane %v2407, 1
        %v2503 = vsel %vm930, %v2501, %v2502
        %v2504 = vrot.slane %v2406, 1
        %v2505 = vrot.slane %v2408, 1
        %v2506 = vsel %vm930, %v2504, %v2505
        %v2507 = vrot.slane %v2409, 1
        %v2508 = vsel %vm930, %v2502, %v2507
        %v2509 = vrot.slane %v2410, 1
        %v2510 = vsel %vm930, %v2505, %v2509
        %v2511 = vrot.slane %v2411, 1
        %v2512 = vrot.slane %v2413, 1
        %v2513 = vsel %vm930, %v2511, %v2512
        %v2514 = vrot.slane %v2412, 1
        %v2515 = vrot.slane %v2414, 1
        %v2516 = vsel %vm930, %v2514, %v2515
        %v2517 = vrot.slane %v2415, 1
        %v2518 = vsel %vm930, %v2512, %v2517
        %v2519 = vrot.slane %v2416, 1
        %v2520 = vsel %vm930, %v2515, %v2519
        %v2521 = vrot.slane %v2417, 1
        %v2522 = vrot.slane %v2419, 1
        %v2523 = vsel %vm930, %v2521, %v2522
        %v2524 = vrot.slane %v2418, 1
        %v2525 = vrot.slane %v2420, 1
        %v2526 = vsel %vm930, %v2524, %v2525
        %v2527 = vrot.slane %v2421, 1
        %v2528 = vsel %vm930, %v2522, %v2527
        %v2529 = vrot.slane %v2422, 1
        %v2530 = vsel %vm930, %v2525, %v2529
        %v2531 = vrot.slane %v2423, 1
        %v2532 = vrot.slane %v2425, 1
        %v2533 = vsel %vm930, %v2531, %v2532
        %v2534 = vrot.slane %v2424, 1
        %v2535 = vrot.slane %v2426, 1
        %v2536 = vsel %vm930, %v2534, %v2535
        %v2537 = vrot.slane %v2427, 1
        %v2538 = vsel %vm930, %v2532, %v2537
        %v2539 = vrot.slane %v2428, 1
        %v2540 = vsel %vm930, %v2535, %v2539
        %v2541 = vrot.slane %v2429, 1
        %v2542 = vrot.slane %v2431, 1
        %v2543 = vsel %vm930, %v2541, %v2542
        %v2544 = vrot.slane %v2430, 1
        %v2545 = vrot.slane %v2432, 1
        %v2546 = vsel %vm930, %v2544, %v2545
        %v2547 = vrot.slane %v2433, 1
        %v2548 = vsel %vm930, %v2542, %v2547
        %v2549 = vrot.slane %v2434, 1
        %v2550 = vsel %vm930, %v2545, %v2549
        %v2551 = vrot.slane %v2435, 1
        %v2552 = vrot.slane %v2437, 1
        %v2553 = vsel %vm930, %v2551, %v2552
        %v2554 = vrot.slane %v2436, 1
        %v2555 = vrot.slane %v2438, 1
        %v2556 = vsel %vm930, %v2554, %v2555
        %v2557 = vrot.slane %v2439, 1
        %v2558 = vsel %vm930, %v2552, %v2557
        %v2559 = vrot.slane %v2440, 1
        %v2560 = vsel %vm930, %v2555, %v2559
        %v2561 = vrot.slane %v2441, 1
        %v2562 = vrot.slane %v2443, 1
        %v2563 = vsel %vm930, %v2561, %v2562
        %v2564 = vrot.slane %v2442, 1
        %v2565 = vrot.slane %v2444, 1
        %v2566 = vsel %vm930, %v2564, %v2565
        %v2567 = vrot.slane %v2445, 1
        %v2568 = vsel %vm930, %v2562, %v2567
        %v2569 = vrot.slane %v2446, 1
        %v2570 = vsel %vm930, %v2565, %v2569
        %v2571 = vrot.slane %v2447, 1
        %v2572 = vrot.slane %v2449, 1
        %v2573 = vsel %vm930, %v2571, %v2572
        %v2574 = vrot.slane %v2448, 1
        %v2575 = vrot.slane %v2450, 1
        %v2576 = vsel %vm930, %v2574, %v2575
        %v2577 = vrot.slane %v2451, 1
        %v2578 = vsel %vm930, %v2572, %v2577
        %v2579 = vrot.slane %v2452, 1
        %v2580 = vsel %vm930, %v2575, %v2579
        %v2613 = vpack.c.bf16 %v2508, %v2503
        %v2614 = vpack.c.bf16 %v2510, %v2506
        %v2615 = vpack.c.bf16 %v2518, %v2513
        %v2616 = vpack.c.bf16 %v2520, %v2516
        %v2617 = vpack.c.bf16 %v2528, %v2523
        %v2618 = vpack.c.bf16 %v2530, %v2526
        %v2619 = vpack.c.bf16 %v2538, %v2533
        %v2620 = vpack.c.bf16 %v2540, %v2536
        %v2621 = vpack.c.bf16 %v2548, %v2543
        %v2622 = vpack.c.bf16 %v2550, %v2546
        %v2623 = vpack.c.bf16 %v2558, %v2553
        %v2624 = vpack.c.bf16 %v2560, %v2556
        %v2625 = vpack.c.bf16 %v2568, %v2563
        %v2626 = vpack.c.bf16 %v2570, %v2566
        %v2627 = vpack.c.bf16 %v2578, %v2573
        %v2628 = vpack.c.bf16 %v2580, %v2576
        %v2645 = vunpack.c.l.b16 %v2613
        %v2646 = vunpack.c.l.b16 %v2614
        %v2647 = vunpack.c.h.b16 %v2613
        %v2648 = vunpack.c.h.b16 %v2614
        %v2649 = vunpack.c.l.b16 %v2615
        %v2650 = vunpack.c.l.b16 %v2616
        %v2651 = vunpack.c.h.b16 %v2615
        %v2652 = vunpack.c.h.b16 %v2616
        %v2653 = vunpack.c.l.b16 %v2617
        %v2654 = vunpack.c.l.b16 %v2618
        %v2655 = vunpack.c.h.b16 %v2617
        %v2656 = vunpack.c.h.b16 %v2618
        %v2657 = vunpack.c.l.b16 %v2619
        %v2658 = vunpack.c.l.b16 %v2620
        %v2659 = vunpack.c.h.b16 %v2619
        %v2660 = vunpack.c.h.b16 %v2620
        %v2661 = vunpack.c.l.b16 %v2621
        %v2662 = vunpack.c.l.b16 %v2622
        %v2663 = vunpack.c.h.b16 %v2621
        %v2664 = vunpack.c.h.b16 %v2622
        %v2665 = vunpack.c.l.b16 %v2623
        %v2666 = vunpack.c.l.b16 %v2624
        %v2667 = vunpack.c.h.b16 %v2623
        %v2668 = vunpack.c.h.b16 %v2624
        %v2669 = vunpack.c.l.b16 %v2625
        %v2670 = vunpack.c.l.b16 %v2626
        %v2671 = vunpack.c.h.b16 %v2625
        %v2672 = vunpack.c.h.b16 %v2626
        %v2673 = vunpack.c.l.b16 %v2627
        %v2674 = vunpack.c.l.b16 %v2628
        %v2675 = vunpack.c.h.b16 %v2627
        %v2676 = vunpack.c.h.b16 %v2628
        %v2677 = vpack.c.b16 %v2646, %v2645
        %v2678 = vpack.c.b16 %v2648, %v2647
        %v2679 = vpack.c.b16 %v2650, %v2649
        %v2680 = vpack.c.b16 %v2652, %v2651
        %v2681 = vpack.c.b16 %v2654, %v2653
        %v2682 = vpack.c.b16 %v2656, %v2655
        %v2683 = vpack.c.b16 %v2658, %v2657
        %v2684 = vpack.c.b16 %v2660, %v2659
        %v2685 = vpack.c.b16 %v2662, %v2661
        %v2686 = vpack.c.b16 %v2664, %v2663
        %v2687 = vpack.c.b16 %v2666, %v2665
        %v2688 = vpack.c.b16 %v2668, %v2667
        %v2689 = vpack.c.b16 %v2670, %v2669
        %v2690 = vpack.c.b16 %v2672, %v2671
        %v2691 = vpack.c.b16 %v2674, %v2673
        %v2692 = vpack.c.b16 %v2676, %v2675
        %2709 = vst [vmem:[#allocation3 + $0x38] sm:$0xff] %v2677
        %2710 = vst [vmem:[#allocation3 + $0x80] sm:$0xff] %v2678
        %2711 = vst [vmem:[#allocation3 + $0xc8] sm:$0xff] %v2679
        %2712 = vst [vmem:[#allocation3 + $0x110] sm:$0xff] %v2680
        %2713 = vst [vmem:[#allocation3 + $0x158] sm:$0xff] %v2681
        %2714 = vst [vmem:[#allocation3 + $0x1a0] sm:$0xff] %v2682
        %2715 = vst [vmem:[#allocation3 + $0x1e8] sm:$0xff] %v2683
        %2716 = vst [vmem:[#allocation3 + $0x230] sm:$0xff] %v2684
        %2717 = vst [vmem:[#allocation3 + $0x278] sm:$0xff] %v2685
        %2718 = vst [vmem:[#allocation3 + $0x2c0] sm:$0xff] %v2686
        %2719 = vst [vmem:[#allocation3 + $0x308] sm:$0xff] %v2687
        %2720 = vst [vmem:[#allocation3 + $0x350] sm:$0xff] %v2688
        %2721 = vst [vmem:[#allocation3 + $0x398] sm:$0xff] %v2689
        %2722 = vst [vmem:[#allocation3 + $0x3e0] sm:$0xff] %v2690
        %2723 = vst [vmem:[#allocation3 + $0x428] sm:$0xff] %v2691
        %2724 = vst [vmem:[#allocation3 + $0x470] sm:$0xff] %v2692
        %v2725 = vld [vmem:[%s2260] sm:$0xfc]
        %v2726 = vld [vmem:[%s2260 + $0x8] sm:$0xfc]
        %v2727 = vld [vmem:[%s2260 + $0x10] sm:$0xff]
        %v2728 = vld [vmem:[%s2260 + $0x18] sm:$0xff]
        %v2729 = vld [vmem:[%s2260 + $0x20] sm:$0x3]
        %v2730 = vld [vmem:[%s2260 + $0x28] sm:$0x3]
        %v2731 = vld [vmem:[%s2260 + $0x30] sm:$0xfc]
        %v2732 = vld [vmem:[%s2260 + $0x38] sm:$0xfc]
        %v2733 = vld [vmem:[%s2260 + $0x40] sm:$0xff]
        %v2734 = vld [vmem:[%s2260 + $0x48] sm:$0xff]
        %v2735 = vld [vmem:[%s2260 + $0x50] sm:$0x3]
        %v2736 = vld [vmem:[%s2260 + $0x58] sm:$0x3]
        %v2737 = vld [vmem:[%s2260 + $0x60] sm:$0xfc]
        %v2738 = vld [vmem:[%s2260 + $0x68] sm:$0xfc]
        %v2739 = vld [vmem:[%s2260 + $0x70] sm:$0xff]
        %v2740 = vld [vmem:[%s2260 + $0x78] sm:$0xff]
        %v2741 = vld [vmem:[%s2260 + $0x80] sm:$0x3]
        %v2742 = vld [vmem:[%s2260 + $0x88] sm:$0x3]
        %v2743 = vld [vmem:[%s2260 + $0x90] sm:$0xfc]
        %v2744 = vld [vmem:[%s2260 + $0x98] sm:$0xfc]
        %v2745 = vld [vmem:[%s2260 + $0xa0] sm:$0xff]
        %v2746 = vld [vmem:[%s2260 + $0xa8] sm:$0xff]
        %v2747 = vld [vmem:[%s2260 + $0xb0] sm:$0x3]
        %v2748 = vld [vmem:[%s2260 + $0xb8] sm:$0x3]
        %v2749 = vld [vmem:[%s2260 + $0xc0] sm:$0xfc]
        %v2750 = vld [vmem:[%s2260 + $0xc8] sm:$0xfc]
        %v2751 = vld [vmem:[%s2260 + $0xd0] sm:$0xff]
        %v2752 = vld [vmem:[%s2260 + $0xd8] sm:$0xff]
        %v2753 = vld [vmem:[%s2260 + $0xe0] sm:$0x3]
        %v2754 = vld [vmem:[%s2260 + $0xe8] sm:$0x3]
        %v2755 = vld [vmem:[%s2260 + $0xf0] sm:$0xfc]
        %v2756 = vld [vmem:[%s2260 + $0xf8] sm:$0xfc]
        %v2757 = vld [vmem:[%s2260 + $0x100] sm:$0xff]
        %v2758 = vld [vmem:[%s2260 + $0x108] sm:$0xff]
        %v2759 = vld [vmem:[%s2260 + $0x110] sm:$0x3]
        %v2760 = vld [vmem:[%s2260 + $0x118] sm:$0x3]
        %v2761 = vld [vmem:[%s2260 + $0x120] sm:$0xfc]
        %v2762 = vld [vmem:[%s2260 + $0x128] sm:$0xfc]
        %v2763 = vld [vmem:[%s2260 + $0x130] sm:$0xff]
        %v2764 = vld [vmem:[%s2260 + $0x138] sm:$0xff]
        %v2765 = vld [vmem:[%s2260 + $0x140] sm:$0x3]
        %v2766 = vld [vmem:[%s2260 + $0x148] sm:$0x3]
        %v2767 = vld [vmem:[%s2260 + $0x150] sm:$0xfc]
        %v2768 = vld [vmem:[%s2260 + $0x158] sm:$0xfc]
        %v2769 = vld [vmem:[%s2260 + $0x160] sm:$0xff]
        %v2770 = vld [vmem:[%s2260 + $0x168] sm:$0xff]
        %v2771 = vld [vmem:[%s2260 + $0x170] sm:$0x3]
        %v2772 = vld [vmem:[%s2260 + $0x178] sm:$0x3]
        %v2821 = vrot.slane %v2725, 2
        %v2822 = vrot.slane %v2727, 2
        %v2823 = vsel %vm1251, %v2821, %v2822
        %v2824 = vrot.slane %v2726, 2
        %v2825 = vrot.slane %v2728, 2
        %v2826 = vsel %vm1251, %v2824, %v2825
        %v2827 = vrot.slane %v2729, 2
        %v2828 = vsel %vm1251, %v2822, %v2827
        %v2829 = vrot.slane %v2730, 2
        %v2830 = vsel %vm1251, %v2825, %v2829
        %v2831 = vrot.slane %v2731, 2
        %v2832 = vrot.slane %v2733, 2
        %v2833 = vsel %vm1251, %v2831, %v2832
        %v2834 = vrot.slane %v2732, 2
        %v2835 = vrot.slane %v2734, 2
        %v2836 = vsel %vm1251, %v2834, %v2835
        %v2837 = vrot.slane %v2735, 2
        %v2838 = vsel %vm1251, %v2832, %v2837
        %v2839 = vrot.slane %v2736, 2
        %v2840 = vsel %vm1251, %v2835, %v2839
        %v2841 = vrot.slane %v2737, 2
        %v2842 = vrot.slane %v2739, 2
        %v2843 = vsel %vm1251, %v2841, %v2842
        %v2844 = vrot.slane %v2738, 2
        %v2845 = vrot.slane %v2740, 2
        %v2846 = vsel %vm1251, %v2844, %v2845
        %v2847 = vrot.slane %v2741, 2
        %v2848 = vsel %vm1251, %v2842, %v2847
        %v2849 = vrot.slane %v2742, 2
        %v2850 = vsel %vm1251, %v2845, %v2849
        %v2851 = vrot.slane %v2743, 2
        %v2852 = vrot.slane %v2745, 2
        %v2853 = vsel %vm1251, %v2851, %v2852
        %v2854 = vrot.slane %v2744, 2
        %v2855 = vrot.slane %v2746, 2
        %v2856 = vsel %vm1251, %v2854, %v2855
        %v2857 = vrot.slane %v2747, 2
        %v2858 = vsel %vm1251, %v2852, %v2857
        %v2859 = vrot.slane %v2748, 2
        %v2860 = vsel %vm1251, %v2855, %v2859
        %v2861 = vrot.slane %v2749, 2
        %v2862 = vrot.slane %v2751, 2
        %v2863 = vsel %vm1251, %v2861, %v2862
        %v2864 = vrot.slane %v2750, 2
        %v2865 = vrot.slane %v2752, 2
        %v2866 = vsel %vm1251, %v2864, %v2865
        %v2867 = vrot.slane %v2753, 2
        %v2868 = vsel %vm1251, %v2862, %v2867
        %v2869 = vrot.slane %v2754, 2
        %v2870 = vsel %vm1251, %v2865, %v2869
        %v2871 = vrot.slane %v2755, 2
        %v2872 = vrot.slane %v2757, 2
        %v2873 = vsel %vm1251, %v2871, %v2872
        %v2874 = vrot.slane %v2756, 2
        %v2875 = vrot.slane %v2758, 2
        %v2876 = vsel %vm1251, %v2874, %v2875
        %v2877 = vrot.slane %v2759, 2
        %v2878 = vsel %vm1251, %v2872, %v2877
        %v2879 = vrot.slane %v2760, 2
        %v2880 = vsel %vm1251, %v2875, %v2879
        %v2881 = vrot.slane %v2761, 2
        %v2882 = vrot.slane %v2763, 2
        %v2883 = vsel %vm1251, %v2881, %v2882
        %v2884 = vrot.slane %v2762, 2
        %v2885 = vrot.slane %v2764, 2
        %v2886 = vsel %vm1251, %v2884, %v2885
        %v2887 = vrot.slane %v2765, 2
        %v2888 = vsel %vm1251, %v2882, %v2887
        %v2889 = vrot.slane %v2766, 2
        %v2890 = vsel %vm1251, %v2885, %v2889
        %v2891 = vrot.slane %v2767, 2
        %v2892 = vrot.slane %v2769, 2
        %v2893 = vsel %vm1251, %v2891, %v2892
        %v2894 = vrot.slane %v2768, 2
        %v2895 = vrot.slane %v2770, 2
        %v2896 = vsel %vm1251, %v2894, %v2895
        %v2897 = vrot.slane %v2771, 2
        %v2898 = vsel %vm1251, %v2892, %v2897
        %v2899 = vrot.slane %v2772, 2
        %v2900 = vsel %vm1251, %v2895, %v2899
        %v2933 = vpack.c.bf16 %v2828, %v2823
        %v2934 = vpack.c.bf16 %v2830, %v2826
        %v2935 = vpack.c.bf16 %v2838, %v2833
        %v2936 = vpack.c.bf16 %v2840, %v2836
        %v2937 = vpack.c.bf16 %v2848, %v2843
        %v2938 = vpack.c.bf16 %v2850, %v2846
        %v2939 = vpack.c.bf16 %v2858, %v2853
        %v2940 = vpack.c.bf16 %v2860, %v2856
        %v2941 = vpack.c.bf16 %v2868, %v2863
        %v2942 = vpack.c.bf16 %v2870, %v2866
        %v2943 = vpack.c.bf16 %v2878, %v2873
        %v2944 = vpack.c.bf16 %v2880, %v2876
        %v2945 = vpack.c.bf16 %v2888, %v2883
        %v2946 = vpack.c.bf16 %v2890, %v2886
        %v2947 = vpack.c.bf16 %v2898, %v2893
        %v2948 = vpack.c.bf16 %v2900, %v2896
        %v2965 = vunpack.c.l.b16 %v2933
        %v2966 = vunpack.c.l.b16 %v2934
        %v2967 = vunpack.c.h.b16 %v2933
        %v2968 = vunpack.c.h.b16 %v2934
        %v2969 = vunpack.c.l.b16 %v2935
        %v2970 = vunpack.c.l.b16 %v2936
        %v2971 = vunpack.c.h.b16 %v2935
        %v2972 = vunpack.c.h.b16 %v2936
        %v2973 = vunpack.c.l.b16 %v2937
        %v2974 = vunpack.c.l.b16 %v2938
        %v2975 = vunpack.c.h.b16 %v2937
        %v2976 = vunpack.c.h.b16 %v2938
        %v2977 = vunpack.c.l.b16 %v2939
        %v2978 = vunpack.c.l.b16 %v2940
        %v2979 = vunpack.c.h.b16 %v2939
        %v2980 = vunpack.c.h.b16 %v2940
        %v2981 = vunpack.c.l.b16 %v2941
        %v2982 = vunpack.c.l.b16 %v2942
        %v2983 = vunpack.c.h.b16 %v2941
        %v2984 = vunpack.c.h.b16 %v2942
        %v2985 = vunpack.c.l.b16 %v2943
        %v2986 = vunpack.c.l.b16 %v2944
        %v2987 = vunpack.c.h.b16 %v2943
        %v2988 = vunpack.c.h.b16 %v2944
        %v2989 = vunpack.c.l.b16 %v2945
        %v2990 = vunpack.c.l.b16 %v2946
        %v2991 = vunpack.c.h.b16 %v2945
        %v2992 = vunpack.c.h.b16 %v2946
        %v2993 = vunpack.c.l.b16 %v2947
        %v2994 = vunpack.c.l.b16 %v2948
        %v2995 = vunpack.c.h.b16 %v2947
        %v2996 = vunpack.c.h.b16 %v2948
        %v2997 = vpack.c.b16 %v2966, %v2965
        %v2998 = vpack.c.b16 %v2968, %v2967
        %v2999 = vpack.c.b16 %v2970, %v2969
        %v3000 = vpack.c.b16 %v2972, %v2971
        %v3001 = vpack.c.b16 %v2974, %v2973
        %v3002 = vpack.c.b16 %v2976, %v2975
        %v3003 = vpack.c.b16 %v2978, %v2977
        %v3004 = vpack.c.b16 %v2980, %v2979
        %v3005 = vpack.c.b16 %v2982, %v2981
        %v3006 = vpack.c.b16 %v2984, %v2983
        %v3007 = vpack.c.b16 %v2986, %v2985
        %v3008 = vpack.c.b16 %v2988, %v2987
        %v3009 = vpack.c.b16 %v2990, %v2989
        %v3010 = vpack.c.b16 %v2992, %v2991
        %v3011 = vpack.c.b16 %v2994, %v2993
        %v3012 = vpack.c.b16 %v2996, %v2995
        %3029 = vst [vmem:[#allocation3 + $0x40] sm:$0xff] %v2997
        %3030 = vst [vmem:[#allocation3 + $0x88] sm:$0xff] %v2998
        %3031 = vst [vmem:[#allocation3 + $0xd0] sm:$0xff] %v2999
        %3032 = vst [vmem:[#allocation3 + $0x118] sm:$0xff] %v3000
        %3033 = vst [vmem:[#allocation3 + $0x160] sm:$0xff] %v3001
        %3034 = vst [vmem:[#allocation3 + $0x1a8] sm:$0xff] %v3002
        %3035 = vst [vmem:[#allocation3 + $0x1f0] sm:$0xff] %v3003
        %3036 = vst [vmem:[#allocation3 + $0x238] sm:$0xff] %v3004
        %3037 = vst [vmem:[#allocation3 + $0x280] sm:$0xff] %v3005
        %3038 = vst [vmem:[#allocation3 + $0x2c8] sm:$0xff] %v3006
        %3039 = vst [vmem:[#allocation3 + $0x310] sm:$0xff] %v3007
        %3040 = vst [vmem:[#allocation3 + $0x358] sm:$0xff] %v3008
        %3041 = vst [vmem:[#allocation3 + $0x3a0] sm:$0xff] %v3009
        %3042 = vst [vmem:[#allocation3 + $0x3e8] sm:$0xff] %v3010
        %3043 = vst [vmem:[#allocation3 + $0x430] sm:$0xff] %v3011
        %3044 = vst [vmem:[#allocation3 + $0x478] sm:$0xff] %v3012
        %v3045 = vld [vmem:[#allocation3] sm:$0xff]
        %v3046 = vld [vmem:[#allocation3 + $0x8] sm:$0xff]
        %v3047 = vld [vmem:[#allocation3 + $0x10] sm:$0xff]
        %v3048 = vld [vmem:[#allocation3 + $0x18] sm:$0xff]
        %v3049 = vld [vmem:[#allocation3 + $0x20] sm:$0xff]
        %v3050 = vld [vmem:[#allocation3 + $0x28] sm:$0xff]
        %v3051 = vld [vmem:[#allocation3 + $0x30] sm:$0xff]
        %v3052 = vld [vmem:[#allocation3 + $0x38] sm:$0xff]
        %v3053 = vld [vmem:[#allocation3 + $0x40] sm:$0xff]
        %v3054 = vld [vmem:[#allocation3 + $0x48] sm:$0xff]
        %v3055 = vld [vmem:[#allocation3 + $0x50] sm:$0xff]
        %v3056 = vld [vmem:[#allocation3 + $0x58] sm:$0xff]
        %v3057 = vld [vmem:[#allocation3 + $0x60] sm:$0xff]
        %v3058 = vld [vmem:[#allocation3 + $0x68] sm:$0xff]
        %v3059 = vld [vmem:[#allocation3 + $0x70] sm:$0xff]
        %v3060 = vld [vmem:[#allocation3 + $0x78] sm:$0xff]
        %v3061 = vld [vmem:[#allocation3 + $0x80] sm:$0xff]
        %v3062 = vld [vmem:[#allocation3 + $0x88] sm:$0xff]
        %v3063 = vld [vmem:[#allocation3 + $0x90] sm:$0xff]
        %v3064 = vld [vmem:[#allocation3 + $0x98] sm:$0xff]
        %v3065 = vld [vmem:[#allocation3 + $0xa0] sm:$0xff]
        %v3066 = vld [vmem:[#allocation3 + $0xa8] sm:$0xff]
        %v3067 = vld [vmem:[#allocation3 + $0xb0] sm:$0xff]
        %v3068 = vld [vmem:[#allocation3 + $0xb8] sm:$0xff]
        %v3069 = vld [vmem:[#allocation3 + $0xc0] sm:$0xff]
        %v3070 = vld [vmem:[#allocation3 + $0xc8] sm:$0xff]
        %v3071 = vld [vmem:[#allocation3 + $0xd0] sm:$0xff]
        %v3072 = vld [vmem:[#allocation3 + $0xd8] sm:$0xff]
        %v3073 = vld [vmem:[#allocation3 + $0xe0] sm:$0xff]
        %v3074 = vld [vmem:[#allocation3 + $0xe8] sm:$0xff]
        %v3075 = vld [vmem:[#allocation3 + $0xf0] sm:$0xff]
        %v3076 = vld [vmem:[#allocation3 + $0xf8] sm:$0xff]
        %v3077 = vld [vmem:[#allocation3 + $0x100] sm:$0xff]
        %v3078 = vld [vmem:[#allocation3 + $0x108] sm:$0xff]
        %v3079 = vld [vmem:[#allocation3 + $0x110] sm:$0xff]
        %v3080 = vld [vmem:[#allocation3 + $0x118] sm:$0xff]
        %v3081 = vld [vmem:[#allocation3 + $0x120] sm:$0xff]
        %v3082 = vld [vmem:[#allocation3 + $0x128] sm:$0xff]
        %v3083 = vld [vmem:[#allocation3 + $0x130] sm:$0xff]
        %v3084 = vld [vmem:[#allocation3 + $0x138] sm:$0xff]
        %v3085 = vld [vmem:[#allocation3 + $0x140] sm:$0xff]
        %v3086 = vld [vmem:[#allocation3 + $0x148] sm:$0xff]
        %v3087 = vld [vmem:[#allocation3 + $0x150] sm:$0xff]
        %v3088 = vld [vmem:[#allocation3 + $0x158] sm:$0xff]
        %v3089 = vld [vmem:[#allocation3 + $0x160] sm:$0xff]
        %v3090 = vld [vmem:[#allocation3 + $0x168] sm:$0xff]
        %v3091 = vld [vmem:[#allocation3 + $0x170] sm:$0xff]
        %v3092 = vld [vmem:[#allocation3 + $0x178] sm:$0xff]
        %v3093 = vld [vmem:[#allocation3 + $0x180] sm:$0xff]
        %v3094 = vld [vmem:[#allocation3 + $0x188] sm:$0xff]
        %v3095 = vld [vmem:[#allocation3 + $0x190] sm:$0xff]
        %v3096 = vld [vmem:[#allocation3 + $0x198] sm:$0xff]
        %v3097 = vld [vmem:[#allocation3 + $0x1a0] sm:$0xff]
        %v3098 = vld [vmem:[#allocation3 + $0x1a8] sm:$0xff]
        %v3099 = vld [vmem:[#allocation3 + $0x1b0] sm:$0xff]
        %v3100 = vld [vmem:[#allocation3 + $0x1b8] sm:$0xff]
        %v3101 = vld [vmem:[#allocation3 + $0x1c0] sm:$0xff]
        %v3102 = vld [vmem:[#allocation3 + $0x1c8] sm:$0xff]
        %v3103 = vld [vmem:[#allocation3 + $0x1d0] sm:$0xff]
        %v3104 = vld [vmem:[#allocation3 + $0x1d8] sm:$0xff]
        %v3105 = vld [vmem:[#allocation3 + $0x1e0] sm:$0xff]
        %v3106 = vld [vmem:[#allocation3 + $0x1e8] sm:$0xff]
        %v3107 = vld [vmem:[#allocation3 + $0x1f0] sm:$0xff]
        %v3108 = vld [vmem:[#allocation3 + $0x1f8] sm:$0xff]
        %v3109 = vld [vmem:[#allocation3 + $0x200] sm:$0xff]
        %v3110 = vld [vmem:[#allocation3 + $0x208] sm:$0xff]
        %v3111 = vld [vmem:[#allocation3 + $0x210] sm:$0xff]
        %v3112 = vld [vmem:[#allocation3 + $0x218] sm:$0xff]
        %v3113 = vld [vmem:[#allocation3 + $0x220] sm:$0xff]
        %v3114 = vld [vmem:[#allocation3 + $0x228] sm:$0xff]
        %v3115 = vld [vmem:[#allocation3 + $0x230] sm:$0xff]
        %v3116 = vld [vmem:[#allocation3 + $0x238] sm:$0xff]
        %v3117 = vld [vmem:[#allocation3 + $0x240] sm:$0xff]
        %v3118 = vld [vmem:[#allocation3 + $0x248] sm:$0xff]
        %v3119 = vld [vmem:[#allocation3 + $0x250] sm:$0xff]
        %v3120 = vld [vmem:[#allocation3 + $0x258] sm:$0xff]
        %v3121 = vld [vmem:[#allocation3 + $0x260] sm:$0xff]
        %v3122 = vld [vmem:[#allocation3 + $0x268] sm:$0xff]
        %v3123 = vld [vmem:[#allocation3 + $0x270] sm:$0xff]
        %v3124 = vld [vmem:[#allocation3 + $0x278] sm:$0xff]
        %v3125 = vld [vmem:[#allocation3 + $0x280] sm:$0xff]
        %v3126 = vld [vmem:[#allocation3 + $0x288] sm:$0xff]
        %v3127 = vld [vmem:[#allocation3 + $0x290] sm:$0xff]
        %v3128 = vld [vmem:[#allocation3 + $0x298] sm:$0xff]
        %v3129 = vld [vmem:[#allocation3 + $0x2a0] sm:$0xff]
        %v3130 = vld [vmem:[#allocation3 + $0x2a8] sm:$0xff]
        %v3131 = vld [vmem:[#allocation3 + $0x2b0] sm:$0xff]
        %v3132 = vld [vmem:[#allocation3 + $0x2b8] sm:$0xff]
        %v3133 = vld [vmem:[#allocation3 + $0x2c0] sm:$0xff]
        %v3134 = vld [vmem:[#allocation3 + $0x2c8] sm:$0xff]
        %v3135 = vld [vmem:[#allocation3 + $0x2d0] sm:$0xff]
        %v3136 = vld [vmem:[#allocation3 + $0x2d8] sm:$0xff]
        %v3137 = vld [vmem:[#allocation3 + $0x2e0] sm:$0xff]
        %v3138 = vld [vmem:[#allocation3 + $0x2e8] sm:$0xff]
        %v3139 = vld [vmem:[#allocation3 + $0x2f0] sm:$0xff]
        %v3140 = vld [vmem:[#allocation3 + $0x2f8] sm:$0xff]
        %v3141 = vld [vmem:[#allocation3 + $0x300] sm:$0xff]
        %v3142 = vld [vmem:[#allocation3 + $0x308] sm:$0xff]
        %v3143 = vld [vmem:[#allocation3 + $0x310] sm:$0xff]
        %v3144 = vld [vmem:[#allocation3 + $0x318] sm:$0xff]
        %v3145 = vld [vmem:[#allocation3 + $0x320] sm:$0xff]
        %v3146 = vld [vmem:[#allocation3 + $0x328] sm:$0xff]
        %v3147 = vld [vmem:[#allocation3 + $0x330] sm:$0xff]
        %v3148 = vld [vmem:[#allocation3 + $0x338] sm:$0xff]
        %v3149 = vld [vmem:[#allocation3 + $0x340] sm:$0xff]
        %v3150 = vld [vmem:[#allocation3 + $0x348] sm:$0xff]
        %v3151 = vld [vmem:[#allocation3 + $0x350] sm:$0xff]
        %v3152 = vld [vmem:[#allocation3 + $0x358] sm:$0xff]
        %v3153 = vld [vmem:[#allocation3 + $0x360] sm:$0xff]
        %v3154 = vld [vmem:[#allocation3 + $0x368] sm:$0xff]
        %v3155 = vld [vmem:[#allocation3 + $0x370] sm:$0xff]
        %v3156 = vld [vmem:[#allocation3 + $0x378] sm:$0xff]
        %v3157 = vld [vmem:[#allocation3 + $0x380] sm:$0xff]
        %v3158 = vld [vmem:[#allocation3 + $0x388] sm:$0xff]
        %v3159 = vld [vmem:[#allocation3 + $0x390] sm:$0xff]
        %v3160 = vld [vmem:[#allocation3 + $0x398] sm:$0xff]
        %v3161 = vld [vmem:[#allocation3 + $0x3a0] sm:$0xff]
        %v3162 = vld [vmem:[#allocation3 + $0x3a8] sm:$0xff]
        %v3163 = vld [vmem:[#allocation3 + $0x3b0] sm:$0xff]
        %v3164 = vld [vmem:[#allocation3 + $0x3b8] sm:$0xff]
        %v3165 = vld [vmem:[#allocation3 + $0x3c0] sm:$0xff]
        %v3166 = vld [vmem:[#allocation3 + $0x3c8] sm:$0xff]
        %v3167 = vld [vmem:[#allocation3 + $0x3d0] sm:$0xff]
        %v3168 = vld [vmem:[#allocation3 + $0x3d8] sm:$0xff]
        %v3169 = vld [vmem:[#allocation3 + $0x3e0] sm:$0xff]
        %v3170 = vld [vmem:[#allocation3 + $0x3e8] sm:$0xff]
        %v3171 = vld [vmem:[#allocation3 + $0x3f0] sm:$0xff]
        %v3172 = vld [vmem:[#allocation3 + $0x3f8] sm:$0xff]
        %v3173 = vld [vmem:[#allocation3 + $0x400] sm:$0xff]
        %v3174 = vld [vmem:[#allocation3 + $0x408] sm:$0xff]
        %v3175 = vld [vmem:[#allocation3 + $0x410] sm:$0xff]
        %v3176 = vld [vmem:[#allocation3 + $0x418] sm:$0xff]
        %v3177 = vld [vmem:[#allocation3 + $0x420] sm:$0xff]
        %v3178 = vld [vmem:[#allocation3 + $0x428] sm:$0xff]
        %v3179 = vld [vmem:[#allocation3 + $0x430] sm:$0xff]
        %v3180 = vld [vmem:[#allocation3 + $0x438] sm:$0xff]
        %v3181 = vld [vmem:[#allocation3 + $0x440] sm:$0xff]
        %v3182 = vld [vmem:[#allocation3 + $0x448] sm:$0xff]
        %v3183 = vld [vmem:[#allocation3 + $0x450] sm:$0xff]
        %v3184 = vld [vmem:[#allocation3 + $0x458] sm:$0xff]
        %v3185 = vld [vmem:[#allocation3 + $0x460] sm:$0xff]
        %v3186 = vld [vmem:[#allocation3 + $0x468] sm:$0xff]
        %v3187 = vld [vmem:[#allocation3 + $0x470] sm:$0xff]
        %v3188 = vld [vmem:[#allocation3 + $0x478] sm:$0xff]
        %v3189 = vld [vmem:[%s1] sm:$0xf]
        %v3190 = vld [vmem:[%s1 + $0x4] sm:$0xf]
        %v3191 = vld [vmem:[%s1 + $0x8] sm:$0xf]
        %v3192 = vld [vmem:[%s1 + $0xc] sm:$0xf]
        %v3193 = vld [vmem:[%s1 + $0x10] sm:$0xf]
        %v3194 = vld [vmem:[%s1 + $0x14] sm:$0xf]
        %v3195 = vld [vmem:[%s1 + $0x18] sm:$0xf]
        %v3196 = vld [vmem:[%s1 + $0x1c] sm:$0xf]
        %v3197 = vld [vmem:[%s1 + $0x20] sm:$0xf]
        %v3198 = vld [vmem:[%s1 + $0x24] sm:$0xf]
        %v3199 = vld [vmem:[%s1 + $0x28] sm:$0xf]
        %v3200 = vld [vmem:[%s1 + $0x2c] sm:$0xf]
        %v3201 = vld [vmem:[%s1 + $0x30] sm:$0xf]
        %v3202 = vld [vmem:[%s1 + $0x34] sm:$0xf]
        %v3203 = vld [vmem:[%s1 + $0x38] sm:$0xf]
        %v3204 = vld [vmem:[%s1 + $0x3c] sm:$0xf]
        %v3205 = vld [vmem:[%s1 + $0x40] sm:$0xf]
        %v3206 = vld [vmem:[%s1 + $0x44] sm:$0xf]
        %v3207 = vld [vmem:[%s1 + $0x48] sm:$0xf]
        %v3208 = vld [vmem:[%s1 + $0x4c] sm:$0xf]
        %v3209 = vld [vmem:[%s1 + $0x50] sm:$0xf]
        %v3210 = vld [vmem:[%s1 + $0x54] sm:$0xf]
        %v3211 = vld [vmem:[%s1 + $0x58] sm:$0xf]
        %v3212 = vld [vmem:[%s1 + $0x5c] sm:$0xf]
        %v3213 = vld [vmem:[%s1 + $0x60] sm:$0xf]
        %v3214 = vld [vmem:[%s1 + $0x64] sm:$0xf]
        %v3215 = vld [vmem:[%s1 + $0x68] sm:$0xf]
        %v3216 = vld [vmem:[%s1 + $0x6c] sm:$0xf]
        %v3217 = vld [vmem:[%s1 + $0x70] sm:$0xf]
        %v3218 = vld [vmem:[%s1 + $0x74] sm:$0xf]
        %v3219 = vld [vmem:[%s1 + $0x78] sm:$0xf]
        %v3220 = vld [vmem:[%s1 + $0x7c] sm:$0xf]
        %v3221 = vld [vmem:[%s1 + $0x80] sm:$0xf]
        %v3222 = vld [vmem:[%s1 + $0x84] sm:$0xf]
        %v3223 = vld [vmem:[%s1 + $0x88] sm:$0xf]
        %v3224 = vld [vmem:[%s1 + $0x8c] sm:$0xf]
        %v3225 = vld [vmem:[%s1 + $0x90] sm:$0xf]
        %v3226 = vld [vmem:[%s1 + $0x94] sm:$0xf]
        %v3227 = vld [vmem:[%s1 + $0x98] sm:$0xf]
        %v3228 = vld [vmem:[%s1 + $0x9c] sm:$0xf]
        %v3229 = vld [vmem:[%s1 + $0xa0] sm:$0xf]
        %v3230 = vld [vmem:[%s1 + $0xa4] sm:$0xf]
        %v3231 = vld [vmem:[%s1 + $0xa8] sm:$0xf]
        %v3232 = vld [vmem:[%s1 + $0xac] sm:$0xf]
        %v3233 = vld [vmem:[%s1 + $0xb0] sm:$0xf]
        %v3234 = vld [vmem:[%s1 + $0xb4] sm:$0xf]
        %v3235 = vld [vmem:[%s1 + $0xb8] sm:$0xf]
        %v3236 = vld [vmem:[%s1 + $0xbc] sm:$0xf]
        %v3237 = vld [vmem:[%s1 + $0xc0] sm:$0xf]
        %v3238 = vld [vmem:[%s1 + $0xc4] sm:$0xf]
        %v3239 = vld [vmem:[%s1 + $0xc8] sm:$0xf]
        %v3240 = vld [vmem:[%s1 + $0xcc] sm:$0xf]
        %v3241 = vld [vmem:[%s1 + $0xd0] sm:$0xf]
        %v3242 = vld [vmem:[%s1 + $0xd4] sm:$0xf]
        %v3243 = vld [vmem:[%s1 + $0xd8] sm:$0xf]
        %v3244 = vld [vmem:[%s1 + $0xdc] sm:$0xf]
        %v3245 = vld [vmem:[%s1 + $0xe0] sm:$0xf]
        %v3246 = vld [vmem:[%s1 + $0xe4] sm:$0xf]
        %v3247 = vld [vmem:[%s1 + $0xe8] sm:$0xf]
        %v3248 = vld [vmem:[%s1 + $0xec] sm:$0xf]
        %v3249 = vld [vmem:[%s1 + $0xf0] sm:$0xf]
        %v3250 = vld [vmem:[%s1 + $0xf4] sm:$0xf]
        %v3251 = vld [vmem:[%s1 + $0xf8] sm:$0xf]
        %v3252 = vld [vmem:[%s1 + $0xfc] sm:$0xf]
        %v3253 = vld [vmem:[%s1 + $0x100] sm:$0xf]
        %v3254 = vld [vmem:[%s1 + $0x104] sm:$0xf]
        %v3255 = vld [vmem:[%s1 + $0x108] sm:$0xf]
        %v3256 = vld [vmem:[%s1 + $0x10c] sm:$0xf]
        %v3257 = vld [vmem:[%s1 + $0x110] sm:$0xf]
        %v3258 = vld [vmem:[%s1 + $0x114] sm:$0xf]
        %v3259 = vld [vmem:[%s1 + $0x118] sm:$0xf]
        %v3260 = vld [vmem:[%s1 + $0x11c] sm:$0xf]
        %v3261 = vld [vmem:[%s1 + $0x120] sm:$0xf]
        %v3262 = vld [vmem:[%s1 + $0x124] sm:$0xf]
        %v3263 = vld [vmem:[%s1 + $0x128] sm:$0xf]
        %v3264 = vld [vmem:[%s1 + $0x12c] sm:$0xf]
        %v3265 = vld [vmem:[%s1 + $0x130] sm:$0xf]
        %v3266 = vld [vmem:[%s1 + $0x134] sm:$0xf]
        %v3267 = vld [vmem:[%s1 + $0x138] sm:$0xf]
        %v3268 = vld [vmem:[%s1 + $0x13c] sm:$0xf]
        %v3269 = vld [vmem:[%s1 + $0x140] sm:$0xf]
        %v3270 = vld [vmem:[%s1 + $0x144] sm:$0xf]
        %v3271 = vld [vmem:[%s1 + $0x148] sm:$0xf]
        %v3272 = vld [vmem:[%s1 + $0x14c] sm:$0xf]
        %v3273 = vld [vmem:[%s1 + $0x150] sm:$0xf]
        %v3274 = vld [vmem:[%s1 + $0x154] sm:$0xf]
        %v3275 = vld [vmem:[%s1 + $0x158] sm:$0xf]
        %v3276 = vld [vmem:[%s1 + $0x15c] sm:$0xf]
        %v3277 = vld [vmem:[%s1 + $0x160] sm:$0xf]
        %v3278 = vld [vmem:[%s1 + $0x164] sm:$0xf]
        %v3279 = vld [vmem:[%s1 + $0x168] sm:$0xf]
        %v3280 = vld [vmem:[%s1 + $0x16c] sm:$0xf]
        %v3281 = vld [vmem:[%s1 + $0x170] sm:$0xf]
        %v3282 = vld [vmem:[%s1 + $0x174] sm:$0xf]
        %v3283 = vld [vmem:[%s1 + $0x178] sm:$0xf]
        %v3284 = vld [vmem:[%s1 + $0x17c] sm:$0xf]
        %v3285 = vld [vmem:[%s1 + $0x180] sm:$0xf]
        %v3286 = vld [vmem:[%s1 + $0x184] sm:$0xf]
        %v3287 = vld [vmem:[%s1 + $0x188] sm:$0xf]
        %v3288 = vld [vmem:[%s1 + $0x18c] sm:$0xf]
        %v3289 = vld [vmem:[%s1 + $0x190] sm:$0xf]
        %v3290 = vld [vmem:[%s1 + $0x194] sm:$0xf]
        %v3291 = vld [vmem:[%s1 + $0x198] sm:$0xf]
        %v3292 = vld [vmem:[%s1 + $0x19c] sm:$0xf]
        %v3293 = vld [vmem:[%s1 + $0x1a0] sm:$0xf]
        %v3294 = vld [vmem:[%s1 + $0x1a4] sm:$0xf]
        %v3295 = vld [vmem:[%s1 + $0x1a8] sm:$0xf]
        %v3296 = vld [vmem:[%s1 + $0x1ac] sm:$0xf]
        %v3297 = vld [vmem:[%s1 + $0x1b0] sm:$0xf]
        %v3298 = vld [vmem:[%s1 + $0x1b4] sm:$0xf]
        %v3299 = vld [vmem:[%s1 + $0x1b8] sm:$0xf]
        %v3300 = vld [vmem:[%s1 + $0x1bc] sm:$0xf]
        %v3301 = vld [vmem:[%s1 + $0x1c0] sm:$0xf]
        %v3302 = vld [vmem:[%s1 + $0x1c4] sm:$0xf]
        %v3303 = vld [vmem:[%s1 + $0x1c8] sm:$0xf]
        %v3304 = vld [vmem:[%s1 + $0x1cc] sm:$0xf]
        %v3305 = vld [vmem:[%s1 + $0x1d0] sm:$0xf]
        %v3306 = vld [vmem:[%s1 + $0x1d4] sm:$0xf]
        %v3307 = vld [vmem:[%s1 + $0x1d8] sm:$0xf]
        %v3308 = vld [vmem:[%s1 + $0x1dc] sm:$0xf]
        %v3309 = vld [vmem:[%s1 + $0x1e0] sm:$0xf]
        %v3310 = vld [vmem:[%s1 + $0x1e4] sm:$0xf]
        %v3311 = vld [vmem:[%s1 + $0x1e8] sm:$0xf]
        %v3312 = vld [vmem:[%s1 + $0x1ec] sm:$0xf]
        %v3313 = vld [vmem:[%s1 + $0x1f0] sm:$0xf]
        %v3314 = vld [vmem:[%s1 + $0x1f4] sm:$0xf]
        %v3315 = vld [vmem:[%s1 + $0x1f8] sm:$0xf]
        %v3316 = vld [vmem:[%s1 + $0x1fc] sm:$0xf]
        %v3317 = vld [vmem:[%s1 + $0x200] sm:$0xf]
        %v3318 = vld [vmem:[%s1 + $0x204] sm:$0xf]
        %v3319 = vld [vmem:[%s1 + $0x208] sm:$0xf]
        %v3320 = vld [vmem:[%s1 + $0x20c] sm:$0xf]
        %v3321 = vld [vmem:[%s1 + $0x210] sm:$0xf]
        %v3322 = vld [vmem:[%s1 + $0x214] sm:$0xf]
        %v3323 = vld [vmem:[%s1 + $0x218] sm:$0xf]
        %v3324 = vld [vmem:[%s1 + $0x21c] sm:$0xf]
        %v3325 = vld [vmem:[%s1 + $0x220] sm:$0xf]
        %v3326 = vld [vmem:[%s1 + $0x224] sm:$0xf]
        %v3327 = vld [vmem:[%s1 + $0x228] sm:$0xf]
        %v3328 = vld [vmem:[%s1 + $0x22c] sm:$0xf]
        %v3329 = vld [vmem:[%s1 + $0x230] sm:$0xf]
        %v3330 = vld [vmem:[%s1 + $0x234] sm:$0xf]
        %v3331 = vld [vmem:[%s1 + $0x238] sm:$0xf]
        %v3332 = vld [vmem:[%s1 + $0x23c] sm:$0xf]
        %v3333 = vld [vmem:[%s1 + $0x240] sm:$0xf]
        %v3334 = vld [vmem:[%s1 + $0x244] sm:$0xf]
        %v3335 = vld [vmem:[%s1 + $0x248] sm:$0xf]
        %v3336 = vld [vmem:[%s1 + $0x24c] sm:$0xf]
        %v3337 = vld [vmem:[%s1 + $0x250] sm:$0xf]
        %v3338 = vld [vmem:[%s1 + $0x254] sm:$0xf]
        %v3339 = vld [vmem:[%s1 + $0x258] sm:$0xf]
        %v3340 = vld [vmem:[%s1 + $0x25c] sm:$0xf]
        %v3341 = vld [vmem:[%s1 + $0x260] sm:$0xf]
        %v3342 = vld [vmem:[%s1 + $0x264] sm:$0xf]
        %v3343 = vld [vmem:[%s1 + $0x268] sm:$0xf]
        %v3344 = vld [vmem:[%s1 + $0x26c] sm:$0xf]
        %v3345 = vld [vmem:[%s1 + $0x270] sm:$0xf]
        %v3346 = vld [vmem:[%s1 + $0x274] sm:$0xf]
        %v3347 = vld [vmem:[%s1 + $0x278] sm:$0xf]
        %v3348 = vld [vmem:[%s1 + $0x27c] sm:$0xf]
        %v3349 = vld [vmem:[%s1 + $0x280] sm:$0xf]
        %v3350 = vld [vmem:[%s1 + $0x284] sm:$0xf]
        %v3351 = vld [vmem:[%s1 + $0x288] sm:$0xf]
        %v3352 = vld [vmem:[%s1 + $0x28c] sm:$0xf]
        %v3353 = vld [vmem:[%s1 + $0x290] sm:$0xf]
        %v3354 = vld [vmem:[%s1 + $0x294] sm:$0xf]
        %v3355 = vld [vmem:[%s1 + $0x298] sm:$0xf]
        %v3356 = vld [vmem:[%s1 + $0x29c] sm:$0xf]
        %v3357 = vld [vmem:[%s1 + $0x2a0] sm:$0xf]
        %v3358 = vld [vmem:[%s1 + $0x2a4] sm:$0xf]
        %v3359 = vld [vmem:[%s1 + $0x2a8] sm:$0xf]
        %v3360 = vld [vmem:[%s1 + $0x2ac] sm:$0xf]
        %v3361 = vld [vmem:[%s1 + $0x2b0] sm:$0xf]
        %v3362 = vld [vmem:[%s1 + $0x2b4] sm:$0xf]
        %v3363 = vld [vmem:[%s1 + $0x2b8] sm:$0xf]
        %v3364 = vld [vmem:[%s1 + $0x2bc] sm:$0xf]
        %v3365 = vld [vmem:[%s1 + $0x2c0] sm:$0xf]
        %v3366 = vld [vmem:[%s1 + $0x2c4] sm:$0xf]
        %v3367 = vld [vmem:[%s1 + $0x2c8] sm:$0xf]
        %v3368 = vld [vmem:[%s1 + $0x2cc] sm:$0xf]
        %v3369 = vld [vmem:[%s1 + $0x2d0] sm:$0xf]
        %v3370 = vld [vmem:[%s1 + $0x2d4] sm:$0xf]
        %v3371 = vld [vmem:[%s1 + $0x2d8] sm:$0xf]
        %v3372 = vld [vmem:[%s1 + $0x2dc] sm:$0xf]
        %v3373 = vld [vmem:[%s1 + $0x2e0] sm:$0xf]
        %v3374 = vld [vmem:[%s1 + $0x2e4] sm:$0xf]
        %v3375 = vld [vmem:[%s1 + $0x2e8] sm:$0xf]
        %v3376 = vld [vmem:[%s1 + $0x2ec] sm:$0xf]
        %v3377 = vld [vmem:[%s1 + $0x2f0] sm:$0xf]
        %v3378 = vld [vmem:[%s1 + $0x2f4] sm:$0xf]
        %v3379 = vld [vmem:[%s1 + $0x2f8] sm:$0xf]
        %v3380 = vld [vmem:[%s1 + $0x2fc] sm:$0xf]
        %v3381 = vld [vmem:[%s1 + $0x300] sm:$0xf]
        %v3382 = vld [vmem:[%s1 + $0x304] sm:$0xf]
        %v3383 = vld [vmem:[%s1 + $0x308] sm:$0xf]
        %v3384 = vld [vmem:[%s1 + $0x30c] sm:$0xf]
        %v3385 = vld [vmem:[%s1 + $0x310] sm:$0xf]
        %v3386 = vld [vmem:[%s1 + $0x314] sm:$0xf]
        %v3387 = vld [vmem:[%s1 + $0x318] sm:$0xf]
        %v3388 = vld [vmem:[%s1 + $0x31c] sm:$0xf]
        %v3389 = vld [vmem:[%s1 + $0x320] sm:$0xf]
        %v3390 = vld [vmem:[%s1 + $0x324] sm:$0xf]
        %v3391 = vld [vmem:[%s1 + $0x328] sm:$0xf]
        %v3392 = vld [vmem:[%s1 + $0x32c] sm:$0xf]
        %v3393 = vld [vmem:[%s1 + $0x330] sm:$0xf]
        %v3394 = vld [vmem:[%s1 + $0x334] sm:$0xf]
        %v3395 = vld [vmem:[%s1 + $0x338] sm:$0xf]
        %v3396 = vld [vmem:[%s1 + $0x33c] sm:$0xf]
        %v3397 = vld [vmem:[%s1 + $0x340] sm:$0xf]
        %v3398 = vld [vmem:[%s1 + $0x344] sm:$0xf]
        %v3399 = vld [vmem:[%s1 + $0x348] sm:$0xf]
        %v3400 = vld [vmem:[%s1 + $0x34c] sm:$0xf]
        %v3401 = vld [vmem:[%s1 + $0x350] sm:$0xf]
        %v3402 = vld [vmem:[%s1 + $0x354] sm:$0xf]
        %v3403 = vld [vmem:[%s1 + $0x358] sm:$0xf]
        %v3404 = vld [vmem:[%s1 + $0x35c] sm:$0xf]
        %v3405 = vld [vmem:[%s1 + $0x360] sm:$0xf]
        %v3406 = vld [vmem:[%s1 + $0x364] sm:$0xf]
        %v3407 = vld [vmem:[%s1 + $0x368] sm:$0xf]
        %v3408 = vld [vmem:[%s1 + $0x36c] sm:$0xf]
        %v3409 = vld [vmem:[%s1 + $0x370] sm:$0xf]
        %v3410 = vld [vmem:[%s1 + $0x374] sm:$0xf]
        %v3411 = vld [vmem:[%s1 + $0x378] sm:$0xf]
        %v3412 = vld [vmem:[%s1 + $0x37c] sm:$0xf]
        %v3413 = vld [vmem:[%s1 + $0x380] sm:$0xf]
        %v3414 = vld [vmem:[%s1 + $0x384] sm:$0xf]
        %v3415 = vld [vmem:[%s1 + $0x388] sm:$0xf]
        %v3416 = vld [vmem:[%s1 + $0x38c] sm:$0xf]
        %v3417 = vld [vmem:[%s1 + $0x390] sm:$0xf]
        %v3418 = vld [vmem:[%s1 + $0x394] sm:$0xf]
        %v3419 = vld [vmem:[%s1 + $0x398] sm:$0xf]
        %v3420 = vld [vmem:[%s1 + $0x39c] sm:$0xf]
        %v3421 = vld [vmem:[%s1 + $0x3a0] sm:$0xf]
        %v3422 = vld [vmem:[%s1 + $0x3a4] sm:$0xf]
        %v3423 = vld [vmem:[%s1 + $0x3a8] sm:$0xf]
        %v3424 = vld [vmem:[%s1 + $0x3ac] sm:$0xf]
        %v3425 = vld [vmem:[%s1 + $0x3b0] sm:$0xf]
        %v3426 = vld [vmem:[%s1 + $0x3b4] sm:$0xf]
        %v3427 = vld [vmem:[%s1 + $0x3b8] sm:$0xf]
        %v3428 = vld [vmem:[%s1 + $0x3bc] sm:$0xf]
        %v3429 = vld [vmem:[%s1 + $0x3c0] sm:$0xf]
        %v3430 = vld [vmem:[%s1 + $0x3c4] sm:$0xf]
        %v3431 = vld [vmem:[%s1 + $0x3c8] sm:$0xf]
        %v3432 = vld [vmem:[%s1 + $0x3cc] sm:$0xf]
        %v3433 = vld [vmem:[%s1 + $0x3d0] sm:$0xf]
        %v3434 = vld [vmem:[%s1 + $0x3d4] sm:$0xf]
        %v3435 = vld [vmem:[%s1 + $0x3d8] sm:$0xf]
        %v3436 = vld [vmem:[%s1 + $0x3dc] sm:$0xf]
        %v3437 = vld [vmem:[%s1 + $0x3e0] sm:$0xf]
        %v3438 = vld [vmem:[%s1 + $0x3e4] sm:$0xf]
        %v3439 = vld [vmem:[%s1 + $0x3e8] sm:$0xf]
        %v3440 = vld [vmem:[%s1 + $0x3ec] sm:$0xf]
        %v3441 = vld [vmem:[%s1 + $0x3f0] sm:$0xf]
        %v3442 = vld [vmem:[%s1 + $0x3f4] sm:$0xf]
        %v3443 = vld [vmem:[%s1 + $0x3f8] sm:$0xf]
        %v3444 = vld [vmem:[%s1 + $0x3fc] sm:$0xf]
        %v3445 = vld [vmem:[%s1 + $0x400] sm:$0xf]
        %v3446 = vld [vmem:[%s1 + $0x404] sm:$0xf]
        %v3447 = vld [vmem:[%s1 + $0x408] sm:$0xf]
        %v3448 = vld [vmem:[%s1 + $0x40c] sm:$0xf]
        %v3449 = vld [vmem:[%s1 + $0x410] sm:$0xf]
        %v3450 = vld [vmem:[%s1 + $0x414] sm:$0xf]
        %v3451 = vld [vmem:[%s1 + $0x418] sm:$0xf]
        %v3452 = vld [vmem:[%s1 + $0x41c] sm:$0xf]
        %v3453 = vld [vmem:[%s1 + $0x420] sm:$0xf]
        %v3454 = vld [vmem:[%s1 + $0x424] sm:$0xf]
        %v3455 = vld [vmem:[%s1 + $0x428] sm:$0xf]
        %v3456 = vld [vmem:[%s1 + $0x42c] sm:$0xf]
        %v3457 = vld [vmem:[%s1 + $0x430] sm:$0xf]
        %v3458 = vld [vmem:[%s1 + $0x434] sm:$0xf]
        %v3459 = vld [vmem:[%s1 + $0x438] sm:$0xf]
        %v3460 = vld [vmem:[%s1 + $0x43c] sm:$0xf]
        %v3461 = vld [vmem:[%s1 + $0x440] sm:$0xf]
        %v3462 = vld [vmem:[%s1 + $0x444] sm:$0xf]
        %v3463 = vld [vmem:[%s1 + $0x448] sm:$0xf]
        %v3464 = vld [vmem:[%s1 + $0x44c] sm:$0xf]
        %v3465 = vld [vmem:[%s1 + $0x450] sm:$0xf]
        %v3466 = vld [vmem:[%s1 + $0x454] sm:$0xf]
        %v3467 = vld [vmem:[%s1 + $0x458] sm:$0xf]
        %v3468 = vld [vmem:[%s1 + $0x45c] sm:$0xf]
        %v3469 = vld [vmem:[%s1 + $0x460] sm:$0xf]
        %v3470 = vld [vmem:[%s1 + $0x464] sm:$0xf]
        %v3471 = vld [vmem:[%s1 + $0x468] sm:$0xf]
        %v3472 = vld [vmem:[%s1 + $0x46c] sm:$0xf]
        %v3473 = vld [vmem:[%s1 + $0x470] sm:$0xf]
        %v3474 = vld [vmem:[%s1 + $0x474] sm:$0xf]
        %v3475 = vld [vmem:[%s1 + $0x478] sm:$0xf]
        %v3476 = vld [vmem:[%s1 + $0x47c] sm:$0xf]
        %v3477 = vld [vmem:[%s2] sm:$0x1]
        %v3479 = vlaneseq
        %v3480 = vshrl.u32 %v3479, 7
        %v3481 = vsub.s32 0, %v3480
        %v3482 = vrot.slane %v3477, %v3481
        %v3628 = vunpack.c.l.b16 %v3045
        %v3629 = vunpack.c.h.b16 %v3045
        %v3630 = vunpack.c.l.b16 %v3046
        %v3631 = vunpack.c.h.b16 %v3046
        %v3632 = vunpack.c.l.b16 %v3047
        %v3633 = vunpack.c.h.b16 %v3047
        %v3634 = vunpack.c.l.b16 %v3048
        %v3635 = vunpack.c.h.b16 %v3048
        %v3636 = vunpack.c.l.b16 %v3049
        %v3637 = vunpack.c.h.b16 %v3049
        %v3638 = vunpack.c.l.b16 %v3050
        %v3639 = vunpack.c.h.b16 %v3050
        %v3640 = vunpack.c.l.b16 %v3051
        %v3641 = vunpack.c.h.b16 %v3051
        %v3642 = vunpack.c.l.b16 %v3052
        %v3643 = vunpack.c.h.b16 %v3052
        %v3644 = vunpack.c.l.b16 %v3053
        %v3645 = vunpack.c.h.b16 %v3053
        %v3646 = vunpack.c.l.b16 %v3054
        %v3647 = vunpack.c.h.b16 %v3054
        %v3648 = vunpack.c.l.b16 %v3055
        %v3649 = vunpack.c.h.b16 %v3055
        %v3650 = vunpack.c.l.b16 %v3056
        %v3651 = vunpack.c.h.b16 %v3056
        %v3652 = vunpack.c.l.b16 %v3057
        %v3653 = vunpack.c.h.b16 %v3057
        %v3654 = vunpack.c.l.b16 %v3058
        %v3655 = vunpack.c.h.b16 %v3058
        %v3656 = vunpack.c.l.b16 %v3059
        %v3657 = vunpack.c.h.b16 %v3059
        %v3658 = vunpack.c.l.b16 %v3060
        %v3659 = vunpack.c.h.b16 %v3060
        %v3660 = vunpack.c.l.b16 %v3061
        %v3661 = vunpack.c.h.b16 %v3061
        %v3662 = vunpack.c.l.b16 %v3062
        %v3663 = vunpack.c.h.b16 %v3062
        %v3664 = vunpack.c.l.b16 %v3063
        %v3665 = vunpack.c.h.b16 %v3063
        %v3666 = vunpack.c.l.b16 %v3064
        %v3667 = vunpack.c.h.b16 %v3064
        %v3668 = vunpack.c.l.b16 %v3065
        %v3669 = vunpack.c.h.b16 %v3065
        %v3670 = vunpack.c.l.b16 %v3066
        %v3671 = vunpack.c.h.b16 %v3066
        %v3672 = vunpack.c.l.b16 %v3067
        %v3673 = vunpack.c.h.b16 %v3067
        %v3674 = vunpack.c.l.b16 %v3068
        %v3675 = vunpack.c.h.b16 %v3068
        %v3676 = vunpack.c.l.b16 %v3069
        %v3677 = vunpack.c.h.b16 %v3069
        %v3678 = vunpack.c.l.b16 %v3070
        %v3679 = vunpack.c.h.b16 %v3070
        %v3680 = vunpack.c.l.b16 %v3071
        %v3681 = vunpack.c.h.b16 %v3071
        %v3682 = vunpack.c.l.b16 %v3072
        %v3683 = vunpack.c.h.b16 %v3072
        %v3684 = vunpack.c.l.b16 %v3073
        %v3685 = vunpack.c.h.b16 %v3073
        %v3686 = vunpack.c.l.b16 %v3074
        %v3687 = vunpack.c.h.b16 %v3074
        %v3688 = vunpack.c.l.b16 %v3075
        %v3689 = vunpack.c.h.b16 %v3075
        %v3690 = vunpack.c.l.b16 %v3076
        %v3691 = vunpack.c.h.b16 %v3076
        %v3692 = vunpack.c.l.b16 %v3077
        %v3693 = vunpack.c.h.b16 %v3077
        %v3694 = vunpack.c.l.b16 %v3078
        %v3695 = vunpack.c.h.b16 %v3078
        %v3696 = vunpack.c.l.b16 %v3079
        %v3697 = vunpack.c.h.b16 %v3079
        %v3698 = vunpack.c.l.b16 %v3080
        %v3699 = vunpack.c.h.b16 %v3080
        %v3700 = vunpack.c.l.b16 %v3081
        %v3701 = vunpack.c.h.b16 %v3081
        %v3702 = vunpack.c.l.b16 %v3082
        %v3703 = vunpack.c.h.b16 %v3082
        %v3704 = vunpack.c.l.b16 %v3083
        %v3705 = vunpack.c.h.b16 %v3083
        %v3706 = vunpack.c.l.b16 %v3084
        %v3707 = vunpack.c.h.b16 %v3084
        %v3708 = vunpack.c.l.b16 %v3085
        %v3709 = vunpack.c.h.b16 %v3085
        %v3710 = vunpack.c.l.b16 %v3086
        %v3711 = vunpack.c.h.b16 %v3086
        %v3712 = vunpack.c.l.b16 %v3087
        %v3713 = vunpack.c.h.b16 %v3087
        %v3714 = vunpack.c.l.b16 %v3088
        %v3715 = vunpack.c.h.b16 %v3088
        %v3716 = vunpack.c.l.b16 %v3089
        %v3717 = vunpack.c.h.b16 %v3089
        %v3718 = vunpack.c.l.b16 %v3090
        %v3719 = vunpack.c.h.b16 %v3090
        %v3720 = vunpack.c.l.b16 %v3091
        %v3721 = vunpack.c.h.b16 %v3091
        %v3722 = vunpack.c.l.b16 %v3092
        %v3723 = vunpack.c.h.b16 %v3092
        %v3724 = vunpack.c.l.b16 %v3093
        %v3725 = vunpack.c.h.b16 %v3093
        %v3726 = vunpack.c.l.b16 %v3094
        %v3727 = vunpack.c.h.b16 %v3094
        %v3728 = vunpack.c.l.b16 %v3095
        %v3729 = vunpack.c.h.b16 %v3095
        %v3730 = vunpack.c.l.b16 %v3096
        %v3731 = vunpack.c.h.b16 %v3096
        %v3732 = vunpack.c.l.b16 %v3097
        %v3733 = vunpack.c.h.b16 %v3097
        %v3734 = vunpack.c.l.b16 %v3098
        %v3735 = vunpack.c.h.b16 %v3098
        %v3736 = vunpack.c.l.b16 %v3099
        %v3737 = vunpack.c.h.b16 %v3099
        %v3738 = vunpack.c.l.b16 %v3100
        %v3739 = vunpack.c.h.b16 %v3100
        %v3740 = vunpack.c.l.b16 %v3101
        %v3741 = vunpack.c.h.b16 %v3101
        %v3742 = vunpack.c.l.b16 %v3102
        %v3743 = vunpack.c.h.b16 %v3102
        %v3744 = vunpack.c.l.b16 %v3103
        %v3745 = vunpack.c.h.b16 %v3103
        %v3746 = vunpack.c.l.b16 %v3104
        %v3747 = vunpack.c.h.b16 %v3104
        %v3748 = vunpack.c.l.b16 %v3105
        %v3749 = vunpack.c.h.b16 %v3105
        %v3750 = vunpack.c.l.b16 %v3106
        %v3751 = vunpack.c.h.b16 %v3106
        %v3752 = vunpack.c.l.b16 %v3107
        %v3753 = vunpack.c.h.b16 %v3107
        %v3754 = vunpack.c.l.b16 %v3108
        %v3755 = vunpack.c.h.b16 %v3108
        %v3756 = vunpack.c.l.b16 %v3109
        %v3757 = vunpack.c.h.b16 %v3109
        %v3758 = vunpack.c.l.b16 %v3110
        %v3759 = vunpack.c.h.b16 %v3110
        %v3760 = vunpack.c.l.b16 %v3111
        %v3761 = vunpack.c.h.b16 %v3111
        %v3762 = vunpack.c.l.b16 %v3112
        %v3763 = vunpack.c.h.b16 %v3112
        %v3764 = vunpack.c.l.b16 %v3113
        %v3765 = vunpack.c.h.b16 %v3113
        %v3766 = vunpack.c.l.b16 %v3114
        %v3767 = vunpack.c.h.b16 %v3114
        %v3768 = vunpack.c.l.b16 %v3115
        %v3769 = vunpack.c.h.b16 %v3115
        %v3770 = vunpack.c.l.b16 %v3116
        %v3771 = vunpack.c.h.b16 %v3116
        %v3772 = vunpack.c.l.b16 %v3117
        %v3773 = vunpack.c.h.b16 %v3117
        %v3774 = vunpack.c.l.b16 %v3118
        %v3775 = vunpack.c.h.b16 %v3118
        %v3776 = vunpack.c.l.b16 %v3119
        %v3777 = vunpack.c.h.b16 %v3119
        %v3778 = vunpack.c.l.b16 %v3120
        %v3779 = vunpack.c.h.b16 %v3120
        %v3780 = vunpack.c.l.b16 %v3121
        %v3781 = vunpack.c.h.b16 %v3121
        %v3782 = vunpack.c.l.b16 %v3122
        %v3783 = vunpack.c.h.b16 %v3122
        %v3784 = vunpack.c.l.b16 %v3123
        %v3785 = vunpack.c.h.b16 %v3123
        %v3786 = vunpack.c.l.b16 %v3124
        %v3787 = vunpack.c.h.b16 %v3124
        %v3788 = vunpack.c.l.b16 %v3125
        %v3789 = vunpack.c.h.b16 %v3125
        %v3790 = vunpack.c.l.b16 %v3126
        %v3791 = vunpack.c.h.b16 %v3126
        %v3792 = vunpack.c.l.b16 %v3127
        %v3793 = vunpack.c.h.b16 %v3127
        %v3794 = vunpack.c.l.b16 %v3128
        %v3795 = vunpack.c.h.b16 %v3128
        %v3796 = vunpack.c.l.b16 %v3129
        %v3797 = vunpack.c.h.b16 %v3129
        %v3798 = vunpack.c.l.b16 %v3130
        %v3799 = vunpack.c.h.b16 %v3130
        %v3800 = vunpack.c.l.b16 %v3131
        %v3801 = vunpack.c.h.b16 %v3131
        %v3802 = vunpack.c.l.b16 %v3132
        %v3803 = vunpack.c.h.b16 %v3132
        %v3804 = vunpack.c.l.b16 %v3133
        %v3805 = vunpack.c.h.b16 %v3133
        %v3806 = vunpack.c.l.b16 %v3134
        %v3807 = vunpack.c.h.b16 %v3134
        %v3808 = vunpack.c.l.b16 %v3135
        %v3809 = vunpack.c.h.b16 %v3135
        %v3810 = vunpack.c.l.b16 %v3136
        %v3811 = vunpack.c.h.b16 %v3136
        %v3812 = vunpack.c.l.b16 %v3137
        %v3813 = vunpack.c.h.b16 %v3137
        %v3814 = vunpack.c.l.b16 %v3138
        %v3815 = vunpack.c.h.b16 %v3138
        %v3816 = vunpack.c.l.b16 %v3139
        %v3817 = vunpack.c.h.b16 %v3139
        %v3818 = vunpack.c.l.b16 %v3140
        %v3819 = vunpack.c.h.b16 %v3140
        %v3820 = vunpack.c.l.b16 %v3141
        %v3821 = vunpack.c.h.b16 %v3141
        %v3822 = vunpack.c.l.b16 %v3142
        %v3823 = vunpack.c.h.b16 %v3142
        %v3824 = vunpack.c.l.b16 %v3143
        %v3825 = vunpack.c.h.b16 %v3143
        %v3826 = vunpack.c.l.b16 %v3144
        %v3827 = vunpack.c.h.b16 %v3144
        %v3828 = vunpack.c.l.b16 %v3145
        %v3829 = vunpack.c.h.b16 %v3145
        %v3830 = vunpack.c.l.b16 %v3146
        %v3831 = vunpack.c.h.b16 %v3146
        %v3832 = vunpack.c.l.b16 %v3147
        %v3833 = vunpack.c.h.b16 %v3147
        %v3834 = vunpack.c.l.b16 %v3148
        %v3835 = vunpack.c.h.b16 %v3148
        %v3836 = vunpack.c.l.b16 %v3149
        %v3837 = vunpack.c.h.b16 %v3149
        %v3838 = vunpack.c.l.b16 %v3150
        %v3839 = vunpack.c.h.b16 %v3150
        %v3840 = vunpack.c.l.b16 %v3151
        %v3841 = vunpack.c.h.b16 %v3151
        %v3842 = vunpack.c.l.b16 %v3152
        %v3843 = vunpack.c.h.b16 %v3152
        %v3844 = vunpack.c.l.b16 %v3153
        %v3845 = vunpack.c.h.b16 %v3153
        %v3846 = vunpack.c.l.b16 %v3154
        %v3847 = vunpack.c.h.b16 %v3154
        %v3848 = vunpack.c.l.b16 %v3155
        %v3849 = vunpack.c.h.b16 %v3155
        %v3850 = vunpack.c.l.b16 %v3156
        %v3851 = vunpack.c.h.b16 %v3156
        %v3852 = vunpack.c.l.b16 %v3157
        %v3853 = vunpack.c.h.b16 %v3157
        %v3854 = vunpack.c.l.b16 %v3158
        %v3855 = vunpack.c.h.b16 %v3158
        %v3856 = vunpack.c.l.b16 %v3159
        %v3857 = vunpack.c.h.b16 %v3159
        %v3858 = vunpack.c.l.b16 %v3160
        %v3859 = vunpack.c.h.b16 %v3160
        %v3860 = vunpack.c.l.b16 %v3161
        %v3861 = vunpack.c.h.b16 %v3161
        %v3862 = vunpack.c.l.b16 %v3162
        %v3863 = vunpack.c.h.b16 %v3162
        %v3864 = vunpack.c.l.b16 %v3163
        %v3865 = vunpack.c.h.b16 %v3163
        %v3866 = vunpack.c.l.b16 %v3164
        %v3867 = vunpack.c.h.b16 %v3164
        %v3868 = vunpack.c.l.b16 %v3165
        %v3869 = vunpack.c.h.b16 %v3165
        %v3870 = vunpack.c.l.b16 %v3166
        %v3871 = vunpack.c.h.b16 %v3166
        %v3872 = vunpack.c.l.b16 %v3167
        %v3873 = vunpack.c.h.b16 %v3167
        %v3874 = vunpack.c.l.b16 %v3168
        %v3875 = vunpack.c.h.b16 %v3168
        %v3876 = vunpack.c.l.b16 %v3169
        %v3877 = vunpack.c.h.b16 %v3169
        %v3878 = vunpack.c.l.b16 %v3170
        %v3879 = vunpack.c.h.b16 %v3170
        %v3880 = vunpack.c.l.b16 %v3171
        %v3881 = vunpack.c.h.b16 %v3171
        %v3882 = vunpack.c.l.b16 %v3172
        %v3883 = vunpack.c.h.b16 %v3172
        %v3884 = vunpack.c.l.b16 %v3173
        %v3885 = vunpack.c.h.b16 %v3173
        %v3886 = vunpack.c.l.b16 %v3174
        %v3887 = vunpack.c.h.b16 %v3174
        %v3888 = vunpack.c.l.b16 %v3175
        %v3889 = vunpack.c.h.b16 %v3175
        %v3890 = vunpack.c.l.b16 %v3176
        %v3891 = vunpack.c.h.b16 %v3176
        %v3892 = vunpack.c.l.b16 %v3177
        %v3893 = vunpack.c.h.b16 %v3177
        %v3894 = vunpack.c.l.b16 %v3178
        %v3895 = vunpack.c.h.b16 %v3178
        %v3896 = vunpack.c.l.b16 %v3179
        %v3897 = vunpack.c.h.b16 %v3179
        %v3898 = vunpack.c.l.b16 %v3180
        %v3899 = vunpack.c.h.b16 %v3180
        %v3900 = vunpack.c.l.b16 %v3181
        %v3901 = vunpack.c.h.b16 %v3181
        %v3902 = vunpack.c.l.b16 %v3182
        %v3903 = vunpack.c.h.b16 %v3182
        %v3904 = vunpack.c.l.b16 %v3183
        %v3905 = vunpack.c.h.b16 %v3183
        %v3906 = vunpack.c.l.b16 %v3184
        %v3907 = vunpack.c.h.b16 %v3184
        %v3908 = vunpack.c.l.b16 %v3185
        %v3909 = vunpack.c.h.b16 %v3185
        %v3910 = vunpack.c.l.b16 %v3186
        %v3911 = vunpack.c.h.b16 %v3186
        %v3912 = vunpack.c.l.b16 %v3187
        %v3913 = vunpack.c.h.b16 %v3187
        %v3914 = vunpack.c.l.b16 %v3188
        %v3915 = vunpack.c.h.b16 %v3188
        %v3916 = vpack.c.b16 %v3646, %v3628
        %v3917 = vpack.c.b16 %v3647, %v3629
        %v3918 = vpack.c.b16 %v3648, %v3630
        %v3919 = vpack.c.b16 %v3649, %v3631
        %v3920 = vpack.c.b16 %v3650, %v3632
        %v3921 = vpack.c.b16 %v3651, %v3633
        %v3922 = vpack.c.b16 %v3652, %v3634
        %v3923 = vpack.c.b16 %v3653, %v3635
        %v3924 = vpack.c.b16 %v3654, %v3636
        %v3925 = vpack.c.b16 %v3655, %v3637
        %v3926 = vpack.c.b16 %v3656, %v3638
        %v3927 = vpack.c.b16 %v3657, %v3639
        %v3928 = vpack.c.b16 %v3658, %v3640
        %v3929 = vpack.c.b16 %v3659, %v3641
        %v3930 = vpack.c.b16 %v3660, %v3642
        %v3931 = vpack.c.b16 %v3661, %v3643
        %v3932 = vpack.c.b16 %v3662, %v3644
        %v3933 = vpack.c.b16 %v3663, %v3645
        %v3934 = vpack.c.b16 %v3682, %v3664
        %v3935 = vpack.c.b16 %v3683, %v3665
        %v3936 = vpack.c.b16 %v3684, %v3666
        %v3937 = vpack.c.b16 %v3685, %v3667
        %v3938 = vpack.c.b16 %v3686, %v3668
        %v3939 = vpack.c.b16 %v3687, %v3669
        %v3940 = vpack.c.b16 %v3688, %v3670
        %v3941 = vpack.c.b16 %v3689, %v3671
        %v3942 = vpack.c.b16 %v3690, %v3672
        %v3943 = vpack.c.b16 %v3691, %v3673
        %v3944 = vpack.c.b16 %v3692, %v3674
        %v3945 = vpack.c.b16 %v3693, %v3675
        %v3946 = vpack.c.b16 %v3694, %v3676
        %v3947 = vpack.c.b16 %v3695, %v3677
        %v3948 = vpack.c.b16 %v3696, %v3678
        %v3949 = vpack.c.b16 %v3697, %v3679
        %v3950 = vpack.c.b16 %v3698, %v3680
        %v3951 = vpack.c.b16 %v3699, %v3681
        %v3952 = vpack.c.b16 %v3718, %v3700
        %v3953 = vpack.c.b16 %v3719, %v3701
        %v3954 = vpack.c.b16 %v3720, %v3702
        %v3955 = vpack.c.b16 %v3721, %v3703
        %v3956 = vpack.c.b16 %v3722, %v3704
        %v3957 = vpack.c.b16 %v3723, %v3705
        %v3958 = vpack.c.b16 %v3724, %v3706
        %v3959 = vpack.c.b16 %v3725, %v3707
        %v3960 = vpack.c.b16 %v3726, %v3708
        %v3961 = vpack.c.b16 %v3727, %v3709
        %v3962 = vpack.c.b16 %v3728, %v3710
        %v3963 = vpack.c.b16 %v3729, %v3711
        %v3964 = vpack.c.b16 %v3730, %v3712
        %v3965 = vpack.c.b16 %v3731, %v3713
        %v3966 = vpack.c.b16 %v3732, %v3714
        %v3967 = vpack.c.b16 %v3733, %v3715
        %v3968 = vpack.c.b16 %v3734, %v3716
        %v3969 = vpack.c.b16 %v3735, %v3717
        %v3970 = vpack.c.b16 %v3754, %v3736
        %v3971 = vpack.c.b16 %v3755, %v3737
        %v3972 = vpack.c.b16 %v3756, %v3738
        %v3973 = vpack.c.b16 %v3757, %v3739
        %v3974 = vpack.c.b16 %v3758, %v3740
        %v3975 = vpack.c.b16 %v3759, %v3741
        %v3976 = vpack.c.b16 %v3760, %v3742
        %v3977 = vpack.c.b16 %v3761, %v3743
        %v3978 = vpack.c.b16 %v3762, %v3744
        %v3979 = vpack.c.b16 %v3763, %v3745
        %v3980 = vpack.c.b16 %v3764, %v3746
        %v3981 = vpack.c.b16 %v3765, %v3747
        %v3982 = vpack.c.b16 %v3766, %v3748
        %v3983 = vpack.c.b16 %v3767, %v3749
        %v3984 = vpack.c.b16 %v3768, %v3750
        %v3985 = vpack.c.b16 %v3769, %v3751
        %v3986 = vpack.c.b16 %v3770, %v3752
        %v3987 = vpack.c.b16 %v3771, %v3753
        %v3988 = vpack.c.b16 %v3790, %v3772
        %v3989 = vpack.c.b16 %v3791, %v3773
        %v3990 = vpack.c.b16 %v3792, %v3774
        %v3991 = vpack.c.b16 %v3793, %v3775
        %v3992 = vpack.c.b16 %v3794, %v3776
        %v3993 = vpack.c.b16 %v3795, %v3777
        %v3994 = vpack.c.b16 %v3796, %v3778
        %v3995 = vpack.c.b16 %v3797, %v3779
        %v3996 = vpack.c.b16 %v3798, %v3780
        %v3997 = vpack.c.b16 %v3799, %v3781
        %v3998 = vpack.c.b16 %v3800, %v3782
        %v3999 = vpack.c.b16 %v3801, %v3783
        %v4000 = vpack.c.b16 %v3802, %v3784
        %v4001 = vpack.c.b16 %v3803, %v3785
        %v4002 = vpack.c.b16 %v3804, %v3786
        %v4003 = vpack.c.b16 %v3805, %v3787
        %v4004 = vpack.c.b16 %v3806, %v3788
        %v4005 = vpack.c.b16 %v3807, %v3789
        %v4006 = vpack.c.b16 %v3826, %v3808
        %v4007 = vpack.c.b16 %v3827, %v3809
        %v4008 = vpack.c.b16 %v3828, %v3810
        %v4009 = vpack.c.b16 %v3829, %v3811
        %v4010 = vpack.c.b16 %v3830, %v3812
        %v4011 = vpack.c.b16 %v3831, %v3813
        %v4012 = vpack.c.b16 %v3832, %v3814
        %v4013 = vpack.c.b16 %v3833, %v3815
        %v4014 = vpack.c.b16 %v3834, %v3816
        %v4015 = vpack.c.b16 %v3835, %v3817
        %v4016 = vpack.c.b16 %v3836, %v3818
        %v4017 = vpack.c.b16 %v3837, %v3819
        %v4018 = vpack.c.b16 %v3838, %v3820
        %v4019 = vpack.c.b16 %v3839, %v3821
        %v4020 = vpack.c.b16 %v3840, %v3822
        %v4021 = vpack.c.b16 %v3841, %v3823
        %v4022 = vpack.c.b16 %v3842, %v3824
        %v4023 = vpack.c.b16 %v3843, %v3825
        %v4024 = vpack.c.b16 %v3862, %v3844
        %v4025 = vpack.c.b16 %v3863, %v3845
        %v4026 = vpack.c.b16 %v3864, %v3846
        %v4027 = vpack.c.b16 %v3865, %v3847
        %v4028 = vpack.c.b16 %v3866, %v3848
        %v4029 = vpack.c.b16 %v3867, %v3849
        %v4030 = vpack.c.b16 %v3868, %v3850
        %v4031 = vpack.c.b16 %v3869, %v3851
        %v4032 = vpack.c.b16 %v3870, %v3852
        %v4033 = vpack.c.b16 %v3871, %v3853
        %v4034 = vpack.c.b16 %v3872, %v3854
        %v4035 = vpack.c.b16 %v3873, %v3855
        %v4036 = vpack.c.b16 %v3874, %v3856
        %v4037 = vpack.c.b16 %v3875, %v3857
        %v4038 = vpack.c.b16 %v3876, %v3858
        %v4039 = vpack.c.b16 %v3877, %v3859
        %v4040 = vpack.c.b16 %v3878, %v3860
        %v4041 = vpack.c.b16 %v3879, %v3861
        %v4042 = vpack.c.b16 %v3898, %v3880
        %v4043 = vpack.c.b16 %v3899, %v3881
        %v4044 = vpack.c.b16 %v3900, %v3882
        %v4045 = vpack.c.b16 %v3901, %v3883
        %v4046 = vpack.c.b16 %v3902, %v3884
        %v4047 = vpack.c.b16 %v3903, %v3885
        %v4048 = vpack.c.b16 %v3904, %v3886
        %v4049 = vpack.c.b16 %v3905, %v3887
        %v4050 = vpack.c.b16 %v3906, %v3888
        %v4051 = vpack.c.b16 %v3907, %v3889
        %v4052 = vpack.c.b16 %v3908, %v3890
        %v4053 = vpack.c.b16 %v3909, %v3891
        %v4054 = vpack.c.b16 %v3910, %v3892
        %v4055 = vpack.c.b16 %v3911, %v3893
        %v4056 = vpack.c.b16 %v3912, %v3894
        %v4057 = vpack.c.b16 %v3913, %v3895
        %v4058 = vpack.c.b16 %v3914, %v3896
        %v4059 = vpack.c.b16 %v3915, %v3897
        %v4492 = vunpack.c.l.b16 %v3189
        %v4493 = vunpack.c.l.b16 %v3190
        %v4494 = vunpack.c.l.b16 %v3191
        %v4495 = vunpack.c.l.b16 %v3192
        %v4496 = vunpack.c.l.b16 %v3193
        %v4497 = vunpack.c.l.b16 %v3194
        %v4498 = vunpack.c.l.b16 %v3195
        %v4499 = vunpack.c.l.b16 %v3196
        %v4500 = vunpack.c.l.b16 %v3197
        %v4501 = vunpack.c.l.b16 %v3198
        %v4502 = vunpack.c.l.b16 %v3199
        %v4503 = vunpack.c.l.b16 %v3200
        %v4504 = vunpack.c.l.b16 %v3201
        %v4505 = vunpack.c.l.b16 %v3202
        %v4506 = vunpack.c.l.b16 %v3203
        %v4507 = vunpack.c.l.b16 %v3204
        %v4508 = vunpack.c.l.b16 %v3205
        %v4509 = vunpack.c.l.b16 %v3206
        %v4510 = vunpack.c.l.b16 %v3207
        %v4511 = vunpack.c.l.b16 %v3208
        %v4512 = vunpack.c.l.b16 %v3209
        %v4513 = vunpack.c.l.b16 %v3210
        %v4514 = vunpack.c.l.b16 %v3211
        %v4515 = vunpack.c.l.b16 %v3212
        %v4516 = vunpack.c.l.b16 %v3213
        %v4517 = vunpack.c.l.b16 %v3214
        %v4518 = vunpack.c.l.b16 %v3215
        %v4519 = vunpack.c.l.b16 %v3216
        %v4520 = vunpack.c.l.b16 %v3217
        %v4521 = vunpack.c.l.b16 %v3218
        %v4522 = vunpack.c.l.b16 %v3219
        %v4523 = vunpack.c.l.b16 %v3220
        %v4524 = vunpack.c.l.b16 %v3221
        %v4525 = vunpack.c.l.b16 %v3222
        %v4526 = vunpack.c.l.b16 %v3223
        %v4527 = vunpack.c.l.b16 %v3224
        %v4528 = vunpack.c.l.b16 %v3225
        %v4529 = vunpack.c.l.b16 %v3226
        %v4530 = vunpack.c.l.b16 %v3227
        %v4531 = vunpack.c.l.b16 %v3228
        %v4532 = vunpack.c.l.b16 %v3229
        %v4533 = vunpack.c.l.b16 %v3230
        %v4534 = vunpack.c.l.b16 %v3231
        %v4535 = vunpack.c.l.b16 %v3232
        %v4536 = vunpack.c.l.b16 %v3233
        %v4537 = vunpack.c.l.b16 %v3234
        %v4538 = vunpack.c.l.b16 %v3235
        %v4539 = vunpack.c.l.b16 %v3236
        %v4540 = vunpack.c.l.b16 %v3237
        %v4541 = vunpack.c.l.b16 %v3238
        %v4542 = vunpack.c.l.b16 %v3239
        %v4543 = vunpack.c.l.b16 %v3240
        %v4544 = vunpack.c.l.b16 %v3241
        %v4545 = vunpack.c.l.b16 %v3242
        %v4546 = vunpack.c.l.b16 %v3243
        %v4547 = vunpack.c.l.b16 %v3244
        %v4548 = vunpack.c.l.b16 %v3245
        %v4549 = vunpack.c.l.b16 %v3246
        %v4550 = vunpack.c.l.b16 %v3247
        %v4551 = vunpack.c.l.b16 %v3248
        %v4552 = vunpack.c.l.b16 %v3249
        %v4553 = vunpack.c.l.b16 %v3250
        %v4554 = vunpack.c.l.b16 %v3251
        %v4555 = vunpack.c.l.b16 %v3252
        %v4556 = vunpack.c.l.b16 %v3253
        %v4557 = vunpack.c.l.b16 %v3254
        %v4558 = vunpack.c.l.b16 %v3255
        %v4559 = vunpack.c.l.b16 %v3256
        %v4560 = vunpack.c.l.b16 %v3257
        %v4561 = vunpack.c.l.b16 %v3258
        %v4562 = vunpack.c.l.b16 %v3259
        %v4563 = vunpack.c.l.b16 %v3260
        %v4564 = vunpack.c.l.b16 %v3261
        %v4565 = vunpack.c.l.b16 %v3262
        %v4566 = vunpack.c.l.b16 %v3263
        %v4567 = vunpack.c.l.b16 %v3264
        %v4568 = vunpack.c.l.b16 %v3265
        %v4569 = vunpack.c.l.b16 %v3266
        %v4570 = vunpack.c.l.b16 %v3267
        %v4571 = vunpack.c.l.b16 %v3268
        %v4572 = vunpack.c.l.b16 %v3269
        %v4573 = vunpack.c.l.b16 %v3270
        %v4574 = vunpack.c.l.b16 %v3271
        %v4575 = vunpack.c.l.b16 %v3272
        %v4576 = vunpack.c.l.b16 %v3273
        %v4577 = vunpack.c.l.b16 %v3274
        %v4578 = vunpack.c.l.b16 %v3275
        %v4579 = vunpack.c.l.b16 %v3276
        %v4580 = vunpack.c.l.b16 %v3277
        %v4581 = vunpack.c.l.b16 %v3278
        %v4582 = vunpack.c.l.b16 %v3279
        %v4583 = vunpack.c.l.b16 %v3280
        %v4584 = vunpack.c.l.b16 %v3281
        %v4585 = vunpack.c.l.b16 %v3282
        %v4586 = vunpack.c.l.b16 %v3283
        %v4587 = vunpack.c.l.b16 %v3284
        %v4588 = vunpack.c.l.b16 %v3285
        %v4589 = vunpack.c.l.b16 %v3286
        %v4590 = vunpack.c.l.b16 %v3287
        %v4591 = vunpack.c.l.b16 %v3288
        %v4592 = vunpack.c.l.b16 %v3289
        %v4593 = vunpack.c.l.b16 %v3290
        %v4594 = vunpack.c.l.b16 %v3291
        %v4595 = vunpack.c.l.b16 %v3292
        %v4596 = vunpack.c.l.b16 %v3293
        %v4597 = vunpack.c.l.b16 %v3294
        %v4598 = vunpack.c.l.b16 %v3295
        %v4599 = vunpack.c.l.b16 %v3296
        %v4600 = vunpack.c.l.b16 %v3297
        %v4601 = vunpack.c.l.b16 %v3298
        %v4602 = vunpack.c.l.b16 %v3299
        %v4603 = vunpack.c.l.b16 %v3300
        %v4604 = vunpack.c.l.b16 %v3301
        %v4605 = vunpack.c.l.b16 %v3302
        %v4606 = vunpack.c.l.b16 %v3303
        %v4607 = vunpack.c.l.b16 %v3304
        %v4608 = vunpack.c.l.b16 %v3305
        %v4609 = vunpack.c.l.b16 %v3306
        %v4610 = vunpack.c.l.b16 %v3307
        %v4611 = vunpack.c.l.b16 %v3308
        %v4612 = vunpack.c.l.b16 %v3309
        %v4613 = vunpack.c.l.b16 %v3310
        %v4614 = vunpack.c.l.b16 %v3311
        %v4615 = vunpack.c.l.b16 %v3312
        %v4616 = vunpack.c.l.b16 %v3313
        %v4617 = vunpack.c.l.b16 %v3314
        %v4618 = vunpack.c.l.b16 %v3315
        %v4619 = vunpack.c.l.b16 %v3316
        %v4620 = vunpack.c.l.b16 %v3317
        %v4621 = vunpack.c.l.b16 %v3318
        %v4622 = vunpack.c.l.b16 %v3319
        %v4623 = vunpack.c.l.b16 %v3320
        %v4624 = vunpack.c.l.b16 %v3321
        %v4625 = vunpack.c.l.b16 %v3322
        %v4626 = vunpack.c.l.b16 %v3323
        %v4627 = vunpack.c.l.b16 %v3324
        %v4628 = vunpack.c.l.b16 %v3325
        %v4629 = vunpack.c.l.b16 %v3326
        %v4630 = vunpack.c.l.b16 %v3327
        %v4631 = vunpack.c.l.b16 %v3328
        %v4632 = vunpack.c.l.b16 %v3329
        %v4633 = vunpack.c.l.b16 %v3330
        %v4634 = vunpack.c.l.b16 %v3331
        %v4635 = vunpack.c.l.b16 %v3332
        %v4636 = vunpack.c.l.b16 %v3333
        %v4637 = vunpack.c.l.b16 %v3334
        %v4638 = vunpack.c.l.b16 %v3335
        %v4639 = vunpack.c.l.b16 %v3336
        %v4640 = vunpack.c.l.b16 %v3337
        %v4641 = vunpack.c.l.b16 %v3338
        %v4642 = vunpack.c.l.b16 %v3339
        %v4643 = vunpack.c.l.b16 %v3340
        %v4644 = vunpack.c.l.b16 %v3341
        %v4645 = vunpack.c.l.b16 %v3342
        %v4646 = vunpack.c.l.b16 %v3343
        %v4647 = vunpack.c.l.b16 %v3344
        %v4648 = vunpack.c.l.b16 %v3345
        %v4649 = vunpack.c.l.b16 %v3346
        %v4650 = vunpack.c.l.b16 %v3347
        %v4651 = vunpack.c.l.b16 %v3348
        %v4652 = vunpack.c.l.b16 %v3349
        %v4653 = vunpack.c.l.b16 %v3350
        %v4654 = vunpack.c.l.b16 %v3351
        %v4655 = vunpack.c.l.b16 %v3352
        %v4656 = vunpack.c.l.b16 %v3353
        %v4657 = vunpack.c.l.b16 %v3354
        %v4658 = vunpack.c.l.b16 %v3355
        %v4659 = vunpack.c.l.b16 %v3356
        %v4660 = vunpack.c.l.b16 %v3357
        %v4661 = vunpack.c.l.b16 %v3358
        %v4662 = vunpack.c.l.b16 %v3359
        %v4663 = vunpack.c.l.b16 %v3360
        %v4664 = vunpack.c.l.b16 %v3361
        %v4665 = vunpack.c.l.b16 %v3362
        %v4666 = vunpack.c.l.b16 %v3363
        %v4667 = vunpack.c.l.b16 %v3364
        %v4668 = vunpack.c.l.b16 %v3365
        %v4669 = vunpack.c.l.b16 %v3366
        %v4670 = vunpack.c.l.b16 %v3367
        %v4671 = vunpack.c.l.b16 %v3368
        %v4672 = vunpack.c.l.b16 %v3369
        %v4673 = vunpack.c.l.b16 %v3370
        %v4674 = vunpack.c.l.b16 %v3371
        %v4675 = vunpack.c.l.b16 %v3372
        %v4676 = vunpack.c.l.b16 %v3373
        %v4677 = vunpack.c.l.b16 %v3374
        %v4678 = vunpack.c.l.b16 %v3375
        %v4679 = vunpack.c.l.b16 %v3376
        %v4680 = vunpack.c.l.b16 %v3377
        %v4681 = vunpack.c.l.b16 %v3378
        %v4682 = vunpack.c.l.b16 %v3379
        %v4683 = vunpack.c.l.b16 %v3380
        %v4684 = vunpack.c.l.b16 %v3381
        %v4685 = vunpack.c.l.b16 %v3382
        %v4686 = vunpack.c.l.b16 %v3383
        %v4687 = vunpack.c.l.b16 %v3384
        %v4688 = vunpack.c.l.b16 %v3385
        %v4689 = vunpack.c.l.b16 %v3386
        %v4690 = vunpack.c.l.b16 %v3387
        %v4691 = vunpack.c.l.b16 %v3388
        %v4692 = vunpack.c.l.b16 %v3389
        %v4693 = vunpack.c.l.b16 %v3390
        %v4694 = vunpack.c.l.b16 %v3391
        %v4695 = vunpack.c.l.b16 %v3392
        %v4696 = vunpack.c.l.b16 %v3393
        %v4697 = vunpack.c.l.b16 %v3394
        %v4698 = vunpack.c.l.b16 %v3395
        %v4699 = vunpack.c.l.b16 %v3396
        %v4700 = vunpack.c.l.b16 %v3397
        %v4701 = vunpack.c.l.b16 %v3398
        %v4702 = vunpack.c.l.b16 %v3399
        %v4703 = vunpack.c.l.b16 %v3400
        %v4704 = vunpack.c.l.b16 %v3401
        %v4705 = vunpack.c.l.b16 %v3402
        %v4706 = vunpack.c.l.b16 %v3403
        %v4707 = vunpack.c.l.b16 %v3404
        %v4708 = vunpack.c.l.b16 %v3405
        %v4709 = vunpack.c.l.b16 %v3406
        %v4710 = vunpack.c.l.b16 %v3407
        %v4711 = vunpack.c.l.b16 %v3408
        %v4712 = vunpack.c.l.b16 %v3409
        %v4713 = vunpack.c.l.b16 %v3410
        %v4714 = vunpack.c.l.b16 %v3411
        %v4715 = vunpack.c.l.b16 %v3412
        %v4716 = vunpack.c.l.b16 %v3413
        %v4717 = vunpack.c.l.b16 %v3414
        %v4718 = vunpack.c.l.b16 %v3415
        %v4719 = vunpack.c.l.b16 %v3416
        %v4720 = vunpack.c.l.b16 %v3417
        %v4721 = vunpack.c.l.b16 %v3418
        %v4722 = vunpack.c.l.b16 %v3419
        %v4723 = vunpack.c.l.b16 %v3420
        %v4724 = vunpack.c.l.b16 %v3421
        %v4725 = vunpack.c.l.b16 %v3422
        %v4726 = vunpack.c.l.b16 %v3423
        %v4727 = vunpack.c.l.b16 %v3424
        %v4728 = vunpack.c.l.b16 %v3425
        %v4729 = vunpack.c.l.b16 %v3426
        %v4730 = vunpack.c.l.b16 %v3427
        %v4731 = vunpack.c.l.b16 %v3428
        %v4732 = vunpack.c.l.b16 %v3429
        %v4733 = vunpack.c.l.b16 %v3430
        %v4734 = vunpack.c.l.b16 %v3431
        %v4735 = vunpack.c.l.b16 %v3432
        %v4736 = vunpack.c.l.b16 %v3433
        %v4737 = vunpack.c.l.b16 %v3434
        %v4738 = vunpack.c.l.b16 %v3435
        %v4739 = vunpack.c.l.b16 %v3436
        %v4740 = vunpack.c.l.b16 %v3437
        %v4741 = vunpack.c.l.b16 %v3438
        %v4742 = vunpack.c.l.b16 %v3439
        %v4743 = vunpack.c.l.b16 %v3440
        %v4744 = vunpack.c.l.b16 %v3441
        %v4745 = vunpack.c.l.b16 %v3442
        %v4746 = vunpack.c.l.b16 %v3443
        %v4747 = vunpack.c.l.b16 %v3444
        %v4748 = vunpack.c.l.b16 %v3445
        %v4749 = vunpack.c.l.b16 %v3446
        %v4750 = vunpack.c.l.b16 %v3447
        %v4751 = vunpack.c.l.b16 %v3448
        %v4752 = vunpack.c.l.b16 %v3449
        %v4753 = vunpack.c.l.b16 %v3450
        %v4754 = vunpack.c.l.b16 %v3451
        %v4755 = vunpack.c.l.b16 %v3452
        %v4756 = vunpack.c.l.b16 %v3453
        %v4757 = vunpack.c.l.b16 %v3454
        %v4758 = vunpack.c.l.b16 %v3455
        %v4759 = vunpack.c.l.b16 %v3456
        %v4760 = vunpack.c.l.b16 %v3457
        %v4761 = vunpack.c.l.b16 %v3458
        %v4762 = vunpack.c.l.b16 %v3459
        %v4763 = vunpack.c.l.b16 %v3460
        %v4764 = vunpack.c.l.b16 %v3461
        %v4765 = vunpack.c.l.b16 %v3462
        %v4766 = vunpack.c.l.b16 %v3463
        %v4767 = vunpack.c.l.b16 %v3464
        %v4768 = vunpack.c.l.b16 %v3465
        %v4769 = vunpack.c.l.b16 %v3466
        %v4770 = vunpack.c.l.b16 %v3467
        %v4771 = vunpack.c.l.b16 %v3468
        %v4772 = vunpack.c.l.b16 %v3469
        %v4773 = vunpack.c.l.b16 %v3470
        %v4774 = vunpack.c.l.b16 %v3471
        %v4775 = vunpack.c.l.b16 %v3472
        %v4776 = vunpack.c.l.b16 %v3473
        %v4777 = vunpack.c.l.b16 %v3474
        %v4778 = vunpack.c.l.b16 %v3475
        %v4779 = vunpack.c.l.b16 %v3476
        %v4780 = vpack.c.b16 %v4493, %v4492
        %v4781 = vpack.c.b16 %v4495, %v4494
        %v4782 = vpack.c.b16 %v4497, %v4496
        %v4783 = vpack.c.b16 %v4499, %v4498
        %v4784 = vpack.c.b16 %v4501, %v4500
        %v4785 = vpack.c.b16 %v4503, %v4502
        %v4786 = vpack.c.b16 %v4505, %v4504
        %v4787 = vpack.c.b16 %v4507, %v4506
        %v4788 = vpack.c.b16 %v4509, %v4508
        %v4789 = vpack.c.b16 %v4511, %v4510
        %v4790 = vpack.c.b16 %v4513, %v4512
        %v4791 = vpack.c.b16 %v4515, %v4514
        %v4792 = vpack.c.b16 %v4517, %v4516
        %v4793 = vpack.c.b16 %v4519, %v4518
        %v4794 = vpack.c.b16 %v4521, %v4520
        %v4795 = vpack.c.b16 %v4523, %v4522
        %v4796 = vpack.c.b16 %v4525, %v4524
        %v4797 = vpack.c.b16 %v4527, %v4526
        %v4798 = vpack.c.b16 %v4529, %v4528
        %v4799 = vpack.c.b16 %v4531, %v4530
        %v4800 = vpack.c.b16 %v4533, %v4532
        %v4801 = vpack.c.b16 %v4535, %v4534
        %v4802 = vpack.c.b16 %v4537, %v4536
        %v4803 = vpack.c.b16 %v4539, %v4538
        %v4804 = vpack.c.b16 %v4541, %v4540
        %v4805 = vpack.c.b16 %v4543, %v4542
        %v4806 = vpack.c.b16 %v4545, %v4544
        %v4807 = vpack.c.b16 %v4547, %v4546
        %v4808 = vpack.c.b16 %v4549, %v4548
        %v4809 = vpack.c.b16 %v4551, %v4550
        %v4810 = vpack.c.b16 %v4553, %v4552
        %v4811 = vpack.c.b16 %v4555, %v4554
        %v4812 = vpack.c.b16 %v4557, %v4556
        %v4813 = vpack.c.b16 %v4559, %v4558
        %v4814 = vpack.c.b16 %v4561, %v4560
        %v4815 = vpack.c.b16 %v4563, %v4562
        %v4816 = vpack.c.b16 %v4565, %v4564
        %v4817 = vpack.c.b16 %v4567, %v4566
        %v4818 = vpack.c.b16 %v4569, %v4568
        %v4819 = vpack.c.b16 %v4571, %v4570
        %v4820 = vpack.c.b16 %v4573, %v4572
        %v4821 = vpack.c.b16 %v4575, %v4574
        %v4822 = vpack.c.b16 %v4577, %v4576
        %v4823 = vpack.c.b16 %v4579, %v4578
        %v4824 = vpack.c.b16 %v4581, %v4580
        %v4825 = vpack.c.b16 %v4583, %v4582
        %v4826 = vpack.c.b16 %v4585, %v4584
        %v4827 = vpack.c.b16 %v4587, %v4586
        %v4828 = vpack.c.b16 %v4589, %v4588
        %v4829 = vpack.c.b16 %v4591, %v4590
        %v4830 = vpack.c.b16 %v4593, %v4592
        %v4831 = vpack.c.b16 %v4595, %v4594
        %v4832 = vpack.c.b16 %v4597, %v4596
        %v4833 = vpack.c.b16 %v4599, %v4598
        %v4834 = vpack.c.b16 %v4601, %v4600
        %v4835 = vpack.c.b16 %v4603, %v4602
        %v4836 = vpack.c.b16 %v4605, %v4604
        %v4837 = vpack.c.b16 %v4607, %v4606
        %v4838 = vpack.c.b16 %v4609, %v4608
        %v4839 = vpack.c.b16 %v4611, %v4610
        %v4840 = vpack.c.b16 %v4613, %v4612
        %v4841 = vpack.c.b16 %v4615, %v4614
        %v4842 = vpack.c.b16 %v4617, %v4616
        %v4843 = vpack.c.b16 %v4619, %v4618
        %v4844 = vpack.c.b16 %v4621, %v4620
        %v4845 = vpack.c.b16 %v4623, %v4622
        %v4846 = vpack.c.b16 %v4625, %v4624
        %v4847 = vpack.c.b16 %v4627, %v4626
        %v4848 = vpack.c.b16 %v4629, %v4628
        %v4849 = vpack.c.b16 %v4631, %v4630
        %v4850 = vpack.c.b16 %v4633, %v4632
        %v4851 = vpack.c.b16 %v4635, %v4634
        %v4852 = vpack.c.b16 %v4637, %v4636
        %v4853 = vpack.c.b16 %v4639, %v4638
        %v4854 = vpack.c.b16 %v4641, %v4640
        %v4855 = vpack.c.b16 %v4643, %v4642
        %v4856 = vpack.c.b16 %v4645, %v4644
        %v4857 = vpack.c.b16 %v4647, %v4646
        %v4858 = vpack.c.b16 %v4649, %v4648
        %v4859 = vpack.c.b16 %v4651, %v4650
        %v4860 = vpack.c.b16 %v4653, %v4652
        %v4861 = vpack.c.b16 %v4655, %v4654
        %v4862 = vpack.c.b16 %v4657, %v4656
        %v4863 = vpack.c.b16 %v4659, %v4658
        %v4864 = vpack.c.b16 %v4661, %v4660
        %v4865 = vpack.c.b16 %v4663, %v4662
        %v4866 = vpack.c.b16 %v4665, %v4664
        %v4867 = vpack.c.b16 %v4667, %v4666
        %v4868 = vpack.c.b16 %v4669, %v4668
        %v4869 = vpack.c.b16 %v4671, %v4670
        %v4870 = vpack.c.b16 %v4673, %v4672
        %v4871 = vpack.c.b16 %v4675, %v4674
        %v4872 = vpack.c.b16 %v4677, %v4676
        %v4873 = vpack.c.b16 %v4679, %v4678
        %v4874 = vpack.c.b16 %v4681, %v4680
        %v4875 = vpack.c.b16 %v4683, %v4682
        %v4876 = vpack.c.b16 %v4685, %v4684
        %v4877 = vpack.c.b16 %v4687, %v4686
        %v4878 = vpack.c.b16 %v4689, %v4688
        %v4879 = vpack.c.b16 %v4691, %v4690
        %v4880 = vpack.c.b16 %v4693, %v4692
        %v4881 = vpack.c.b16 %v4695, %v4694
        %v4882 = vpack.c.b16 %v4697, %v4696
        %v4883 = vpack.c.b16 %v4699, %v4698
        %v4884 = vpack.c.b16 %v4701, %v4700
        %v4885 = vpack.c.b16 %v4703, %v4702
        %v4886 = vpack.c.b16 %v4705, %v4704
        %v4887 = vpack.c.b16 %v4707, %v4706
        %v4888 = vpack.c.b16 %v4709, %v4708
        %v4889 = vpack.c.b16 %v4711, %v4710
        %v4890 = vpack.c.b16 %v4713, %v4712
        %v4891 = vpack.c.b16 %v4715, %v4714
        %v4892 = vpack.c.b16 %v4717, %v4716
        %v4893 = vpack.c.b16 %v4719, %v4718
        %v4894 = vpack.c.b16 %v4721, %v4720
        %v4895 = vpack.c.b16 %v4723, %v4722
        %v4896 = vpack.c.b16 %v4725, %v4724
        %v4897 = vpack.c.b16 %v4727, %v4726
        %v4898 = vpack.c.b16 %v4729, %v4728
        %v4899 = vpack.c.b16 %v4731, %v4730
        %v4900 = vpack.c.b16 %v4733, %v4732
        %v4901 = vpack.c.b16 %v4735, %v4734
        %v4902 = vpack.c.b16 %v4737, %v4736
        %v4903 = vpack.c.b16 %v4739, %v4738
        %v4904 = vpack.c.b16 %v4741, %v4740
        %v4905 = vpack.c.b16 %v4743, %v4742
        %v4906 = vpack.c.b16 %v4745, %v4744
        %v4907 = vpack.c.b16 %v4747, %v4746
        %v4908 = vpack.c.b16 %v4749, %v4748
        %v4909 = vpack.c.b16 %v4751, %v4750
        %v4910 = vpack.c.b16 %v4753, %v4752
        %v4911 = vpack.c.b16 %v4755, %v4754
        %v4912 = vpack.c.b16 %v4757, %v4756
        %v4913 = vpack.c.b16 %v4759, %v4758
        %v4914 = vpack.c.b16 %v4761, %v4760
        %v4915 = vpack.c.b16 %v4763, %v4762
        %v4916 = vpack.c.b16 %v4765, %v4764
        %v4917 = vpack.c.b16 %v4767, %v4766
        %v4918 = vpack.c.b16 %v4769, %v4768
        %v4919 = vpack.c.b16 %v4771, %v4770
        %v4920 = vpack.c.b16 %v4773, %v4772
        %v4921 = vpack.c.b16 %v4775, %v4774
        %v4922 = vpack.c.b16 %v4777, %v4776
        %v4923 = vpack.c.b16 %v4779, %v4778
        %5068 = vmatprep.subr.bf16.mxu0 0
        %5069 = vmatpush1.bf16.msra.mxu0 %v4787
        %5070 = vmatprep.subr.bf16.mxu0 0
        %5071 = vmatpush1.bf16.msra.mxu0 %v4786
        %5072 = vmatprep.subr.bf16.mxu0 0
        %5073 = vmatpush1.bf16.msra.mxu0 %v4785
        %5074 = vmatprep.subr.bf16.mxu0 0
        %5075 = vmatpush1.bf16.msra.mxu0 %v4784
        %5076 = vmatprep.subr.bf16.mxu0 0
        %5077 = vmatpush1.bf16.msra.mxu0 %v4783
        %5078 = vmatprep.subr.bf16.mxu0 0
        %5079 = vmatpush1.bf16.msra.mxu0 %v4782
        %5080 = vmatprep.subr.bf16.mxu0 0
        %5081 = vmatpush1.bf16.msra.mxu0 %v4781
        %5082 = vmatprep.subr.bf16.mxu0 0
        %5083 = vmatpush1.bf16.msra.mxu0 %v4780
        %5084 = vmatprep.subr.bf16.mxu0 0
        %5085 = vmatpush2.bf16.msra.mxu0 %v4795
        %5086 = vmatprep.subr.bf16.mxu0 0
        %5087 = vmatpush2.bf16.msra.mxu0 %v4794
        %5088 = vmatprep.subr.bf16.mxu0 0
        %5089 = vmatpush2.bf16.msra.mxu0 %v4793
        %5090 = vmatprep.subr.bf16.mxu0 0
        %5091 = vmatpush2.bf16.msra.mxu0 %v4792
        %5092 = vmatprep.subr.bf16.mxu0 0
        %5093 = vmatpush2.bf16.msra.mxu0 %v4791
        %5094 = vmatprep.subr.bf16.mxu0 0
        %5095 = vmatpush2.bf16.msra.mxu0 %v4790
        %5096 = vmatprep.subr.bf16.mxu0 0
        %5097 = vmatpush2.bf16.msra.mxu0 %v4789
        %5098 = vmatprep.subr.bf16.mxu0 0
        %5099 = vmatpush2.bf16.msra.mxu0 %v4788
        %5100 = vmatprep.mubr.bf16.mxu0 %v3917
        %5101 = vmatmul.mubr.bf16.gmra.mxu0 %v3916
        %v5102 = vpop.f32.mrf.mxu0
        %v5103 = vadd.f32 %v3482, %v5102
        %v5104 = vpop.f32.mrf.mxu0
        %v5105 = vpop.f32.mrf.mxu0
        %v5106 = vadd.f32 %v3482, %v5105
        %v5107 = vpop.f32.mrf.mxu0
        %5108 = vmatprep.mubr.bf16.mxu0 %v3935
        %5109 = vmatmul.mubr.bf16.gmra.mxu0 %v3934
        %v5110 = vpop.f32.mrf.mxu0
        %v5111 = vadd.f32 %v3482, %v5110
        %v5112 = vpop.f32.mrf.mxu0
        %v5113 = vpop.f32.mrf.mxu0
        %v5114 = vadd.f32 %v3482, %v5113
        %v5115 = vpop.f32.mrf.mxu0
        %5116 = vmatprep.mubr.bf16.mxu0 %v3953
        %5117 = vmatmul.mubr.bf16.gmra.mxu0 %v3952
        %v5118 = vpop.f32.mrf.mxu0
        %v5119 = vadd.f32 %v3482, %v5118
        %v5120 = vpop.f32.mrf.mxu0
        %v5121 = vpop.f32.mrf.mxu0
        %v5122 = vadd.f32 %v3482, %v5121
        %v5123 = vpop.f32.mrf.mxu0
        %5124 = vmatprep.mubr.bf16.mxu0 %v3971
        %5125 = vmatmul.mubr.bf16.gmra.mxu0 %v3970
        %v5126 = vpop.f32.mrf.mxu0
        %v5127 = vadd.f32 %v3482, %v5126
        %v5128 = vpop.f32.mrf.mxu0
        %v5129 = vpop.f32.mrf.mxu0
        %v5130 = vadd.f32 %v3482, %v5129
        %v5131 = vpop.f32.mrf.mxu0
        %5132 = vmatprep.mubr.bf16.mxu0 %v3989
        %5133 = vmatmul.mubr.bf16.gmra.mxu0 %v3988
        %v5134 = vpop.f32.mrf.mxu0
        %v5135 = vadd.f32 %v3482, %v5134
        %v5136 = vpop.f32.mrf.mxu0
        %v5137 = vpop.f32.mrf.mxu0
        %v5138 = vadd.f32 %v3482, %v5137
        %v5139 = vpop.f32.mrf.mxu0
        %5140 = vmatprep.mubr.bf16.mxu0 %v4007
        %5141 = vmatmul.mubr.bf16.gmra.mxu0 %v4006
        %v5142 = vpop.f32.mrf.mxu0
        %v5143 = vadd.f32 %v3482, %v5142
        %v5144 = vpop.f32.mrf.mxu0
        %v5145 = vpop.f32.mrf.mxu0
        %v5146 = vadd.f32 %v3482, %v5145
        %v5147 = vpop.f32.mrf.mxu0
        %5148 = vmatprep.mubr.bf16.mxu0 %v4025
        %5149 = vmatmul.mubr.bf16.gmra.mxu0 %v4024
        %v5150 = vpop.f32.mrf.mxu0
        %v5151 = vadd.f32 %v3482, %v5150
        %v5152 = vpop.f32.mrf.mxu0
        %v5153 = vpop.f32.mrf.mxu0
        %v5154 = vadd.f32 %v3482, %v5153
        %v5155 = vpop.f32.mrf.mxu0
        %5156 = vmatprep.mubr.bf16.mxu0 %v4043
        %5157 = vmatmul.mubr.bf16.gmra.mxu0 %v4042
        %v5158 = vpop.f32.mrf.mxu0
        %v5159 = vadd.f32 %v3482, %v5158
        %v5160 = vpop.f32.mrf.mxu0
        %v5161 = vpop.f32.mrf.mxu0
        %v5162 = vadd.f32 %v3482, %v5161
        %v5163 = vpop.f32.mrf.mxu0
        %5164 = vdwg.mxu0
        %5165 = vmatprep.subr.bf16.mxu0 0
        %5166 = vmatpush1.bf16.msra.mxu0 %v4803
        %5167 = vmatprep.subr.bf16.mxu0 0
        %5168 = vmatpush1.bf16.msra.mxu0 %v4802
        %5169 = vmatprep.subr.bf16.mxu0 0
        %5170 = vmatpush1.bf16.msra.mxu0 %v4801
        %5171 = vmatprep.subr.bf16.mxu0 0
        %5172 = vmatpush1.bf16.msra.mxu0 %v4800
        %5173 = vmatprep.subr.bf16.mxu0 0
        %5174 = vmatpush1.bf16.msra.mxu0 %v4799
        %5175 = vmatprep.subr.bf16.mxu0 0
        %5176 = vmatpush1.bf16.msra.mxu0 %v4798
        %5177 = vmatprep.subr.bf16.mxu0 0
        %5178 = vmatpush1.bf16.msra.mxu0 %v4797
        %5179 = vmatprep.subr.bf16.mxu0 0
        %5180 = vmatpush1.bf16.msra.mxu0 %v4796
        %5181 = vmatprep.subr.bf16.mxu0 0
        %5182 = vmatpush2.bf16.msra.mxu0 %v4811
        %5183 = vmatprep.subr.bf16.mxu0 0
        %5184 = vmatpush2.bf16.msra.mxu0 %v4810
        %5185 = vmatprep.subr.bf16.mxu0 0
        %5186 = vmatpush2.bf16.msra.mxu0 %v4809
        %5187 = vmatprep.subr.bf16.mxu0 0
        %5188 = vmatpush2.bf16.msra.mxu0 %v4808
        %5189 = vmatprep.subr.bf16.mxu0 0
        %5190 = vmatpush2.bf16.msra.mxu0 %v4807
        %5191 = vmatprep.subr.bf16.mxu0 0
        %5192 = vmatpush2.bf16.msra.mxu0 %v4806
        %5193 = vmatprep.subr.bf16.mxu0 0
        %5194 = vmatpush2.bf16.msra.mxu0 %v4805
        %5195 = vmatprep.subr.bf16.mxu0 0
        %5196 = vmatpush2.bf16.msra.mxu0 %v4804
        %5197 = vmatprep.mubr.bf16.mxu0 %v3919
        %5198 = vmatmul.mubr.bf16.gmra.mxu0 %v3918
        %v5199 = vpop.f32.mrf.mxu0
        %v5200 = vadd.f32 %v5103, %v5199
        %v5201 = vpop.f32.mrf.mxu0
        %v5202 = vpop.f32.mrf.mxu0
        %v5203 = vadd.f32 %v5106, %v5202
        %v5204 = vpop.f32.mrf.mxu0
        %5205 = vmatprep.mubr.bf16.mxu0 %v3937
        %5206 = vmatmul.mubr.bf16.gmra.mxu0 %v3936
        %v5207 = vpop.f32.mrf.mxu0
        %v5208 = vadd.f32 %v5111, %v5207
        %v5209 = vpop.f32.mrf.mxu0
        %v5210 = vpop.f32.mrf.mxu0
        %v5211 = vadd.f32 %v5114, %v5210
        %v5212 = vpop.f32.mrf.mxu0
        %5213 = vmatprep.mubr.bf16.mxu0 %v3955
        %5214 = vmatmul.mubr.bf16.gmra.mxu0 %v3954
        %v5215 = vpop.f32.mrf.mxu0
        %v5216 = vadd.f32 %v5119, %v5215
        %v5217 = vpop.f32.mrf.mxu0
        %v5218 = vpop.f32.mrf.mxu0
        %v5219 = vadd.f32 %v5122, %v5218
        %v5220 = vpop.f32.mrf.mxu0
        %5221 = vmatprep.mubr.bf16.mxu0 %v3973
        %5222 = vmatmul.mubr.bf16.gmra.mxu0 %v3972
        %v5223 = vpop.f32.mrf.mxu0
        %v5224 = vadd.f32 %v5127, %v5223
        %v5225 = vpop.f32.mrf.mxu0
        %v5226 = vpop.f32.mrf.mxu0
        %v5227 = vadd.f32 %v5130, %v5226
        %v5228 = vpop.f32.mrf.mxu0
        %5229 = vmatprep.mubr.bf16.mxu0 %v3991
        %5230 = vmatmul.mubr.bf16.gmra.mxu0 %v3990
        %v5231 = vpop.f32.mrf.mxu0
        %v5232 = vadd.f32 %v5135, %v5231
        %v5233 = vpop.f32.mrf.mxu0
        %v5234 = vpop.f32.mrf.mxu0
        %v5235 = vadd.f32 %v5138, %v5234
        %v5236 = vpop.f32.mrf.mxu0
        %5237 = vmatprep.mubr.bf16.mxu0 %v4009
        %5238 = vmatmul.mubr.bf16.gmra.mxu0 %v4008
        %v5239 = vpop.f32.mrf.mxu0
        %v5240 = vadd.f32 %v5143, %v5239
        %v5241 = vpop.f32.mrf.mxu0
        %v5242 = vpop.f32.mrf.mxu0
        %v5243 = vadd.f32 %v5146, %v5242
        %v5244 = vpop.f32.mrf.mxu0
        %5245 = vmatprep.mubr.bf16.mxu0 %v4027
        %5246 = vmatmul.mubr.bf16.gmra.mxu0 %v4026
        %v5247 = vpop.f32.mrf.mxu0
        %v5248 = vadd.f32 %v5151, %v5247
        %v5249 = vpop.f32.mrf.mxu0
        %v5250 = vpop.f32.mrf.mxu0
        %v5251 = vadd.f32 %v5154, %v5250
        %v5252 = vpop.f32.mrf.mxu0
        %5253 = vmatprep.mubr.bf16.mxu0 %v4045
        %5254 = vmatmul.mubr.bf16.gmra.mxu0 %v4044
        %v5255 = vpop.f32.mrf.mxu0
        %v5256 = vadd.f32 %v5159, %v5255
        %v5257 = vpop.f32.mrf.mxu0
        %v5258 = vpop.f32.mrf.mxu0
        %v5259 = vadd.f32 %v5162, %v5258
        %v5260 = vpop.f32.mrf.mxu0
        %5261 = vdwg.mxu0
        %5262 = vmatprep.subr.bf16.mxu0 0
        %5263 = vmatpush1.bf16.msra.mxu0 %v4819
        %5264 = vmatprep.subr.bf16.mxu0 0
        %5265 = vmatpush1.bf16.msra.mxu0 %v4818
        %5266 = vmatprep.subr.bf16.mxu0 0
        %5267 = vmatpush1.bf16.msra.mxu0 %v4817
        %5268 = vmatprep.subr.bf16.mxu0 0
        %5269 = vmatpush1.bf16.msra.mxu0 %v4816
        %5270 = vmatprep.subr.bf16.mxu0 0
        %5271 = vmatpush1.bf16.msra.mxu0 %v4815
        %5272 = vmatprep.subr.bf16.mxu0 0
        %5273 = vmatpush1.bf16.msra.mxu0 %v4814
        %5274 = vmatprep.subr.bf16.mxu0 0
        %5275 = vmatpush1.bf16.msra.mxu0 %v4813
        %5276 = vmatprep.subr.bf16.mxu0 0
        %5277 = vmatpush1.bf16.msra.mxu0 %v4812
        %5278 = vmatprep.subr.bf16.mxu0 0
        %5279 = vmatpush2.bf16.msra.mxu0 %v4827
        %5280 = vmatprep.subr.bf16.mxu0 0
        %5281 = vmatpush2.bf16.msra.mxu0 %v4826
        %5282 = vmatprep.subr.bf16.mxu0 0
        %5283 = vmatpush2.bf16.msra.mxu0 %v4825
        %5284 = vmatprep.subr.bf16.mxu0 0
        %5285 = vmatpush2.bf16.msra.mxu0 %v4824
        %5286 = vmatprep.subr.bf16.mxu0 0
        %5287 = vmatpush2.bf16.msra.mxu0 %v4823
        %5288 = vmatprep.subr.bf16.mxu0 0
        %5289 = vmatpush2.bf16.msra.mxu0 %v4822
        %5290 = vmatprep.subr.bf16.mxu0 0
        %5291 = vmatpush2.bf16.msra.mxu0 %v4821
        %5292 = vmatprep.subr.bf16.mxu0 0
        %5293 = vmatpush2.bf16.msra.mxu0 %v4820
        %5294 = vmatprep.mubr.bf16.mxu0 %v3921
        %5295 = vmatmul.mubr.bf16.gmra.mxu0 %v3920
        %v5296 = vpop.f32.mrf.mxu0
        %v5297 = vadd.f32 %v5200, %v5296
        %v5298 = vpop.f32.mrf.mxu0
        %v5299 = vpop.f32.mrf.mxu0
        %v5300 = vadd.f32 %v5203, %v5299
        %v5301 = vpop.f32.mrf.mxu0
        %5302 = vmatprep.mubr.bf16.mxu0 %v3939
        %5303 = vmatmul.mubr.bf16.gmra.mxu0 %v3938
        %v5304 = vpop.f32.mrf.mxu0
        %v5305 = vadd.f32 %v5208, %v5304
        %v5306 = vpop.f32.mrf.mxu0
        %v5307 = vpop.f32.mrf.mxu0
        %v5308 = vadd.f32 %v5211, %v5307
        %v5309 = vpop.f32.mrf.mxu0
        %5310 = vmatprep.mubr.bf16.mxu0 %v3957
        %5311 = vmatmul.mubr.bf16.gmra.mxu0 %v3956
        %v5312 = vpop.f32.mrf.mxu0
        %v5313 = vadd.f32 %v5216, %v5312
        %v5314 = vpop.f32.mrf.mxu0
        %v5315 = vpop.f32.mrf.mxu0
        %v5316 = vadd.f32 %v5219, %v5315
        %v5317 = vpop.f32.mrf.mxu0
        %5318 = vmatprep.mubr.bf16.mxu0 %v3975
        %5319 = vmatmul.mubr.bf16.gmra.mxu0 %v3974
        %v5320 = vpop.f32.mrf.mxu0
        %v5321 = vadd.f32 %v5224, %v5320
        %v5322 = vpop.f32.mrf.mxu0
        %v5323 = vpop.f32.mrf.mxu0
        %v5324 = vadd.f32 %v5227, %v5323
        %v5325 = vpop.f32.mrf.mxu0
        %5326 = vmatprep.mubr.bf16.mxu0 %v3993
        %5327 = vmatmul.mubr.bf16.gmra.mxu0 %v3992
        %v5328 = vpop.f32.mrf.mxu0
        %v5329 = vadd.f32 %v5232, %v5328
        %v5330 = vpop.f32.mrf.mxu0
        %v5331 = vpop.f32.mrf.mxu0
        %v5332 = vadd.f32 %v5235, %v5331
        %v5333 = vpop.f32.mrf.mxu0
        %5334 = vmatprep.mubr.bf16.mxu0 %v4011
        %5335 = vmatmul.mubr.bf16.gmra.mxu0 %v4010
        %v5336 = vpop.f32.mrf.mxu0
        %v5337 = vadd.f32 %v5240, %v5336
        %v5338 = vpop.f32.mrf.mxu0
        %v5339 = vpop.f32.mrf.mxu0
        %v5340 = vadd.f32 %v5243, %v5339
        %v5341 = vpop.f32.mrf.mxu0
        %5342 = vmatprep.mubr.bf16.mxu0 %v4029
        %5343 = vmatmul.mubr.bf16.gmra.mxu0 %v4028
        %v5344 = vpop.f32.mrf.mxu0
        %v5345 = vadd.f32 %v5248, %v5344
        %v5346 = vpop.f32.mrf.mxu0
        %v5347 = vpop.f32.mrf.mxu0
        %v5348 = vadd.f32 %v5251, %v5347
        %v5349 = vpop.f32.mrf.mxu0
        %5350 = vmatprep.mubr.bf16.mxu0 %v4047
        %5351 = vmatmul.mubr.bf16.gmra.mxu0 %v4046
        %v5352 = vpop.f32.mrf.mxu0
        %v5353 = vadd.f32 %v5256, %v5352
        %v5354 = vpop.f32.mrf.mxu0
        %v5355 = vpop.f32.mrf.mxu0
        %v5356 = vadd.f32 %v5259, %v5355
        %v5357 = vpop.f32.mrf.mxu0
        %5358 = vdwg.mxu0
        %5359 = vmatprep.subr.bf16.mxu0 0
        %5360 = vmatpush1.bf16.msra.mxu0 %v4835
        %5361 = vmatprep.subr.bf16.mxu0 0
        %5362 = vmatpush1.bf16.msra.mxu0 %v4834
        %5363 = vmatprep.subr.bf16.mxu0 0
        %5364 = vmatpush1.bf16.msra.mxu0 %v4833
        %5365 = vmatprep.subr.bf16.mxu0 0
        %5366 = vmatpush1.bf16.msra.mxu0 %v4832
        %5367 = vmatprep.subr.bf16.mxu0 0
        %5368 = vmatpush1.bf16.msra.mxu0 %v4831
        %5369 = vmatprep.subr.bf16.mxu0 0
        %5370 = vmatpush1.bf16.msra.mxu0 %v4830
        %5371 = vmatprep.subr.bf16.mxu0 0
        %5372 = vmatpush1.bf16.msra.mxu0 %v4829
        %5373 = vmatprep.subr.bf16.mxu0 0
        %5374 = vmatpush1.bf16.msra.mxu0 %v4828
        %5375 = vmatprep.subr.bf16.mxu0 0
        %5376 = vmatpush2.bf16.msra.mxu0 %v4843
        %5377 = vmatprep.subr.bf16.mxu0 0
        %5378 = vmatpush2.bf16.msra.mxu0 %v4842
        %5379 = vmatprep.subr.bf16.mxu0 0
        %5380 = vmatpush2.bf16.msra.mxu0 %v4841
        %5381 = vmatprep.subr.bf16.mxu0 0
        %5382 = vmatpush2.bf16.msra.mxu0 %v4840
        %5383 = vmatprep.subr.bf16.mxu0 0
        %5384 = vmatpush2.bf16.msra.mxu0 %v4839
        %5385 = vmatprep.subr.bf16.mxu0 0
        %5386 = vmatpush2.bf16.msra.mxu0 %v4838
        %5387 = vmatprep.subr.bf16.mxu0 0
        %5388 = vmatpush2.bf16.msra.mxu0 %v4837
        %5389 = vmatprep.subr.bf16.mxu0 0
        %5390 = vmatpush2.bf16.msra.mxu0 %v4836
        %5391 = vmatprep.mubr.bf16.mxu0 %v3923
        %5392 = vmatmul.mubr.bf16.gmra.mxu0 %v3922
        %v5393 = vpop.f32.mrf.mxu0
        %v5394 = vadd.f32 %v5297, %v5393
        %v5395 = vpop.f32.mrf.mxu0
        %v5396 = vpop.f32.mrf.mxu0
        %v5397 = vadd.f32 %v5300, %v5396
        %v5398 = vpop.f32.mrf.mxu0
        %5399 = vmatprep.mubr.bf16.mxu0 %v3941
        %5400 = vmatmul.mubr.bf16.gmra.mxu0 %v3940
        %v5401 = vpop.f32.mrf.mxu0
        %v5402 = vadd.f32 %v5305, %v5401
        %v5403 = vpop.f32.mrf.mxu0
        %v5404 = vpop.f32.mrf.mxu0
        %v5405 = vadd.f32 %v5308, %v5404
        %v5406 = vpop.f32.mrf.mxu0
        %5407 = vmatprep.mubr.bf16.mxu0 %v3959
        %5408 = vmatmul.mubr.bf16.gmra.mxu0 %v3958
        %v5409 = vpop.f32.mrf.mxu0
        %v5410 = vadd.f32 %v5313, %v5409
        %v5411 = vpop.f32.mrf.mxu0
        %v5412 = vpop.f32.mrf.mxu0
        %v5413 = vadd.f32 %v5316, %v5412
        %v5414 = vpop.f32.mrf.mxu0
        %5415 = vmatprep.mubr.bf16.mxu0 %v3977
        %5416 = vmatmul.mubr.bf16.gmra.mxu0 %v3976
        %v5417 = vpop.f32.mrf.mxu0
        %v5418 = vadd.f32 %v5321, %v5417
        %v5419 = vpop.f32.mrf.mxu0
        %v5420 = vpop.f32.mrf.mxu0
        %v5421 = vadd.f32 %v5324, %v5420
        %v5422 = vpop.f32.mrf.mxu0
        %5423 = vmatprep.mubr.bf16.mxu0 %v3995
        %5424 = vmatmul.mubr.bf16.gmra.mxu0 %v3994
        %v5425 = vpop.f32.mrf.mxu0
        %v5426 = vadd.f32 %v5329, %v5425
        %v5427 = vpop.f32.mrf.mxu0
        %v5428 = vpop.f32.mrf.mxu0
        %v5429 = vadd.f32 %v5332, %v5428
        %v5430 = vpop.f32.mrf.mxu0
        %5431 = vmatprep.mubr.bf16.mxu0 %v4013
        %5432 = vmatmul.mubr.bf16.gmra.mxu0 %v4012
        %v5433 = vpop.f32.mrf.mxu0
        %v5434 = vadd.f32 %v5337, %v5433
        %v5435 = vpop.f32.mrf.mxu0
        %v5436 = vpop.f32.mrf.mxu0
        %v5437 = vadd.f32 %v5340, %v5436
        %v5438 = vpop.f32.mrf.mxu0
        %5439 = vmatprep.mubr.bf16.mxu0 %v4031
        %5440 = vmatmul.mubr.bf16.gmra.mxu0 %v4030
        %v5441 = vpop.f32.mrf.mxu0
        %v5442 = vadd.f32 %v5345, %v5441
        %v5443 = vpop.f32.mrf.mxu0
        %v5444 = vpop.f32.mrf.mxu0
        %v5445 = vadd.f32 %v5348, %v5444
        %v5446 = vpop.f32.mrf.mxu0
        %5447 = vmatprep.mubr.bf16.mxu0 %v4049
        %5448 = vmatmul.mubr.bf16.gmra.mxu0 %v4048
        %v5449 = vpop.f32.mrf.mxu0
        %v5450 = vadd.f32 %v5353, %v5449
        %v5451 = vpop.f32.mrf.mxu0
        %v5452 = vpop.f32.mrf.mxu0
        %v5453 = vadd.f32 %v5356, %v5452
        %v5454 = vpop.f32.mrf.mxu0
        %5455 = vdwg.mxu0
        %5456 = vmatprep.subr.bf16.mxu0 0
        %5457 = vmatpush1.bf16.msra.mxu0 %v4851
        %5458 = vmatprep.subr.bf16.mxu0 0
        %5459 = vmatpush1.bf16.msra.mxu0 %v4850
        %5460 = vmatprep.subr.bf16.mxu0 0
        %5461 = vmatpush1.bf16.msra.mxu0 %v4849
        %5462 = vmatprep.subr.bf16.mxu0 0
        %5463 = vmatpush1.bf16.msra.mxu0 %v4848
        %5464 = vmatprep.subr.bf16.mxu0 0
        %5465 = vmatpush1.bf16.msra.mxu0 %v4847
        %5466 = vmatprep.subr.bf16.mxu0 0
        %5467 = vmatpush1.bf16.msra.mxu0 %v4846
        %5468 = vmatprep.subr.bf16.mxu0 0
        %5469 = vmatpush1.bf16.msra.mxu0 %v4845
        %5470 = vmatprep.subr.bf16.mxu0 0
        %5471 = vmatpush1.bf16.msra.mxu0 %v4844
        %5472 = vmatprep.subr.bf16.mxu0 0
        %5473 = vmatpush2.bf16.msra.mxu0 %v4859
        %5474 = vmatprep.subr.bf16.mxu0 0
        %5475 = vmatpush2.bf16.msra.mxu0 %v4858
        %5476 = vmatprep.subr.bf16.mxu0 0
        %5477 = vmatpush2.bf16.msra.mxu0 %v4857
        %5478 = vmatprep.subr.bf16.mxu0 0
        %5479 = vmatpush2.bf16.msra.mxu0 %v4856
        %5480 = vmatprep.subr.bf16.mxu0 0
        %5481 = vmatpush2.bf16.msra.mxu0 %v4855
        %5482 = vmatprep.subr.bf16.mxu0 0
        %5483 = vmatpush2.bf16.msra.mxu0 %v4854
        %5484 = vmatprep.subr.bf16.mxu0 0
        %5485 = vmatpush2.bf16.msra.mxu0 %v4853
        %5486 = vmatprep.subr.bf16.mxu0 0
        %5487 = vmatpush2.bf16.msra.mxu0 %v4852
        %5488 = vmatprep.mubr.bf16.mxu0 %v3925
        %5489 = vmatmul.mubr.bf16.gmra.mxu0 %v3924
        %v5490 = vpop.f32.mrf.mxu0
        %v5491 = vadd.f32 %v5394, %v5490
        %v5492 = vpop.f32.mrf.mxu0
        %v5493 = vpop.f32.mrf.mxu0
        %v5494 = vadd.f32 %v5397, %v5493
        %v5495 = vpop.f32.mrf.mxu0
        %5496 = vmatprep.mubr.bf16.mxu0 %v3943
        %5497 = vmatmul.mubr.bf16.gmra.mxu0 %v3942
        %v5498 = vpop.f32.mrf.mxu0
        %v5499 = vadd.f32 %v5402, %v5498
        %v5500 = vpop.f32.mrf.mxu0
        %v5501 = vpop.f32.mrf.mxu0
        %v5502 = vadd.f32 %v5405, %v5501
        %v5503 = vpop.f32.mrf.mxu0
        %5504 = vmatprep.mubr.bf16.mxu0 %v3961
        %5505 = vmatmul.mubr.bf16.gmra.mxu0 %v3960
        %v5506 = vpop.f32.mrf.mxu0
        %v5507 = vadd.f32 %v5410, %v5506
        %v5508 = vpop.f32.mrf.mxu0
        %v5509 = vpop.f32.mrf.mxu0
        %v5510 = vadd.f32 %v5413, %v5509
        %v5511 = vpop.f32.mrf.mxu0
        %5512 = vmatprep.mubr.bf16.mxu0 %v3979
        %5513 = vmatmul.mubr.bf16.gmra.mxu0 %v3978
        %v5514 = vpop.f32.mrf.mxu0
        %v5515 = vadd.f32 %v5418, %v5514
        %v5516 = vpop.f32.mrf.mxu0
        %v5517 = vpop.f32.mrf.mxu0
        %v5518 = vadd.f32 %v5421, %v5517
        %v5519 = vpop.f32.mrf.mxu0
        %5520 = vmatprep.mubr.bf16.mxu0 %v3997
        %5521 = vmatmul.mubr.bf16.gmra.mxu0 %v3996
        %v5522 = vpop.f32.mrf.mxu0
        %v5523 = vadd.f32 %v5426, %v5522
        %v5524 = vpop.f32.mrf.mxu0
        %v5525 = vpop.f32.mrf.mxu0
        %v5526 = vadd.f32 %v5429, %v5525
        %v5527 = vpop.f32.mrf.mxu0
        %5528 = vmatprep.mubr.bf16.mxu0 %v4015
        %5529 = vmatmul.mubr.bf16.gmra.mxu0 %v4014
        %v5530 = vpop.f32.mrf.mxu0
        %v5531 = vadd.f32 %v5434, %v5530
        %v5532 = vpop.f32.mrf.mxu0
        %v5533 = vpop.f32.mrf.mxu0
        %v5534 = vadd.f32 %v5437, %v5533
        %v5535 = vpop.f32.mrf.mxu0
        %5536 = vmatprep.mubr.bf16.mxu0 %v4033
        %5537 = vmatmul.mubr.bf16.gmra.mxu0 %v4032
        %v5538 = vpop.f32.mrf.mxu0
        %v5539 = vadd.f32 %v5442, %v5538
        %v5540 = vpop.f32.mrf.mxu0
        %v5541 = vpop.f32.mrf.mxu0
        %v5542 = vadd.f32 %v5445, %v5541
        %v5543 = vpop.f32.mrf.mxu0
        %5544 = vmatprep.mubr.bf16.mxu0 %v4051
        %5545 = vmatmul.mubr.bf16.gmra.mxu0 %v4050
        %v5546 = vpop.f32.mrf.mxu0
        %v5547 = vadd.f32 %v5450, %v5546
        %v5548 = vpop.f32.mrf.mxu0
        %v5549 = vpop.f32.mrf.mxu0
        %v5550 = vadd.f32 %v5453, %v5549
        %v5551 = vpop.f32.mrf.mxu0
        %5552 = vdwg.mxu0
        %5553 = vmatprep.subr.bf16.mxu0 0
        %5554 = vmatpush1.bf16.msra.mxu0 %v4867
        %5555 = vmatprep.subr.bf16.mxu0 0
        %5556 = vmatpush1.bf16.msra.mxu0 %v4866
        %5557 = vmatprep.subr.bf16.mxu0 0
        %5558 = vmatpush1.bf16.msra.mxu0 %v4865
        %5559 = vmatprep.subr.bf16.mxu0 0
        %5560 = vmatpush1.bf16.msra.mxu0 %v4864
        %5561 = vmatprep.subr.bf16.mxu0 0
        %5562 = vmatpush1.bf16.msra.mxu0 %v4863
        %5563 = vmatprep.subr.bf16.mxu0 0
        %5564 = vmatpush1.bf16.msra.mxu0 %v4862
        %5565 = vmatprep.subr.bf16.mxu0 0
        %5566 = vmatpush1.bf16.msra.mxu0 %v4861
        %5567 = vmatprep.subr.bf16.mxu0 0
        %5568 = vmatpush1.bf16.msra.mxu0 %v4860
        %5569 = vmatprep.subr.bf16.mxu0 0
        %5570 = vmatpush2.bf16.msra.mxu0 %v4875
        %5571 = vmatprep.subr.bf16.mxu0 0
        %5572 = vmatpush2.bf16.msra.mxu0 %v4874
        %5573 = vmatprep.subr.bf16.mxu0 0
        %5574 = vmatpush2.bf16.msra.mxu0 %v4873
        %5575 = vmatprep.subr.bf16.mxu0 0
        %5576 = vmatpush2.bf16.msra.mxu0 %v4872
        %5577 = vmatprep.subr.bf16.mxu0 0
        %5578 = vmatpush2.bf16.msra.mxu0 %v4871
        %5579 = vmatprep.subr.bf16.mxu0 0
        %5580 = vmatpush2.bf16.msra.mxu0 %v4870
        %5581 = vmatprep.subr.bf16.mxu0 0
        %5582 = vmatpush2.bf16.msra.mxu0 %v4869
        %5583 = vmatprep.subr.bf16.mxu0 0
        %5584 = vmatpush2.bf16.msra.mxu0 %v4868
        %5585 = vmatprep.mubr.bf16.mxu0 %v3927
        %5586 = vmatmul.mubr.bf16.gmra.mxu0 %v3926
        %v5587 = vpop.f32.mrf.mxu0
        %v5588 = vadd.f32 %v5491, %v5587
        %v5589 = vpop.f32.mrf.mxu0
        %v5590 = vpop.f32.mrf.mxu0
        %v5591 = vadd.f32 %v5494, %v5590
        %v5592 = vpop.f32.mrf.mxu0
        %5593 = vmatprep.mubr.bf16.mxu0 %v3945
        %5594 = vmatmul.mubr.bf16.gmra.mxu0 %v3944
        %v5595 = vpop.f32.mrf.mxu0
        %v5596 = vadd.f32 %v5499, %v5595
        %v5597 = vpop.f32.mrf.mxu0
        %v5598 = vpop.f32.mrf.mxu0
        %v5599 = vadd.f32 %v5502, %v5598
        %v5600 = vpop.f32.mrf.mxu0
        %5601 = vmatprep.mubr.bf16.mxu0 %v3963
        %5602 = vmatmul.mubr.bf16.gmra.mxu0 %v3962
        %v5603 = vpop.f32.mrf.mxu0
        %v5604 = vadd.f32 %v5507, %v5603
        %v5605 = vpop.f32.mrf.mxu0
        %v5606 = vpop.f32.mrf.mxu0
        %v5607 = vadd.f32 %v5510, %v5606
        %v5608 = vpop.f32.mrf.mxu0
        %5609 = vmatprep.mubr.bf16.mxu0 %v3981
        %5610 = vmatmul.mubr.bf16.gmra.mxu0 %v3980
        %v5611 = vpop.f32.mrf.mxu0
        %v5612 = vadd.f32 %v5515, %v5611
        %v5613 = vpop.f32.mrf.mxu0
        %v5614 = vpop.f32.mrf.mxu0
        %v5615 = vadd.f32 %v5518, %v5614
        %v5616 = vpop.f32.mrf.mxu0
        %5617 = vmatprep.mubr.bf16.mxu0 %v3999
        %5618 = vmatmul.mubr.bf16.gmra.mxu0 %v3998
        %v5619 = vpop.f32.mrf.mxu0
        %v5620 = vadd.f32 %v5523, %v5619
        %v5621 = vpop.f32.mrf.mxu0
        %v5622 = vpop.f32.mrf.mxu0
        %v5623 = vadd.f32 %v5526, %v5622
        %v5624 = vpop.f32.mrf.mxu0
        %5625 = vmatprep.mubr.bf16.mxu0 %v4017
        %5626 = vmatmul.mubr.bf16.gmra.mxu0 %v4016
        %v5627 = vpop.f32.mrf.mxu0
        %v5628 = vadd.f32 %v5531, %v5627
        %v5629 = vpop.f32.mrf.mxu0
        %v5630 = vpop.f32.mrf.mxu0
        %v5631 = vadd.f32 %v5534, %v5630
        %v5632 = vpop.f32.mrf.mxu0
        %5633 = vmatprep.mubr.bf16.mxu0 %v4035
        %5634 = vmatmul.mubr.bf16.gmra.mxu0 %v4034
        %v5635 = vpop.f32.mrf.mxu0
        %v5636 = vadd.f32 %v5539, %v5635
        %v5637 = vpop.f32.mrf.mxu0
        %v5638 = vpop.f32.mrf.mxu0
        %v5639 = vadd.f32 %v5542, %v5638
        %v5640 = vpop.f32.mrf.mxu0
        %5641 = vmatprep.mubr.bf16.mxu0 %v4053
        %5642 = vmatmul.mubr.bf16.gmra.mxu0 %v4052
        %v5643 = vpop.f32.mrf.mxu0
        %v5644 = vadd.f32 %v5547, %v5643
        %v5645 = vpop.f32.mrf.mxu0
        %v5646 = vpop.f32.mrf.mxu0
        %v5647 = vadd.f32 %v5550, %v5646
        %v5648 = vpop.f32.mrf.mxu0
        %5649 = vdwg.mxu0
        %5650 = vmatprep.subr.bf16.mxu0 0
        %5651 = vmatpush1.bf16.msra.mxu0 %v4883
        %5652 = vmatprep.subr.bf16.mxu0 0
        %5653 = vmatpush1.bf16.msra.mxu0 %v4882
        %5654 = vmatprep.subr.bf16.mxu0 0
        %5655 = vmatpush1.bf16.msra.mxu0 %v4881
        %5656 = vmatprep.subr.bf16.mxu0 0
        %5657 = vmatpush1.bf16.msra.mxu0 %v4880
        %5658 = vmatprep.subr.bf16.mxu0 0
        %5659 = vmatpush1.bf16.msra.mxu0 %v4879
        %5660 = vmatprep.subr.bf16.mxu0 0
        %5661 = vmatpush1.bf16.msra.mxu0 %v4878
        %5662 = vmatprep.subr.bf16.mxu0 0
        %5663 = vmatpush1.bf16.msra.mxu0 %v4877
        %5664 = vmatprep.subr.bf16.mxu0 0
        %5665 = vmatpush1.bf16.msra.mxu0 %v4876
        %5666 = vmatprep.subr.bf16.mxu0 0
        %5667 = vmatpush2.bf16.msra.mxu0 %v4891
        %5668 = vmatprep.subr.bf16.mxu0 0
        %5669 = vmatpush2.bf16.msra.mxu0 %v4890
        %5670 = vmatprep.subr.bf16.mxu0 0
        %5671 = vmatpush2.bf16.msra.mxu0 %v4889
        %5672 = vmatprep.subr.bf16.mxu0 0
        %5673 = vmatpush2.bf16.msra.mxu0 %v4888
        %5674 = vmatprep.subr.bf16.mxu0 0
        %5675 = vmatpush2.bf16.msra.mxu0 %v4887
        %5676 = vmatprep.subr.bf16.mxu0 0
        %5677 = vmatpush2.bf16.msra.mxu0 %v4886
        %5678 = vmatprep.subr.bf16.mxu0 0
        %5679 = vmatpush2.bf16.msra.mxu0 %v4885
        %5680 = vmatprep.subr.bf16.mxu0 0
        %5681 = vmatpush2.bf16.msra.mxu0 %v4884
        %5682 = vmatprep.mubr.bf16.mxu0 %v3929
        %5683 = vmatmul.mubr.bf16.gmra.mxu0 %v3928
        %v5684 = vpop.f32.mrf.mxu0
        %v5685 = vadd.f32 %v5588, %v5684
        %v5686 = vpop.f32.mrf.mxu0
        %v5687 = vpop.f32.mrf.mxu0
        %v5688 = vadd.f32 %v5591, %v5687
        %v5689 = vpop.f32.mrf.mxu0
        %5690 = vmatprep.mubr.bf16.mxu0 %v3947
        %5691 = vmatmul.mubr.bf16.gmra.mxu0 %v3946
        %v5692 = vpop.f32.mrf.mxu0
        %v5693 = vadd.f32 %v5596, %v5692
        %v5694 = vpop.f32.mrf.mxu0
        %v5695 = vpop.f32.mrf.mxu0
        %v5696 = vadd.f32 %v5599, %v5695
        %v5697 = vpop.f32.mrf.mxu0
        %5698 = vmatprep.mubr.bf16.mxu0 %v3965
        %5699 = vmatmul.mubr.bf16.gmra.mxu0 %v3964
        %v5700 = vpop.f32.mrf.mxu0
        %v5701 = vadd.f32 %v5604, %v5700
        %v5702 = vpop.f32.mrf.mxu0
        %v5703 = vpop.f32.mrf.mxu0
        %v5704 = vadd.f32 %v5607, %v5703
        %v5705 = vpop.f32.mrf.mxu0
        %5706 = vmatprep.mubr.bf16.mxu0 %v3983
        %5707 = vmatmul.mubr.bf16.gmra.mxu0 %v3982
        %v5708 = vpop.f32.mrf.mxu0
        %v5709 = vadd.f32 %v5612, %v5708
        %v5710 = vpop.f32.mrf.mxu0
        %v5711 = vpop.f32.mrf.mxu0
        %v5712 = vadd.f32 %v5615, %v5711
        %v5713 = vpop.f32.mrf.mxu0
        %5714 = vmatprep.mubr.bf16.mxu0 %v4001
        %5715 = vmatmul.mubr.bf16.gmra.mxu0 %v4000
        %v5716 = vpop.f32.mrf.mxu0
        %v5717 = vadd.f32 %v5620, %v5716
        %v5718 = vpop.f32.mrf.mxu0
        %v5719 = vpop.f32.mrf.mxu0
        %v5720 = vadd.f32 %v5623, %v5719
        %v5721 = vpop.f32.mrf.mxu0
        %5722 = vmatprep.mubr.bf16.mxu0 %v4019
        %5723 = vmatmul.mubr.bf16.gmra.mxu0 %v4018
        %v5724 = vpop.f32.mrf.mxu0
        %v5725 = vadd.f32 %v5628, %v5724
        %v5726 = vpop.f32.mrf.mxu0
        %v5727 = vpop.f32.mrf.mxu0
        %v5728 = vadd.f32 %v5631, %v5727
        %v5729 = vpop.f32.mrf.mxu0
        %5730 = vmatprep.mubr.bf16.mxu0 %v4037
        %5731 = vmatmul.mubr.bf16.gmra.mxu0 %v4036
        %v5732 = vpop.f32.mrf.mxu0
        %v5733 = vadd.f32 %v5636, %v5732
        %v5734 = vpop.f32.mrf.mxu0
        %v5735 = vpop.f32.mrf.mxu0
        %v5736 = vadd.f32 %v5639, %v5735
        %v5737 = vpop.f32.mrf.mxu0
        %5738 = vmatprep.mubr.bf16.mxu0 %v4055
        %5739 = vmatmul.mubr.bf16.gmra.mxu0 %v4054
        %v5740 = vpop.f32.mrf.mxu0
        %v5741 = vadd.f32 %v5644, %v5740
        %v5742 = vpop.f32.mrf.mxu0
        %v5743 = vpop.f32.mrf.mxu0
        %v5744 = vadd.f32 %v5647, %v5743
        %v5745 = vpop.f32.mrf.mxu0
        %5746 = vdwg.mxu0
        %5747 = vmatprep.subr.bf16.mxu0 0
        %5748 = vmatpush1.bf16.msra.mxu0 %v4899
        %5749 = vmatprep.subr.bf16.mxu0 0
        %5750 = vmatpush1.bf16.msra.mxu0 %v4898
        %5751 = vmatprep.subr.bf16.mxu0 0
        %5752 = vmatpush1.bf16.msra.mxu0 %v4897
        %5753 = vmatprep.subr.bf16.mxu0 0
        %5754 = vmatpush1.bf16.msra.mxu0 %v4896
        %5755 = vmatprep.subr.bf16.mxu0 0
        %5756 = vmatpush1.bf16.msra.mxu0 %v4895
        %5757 = vmatprep.subr.bf16.mxu0 0
        %5758 = vmatpush1.bf16.msra.mxu0 %v4894
        %5759 = vmatprep.subr.bf16.mxu0 0
        %5760 = vmatpush1.bf16.msra.mxu0 %v4893
        %5761 = vmatprep.subr.bf16.mxu0 0
        %5762 = vmatpush1.bf16.msra.mxu0 %v4892
        %5763 = vmatprep.subr.bf16.mxu0 0
        %5764 = vmatpush2.bf16.msra.mxu0 %v4907
        %5765 = vmatprep.subr.bf16.mxu0 0
        %5766 = vmatpush2.bf16.msra.mxu0 %v4906
        %5767 = vmatprep.subr.bf16.mxu0 0
        %5768 = vmatpush2.bf16.msra.mxu0 %v4905
        %5769 = vmatprep.subr.bf16.mxu0 0
        %5770 = vmatpush2.bf16.msra.mxu0 %v4904
        %5771 = vmatprep.subr.bf16.mxu0 0
        %5772 = vmatpush2.bf16.msra.mxu0 %v4903
        %5773 = vmatprep.subr.bf16.mxu0 0
        %5774 = vmatpush2.bf16.msra.mxu0 %v4902
        %5775 = vmatprep.subr.bf16.mxu0 0
        %5776 = vmatpush2.bf16.msra.mxu0 %v4901
        %5777 = vmatprep.subr.bf16.mxu0 0
        %5778 = vmatpush2.bf16.msra.mxu0 %v4900
        %5779 = vmatprep.mubr.bf16.mxu0 %v3931
        %5780 = vmatmul.mubr.bf16.gmra.mxu0 %v3930
        %v5781 = vpop.f32.mrf.mxu0
        %v5782 = vadd.f32 %v5685, %v5781
        %v5783 = vpop.f32.mrf.mxu0
        %v5784 = vpop.f32.mrf.mxu0
        %v5785 = vadd.f32 %v5688, %v5784
        %v5786 = vpop.f32.mrf.mxu0
        %5787 = vmatprep.mubr.bf16.mxu0 %v3949
        %5788 = vmatmul.mubr.bf16.gmra.mxu0 %v3948
        %v5789 = vpop.f32.mrf.mxu0
        %v5790 = vadd.f32 %v5693, %v5789
        %v5791 = vpop.f32.mrf.mxu0
        %v5792 = vpop.f32.mrf.mxu0
        %v5793 = vadd.f32 %v5696, %v5792
        %v5794 = vpop.f32.mrf.mxu0
        %5795 = vmatprep.mubr.bf16.mxu0 %v3967
        %5796 = vmatmul.mubr.bf16.gmra.mxu0 %v3966
        %v5797 = vpop.f32.mrf.mxu0
        %v5798 = vadd.f32 %v5701, %v5797
        %v5799 = vpop.f32.mrf.mxu0
        %v5800 = vpop.f32.mrf.mxu0
        %v5801 = vadd.f32 %v5704, %v5800
        %v5802 = vpop.f32.mrf.mxu0
        %5803 = vmatprep.mubr.bf16.mxu0 %v3985
        %5804 = vmatmul.mubr.bf16.gmra.mxu0 %v3984
        %v5805 = vpop.f32.mrf.mxu0
        %v5806 = vadd.f32 %v5709, %v5805
        %v5807 = vpop.f32.mrf.mxu0
        %v5808 = vpop.f32.mrf.mxu0
        %v5809 = vadd.f32 %v5712, %v5808
        %v5810 = vpop.f32.mrf.mxu0
        %5811 = vmatprep.mubr.bf16.mxu0 %v4003
        %5812 = vmatmul.mubr.bf16.gmra.mxu0 %v4002
        %v5813 = vpop.f32.mrf.mxu0
        %v5814 = vadd.f32 %v5717, %v5813
        %v5815 = vpop.f32.mrf.mxu0
        %v5816 = vpop.f32.mrf.mxu0
        %v5817 = vadd.f32 %v5720, %v5816
        %v5818 = vpop.f32.mrf.mxu0
        %5819 = vmatprep.mubr.bf16.mxu0 %v4021
        %5820 = vmatmul.mubr.bf16.gmra.mxu0 %v4020
        %v5821 = vpop.f32.mrf.mxu0
        %v5822 = vadd.f32 %v5725, %v5821
        %v5823 = vpop.f32.mrf.mxu0
        %v5824 = vpop.f32.mrf.mxu0
        %v5825 = vadd.f32 %v5728, %v5824
        %v5826 = vpop.f32.mrf.mxu0
        %5827 = vmatprep.mubr.bf16.mxu0 %v4039
        %5828 = vmatmul.mubr.bf16.gmra.mxu0 %v4038
        %v5829 = vpop.f32.mrf.mxu0
        %v5830 = vadd.f32 %v5733, %v5829
        %v5831 = vpop.f32.mrf.mxu0
        %v5832 = vpop.f32.mrf.mxu0
        %v5833 = vadd.f32 %v5736, %v5832
        %v5834 = vpop.f32.mrf.mxu0
        %5835 = vmatprep.mubr.bf16.mxu0 %v4057
        %5836 = vmatmul.mubr.bf16.gmra.mxu0 %v4056
        %v5837 = vpop.f32.mrf.mxu0
        %v5838 = vadd.f32 %v5741, %v5837
        %v5839 = vpop.f32.mrf.mxu0
        %v5840 = vpop.f32.mrf.mxu0
        %v5841 = vadd.f32 %v5744, %v5840
        %v5842 = vpop.f32.mrf.mxu0
        %5843 = vdwg.mxu0
        %5844 = vmatprep.subr.bf16.mxu0 0
        %5845 = vmatpush1.bf16.msra.mxu0 %v4915
        %5846 = vmatprep.subr.bf16.mxu0 0
        %5847 = vmatpush1.bf16.msra.mxu0 %v4914
        %5848 = vmatprep.subr.bf16.mxu0 0
        %5849 = vmatpush1.bf16.msra.mxu0 %v4913
        %5850 = vmatprep.subr.bf16.mxu0 0
        %5851 = vmatpush1.bf16.msra.mxu0 %v4912
        %5852 = vmatprep.subr.bf16.mxu0 0
        %5853 = vmatpush1.bf16.msra.mxu0 %v4911
        %5854 = vmatprep.subr.bf16.mxu0 0
        %5855 = vmatpush1.bf16.msra.mxu0 %v4910
        %5856 = vmatprep.subr.bf16.mxu0 0
        %5857 = vmatpush1.bf16.msra.mxu0 %v4909
        %5858 = vmatprep.subr.bf16.mxu0 0
        %5859 = vmatpush1.bf16.msra.mxu0 %v4908
        %5860 = vmatprep.subr.bf16.mxu0 0
        %5861 = vmatpush2.bf16.msra.mxu0 %v4923
        %5862 = vmatprep.subr.bf16.mxu0 0
        %5863 = vmatpush2.bf16.msra.mxu0 %v4922
        %5864 = vmatprep.subr.bf16.mxu0 0
        %5865 = vmatpush2.bf16.msra.mxu0 %v4921
        %5866 = vmatprep.subr.bf16.mxu0 0
        %5867 = vmatpush2.bf16.msra.mxu0 %v4920
        %5868 = vmatprep.subr.bf16.mxu0 0
        %5869 = vmatpush2.bf16.msra.mxu0 %v4919
        %5870 = vmatprep.subr.bf16.mxu0 0
        %5871 = vmatpush2.bf16.msra.mxu0 %v4918
        %5872 = vmatprep.subr.bf16.mxu0 0
        %5873 = vmatpush2.bf16.msra.mxu0 %v4917
        %5874 = vmatprep.subr.bf16.mxu0 0
        %5875 = vmatpush2.bf16.msra.mxu0 %v4916
        %5876 = vmatprep.mubr.bf16.mxu0 %v3933
        %5877 = vmatmul.mubr.bf16.gmra.mxu0 %v3932
        %v5878 = vpop.f32.mrf.mxu0
        %v5879 = vadd.f32 %v5782, %v5878
        %v5880 = vpop.f32.mrf.mxu0
        %v5881 = vpop.f32.mrf.mxu0
        %v5882 = vadd.f32 %v5785, %v5881
        %v5883 = vpop.f32.mrf.mxu0
        %5884 = vmatprep.mubr.bf16.mxu0 %v3951
        %5885 = vmatmul.mubr.bf16.gmra.mxu0 %v3950
        %v5886 = vpop.f32.mrf.mxu0
        %v5887 = vadd.f32 %v5790, %v5886
        %v5888 = vpop.f32.mrf.mxu0
        %v5889 = vpop.f32.mrf.mxu0
        %v5890 = vadd.f32 %v5793, %v5889
        %v5891 = vpop.f32.mrf.mxu0
        %5892 = vmatprep.mubr.bf16.mxu0 %v3969
        %5893 = vmatmul.mubr.bf16.gmra.mxu0 %v3968
        %v5894 = vpop.f32.mrf.mxu0
        %v5895 = vadd.f32 %v5798, %v5894
        %v5896 = vpop.f32.mrf.mxu0
        %v5897 = vpop.f32.mrf.mxu0
        %v5898 = vadd.f32 %v5801, %v5897
        %v5899 = vpop.f32.mrf.mxu0
        %5900 = vmatprep.mubr.bf16.mxu0 %v3987
        %5901 = vmatmul.mubr.bf16.gmra.mxu0 %v3986
        %v5902 = vpop.f32.mrf.mxu0
        %v5903 = vadd.f32 %v5806, %v5902
        %v5904 = vpop.f32.mrf.mxu0
        %v5905 = vpop.f32.mrf.mxu0
        %v5906 = vadd.f32 %v5809, %v5905
        %v5907 = vpop.f32.mrf.mxu0
        %5908 = vmatprep.mubr.bf16.mxu0 %v4005
        %5909 = vmatmul.mubr.bf16.gmra.mxu0 %v4004
        %v5910 = vpop.f32.mrf.mxu0
        %v5911 = vadd.f32 %v5814, %v5910
        %v5912 = vpop.f32.mrf.mxu0
        %v5913 = vpop.f32.mrf.mxu0
        %v5914 = vadd.f32 %v5817, %v5913
        %v5915 = vpop.f32.mrf.mxu0
        %5916 = vmatprep.mubr.bf16.mxu0 %v4023
        %5917 = vmatmul.mubr.bf16.gmra.mxu0 %v4022
        %v5918 = vpop.f32.mrf.mxu0
        %v5919 = vadd.f32 %v5822, %v5918
        %v5920 = vpop.f32.mrf.mxu0
        %v5921 = vpop.f32.mrf.mxu0
        %v5922 = vadd.f32 %v5825, %v5921
        %v5923 = vpop.f32.mrf.mxu0
        %5924 = vmatprep.mubr.bf16.mxu0 %v4041
        %5925 = vmatmul.mubr.bf16.gmra.mxu0 %v4040
        %v5926 = vpop.f32.mrf.mxu0
        %v5927 = vadd.f32 %v5830, %v5926
        %v5928 = vpop.f32.mrf.mxu0
        %v5929 = vpop.f32.mrf.mxu0
        %v5930 = vadd.f32 %v5833, %v5929
        %v5931 = vpop.f32.mrf.mxu0
        %5932 = vmatprep.mubr.bf16.mxu0 %v4059
        %5933 = vmatmul.mubr.bf16.gmra.mxu0 %v4058
        %v5934 = vpop.f32.mrf.mxu0
        %v5935 = vadd.f32 %v5838, %v5934
        %v5936 = vpop.f32.mrf.mxu0
        %v5937 = vpop.f32.mrf.mxu0
        %v5938 = vadd.f32 %v5841, %v5937
        %v5939 = vpop.f32.mrf.mxu0
        %5940 = vdwg.mxu0
        %v5941 = vmax.f32 %v5879, 0.0
        %v5942 = vmax.f32 %v5882, 0.0
        %v5943 = vmax.f32 %v5887, 0.0
        %v5944 = vmax.f32 %v5890, 0.0
        %v5945 = vmax.f32 %v5895, 0.0
        %v5946 = vmax.f32 %v5898, 0.0
        %v5947 = vmax.f32 %v5903, 0.0
        %v5948 = vmax.f32 %v5906, 0.0
        %v5949 = vmax.f32 %v5911, 0.0
        %v5950 = vmax.f32 %v5914, 0.0
        %v5951 = vmax.f32 %v5919, 0.0
        %v5952 = vmax.f32 %v5922, 0.0
        %v5953 = vmax.f32 %v5927, 0.0
        %v5954 = vmax.f32 %v5930, 0.0
        %v5955 = vmax.f32 %v5935, 0.0
        %v5956 = vmax.f32 %v5938, 0.0
        %5957 = vst [vmem:[#allocation4] sm:$0xff] 0.0
        %5958 = vst [vmem:[#allocation4 + $0x8] sm:$0xff] 0.0
        %5959 = vst [vmem:[#allocation4 + $0x10] sm:$0x3] 0.0
        %5960 = vst [vmem:[#allocation4 + $0x18] sm:$0xff] 0.0
        %5961 = vst [vmem:[#allocation4 + $0x20] sm:$0xff] 0.0
        %5962 = vst [vmem:[#allocation4 + $0x28] sm:$0x3] 0.0
        %5963 = vst [vmem:[#allocation4 + $0x30] sm:$0xff] 0.0
        %5964 = vst [vmem:[#allocation4 + $0x38] sm:$0xff] 0.0
        %5965 = vst [vmem:[#allocation4 + $0x40] sm:$0x3] 0.0
        %5966 = vst [vmem:[#allocation4 + $0x48] sm:$0xff] 0.0
        %5967 = vst [vmem:[#allocation4 + $0x50] sm:$0xff] 0.0
        %5968 = vst [vmem:[#allocation4 + $0x58] sm:$0x3] 0.0
        %5969 = vst [vmem:[#allocation4 + $0x60] sm:$0xff] 0.0
        %5970 = vst [vmem:[#allocation4 + $0x68] sm:$0xff] 0.0
        %5971 = vst [vmem:[#allocation4 + $0x70] sm:$0x3] 0.0
        %5972 = vst [vmem:[#allocation4 + $0x78] sm:$0xff] 0.0
        %5973 = vst [vmem:[#allocation4 + $0x80] sm:$0xff] 0.0
        %5974 = vst [vmem:[#allocation4 + $0x88] sm:$0x3] 0.0
        %5975 = vst [vmem:[#allocation4 + $0x90] sm:$0xff] 0.0
        %5976 = vst [vmem:[#allocation4 + $0x98] sm:$0xff] 0.0
        %5977 = vst [vmem:[#allocation4 + $0xa0] sm:$0x3] 0.0
        %5978 = vst [vmem:[#allocation4 + $0xa8] sm:$0xff] 0.0
        %5979 = vst [vmem:[#allocation4 + $0xb0] sm:$0xff] 0.0
        %5980 = vst [vmem:[#allocation4 + $0xb8] sm:$0x3] 0.0
        %5981 = vst [vmem:[#allocation4 + $0xc0] sm:$0xff] 0.0
        %5982 = vst [vmem:[#allocation4 + $0xc8] sm:$0xff] 0.0
        %5983 = vst [vmem:[#allocation4 + $0xd0] sm:$0x3] 0.0
        %5984 = vst [vmem:[#allocation4 + $0xd8] sm:$0xff] 0.0
        %5985 = vst [vmem:[#allocation4 + $0xe0] sm:$0xff] 0.0
        %5986 = vst [vmem:[#allocation4 + $0xe8] sm:$0x3] 0.0
        %s5987 = scalar_lea.vmem [#allocation4], 24
        %5988 = vst [vmem:[%s5987 + $0x1] sm:$0xff] %v5941
        %5989 = vst [vmem:[%s5987 + $0x9] sm:$0xff] %v5942
        %5990 = vst [vmem:[%s5987 + $0x19] sm:$0xff] %v5943
        %5991 = vst [vmem:[%s5987 + $0x21] sm:$0xff] %v5944
        %5992 = vst [vmem:[%s5987 + $0x31] sm:$0xff] %v5945
        %5993 = vst [vmem:[%s5987 + $0x39] sm:$0xff] %v5946
        %5994 = vst [vmem:[%s5987 + $0x49] sm:$0xff] %v5947
        %5995 = vst [vmem:[%s5987 + $0x51] sm:$0xff] %v5948
        %5996 = vst [vmem:[%s5987 + $0x61] sm:$0xff] %v5949
        %5997 = vst [vmem:[%s5987 + $0x69] sm:$0xff] %v5950
        %5998 = vst [vmem:[%s5987 + $0x79] sm:$0xff] %v5951
        %5999 = vst [vmem:[%s5987 + $0x81] sm:$0xff] %v5952
        %6000 = vst [vmem:[%s5987 + $0x91] sm:$0xff] %v5953
        %6001 = vst [vmem:[%s5987 + $0x99] sm:$0xff] %v5954
        %6002 = vst [vmem:[%s5987 + $0xa9] sm:$0xff] %v5955
        %6003 = vst [vmem:[%s5987 + $0xb1] sm:$0xff] %v5956
        %v6004 = vld [vmem:[#allocation4] sm:$0xff]
        %v6005 = vld [vmem:[#allocation4 + $0x8] sm:$0xff]
        %v6006 = vld [vmem:[#allocation4 + $0x18] sm:$0xff]
        %v6007 = vld [vmem:[#allocation4 + $0x20] sm:$0xff]
        %v6008 = vld [vmem:[#allocation4 + $0x30] sm:$0xff]
        %v6009 = vld [vmem:[#allocation4 + $0x38] sm:$0xff]
        %v6010 = vld [vmem:[#allocation4 + $0x48] sm:$0xff]
        %v6011 = vld [vmem:[#allocation4 + $0x50] sm:$0xff]
        %v6012 = vld [vmem:[#allocation4 + $0x60] sm:$0xff]
        %v6013 = vld [vmem:[#allocation4 + $0x68] sm:$0xff]
        %v6014 = vld [vmem:[#allocation4 + $0x78] sm:$0xff]
        %v6015 = vld [vmem:[#allocation4 + $0x80] sm:$0xff]
        %v6016 = vld [vmem:[#allocation4 + $0x90] sm:$0xff]
        %v6017 = vld [vmem:[#allocation4 + $0x98] sm:$0xff]
        %v6018 = vld [vmem:[#allocation4 + $0xa8] sm:$0xff]
        %v6019 = vld [vmem:[#allocation4 + $0xb0] sm:$0xff]
        %v6020 = vpack.c.bf16 %v6005, %v6004
        %v6021 = vpack.c.bf16 %v6007, %v6006
        %v6022 = vpack.c.bf16 %v6009, %v6008
        %v6023 = vpack.c.bf16 %v6011, %v6010
        %v6024 = vpack.c.bf16 %v6013, %v6012
        %v6025 = vpack.c.bf16 %v6015, %v6014
        %v6026 = vpack.c.bf16 %v6017, %v6016
        %v6027 = vpack.c.bf16 %v6019, %v6018
        %v6036 = vunpack.c.l.b16 %v6020
        %v6037 = vunpack.c.h.b16 %v6020
        %v6038 = vunpack.c.l.b16 %v6021
        %v6039 = vunpack.c.h.b16 %v6021
        %v6040 = vunpack.c.l.b16 %v6022
        %v6041 = vunpack.c.h.b16 %v6022
        %v6042 = vunpack.c.l.b16 %v6023
        %v6043 = vunpack.c.h.b16 %v6023
        %v6044 = vunpack.c.l.b16 %v6024
        %v6045 = vunpack.c.h.b16 %v6024
        %v6046 = vunpack.c.l.b16 %v6025
        %v6047 = vunpack.c.h.b16 %v6025
        %v6048 = vunpack.c.l.b16 %v6026
        %v6049 = vunpack.c.h.b16 %v6026
        %v6050 = vunpack.c.l.b16 %v6027
        %v6051 = vunpack.c.h.b16 %v6027
        %v6052 = vpack.c.b16 %v6036, %v6036
        %v6053 = vpack.c.b16 %v6037, %v6037
        %v6054 = vpack.c.b16 %v6038, %v6038
        %v6055 = vpack.c.b16 %v6039, %v6039
        %v6056 = vpack.c.b16 %v6040, %v6040
        %v6057 = vpack.c.b16 %v6041, %v6041
        %v6058 = vpack.c.b16 %v6042, %v6042
        %v6059 = vpack.c.b16 %v6043, %v6043
        %v6060 = vpack.c.b16 %v6044, %v6044
        %v6061 = vpack.c.b16 %v6045, %v6045
        %v6062 = vpack.c.b16 %v6046, %v6046
        %v6063 = vpack.c.b16 %v6047, %v6047
        %v6064 = vpack.c.b16 %v6048, %v6048
        %v6065 = vpack.c.b16 %v6049, %v6049
        %v6066 = vpack.c.b16 %v6050, %v6050
        %v6067 = vpack.c.b16 %v6051, %v6051
        %6084 = vst [vmem:[#allocation5] sm:$0xf] %v6052
        %6085 = vst [vmem:[#allocation5 + $0x24] sm:$0xf] %v6053
        %6086 = vst [vmem:[#allocation5 + $0x48] sm:$0xf] %v6054
        %6087 = vst [vmem:[#allocation5 + $0x6c] sm:$0xf] %v6055
        %6088 = vst [vmem:[#allocation5 + $0x90] sm:$0xf] %v6056
        %6089 = vst [vmem:[#allocation5 + $0xb4] sm:$0xf] %v6057
        %6090 = vst [vmem:[#allocation5 + $0xd8] sm:$0xf] %v6058
        %6091 = vst [vmem:[#allocation5 + $0xfc] sm:$0xf] %v6059
        %6092 = vst [vmem:[#allocation5 + $0x120] sm:$0xf] %v6060
        %6093 = vst [vmem:[#allocation5 + $0x144] sm:$0xf] %v6061
        %6094 = vst [vmem:[#allocation5 + $0x168] sm:$0xf] %v6062
        %6095 = vst [vmem:[#allocation5 + $0x18c] sm:$0xf] %v6063
        %6096 = vst [vmem:[#allocation5 + $0x1b0] sm:$0xf] %v6064
        %6097 = vst [vmem:[#allocation5 + $0x1d4] sm:$0xf] %v6065
        %6098 = vst [vmem:[#allocation5 + $0x1f8] sm:$0xf] %v6066
        %6099 = vst [vmem:[#allocation5 + $0x21c] sm:$0xf] %v6067
        %v6100 = vld [vmem:[#allocation4 + $0x1] sm:$0xff]
        %v6101 = vld [vmem:[#allocation4 + $0x9] sm:$0xff]
        %v6102 = vld [vmem:[#allocation4 + $0x19] sm:$0xff]
        %v6103 = vld [vmem:[#allocation4 + $0x21] sm:$0xff]
        %v6104 = vld [vmem:[#allocation4 + $0x31] sm:$0xff]
        %v6105 = vld [vmem:[#allocation4 + $0x39] sm:$0xff]
        %v6106 = vld [vmem:[#allocation4 + $0x49] sm:$0xff]
        %v6107 = vld [vmem:[#allocation4 + $0x51] sm:$0xff]
        %v6108 = vld [vmem:[#allocation4 + $0x61] sm:$0xff]
        %v6109 = vld [vmem:[#allocation4 + $0x69] sm:$0xff]
        %v6110 = vld [vmem:[#allocation4 + $0x79] sm:$0xff]
        %v6111 = vld [vmem:[#allocation4 + $0x81] sm:$0xff]
        %v6112 = vld [vmem:[#allocation4 + $0x91] sm:$0xff]
        %v6113 = vld [vmem:[#allocation4 + $0x99] sm:$0xff]
        %v6114 = vld [vmem:[#allocation4 + $0xa9] sm:$0xff]
        %v6115 = vld [vmem:[#allocation4 + $0xb1] sm:$0xff]
        %v6116 = vpack.c.bf16 %v6101, %v6100
        %v6117 = vpack.c.bf16 %v6103, %v6102
        %v6118 = vpack.c.bf16 %v6105, %v6104
        %v6119 = vpack.c.bf16 %v6107, %v6106
        %v6120 = vpack.c.bf16 %v6109, %v6108
        %v6121 = vpack.c.bf16 %v6111, %v6110
        %v6122 = vpack.c.bf16 %v6113, %v6112
        %v6123 = vpack.c.bf16 %v6115, %v6114
        %v6132 = vunpack.c.l.b16 %v6116
        %v6133 = vunpack.c.h.b16 %v6116
        %v6134 = vunpack.c.l.b16 %v6117
        %v6135 = vunpack.c.h.b16 %v6117
        %v6136 = vunpack.c.l.b16 %v6118
        %v6137 = vunpack.c.h.b16 %v6118
        %v6138 = vunpack.c.l.b16 %v6119
        %v6139 = vunpack.c.h.b16 %v6119
        %v6140 = vunpack.c.l.b16 %v6120
        %v6141 = vunpack.c.h.b16 %v6120
        %v6142 = vunpack.c.l.b16 %v6121
        %v6143 = vunpack.c.h.b16 %v6121
        %v6144 = vunpack.c.l.b16 %v6122
        %v6145 = vunpack.c.h.b16 %v6122
        %v6146 = vunpack.c.l.b16 %v6123
        %v6147 = vunpack.c.h.b16 %v6123
        %v6148 = vpack.c.b16 %v6132, %v6132
        %v6149 = vpack.c.b16 %v6133, %v6133
        %v6150 = vpack.c.b16 %v6134, %v6134
        %v6151 = vpack.c.b16 %v6135, %v6135
        %v6152 = vpack.c.b16 %v6136, %v6136
        %v6153 = vpack.c.b16 %v6137, %v6137
        %v6154 = vpack.c.b16 %v6138, %v6138
        %v6155 = vpack.c.b16 %v6139, %v6139
        %v6156 = vpack.c.b16 %v6140, %v6140
        %v6157 = vpack.c.b16 %v6141, %v6141
        %v6158 = vpack.c.b16 %v6142, %v6142
        %v6159 = vpack.c.b16 %v6143, %v6143
        %v6160 = vpack.c.b16 %v6144, %v6144
        %v6161 = vpack.c.b16 %v6145, %v6145
        %v6162 = vpack.c.b16 %v6146, %v6146
        %v6163 = vpack.c.b16 %v6147, %v6147
        %6180 = vst [vmem:[#allocation5 + $0x4] sm:$0xf] %v6148
        %6181 = vst [vmem:[#allocation5 + $0x28] sm:$0xf] %v6149
        %6182 = vst [vmem:[#allocation5 + $0x4c] sm:$0xf] %v6150
        %6183 = vst [vmem:[#allocation5 + $0x70] sm:$0xf] %v6151
        %6184 = vst [vmem:[#allocation5 + $0x94] sm:$0xf] %v6152
        %6185 = vst [vmem:[#allocation5 + $0xb8] sm:$0xf] %v6153
        %6186 = vst [vmem:[#allocation5 + $0xdc] sm:$0xf] %v6154
        %6187 = vst [vmem:[#allocation5 + $0x100] sm:$0xf] %v6155
        %6188 = vst [vmem:[#allocation5 + $0x124] sm:$0xf] %v6156
        %6189 = vst [vmem:[#allocation5 + $0x148] sm:$0xf] %v6157
        %6190 = vst [vmem:[#allocation5 + $0x16c] sm:$0xf] %v6158
        %6191 = vst [vmem:[#allocation5 + $0x190] sm:$0xf] %v6159
        %6192 = vst [vmem:[#allocation5 + $0x1b4] sm:$0xf] %v6160
        %6193 = vst [vmem:[#allocation5 + $0x1d8] sm:$0xf] %v6161
        %6194 = vst [vmem:[#allocation5 + $0x1fc] sm:$0xf] %v6162
        %6195 = vst [vmem:[#allocation5 + $0x220] sm:$0xf] %v6163
        %v6196 = vld [vmem:[#allocation4 + $0x2] sm:$0xff]
        %v6197 = vld [vmem:[#allocation4 + $0xa] sm:$0xff]
        %v6198 = vld [vmem:[#allocation4 + $0x1a] sm:$0xff]
        %v6199 = vld [vmem:[#allocation4 + $0x22] sm:$0xff]
        %v6200 = vld [vmem:[#allocation4 + $0x32] sm:$0xff]
        %v6201 = vld [vmem:[#allocation4 + $0x3a] sm:$0xff]
        %v6202 = vld [vmem:[#allocation4 + $0x4a] sm:$0xff]
        %v6203 = vld [vmem:[#allocation4 + $0x52] sm:$0xff]
        %v6204 = vld [vmem:[#allocation4 + $0x62] sm:$0xff]
        %v6205 = vld [vmem:[#allocation4 + $0x6a] sm:$0xff]
        %v6206 = vld [vmem:[#allocation4 + $0x7a] sm:$0xff]
        %v6207 = vld [vmem:[#allocation4 + $0x82] sm:$0xff]
        %v6208 = vld [vmem:[#allocation4 + $0x92] sm:$0xff]
        %v6209 = vld [vmem:[#allocation4 + $0x9a] sm:$0xff]
        %v6210 = vld [vmem:[#allocation4 + $0xaa] sm:$0xff]
        %v6211 = vld [vmem:[#allocation4 + $0xb2] sm:$0xff]
        %v6212 = vpack.c.bf16 %v6197, %v6196
        %v6213 = vpack.c.bf16 %v6199, %v6198
        %v6214 = vpack.c.bf16 %v6201, %v6200
        %v6215 = vpack.c.bf16 %v6203, %v6202
        %v6216 = vpack.c.bf16 %v6205, %v6204
        %v6217 = vpack.c.bf16 %v6207, %v6206
        %v6218 = vpack.c.bf16 %v6209, %v6208
        %v6219 = vpack.c.bf16 %v6211, %v6210
        %v6228 = vunpack.c.l.b16 %v6212
        %v6229 = vunpack.c.h.b16 %v6212
        %v6230 = vunpack.c.l.b16 %v6213
        %v6231 = vunpack.c.h.b16 %v6213
        %v6232 = vunpack.c.l.b16 %v6214
        %v6233 = vunpack.c.h.b16 %v6214
        %v6234 = vunpack.c.l.b16 %v6215
        %v6235 = vunpack.c.h.b16 %v6215
        %v6236 = vunpack.c.l.b16 %v6216
        %v6237 = vunpack.c.h.b16 %v6216
        %v6238 = vunpack.c.l.b16 %v6217
        %v6239 = vunpack.c.h.b16 %v6217
        %v6240 = vunpack.c.l.b16 %v6218
        %v6241 = vunpack.c.h.b16 %v6218
        %v6242 = vunpack.c.l.b16 %v6219
        %v6243 = vunpack.c.h.b16 %v6219
        %v6244 = vpack.c.b16 %v6228, %v6228
        %v6245 = vpack.c.b16 %v6229, %v6229
        %v6246 = vpack.c.b16 %v6230, %v6230
        %v6247 = vpack.c.b16 %v6231, %v6231
        %v6248 = vpack.c.b16 %v6232, %v6232
        %v6249 = vpack.c.b16 %v6233, %v6233
        %v6250 = vpack.c.b16 %v6234, %v6234
        %v6251 = vpack.c.b16 %v6235, %v6235
        %v6252 = vpack.c.b16 %v6236, %v6236
        %v6253 = vpack.c.b16 %v6237, %v6237
        %v6254 = vpack.c.b16 %v6238, %v6238
        %v6255 = vpack.c.b16 %v6239, %v6239
        %v6256 = vpack.c.b16 %v6240, %v6240
        %v6257 = vpack.c.b16 %v6241, %v6241
        %v6258 = vpack.c.b16 %v6242, %v6242
        %v6259 = vpack.c.b16 %v6243, %v6243
        %6276 = vst [vmem:[#allocation5 + $0x8] sm:$0xf] %v6244
        %6277 = vst [vmem:[#allocation5 + $0x2c] sm:$0xf] %v6245
        %6278 = vst [vmem:[#allocation5 + $0x50] sm:$0xf] %v6246
        %6279 = vst [vmem:[#allocation5 + $0x74] sm:$0xf] %v6247
        %6280 = vst [vmem:[#allocation5 + $0x98] sm:$0xf] %v6248
        %6281 = vst [vmem:[#allocation5 + $0xbc] sm:$0xf] %v6249
        %6282 = vst [vmem:[#allocation5 + $0xe0] sm:$0xf] %v6250
        %6283 = vst [vmem:[#allocation5 + $0x104] sm:$0xf] %v6251
        %6284 = vst [vmem:[#allocation5 + $0x128] sm:$0xf] %v6252
        %6285 = vst [vmem:[#allocation5 + $0x14c] sm:$0xf] %v6253
        %6286 = vst [vmem:[#allocation5 + $0x170] sm:$0xf] %v6254
        %6287 = vst [vmem:[#allocation5 + $0x194] sm:$0xf] %v6255
        %6288 = vst [vmem:[#allocation5 + $0x1b8] sm:$0xf] %v6256
        %6289 = vst [vmem:[#allocation5 + $0x1dc] sm:$0xf] %v6257
        %6290 = vst [vmem:[#allocation5 + $0x200] sm:$0xf] %v6258
        %6291 = vst [vmem:[#allocation5 + $0x224] sm:$0xf] %v6259
        %v6292 = vld [vmem:[%s5987] sm:$0xff]
        %v6293 = vld [vmem:[%s5987 + $0x8] sm:$0xff]
        %v6294 = vld [vmem:[%s5987 + $0x18] sm:$0xff]
        %v6295 = vld [vmem:[%s5987 + $0x20] sm:$0xff]
        %v6296 = vld [vmem:[%s5987 + $0x30] sm:$0xff]
        %v6297 = vld [vmem:[%s5987 + $0x38] sm:$0xff]
        %v6298 = vld [vmem:[%s5987 + $0x48] sm:$0xff]
        %v6299 = vld [vmem:[%s5987 + $0x50] sm:$0xff]
        %v6300 = vld [vmem:[%s5987 + $0x60] sm:$0xff]
        %v6301 = vld [vmem:[%s5987 + $0x68] sm:$0xff]
        %v6302 = vld [vmem:[%s5987 + $0x78] sm:$0xff]
        %v6303 = vld [vmem:[%s5987 + $0x80] sm:$0xff]
        %v6304 = vld [vmem:[%s5987 + $0x90] sm:$0xff]
        %v6305 = vld [vmem:[%s5987 + $0x98] sm:$0xff]
        %v6306 = vld [vmem:[%s5987 + $0xa8] sm:$0xff]
        %v6307 = vld [vmem:[%s5987 + $0xb0] sm:$0xff]
        %v6308 = vpack.c.bf16 %v6293, %v6292
        %v6309 = vpack.c.bf16 %v6295, %v6294
        %v6310 = vpack.c.bf16 %v6297, %v6296
        %v6311 = vpack.c.bf16 %v6299, %v6298
        %v6312 = vpack.c.bf16 %v6301, %v6300
        %v6313 = vpack.c.bf16 %v6303, %v6302
        %v6314 = vpack.c.bf16 %v6305, %v6304
        %v6315 = vpack.c.bf16 %v6307, %v6306
        %v6324 = vunpack.c.l.b16 %v6308
        %v6325 = vunpack.c.h.b16 %v6308
        %v6326 = vunpack.c.l.b16 %v6309
        %v6327 = vunpack.c.h.b16 %v6309
        %v6328 = vunpack.c.l.b16 %v6310
        %v6329 = vunpack.c.h.b16 %v6310
        %v6330 = vunpack.c.l.b16 %v6311
        %v6331 = vunpack.c.h.b16 %v6311
        %v6332 = vunpack.c.l.b16 %v6312
        %v6333 = vunpack.c.h.b16 %v6312
        %v6334 = vunpack.c.l.b16 %v6313
        %v6335 = vunpack.c.h.b16 %v6313
        %v6336 = vunpack.c.l.b16 %v6314
        %v6337 = vunpack.c.h.b16 %v6314
        %v6338 = vunpack.c.l.b16 %v6315
        %v6339 = vunpack.c.h.b16 %v6315
        %v6340 = vpack.c.b16 %v6324, %v6324
        %v6341 = vpack.c.b16 %v6325, %v6325
        %v6342 = vpack.c.b16 %v6326, %v6326
        %v6343 = vpack.c.b16 %v6327, %v6327
        %v6344 = vpack.c.b16 %v6328, %v6328
        %v6345 = vpack.c.b16 %v6329, %v6329
        %v6346 = vpack.c.b16 %v6330, %v6330
        %v6347 = vpack.c.b16 %v6331, %v6331
        %v6348 = vpack.c.b16 %v6332, %v6332
        %v6349 = vpack.c.b16 %v6333, %v6333
        %v6350 = vpack.c.b16 %v6334, %v6334
        %v6351 = vpack.c.b16 %v6335, %v6335
        %v6352 = vpack.c.b16 %v6336, %v6336
        %v6353 = vpack.c.b16 %v6337, %v6337
        %v6354 = vpack.c.b16 %v6338, %v6338
        %v6355 = vpack.c.b16 %v6339, %v6339
        %6372 = vst [vmem:[#allocation5 + $0xc] sm:$0xf] %v6340
        %6373 = vst [vmem:[#allocation5 + $0x30] sm:$0xf] %v6341
        %6374 = vst [vmem:[#allocation5 + $0x54] sm:$0xf] %v6342
        %6375 = vst [vmem:[#allocation5 + $0x78] sm:$0xf] %v6343
        %6376 = vst [vmem:[#allocation5 + $0x9c] sm:$0xf] %v6344
        %6377 = vst [vmem:[#allocation5 + $0xc0] sm:$0xf] %v6345
        %6378 = vst [vmem:[#allocation5 + $0xe4] sm:$0xf] %v6346
        %6379 = vst [vmem:[#allocation5 + $0x108] sm:$0xf] %v6347
        %6380 = vst [vmem:[#allocation5 + $0x12c] sm:$0xf] %v6348
        %6381 = vst [vmem:[#allocation5 + $0x150] sm:$0xf] %v6349
        %6382 = vst [vmem:[#allocation5 + $0x174] sm:$0xf] %v6350
        %6383 = vst [vmem:[#allocation5 + $0x198] sm:$0xf] %v6351
        %6384 = vst [vmem:[#allocation5 + $0x1bc] sm:$0xf] %v6352
        %6385 = vst [vmem:[#allocation5 + $0x1e0] sm:$0xf] %v6353
        %6386 = vst [vmem:[#allocation5 + $0x204] sm:$0xf] %v6354
        %6387 = vst [vmem:[#allocation5 + $0x228] sm:$0xf] %v6355
        %v6388 = vld [vmem:[%s5987 + $0x1] sm:$0xff]
        %v6389 = vld [vmem:[%s5987 + $0x9] sm:$0xff]
        %v6390 = vld [vmem:[%s5987 + $0x19] sm:$0xff]
        %v6391 = vld [vmem:[%s5987 + $0x21] sm:$0xff]
        %v6392 = vld [vmem:[%s5987 + $0x31] sm:$0xff]
        %v6393 = vld [vmem:[%s5987 + $0x39] sm:$0xff]
        %v6394 = vld [vmem:[%s5987 + $0x49] sm:$0xff]
        %v6395 = vld [vmem:[%s5987 + $0x51] sm:$0xff]
        %v6396 = vld [vmem:[%s5987 + $0x61] sm:$0xff]
        %v6397 = vld [vmem:[%s5987 + $0x69] sm:$0xff]
        %v6398 = vld [vmem:[%s5987 + $0x79] sm:$0xff]
        %v6399 = vld [vmem:[%s5987 + $0x81] sm:$0xff]
        %v6400 = vld [vmem:[%s5987 + $0x91] sm:$0xff]
        %v6401 = vld [vmem:[%s5987 + $0x99] sm:$0xff]
        %v6402 = vld [vmem:[%s5987 + $0xa9] sm:$0xff]
        %v6403 = vld [vmem:[%s5987 + $0xb1] sm:$0xff]
        %v6404 = vpack.c.bf16 %v6389, %v6388
        %v6405 = vpack.c.bf16 %v6391, %v6390
        %v6406 = vpack.c.bf16 %v6393, %v6392
        %v6407 = vpack.c.bf16 %v6395, %v6394
        %v6408 = vpack.c.bf16 %v6397, %v6396
        %v6409 = vpack.c.bf16 %v6399, %v6398
        %v6410 = vpack.c.bf16 %v6401, %v6400
        %v6411 = vpack.c.bf16 %v6403, %v6402
        %v6420 = vunpack.c.l.b16 %v6404
        %v6421 = vunpack.c.h.b16 %v6404
        %v6422 = vunpack.c.l.b16 %v6405
        %v6423 = vunpack.c.h.b16 %v6405
        %v6424 = vunpack.c.l.b16 %v6406
        %v6425 = vunpack.c.h.b16 %v6406
        %v6426 = vunpack.c.l.b16 %v6407
        %v6427 = vunpack.c.h.b16 %v6407
        %v6428 = vunpack.c.l.b16 %v6408
        %v6429 = vunpack.c.h.b16 %v6408
        %v6430 = vunpack.c.l.b16 %v6409
        %v6431 = vunpack.c.h.b16 %v6409
        %v6432 = vunpack.c.l.b16 %v6410
        %v6433 = vunpack.c.h.b16 %v6410
        %v6434 = vunpack.c.l.b16 %v6411
        %v6435 = vunpack.c.h.b16 %v6411
        %v6436 = vpack.c.b16 %v6420, %v6420
        %v6437 = vpack.c.b16 %v6421, %v6421
        %v6438 = vpack.c.b16 %v6422, %v6422
        %v6439 = vpack.c.b16 %v6423, %v6423
        %v6440 = vpack.c.b16 %v6424, %v6424
        %v6441 = vpack.c.b16 %v6425, %v6425
        %v6442 = vpack.c.b16 %v6426, %v6426
        %v6443 = vpack.c.b16 %v6427, %v6427
        %v6444 = vpack.c.b16 %v6428, %v6428
        %v6445 = vpack.c.b16 %v6429, %v6429
        %v6446 = vpack.c.b16 %v6430, %v6430
        %v6447 = vpack.c.b16 %v6431, %v6431
        %v6448 = vpack.c.b16 %v6432, %v6432
        %v6449 = vpack.c.b16 %v6433, %v6433
        %v6450 = vpack.c.b16 %v6434, %v6434
        %v6451 = vpack.c.b16 %v6435, %v6435
        %6468 = vst [vmem:[#allocation5 + $0x10] sm:$0xf] %v6436
        %6469 = vst [vmem:[#allocation5 + $0x34] sm:$0xf] %v6437
        %6470 = vst [vmem:[#allocation5 + $0x58] sm:$0xf] %v6438
        %6471 = vst [vmem:[#allocation5 + $0x7c] sm:$0xf] %v6439
        %6472 = vst [vmem:[#allocation5 + $0xa0] sm:$0xf] %v6440
        %6473 = vst [vmem:[#allocation5 + $0xc4] sm:$0xf] %v6441
        %6474 = vst [vmem:[#allocation5 + $0xe8] sm:$0xf] %v6442
        %6475 = vst [vmem:[#allocation5 + $0x10c] sm:$0xf] %v6443
        %6476 = vst [vmem:[#allocation5 + $0x130] sm:$0xf] %v6444
        %6477 = vst [vmem:[#allocation5 + $0x154] sm:$0xf] %v6445
        %6478 = vst [vmem:[#allocation5 + $0x178] sm:$0xf] %v6446
        %6479 = vst [vmem:[#allocation5 + $0x19c] sm:$0xf] %v6447
        %6480 = vst [vmem:[#allocation5 + $0x1c0] sm:$0xf] %v6448
        %6481 = vst [vmem:[#allocation5 + $0x1e4] sm:$0xf] %v6449
        %6482 = vst [vmem:[#allocation5 + $0x208] sm:$0xf] %v6450
        %6483 = vst [vmem:[#allocation5 + $0x22c] sm:$0xf] %v6451
        %v6484 = vld [vmem:[%s5987 + $0x2] sm:$0xff]
        %v6485 = vld [vmem:[%s5987 + $0xa] sm:$0xff]
        %v6486 = vld [vmem:[%s5987 + $0x1a] sm:$0xff]
        %v6487 = vld [vmem:[%s5987 + $0x22] sm:$0xff]
        %v6488 = vld [vmem:[%s5987 + $0x32] sm:$0xff]
        %v6489 = vld [vmem:[%s5987 + $0x3a] sm:$0xff]
        %v6490 = vld [vmem:[%s5987 + $0x4a] sm:$0xff]
        %v6491 = vld [vmem:[%s5987 + $0x52] sm:$0xff]
        %v6492 = vld [vmem:[%s5987 + $0x62] sm:$0xff]
        %v6493 = vld [vmem:[%s5987 + $0x6a] sm:$0xff]
        %v6494 = vld [vmem:[%s5987 + $0x7a] sm:$0xff]
        %v6495 = vld [vmem:[%s5987 + $0x82] sm:$0xff]
        %v6496 = vld [vmem:[%s5987 + $0x92] sm:$0xff]
        %v6497 = vld [vmem:[%s5987 + $0x9a] sm:$0xff]
        %v6498 = vld [vmem:[%s5987 + $0xaa] sm:$0xff]
        %v6499 = vld [vmem:[%s5987 + $0xb2] sm:$0xff]
        %v6500 = vpack.c.bf16 %v6485, %v6484
        %v6501 = vpack.c.bf16 %v6487, %v6486
        %v6502 = vpack.c.bf16 %v6489, %v6488
        %v6503 = vpack.c.bf16 %v6491, %v6490
        %v6504 = vpack.c.bf16 %v6493, %v6492
        %v6505 = vpack.c.bf16 %v6495, %v6494
        %v6506 = vpack.c.bf16 %v6497, %v6496
        %v6507 = vpack.c.bf16 %v6499, %v6498
        %v6516 = vunpack.c.l.b16 %v6500
        %v6517 = vunpack.c.h.b16 %v6500
        %v6518 = vunpack.c.l.b16 %v6501
        %v6519 = vunpack.c.h.b16 %v6501
        %v6520 = vunpack.c.l.b16 %v6502
        %v6521 = vunpack.c.h.b16 %v6502
        %v6522 = vunpack.c.l.b16 %v6503
        %v6523 = vunpack.c.h.b16 %v6503
        %v6524 = vunpack.c.l.b16 %v6504
        %v6525 = vunpack.c.h.b16 %v6504
        %v6526 = vunpack.c.l.b16 %v6505
        %v6527 = vunpack.c.h.b16 %v6505
        %v6528 = vunpack.c.l.b16 %v6506
        %v6529 = vunpack.c.h.b16 %v6506
        %v6530 = vunpack.c.l.b16 %v6507
        %v6531 = vunpack.c.h.b16 %v6507
        %v6532 = vpack.c.b16 %v6516, %v6516
        %v6533 = vpack.c.b16 %v6517, %v6517
        %v6534 = vpack.c.b16 %v6518, %v6518
        %v6535 = vpack.c.b16 %v6519, %v6519
        %v6536 = vpack.c.b16 %v6520, %v6520
        %v6537 = vpack.c.b16 %v6521, %v6521
        %v6538 = vpack.c.b16 %v6522, %v6522
        %v6539 = vpack.c.b16 %v6523, %v6523
        %v6540 = vpack.c.b16 %v6524, %v6524
        %v6541 = vpack.c.b16 %v6525, %v6525
        %v6542 = vpack.c.b16 %v6526, %v6526
        %v6543 = vpack.c.b16 %v6527, %v6527
        %v6544 = vpack.c.b16 %v6528, %v6528
        %v6545 = vpack.c.b16 %v6529, %v6529
        %v6546 = vpack.c.b16 %v6530, %v6530
        %v6547 = vpack.c.b16 %v6531, %v6531
        %6564 = vst [vmem:[#allocation5 + $0x14] sm:$0xf] %v6532
        %6565 = vst [vmem:[#allocation5 + $0x38] sm:$0xf] %v6533
        %6566 = vst [vmem:[#allocation5 + $0x5c] sm:$0xf] %v6534
        %6567 = vst [vmem:[#allocation5 + $0x80] sm:$0xf] %v6535
        %6568 = vst [vmem:[#allocation5 + $0xa4] sm:$0xf] %v6536
        %6569 = vst [vmem:[#allocation5 + $0xc8] sm:$0xf] %v6537
        %6570 = vst [vmem:[#allocation5 + $0xec] sm:$0xf] %v6538
        %6571 = vst [vmem:[#allocation5 + $0x110] sm:$0xf] %v6539
        %6572 = vst [vmem:[#allocation5 + $0x134] sm:$0xf] %v6540
        %6573 = vst [vmem:[#allocation5 + $0x158] sm:$0xf] %v6541
        %6574 = vst [vmem:[#allocation5 + $0x17c] sm:$0xf] %v6542
        %6575 = vst [vmem:[#allocation5 + $0x1a0] sm:$0xf] %v6543
        %6576 = vst [vmem:[#allocation5 + $0x1c4] sm:$0xf] %v6544
        %6577 = vst [vmem:[#allocation5 + $0x1e8] sm:$0xf] %v6545
        %6578 = vst [vmem:[#allocation5 + $0x20c] sm:$0xf] %v6546
        %6579 = vst [vmem:[#allocation5 + $0x230] sm:$0xf] %v6547
        %s6580 = scalar_lea.vmem [#allocation4], 48
        %v6581 = vld [vmem:[%s6580] sm:$0xff]
        %v6582 = vld [vmem:[%s6580 + $0x8] sm:$0xff]
        %v6583 = vld [vmem:[%s6580 + $0x18] sm:$0xff]
        %v6584 = vld [vmem:[%s6580 + $0x20] sm:$0xff]
        %v6585 = vld [vmem:[%s6580 + $0x30] sm:$0xff]
        %v6586 = vld [vmem:[%s6580 + $0x38] sm:$0xff]
        %v6587 = vld [vmem:[%s6580 + $0x48] sm:$0xff]
        %v6588 = vld [vmem:[%s6580 + $0x50] sm:$0xff]
        %v6589 = vld [vmem:[%s6580 + $0x60] sm:$0xff]
        %v6590 = vld [vmem:[%s6580 + $0x68] sm:$0xff]
        %v6591 = vld [vmem:[%s6580 + $0x78] sm:$0xff]
        %v6592 = vld [vmem:[%s6580 + $0x80] sm:$0xff]
        %v6593 = vld [vmem:[%s6580 + $0x90] sm:$0xff]
        %v6594 = vld [vmem:[%s6580 + $0x98] sm:$0xff]
        %v6595 = vld [vmem:[%s6580 + $0xa8] sm:$0xff]
        %v6596 = vld [vmem:[%s6580 + $0xb0] sm:$0xff]
        %v6597 = vpack.c.bf16 %v6582, %v6581
        %v6598 = vpack.c.bf16 %v6584, %v6583
        %v6599 = vpack.c.bf16 %v6586, %v6585
        %v6600 = vpack.c.bf16 %v6588, %v6587
        %v6601 = vpack.c.bf16 %v6590, %v6589
        %v6602 = vpack.c.bf16 %v6592, %v6591
        %v6603 = vpack.c.bf16 %v6594, %v6593
        %v6604 = vpack.c.bf16 %v6596, %v6595
        %v6613 = vunpack.c.l.b16 %v6597
        %v6614 = vunpack.c.h.b16 %v6597
        %v6615 = vunpack.c.l.b16 %v6598
        %v6616 = vunpack.c.h.b16 %v6598
        %v6617 = vunpack.c.l.b16 %v6599
        %v6618 = vunpack.c.h.b16 %v6599
        %v6619 = vunpack.c.l.b16 %v6600
        %v6620 = vunpack.c.h.b16 %v6600
        %v6621 = vunpack.c.l.b16 %v6601
        %v6622 = vunpack.c.h.b16 %v6601
        %v6623 = vunpack.c.l.b16 %v6602
        %v6624 = vunpack.c.h.b16 %v6602
        %v6625 = vunpack.c.l.b16 %v6603
        %v6626 = vunpack.c.h.b16 %v6603
        %v6627 = vunpack.c.l.b16 %v6604
        %v6628 = vunpack.c.h.b16 %v6604
        %v6629 = vpack.c.b16 %v6613, %v6613
        %v6630 = vpack.c.b16 %v6614, %v6614
        %v6631 = vpack.c.b16 %v6615, %v6615
        %v6632 = vpack.c.b16 %v6616, %v6616
        %v6633 = vpack.c.b16 %v6617, %v6617
        %v6634 = vpack.c.b16 %v6618, %v6618
        %v6635 = vpack.c.b16 %v6619, %v6619
        %v6636 = vpack.c.b16 %v6620, %v6620
        %v6637 = vpack.c.b16 %v6621, %v6621
        %v6638 = vpack.c.b16 %v6622, %v6622
        %v6639 = vpack.c.b16 %v6623, %v6623
        %v6640 = vpack.c.b16 %v6624, %v6624
        %v6641 = vpack.c.b16 %v6625, %v6625
        %v6642 = vpack.c.b16 %v6626, %v6626
        %v6643 = vpack.c.b16 %v6627, %v6627
        %v6644 = vpack.c.b16 %v6628, %v6628
        %6661 = vst [vmem:[#allocation5 + $0x18] sm:$0xf] %v6629
        %6662 = vst [vmem:[#allocation5 + $0x3c] sm:$0xf] %v6630
        %6663 = vst [vmem:[#allocation5 + $0x60] sm:$0xf] %v6631
        %6664 = vst [vmem:[#allocation5 + $0x84] sm:$0xf] %v6632
        %6665 = vst [vmem:[#allocation5 + $0xa8] sm:$0xf] %v6633
        %6666 = vst [vmem:[#allocation5 + $0xcc] sm:$0xf] %v6634
        %6667 = vst [vmem:[#allocation5 + $0xf0] sm:$0xf] %v6635
        %6668 = vst [vmem:[#allocation5 + $0x114] sm:$0xf] %v6636
        %6669 = vst [vmem:[#allocation5 + $0x138] sm:$0xf] %v6637
        %6670 = vst [vmem:[#allocation5 + $0x15c] sm:$0xf] %v6638
        %6671 = vst [vmem:[#allocation5 + $0x180] sm:$0xf] %v6639
        %6672 = vst [vmem:[#allocation5 + $0x1a4] sm:$0xf] %v6640
        %6673 = vst [vmem:[#allocation5 + $0x1c8] sm:$0xf] %v6641
        %6674 = vst [vmem:[#allocation5 + $0x1ec] sm:$0xf] %v6642
        %6675 = vst [vmem:[#allocation5 + $0x210] sm:$0xf] %v6643
        %6676 = vst [vmem:[#allocation5 + $0x234] sm:$0xf] %v6644
        %v6677 = vld [vmem:[%s6580 + $0x1] sm:$0xff]
        %v6678 = vld [vmem:[%s6580 + $0x9] sm:$0xff]
        %v6679 = vld [vmem:[%s6580 + $0x19] sm:$0xff]
        %v6680 = vld [vmem:[%s6580 + $0x21] sm:$0xff]
        %v6681 = vld [vmem:[%s6580 + $0x31] sm:$0xff]
        %v6682 = vld [vmem:[%s6580 + $0x39] sm:$0xff]
        %v6683 = vld [vmem:[%s6580 + $0x49] sm:$0xff]
        %v6684 = vld [vmem:[%s6580 + $0x51] sm:$0xff]
        %v6685 = vld [vmem:[%s6580 + $0x61] sm:$0xff]
        %v6686 = vld [vmem:[%s6580 + $0x69] sm:$0xff]
        %v6687 = vld [vmem:[%s6580 + $0x79] sm:$0xff]
        %v6688 = vld [vmem:[%s6580 + $0x81] sm:$0xff]
        %v6689 = vld [vmem:[%s6580 + $0x91] sm:$0xff]
        %v6690 = vld [vmem:[%s6580 + $0x99] sm:$0xff]
        %v6691 = vld [vmem:[%s6580 + $0xa9] sm:$0xff]
        %v6692 = vld [vmem:[%s6580 + $0xb1] sm:$0xff]
        %v6693 = vpack.c.bf16 %v6678, %v6677
        %v6694 = vpack.c.bf16 %v6680, %v6679
        %v6695 = vpack.c.bf16 %v6682, %v6681
        %v6696 = vpack.c.bf16 %v6684, %v6683
        %v6697 = vpack.c.bf16 %v6686, %v6685
        %v6698 = vpack.c.bf16 %v6688, %v6687
        %v6699 = vpack.c.bf16 %v6690, %v6689
        %v6700 = vpack.c.bf16 %v6692, %v6691
        %v6709 = vunpack.c.l.b16 %v6693
        %v6710 = vunpack.c.h.b16 %v6693
        %v6711 = vunpack.c.l.b16 %v6694
        %v6712 = vunpack.c.h.b16 %v6694
        %v6713 = vunpack.c.l.b16 %v6695
        %v6714 = vunpack.c.h.b16 %v6695
        %v6715 = vunpack.c.l.b16 %v6696
        %v6716 = vunpack.c.h.b16 %v6696
        %v6717 = vunpack.c.l.b16 %v6697
        %v6718 = vunpack.c.h.b16 %v6697
        %v6719 = vunpack.c.l.b16 %v6698
        %v6720 = vunpack.c.h.b16 %v6698
        %v6721 = vunpack.c.l.b16 %v6699
        %v6722 = vunpack.c.h.b16 %v6699
        %v6723 = vunpack.c.l.b16 %v6700
        %v6724 = vunpack.c.h.b16 %v6700
        %v6725 = vpack.c.b16 %v6709, %v6709
        %v6726 = vpack.c.b16 %v6710, %v6710
        %v6727 = vpack.c.b16 %v6711, %v6711
        %v6728 = vpack.c.b16 %v6712, %v6712
        %v6729 = vpack.c.b16 %v6713, %v6713
        %v6730 = vpack.c.b16 %v6714, %v6714
        %v6731 = vpack.c.b16 %v6715, %v6715
        %v6732 = vpack.c.b16 %v6716, %v6716
        %v6733 = vpack.c.b16 %v6717, %v6717
        %v6734 = vpack.c.b16 %v6718, %v6718
        %v6735 = vpack.c.b16 %v6719, %v6719
        %v6736 = vpack.c.b16 %v6720, %v6720
        %v6737 = vpack.c.b16 %v6721, %v6721
        %v6738 = vpack.c.b16 %v6722, %v6722
        %v6739 = vpack.c.b16 %v6723, %v6723
        %v6740 = vpack.c.b16 %v6724, %v6724
        %6757 = vst [vmem:[#allocation5 + $0x1c] sm:$0xf] %v6725
        %6758 = vst [vmem:[#allocation5 + $0x40] sm:$0xf] %v6726
        %6759 = vst [vmem:[#allocation5 + $0x64] sm:$0xf] %v6727
        %6760 = vst [vmem:[#allocation5 + $0x88] sm:$0xf] %v6728
        %6761 = vst [vmem:[#allocation5 + $0xac] sm:$0xf] %v6729
        %6762 = vst [vmem:[#allocation5 + $0xd0] sm:$0xf] %v6730
        %6763 = vst [vmem:[#allocation5 + $0xf4] sm:$0xf] %v6731
        %6764 = vst [vmem:[#allocation5 + $0x118] sm:$0xf] %v6732
        %6765 = vst [vmem:[#allocation5 + $0x13c] sm:$0xf] %v6733
        %6766 = vst [vmem:[#allocation5 + $0x160] sm:$0xf] %v6734
        %6767 = vst [vmem:[#allocation5 + $0x184] sm:$0xf] %v6735
        %6768 = vst [vmem:[#allocation5 + $0x1a8] sm:$0xf] %v6736
        %6769 = vst [vmem:[#allocation5 + $0x1cc] sm:$0xf] %v6737
        %6770 = vst [vmem:[#allocation5 + $0x1f0] sm:$0xf] %v6738
        %6771 = vst [vmem:[#allocation5 + $0x214] sm:$0xf] %v6739
        %6772 = vst [vmem:[#allocation5 + $0x238] sm:$0xf] %v6740
        %v6773 = vld [vmem:[%s6580 + $0x2] sm:$0xff]
        %v6774 = vld [vmem:[%s6580 + $0xa] sm:$0xff]
        %v6775 = vld [vmem:[%s6580 + $0x1a] sm:$0xff]
        %v6776 = vld [vmem:[%s6580 + $0x22] sm:$0xff]
        %v6777 = vld [vmem:[%s6580 + $0x32] sm:$0xff]
        %v6778 = vld [vmem:[%s6580 + $0x3a] sm:$0xff]
        %v6779 = vld [vmem:[%s6580 + $0x4a] sm:$0xff]
        %v6780 = vld [vmem:[%s6580 + $0x52] sm:$0xff]
        %v6781 = vld [vmem:[%s6580 + $0x62] sm:$0xff]
        %v6782 = vld [vmem:[%s6580 + $0x6a] sm:$0xff]
        %v6783 = vld [vmem:[%s6580 + $0x7a] sm:$0xff]
        %v6784 = vld [vmem:[%s6580 + $0x82] sm:$0xff]
        %v6785 = vld [vmem:[%s6580 + $0x92] sm:$0xff]
        %v6786 = vld [vmem:[%s6580 + $0x9a] sm:$0xff]
        %v6787 = vld [vmem:[%s6580 + $0xaa] sm:$0xff]
        %v6788 = vld [vmem:[%s6580 + $0xb2] sm:$0xff]
        %v6789 = vpack.c.bf16 %v6774, %v6773
        %v6790 = vpack.c.bf16 %v6776, %v6775
        %v6791 = vpack.c.bf16 %v6778, %v6777
        %v6792 = vpack.c.bf16 %v6780, %v6779
        %v6793 = vpack.c.bf16 %v6782, %v6781
        %v6794 = vpack.c.bf16 %v6784, %v6783
        %v6795 = vpack.c.bf16 %v6786, %v6785
        %v6796 = vpack.c.bf16 %v6788, %v6787
        %v6805 = vunpack.c.l.b16 %v6789
        %v6806 = vunpack.c.h.b16 %v6789
        %v6807 = vunpack.c.l.b16 %v6790
        %v6808 = vunpack.c.h.b16 %v6790
        %v6809 = vunpack.c.l.b16 %v6791
        %v6810 = vunpack.c.h.b16 %v6791
        %v6811 = vunpack.c.l.b16 %v6792
        %v6812 = vunpack.c.h.b16 %v6792
        %v6813 = vunpack.c.l.b16 %v6793
        %v6814 = vunpack.c.h.b16 %v6793
        %v6815 = vunpack.c.l.b16 %v6794
        %v6816 = vunpack.c.h.b16 %v6794
        %v6817 = vunpack.c.l.b16 %v6795
        %v6818 = vunpack.c.h.b16 %v6795
        %v6819 = vunpack.c.l.b16 %v6796
        %v6820 = vunpack.c.h.b16 %v6796
        %v6821 = vpack.c.b16 %v6805, %v6805
        %v6822 = vpack.c.b16 %v6806, %v6806
        %v6823 = vpack.c.b16 %v6807, %v6807
        %v6824 = vpack.c.b16 %v6808, %v6808
        %v6825 = vpack.c.b16 %v6809, %v6809
        %v6826 = vpack.c.b16 %v6810, %v6810
        %v6827 = vpack.c.b16 %v6811, %v6811
        %v6828 = vpack.c.b16 %v6812, %v6812
        %v6829 = vpack.c.b16 %v6813, %v6813
        %v6830 = vpack.c.b16 %v6814, %v6814
        %v6831 = vpack.c.b16 %v6815, %v6815
        %v6832 = vpack.c.b16 %v6816, %v6816
        %v6833 = vpack.c.b16 %v6817, %v6817
        %v6834 = vpack.c.b16 %v6818, %v6818
        %v6835 = vpack.c.b16 %v6819, %v6819
        %v6836 = vpack.c.b16 %v6820, %v6820
        %6853 = vst [vmem:[#allocation5 + $0x20] sm:$0xf] %v6821
        %6854 = vst [vmem:[#allocation5 + $0x44] sm:$0xf] %v6822
        %6855 = vst [vmem:[#allocation5 + $0x68] sm:$0xf] %v6823
        %6856 = vst [vmem:[#allocation5 + $0x8c] sm:$0xf] %v6824
        %6857 = vst [vmem:[#allocation5 + $0xb0] sm:$0xf] %v6825
        %6858 = vst [vmem:[#allocation5 + $0xd4] sm:$0xf] %v6826
        %6859 = vst [vmem:[#allocation5 + $0xf8] sm:$0xf] %v6827
        %6860 = vst [vmem:[#allocation5 + $0x11c] sm:$0xf] %v6828
        %6861 = vst [vmem:[#allocation5 + $0x140] sm:$0xf] %v6829
        %6862 = vst [vmem:[#allocation5 + $0x164] sm:$0xf] %v6830
        %6863 = vst [vmem:[#allocation5 + $0x188] sm:$0xf] %v6831
        %6864 = vst [vmem:[#allocation5 + $0x1ac] sm:$0xf] %v6832
        %6865 = vst [vmem:[#allocation5 + $0x1d0] sm:$0xf] %v6833
        %6866 = vst [vmem:[#allocation5 + $0x1f4] sm:$0xf] %v6834
        %6867 = vst [vmem:[#allocation5 + $0x218] sm:$0xf] %v6835
        %6868 = vst [vmem:[#allocation5 + $0x23c] sm:$0xf] %v6836
        %v6869 = vld [vmem:[#allocation5] sm:$0xff]
        %v6870 = vld [vmem:[#allocation5 + $0x8] sm:$0xff]
        %v6871 = vld [vmem:[#allocation5 + $0x10] sm:$0xff]
        %v6872 = vld [vmem:[#allocation5 + $0x18] sm:$0xff]
        %v6873 = vld [vmem:[#allocation5 + $0x20] sm:$0xf]
        %v6874 = vld [vmem:[#allocation5 + $0x24] sm:$0xff]
        %v6875 = vld [vmem:[#allocation5 + $0x2c] sm:$0xff]
        %v6876 = vld [vmem:[#allocation5 + $0x34] sm:$0xff]
        %v6877 = vld [vmem:[#allocation5 + $0x3c] sm:$0xff]
        %v6878 = vld [vmem:[#allocation5 + $0x44] sm:$0xf]
        %v6879 = vld [vmem:[#allocation5 + $0x48] sm:$0xff]
        %v6880 = vld [vmem:[#allocation5 + $0x50] sm:$0xff]
        %v6881 = vld [vmem:[#allocation5 + $0x58] sm:$0xff]
        %v6882 = vld [vmem:[#allocation5 + $0x60] sm:$0xff]
        %v6883 = vld [vmem:[#allocation5 + $0x68] sm:$0xf]
        %v6884 = vld [vmem:[#allocation5 + $0x6c] sm:$0xff]
        %v6885 = vld [vmem:[#allocation5 + $0x74] sm:$0xff]
        %v6886 = vld [vmem:[#allocation5 + $0x7c] sm:$0xff]
        %v6887 = vld [vmem:[#allocation5 + $0x84] sm:$0xff]
        %v6888 = vld [vmem:[#allocation5 + $0x8c] sm:$0xf]
        %v6889 = vld [vmem:[#allocation5 + $0x90] sm:$0xff]
        %v6890 = vld [vmem:[#allocation5 + $0x98] sm:$0xff]
        %v6891 = vld [vmem:[#allocation5 + $0xa0] sm:$0xff]
        %v6892 = vld [vmem:[#allocation5 + $0xa8] sm:$0xff]
        %v6893 = vld [vmem:[#allocation5 + $0xb0] sm:$0xf]
        %v6894 = vld [vmem:[#allocation5 + $0xb4] sm:$0xff]
        %v6895 = vld [vmem:[#allocation5 + $0xbc] sm:$0xff]
        %v6896 = vld [vmem:[#allocation5 + $0xc4] sm:$0xff]
        %v6897 = vld [vmem:[#allocation5 + $0xcc] sm:$0xff]
        %v6898 = vld [vmem:[#allocation5 + $0xd4] sm:$0xf]
        %v6899 = vld [vmem:[#allocation5 + $0xd8] sm:$0xff]
        %v6900 = vld [vmem:[#allocation5 + $0xe0] sm:$0xff]
        %v6901 = vld [vmem:[#allocation5 + $0xe8] sm:$0xff]
        %v6902 = vld [vmem:[#allocation5 + $0xf0] sm:$0xff]
        %v6903 = vld [vmem:[#allocation5 + $0xf8] sm:$0xf]
        %v6904 = vld [vmem:[#allocation5 + $0xfc] sm:$0xff]
        %v6905 = vld [vmem:[#allocation5 + $0x104] sm:$0xff]
        %v6906 = vld [vmem:[#allocation5 + $0x10c] sm:$0xff]
        %v6907 = vld [vmem:[#allocation5 + $0x114] sm:$0xff]
        %v6908 = vld [vmem:[#allocation5 + $0x11c] sm:$0xf]
        %v6909 = vld [vmem:[#allocation5 + $0x120] sm:$0xff]
        %v6910 = vld [vmem:[#allocation5 + $0x128] sm:$0xff]
        %v6911 = vld [vmem:[#allocation5 + $0x130] sm:$0xff]
        %v6912 = vld [vmem:[#allocation5 + $0x138] sm:$0xff]
        %v6913 = vld [vmem:[#allocation5 + $0x140] sm:$0xf]
        %v6914 = vld [vmem:[#allocation5 + $0x144] sm:$0xff]
        %v6915 = vld [vmem:[#allocation5 + $0x14c] sm:$0xff]
        %v6916 = vld [vmem:[#allocation5 + $0x154] sm:$0xff]
        %v6917 = vld [vmem:[#allocation5 + $0x15c] sm:$0xff]
        %v6918 = vld [vmem:[#allocation5 + $0x164] sm:$0xf]
        %v6919 = vld [vmem:[#allocation5 + $0x168] sm:$0xff]
        %v6920 = vld [vmem:[#allocation5 + $0x170] sm:$0xff]
        %v6921 = vld [vmem:[#allocation5 + $0x178] sm:$0xff]
        %v6922 = vld [vmem:[#allocation5 + $0x180] sm:$0xff]
        %v6923 = vld [vmem:[#allocation5 + $0x188] sm:$0xf]
        %v6924 = vld [vmem:[#allocation5 + $0x18c] sm:$0xff]
        %v6925 = vld [vmem:[#allocation5 + $0x194] sm:$0xff]
        %v6926 = vld [vmem:[#allocation5 + $0x19c] sm:$0xff]
        %v6927 = vld [vmem:[#allocation5 + $0x1a4] sm:$0xff]
        %v6928 = vld [vmem:[#allocation5 + $0x1ac] sm:$0xf]
        %v6929 = vld [vmem:[#allocation5 + $0x1b0] sm:$0xff]
        %v6930 = vld [vmem:[#allocation5 + $0x1b8] sm:$0xff]
        %v6931 = vld [vmem:[#allocation5 + $0x1c0] sm:$0xff]
        %v6932 = vld [vmem:[#allocation5 + $0x1c8] sm:$0xff]
        %v6933 = vld [vmem:[#allocation5 + $0x1d0] sm:$0xf]
        %v6934 = vld [vmem:[#allocation5 + $0x1d4] sm:$0xff]
        %v6935 = vld [vmem:[#allocation5 + $0x1dc] sm:$0xff]
        %v6936 = vld [vmem:[#allocation5 + $0x1e4] sm:$0xff]
        %v6937 = vld [vmem:[#allocation5 + $0x1ec] sm:$0xff]
        %v6938 = vld [vmem:[#allocation5 + $0x1f4] sm:$0xf]
        %v6939 = vld [vmem:[#allocation5 + $0x1f8] sm:$0xff]
        %v6940 = vld [vmem:[#allocation5 + $0x200] sm:$0xff]
        %v6941 = vld [vmem:[#allocation5 + $0x208] sm:$0xff]
        %v6942 = vld [vmem:[#allocation5 + $0x210] sm:$0xff]
        %v6943 = vld [vmem:[#allocation5 + $0x218] sm:$0xf]
        %v6944 = vld [vmem:[#allocation5 + $0x21c] sm:$0xff]
        %v6945 = vld [vmem:[#allocation5 + $0x224] sm:$0xff]
        %v6946 = vld [vmem:[#allocation5 + $0x22c] sm:$0xff]
        %v6947 = vld [vmem:[#allocation5 + $0x234] sm:$0xff]
        %v6948 = vld [vmem:[#allocation5 + $0x23c] sm:$0xf]
        %v6949 = vld [vmem:[%s3] sm:$0xf]
        %v6950 = vld [vmem:[%s3 + $0x4] sm:$0xf]
        %v6951 = vld [vmem:[%s3 + $0x8] sm:$0xf]
        %v6952 = vld [vmem:[%s3 + $0xc] sm:$0xf]
        %v6953 = vld [vmem:[%s3 + $0x10] sm:$0xf]
        %v6954 = vld [vmem:[%s3 + $0x14] sm:$0xf]
        %v6955 = vld [vmem:[%s3 + $0x18] sm:$0xf]
        %v6956 = vld [vmem:[%s3 + $0x1c] sm:$0xf]
        %v6957 = vld [vmem:[%s3 + $0x20] sm:$0xf]
        %v6958 = vld [vmem:[%s3 + $0x24] sm:$0xf]
        %v6959 = vld [vmem:[%s3 + $0x28] sm:$0xf]
        %v6960 = vld [vmem:[%s3 + $0x2c] sm:$0xf]
        %v6961 = vld [vmem:[%s3 + $0x30] sm:$0xf]
        %v6962 = vld [vmem:[%s3 + $0x34] sm:$0xf]
        %v6963 = vld [vmem:[%s3 + $0x38] sm:$0xf]
        %v6964 = vld [vmem:[%s3 + $0x3c] sm:$0xf]
        %v6965 = vld [vmem:[%s3 + $0x40] sm:$0xf]
        %v6966 = vld [vmem:[%s3 + $0x44] sm:$0xf]
        %v6967 = vld [vmem:[%s3 + $0x48] sm:$0xf]
        %v6968 = vld [vmem:[%s3 + $0x4c] sm:$0xf]
        %v6969 = vld [vmem:[%s3 + $0x50] sm:$0xf]
        %v6970 = vld [vmem:[%s3 + $0x54] sm:$0xf]
        %v6971 = vld [vmem:[%s3 + $0x58] sm:$0xf]
        %v6972 = vld [vmem:[%s3 + $0x5c] sm:$0xf]
        %v6973 = vld [vmem:[%s3 + $0x60] sm:$0xf]
        %v6974 = vld [vmem:[%s3 + $0x64] sm:$0xf]
        %v6975 = vld [vmem:[%s3 + $0x68] sm:$0xf]
        %v6976 = vld [vmem:[%s3 + $0x6c] sm:$0xf]
        %v6977 = vld [vmem:[%s3 + $0x70] sm:$0xf]
        %v6978 = vld [vmem:[%s3 + $0x74] sm:$0xf]
        %v6979 = vld [vmem:[%s3 + $0x78] sm:$0xf]
        %v6980 = vld [vmem:[%s3 + $0x7c] sm:$0xf]
        %v6981 = vld [vmem:[%s3 + $0x80] sm:$0xf]
        %v6982 = vld [vmem:[%s3 + $0x84] sm:$0xf]
        %v6983 = vld [vmem:[%s3 + $0x88] sm:$0xf]
        %v6984 = vld [vmem:[%s3 + $0x8c] sm:$0xf]
        %v6985 = vld [vmem:[%s3 + $0x90] sm:$0xf]
        %v6986 = vld [vmem:[%s3 + $0x94] sm:$0xf]
        %v6987 = vld [vmem:[%s3 + $0x98] sm:$0xf]
        %v6988 = vld [vmem:[%s3 + $0x9c] sm:$0xf]
        %v6989 = vld [vmem:[%s3 + $0xa0] sm:$0xf]
        %v6990 = vld [vmem:[%s3 + $0xa4] sm:$0xf]
        %v6991 = vld [vmem:[%s3 + $0xa8] sm:$0xf]
        %v6992 = vld [vmem:[%s3 + $0xac] sm:$0xf]
        %v6993 = vld [vmem:[%s3 + $0xb0] sm:$0xf]
        %v6994 = vld [vmem:[%s3 + $0xb4] sm:$0xf]
        %v6995 = vld [vmem:[%s3 + $0xb8] sm:$0xf]
        %v6996 = vld [vmem:[%s3 + $0xbc] sm:$0xf]
        %v6997 = vld [vmem:[%s3 + $0xc0] sm:$0xf]
        %v6998 = vld [vmem:[%s3 + $0xc4] sm:$0xf]
        %v6999 = vld [vmem:[%s3 + $0xc8] sm:$0xf]
        %v7000 = vld [vmem:[%s3 + $0xcc] sm:$0xf]
        %v7001 = vld [vmem:[%s3 + $0xd0] sm:$0xf]
        %v7002 = vld [vmem:[%s3 + $0xd4] sm:$0xf]
        %v7003 = vld [vmem:[%s3 + $0xd8] sm:$0xf]
        %v7004 = vld [vmem:[%s3 + $0xdc] sm:$0xf]
        %v7005 = vld [vmem:[%s3 + $0xe0] sm:$0xf]
        %v7006 = vld [vmem:[%s3 + $0xe4] sm:$0xf]
        %v7007 = vld [vmem:[%s3 + $0xe8] sm:$0xf]
        %v7008 = vld [vmem:[%s3 + $0xec] sm:$0xf]
        %v7009 = vld [vmem:[%s3 + $0xf0] sm:$0xf]
        %v7010 = vld [vmem:[%s3 + $0xf4] sm:$0xf]
        %v7011 = vld [vmem:[%s3 + $0xf8] sm:$0xf]
        %v7012 = vld [vmem:[%s3 + $0xfc] sm:$0xf]
        %v7013 = vld [vmem:[%s3 + $0x100] sm:$0xf]
        %v7014 = vld [vmem:[%s3 + $0x104] sm:$0xf]
        %v7015 = vld [vmem:[%s3 + $0x108] sm:$0xf]
        %v7016 = vld [vmem:[%s3 + $0x10c] sm:$0xf]
        %v7017 = vld [vmem:[%s3 + $0x110] sm:$0xf]
        %v7018 = vld [vmem:[%s3 + $0x114] sm:$0xf]
        %v7019 = vld [vmem:[%s3 + $0x118] sm:$0xf]
        %v7020 = vld [vmem:[%s3 + $0x11c] sm:$0xf]
        %v7021 = vld [vmem:[%s3 + $0x120] sm:$0xf]
        %v7022 = vld [vmem:[%s3 + $0x124] sm:$0xf]
        %v7023 = vld [vmem:[%s3 + $0x128] sm:$0xf]
        %v7024 = vld [vmem:[%s3 + $0x12c] sm:$0xf]
        %v7025 = vld [vmem:[%s3 + $0x130] sm:$0xf]
        %v7026 = vld [vmem:[%s3 + $0x134] sm:$0xf]
        %v7027 = vld [vmem:[%s3 + $0x138] sm:$0xf]
        %v7028 = vld [vmem:[%s3 + $0x13c] sm:$0xf]
        %v7029 = vld [vmem:[%s3 + $0x140] sm:$0xf]
        %v7030 = vld [vmem:[%s3 + $0x144] sm:$0xf]
        %v7031 = vld [vmem:[%s3 + $0x148] sm:$0xf]
        %v7032 = vld [vmem:[%s3 + $0x14c] sm:$0xf]
        %v7033 = vld [vmem:[%s3 + $0x150] sm:$0xf]
        %v7034 = vld [vmem:[%s3 + $0x154] sm:$0xf]
        %v7035 = vld [vmem:[%s3 + $0x158] sm:$0xf]
        %v7036 = vld [vmem:[%s3 + $0x15c] sm:$0xf]
        %v7037 = vld [vmem:[%s3 + $0x160] sm:$0xf]
        %v7038 = vld [vmem:[%s3 + $0x164] sm:$0xf]
        %v7039 = vld [vmem:[%s3 + $0x168] sm:$0xf]
        %v7040 = vld [vmem:[%s3 + $0x16c] sm:$0xf]
        %v7041 = vld [vmem:[%s3 + $0x170] sm:$0xf]
        %v7042 = vld [vmem:[%s3 + $0x174] sm:$0xf]
        %v7043 = vld [vmem:[%s3 + $0x178] sm:$0xf]
        %v7044 = vld [vmem:[%s3 + $0x17c] sm:$0xf]
        %v7045 = vld [vmem:[%s3 + $0x180] sm:$0xf]
        %v7046 = vld [vmem:[%s3 + $0x184] sm:$0xf]
        %v7047 = vld [vmem:[%s3 + $0x188] sm:$0xf]
        %v7048 = vld [vmem:[%s3 + $0x18c] sm:$0xf]
        %v7049 = vld [vmem:[%s3 + $0x190] sm:$0xf]
        %v7050 = vld [vmem:[%s3 + $0x194] sm:$0xf]
        %v7051 = vld [vmem:[%s3 + $0x198] sm:$0xf]
        %v7052 = vld [vmem:[%s3 + $0x19c] sm:$0xf]
        %v7053 = vld [vmem:[%s3 + $0x1a0] sm:$0xf]
        %v7054 = vld [vmem:[%s3 + $0x1a4] sm:$0xf]
        %v7055 = vld [vmem:[%s3 + $0x1a8] sm:$0xf]
        %v7056 = vld [vmem:[%s3 + $0x1ac] sm:$0xf]
        %v7057 = vld [vmem:[%s3 + $0x1b0] sm:$0xf]
        %v7058 = vld [vmem:[%s3 + $0x1b4] sm:$0xf]
        %v7059 = vld [vmem:[%s3 + $0x1b8] sm:$0xf]
        %v7060 = vld [vmem:[%s3 + $0x1bc] sm:$0xf]
        %v7061 = vld [vmem:[%s3 + $0x1c0] sm:$0xf]
        %v7062 = vld [vmem:[%s3 + $0x1c4] sm:$0xf]
        %v7063 = vld [vmem:[%s3 + $0x1c8] sm:$0xf]
        %v7064 = vld [vmem:[%s3 + $0x1cc] sm:$0xf]
        %v7065 = vld [vmem:[%s3 + $0x1d0] sm:$0xf]
        %v7066 = vld [vmem:[%s3 + $0x1d4] sm:$0xf]
        %v7067 = vld [vmem:[%s3 + $0x1d8] sm:$0xf]
        %v7068 = vld [vmem:[%s3 + $0x1dc] sm:$0xf]
        %v7069 = vld [vmem:[%s3 + $0x1e0] sm:$0xf]
        %v7070 = vld [vmem:[%s3 + $0x1e4] sm:$0xf]
        %v7071 = vld [vmem:[%s3 + $0x1e8] sm:$0xf]
        %v7072 = vld [vmem:[%s3 + $0x1ec] sm:$0xf]
        %v7073 = vld [vmem:[%s3 + $0x1f0] sm:$0xf]
        %v7074 = vld [vmem:[%s3 + $0x1f4] sm:$0xf]
        %v7075 = vld [vmem:[%s3 + $0x1f8] sm:$0xf]
        %v7076 = vld [vmem:[%s3 + $0x1fc] sm:$0xf]
        %v7077 = vld [vmem:[%s3 + $0x200] sm:$0xf]
        %v7078 = vld [vmem:[%s3 + $0x204] sm:$0xf]
        %v7079 = vld [vmem:[%s3 + $0x208] sm:$0xf]
        %v7080 = vld [vmem:[%s3 + $0x20c] sm:$0xf]
        %v7081 = vld [vmem:[%s3 + $0x210] sm:$0xf]
        %v7082 = vld [vmem:[%s3 + $0x214] sm:$0xf]
        %v7083 = vld [vmem:[%s3 + $0x218] sm:$0xf]
        %v7084 = vld [vmem:[%s3 + $0x21c] sm:$0xf]
        %v7085 = vld [vmem:[%s3 + $0x220] sm:$0xf]
        %v7086 = vld [vmem:[%s3 + $0x224] sm:$0xf]
        %v7087 = vld [vmem:[%s3 + $0x228] sm:$0xf]
        %v7088 = vld [vmem:[%s3 + $0x22c] sm:$0xf]
        %v7089 = vld [vmem:[%s3 + $0x230] sm:$0xf]
        %v7090 = vld [vmem:[%s3 + $0x234] sm:$0xf]
        %v7091 = vld [vmem:[%s3 + $0x238] sm:$0xf]
        %v7092 = vld [vmem:[%s3 + $0x23c] sm:$0xf]
        %v7093 = vld [vmem:[%s4] sm:$0x1]
        %v7095 = vlaneseq
        %v7096 = vshrl.u32 %v7095, 7
        %v7097 = vsub.s32 0, %v7096
        %v7098 = vrot.slane %v7093, %v7097
        %v7180 = vunpack.c.l.b16 %v6869
        %v7181 = vunpack.c.h.b16 %v6869
        %v7182 = vunpack.c.l.b16 %v6870
        %v7183 = vunpack.c.h.b16 %v6870
        %v7184 = vunpack.c.l.b16 %v6871
        %v7185 = vunpack.c.h.b16 %v6871
        %v7186 = vunpack.c.l.b16 %v6872
        %v7187 = vunpack.c.h.b16 %v6872
        %v7188 = vunpack.c.l.b16 %v6873
        %v7189 = vunpack.c.l.b16 %v6874
        %v7190 = vunpack.c.h.b16 %v6874
        %v7191 = vunpack.c.l.b16 %v6875
        %v7192 = vunpack.c.h.b16 %v6875
        %v7193 = vunpack.c.l.b16 %v6876
        %v7194 = vunpack.c.h.b16 %v6876
        %v7195 = vunpack.c.l.b16 %v6877
        %v7196 = vunpack.c.h.b16 %v6877
        %v7197 = vunpack.c.l.b16 %v6878
        %v7198 = vunpack.c.l.b16 %v6879
        %v7199 = vunpack.c.h.b16 %v6879
        %v7200 = vunpack.c.l.b16 %v6880
        %v7201 = vunpack.c.h.b16 %v6880
        %v7202 = vunpack.c.l.b16 %v6881
        %v7203 = vunpack.c.h.b16 %v6881
        %v7204 = vunpack.c.l.b16 %v6882
        %v7205 = vunpack.c.h.b16 %v6882
        %v7206 = vunpack.c.l.b16 %v6883
        %v7207 = vunpack.c.l.b16 %v6884
        %v7208 = vunpack.c.h.b16 %v6884
        %v7209 = vunpack.c.l.b16 %v6885
        %v7210 = vunpack.c.h.b16 %v6885
        %v7211 = vunpack.c.l.b16 %v6886
        %v7212 = vunpack.c.h.b16 %v6886
        %v7213 = vunpack.c.l.b16 %v6887
        %v7214 = vunpack.c.h.b16 %v6887
        %v7215 = vunpack.c.l.b16 %v6888
        %v7216 = vunpack.c.l.b16 %v6889
        %v7217 = vunpack.c.h.b16 %v6889
        %v7218 = vunpack.c.l.b16 %v6890
        %v7219 = vunpack.c.h.b16 %v6890
        %v7220 = vunpack.c.l.b16 %v6891
        %v7221 = vunpack.c.h.b16 %v6891
        %v7222 = vunpack.c.l.b16 %v6892
        %v7223 = vunpack.c.h.b16 %v6892
        %v7224 = vunpack.c.l.b16 %v6893
        %v7225 = vunpack.c.l.b16 %v6894
        %v7226 = vunpack.c.h.b16 %v6894
        %v7227 = vunpack.c.l.b16 %v6895
        %v7228 = vunpack.c.h.b16 %v6895
        %v7229 = vunpack.c.l.b16 %v6896
        %v7230 = vunpack.c.h.b16 %v6896
        %v7231 = vunpack.c.l.b16 %v6897
        %v7232 = vunpack.c.h.b16 %v6897
        %v7233 = vunpack.c.l.b16 %v6898
        %v7234 = vunpack.c.l.b16 %v6899
        %v7235 = vunpack.c.h.b16 %v6899
        %v7236 = vunpack.c.l.b16 %v6900
        %v7237 = vunpack.c.h.b16 %v6900
        %v7238 = vunpack.c.l.b16 %v6901
        %v7239 = vunpack.c.h.b16 %v6901
        %v7240 = vunpack.c.l.b16 %v6902
        %v7241 = vunpack.c.h.b16 %v6902
        %v7242 = vunpack.c.l.b16 %v6903
        %v7243 = vunpack.c.l.b16 %v6904
        %v7244 = vunpack.c.h.b16 %v6904
        %v7245 = vunpack.c.l.b16 %v6905
        %v7246 = vunpack.c.h.b16 %v6905
        %v7247 = vunpack.c.l.b16 %v6906
        %v7248 = vunpack.c.h.b16 %v6906
        %v7249 = vunpack.c.l.b16 %v6907
        %v7250 = vunpack.c.h.b16 %v6907
        %v7251 = vunpack.c.l.b16 %v6908
        %v7252 = vunpack.c.l.b16 %v6909
        %v7253 = vunpack.c.h.b16 %v6909
        %v7254 = vunpack.c.l.b16 %v6910
        %v7255 = vunpack.c.h.b16 %v6910
        %v7256 = vunpack.c.l.b16 %v6911
        %v7257 = vunpack.c.h.b16 %v6911
        %v7258 = vunpack.c.l.b16 %v6912
        %v7259 = vunpack.c.h.b16 %v6912
        %v7260 = vunpack.c.l.b16 %v6913
        %v7261 = vunpack.c.l.b16 %v6914
        %v7262 = vunpack.c.h.b16 %v6914
        %v7263 = vunpack.c.l.b16 %v6915
        %v7264 = vunpack.c.h.b16 %v6915
        %v7265 = vunpack.c.l.b16 %v6916
        %v7266 = vunpack.c.h.b16 %v6916
        %v7267 = vunpack.c.l.b16 %v6917
        %v7268 = vunpack.c.h.b16 %v6917
        %v7269 = vunpack.c.l.b16 %v6918
        %v7270 = vunpack.c.l.b16 %v6919
        %v7271 = vunpack.c.h.b16 %v6919
        %v7272 = vunpack.c.l.b16 %v6920
        %v7273 = vunpack.c.h.b16 %v6920
        %v7274 = vunpack.c.l.b16 %v6921
        %v7275 = vunpack.c.h.b16 %v6921
        %v7276 = vunpack.c.l.b16 %v6922
        %v7277 = vunpack.c.h.b16 %v6922
        %v7278 = vunpack.c.l.b16 %v6923
        %v7279 = vunpack.c.l.b16 %v6924
        %v7280 = vunpack.c.h.b16 %v6924
        %v7281 = vunpack.c.l.b16 %v6925
        %v7282 = vunpack.c.h.b16 %v6925
        %v7283 = vunpack.c.l.b16 %v6926
        %v7284 = vunpack.c.h.b16 %v6926
        %v7285 = vunpack.c.l.b16 %v6927
        %v7286 = vunpack.c.h.b16 %v6927
        %v7287 = vunpack.c.l.b16 %v6928
        %v7288 = vunpack.c.l.b16 %v6929
        %v7289 = vunpack.c.h.b16 %v6929
        %v7290 = vunpack.c.l.b16 %v6930
        %v7291 = vunpack.c.h.b16 %v6930
        %v7292 = vunpack.c.l.b16 %v6931
        %v7293 = vunpack.c.h.b16 %v6931
        %v7294 = vunpack.c.l.b16 %v6932
        %v7295 = vunpack.c.h.b16 %v6932
        %v7296 = vunpack.c.l.b16 %v6933
        %v7297 = vunpack.c.l.b16 %v6934
        %v7298 = vunpack.c.h.b16 %v6934
        %v7299 = vunpack.c.l.b16 %v6935
        %v7300 = vunpack.c.h.b16 %v6935
        %v7301 = vunpack.c.l.b16 %v6936
        %v7302 = vunpack.c.h.b16 %v6936
        %v7303 = vunpack.c.l.b16 %v6937
        %v7304 = vunpack.c.h.b16 %v6937
        %v7305 = vunpack.c.l.b16 %v6938
        %v7306 = vunpack.c.l.b16 %v6939
        %v7307 = vunpack.c.h.b16 %v6939
        %v7308 = vunpack.c.l.b16 %v6940
        %v7309 = vunpack.c.h.b16 %v6940
        %v7310 = vunpack.c.l.b16 %v6941
        %v7311 = vunpack.c.h.b16 %v6941
        %v7312 = vunpack.c.l.b16 %v6942
        %v7313 = vunpack.c.h.b16 %v6942
        %v7314 = vunpack.c.l.b16 %v6943
        %v7315 = vunpack.c.l.b16 %v6944
        %v7316 = vunpack.c.h.b16 %v6944
        %v7317 = vunpack.c.l.b16 %v6945
        %v7318 = vunpack.c.h.b16 %v6945
        %v7319 = vunpack.c.l.b16 %v6946
        %v7320 = vunpack.c.h.b16 %v6946
        %v7321 = vunpack.c.l.b16 %v6947
        %v7322 = vunpack.c.h.b16 %v6947
        %v7323 = vunpack.c.l.b16 %v6948
        %v7324 = vpack.c.b16 %v7189, %v7180
        %v7325 = vpack.c.b16 %v7190, %v7181
        %v7326 = vpack.c.b16 %v7191, %v7182
        %v7327 = vpack.c.b16 %v7192, %v7183
        %v7328 = vpack.c.b16 %v7193, %v7184
        %v7329 = vpack.c.b16 %v7194, %v7185
        %v7330 = vpack.c.b16 %v7195, %v7186
        %v7331 = vpack.c.b16 %v7196, %v7187
        %v7332 = vpack.c.b16 %v7197, %v7188
        %v7333 = vpack.c.b16 %v7207, %v7198
        %v7334 = vpack.c.b16 %v7208, %v7199
        %v7335 = vpack.c.b16 %v7209, %v7200
        %v7336 = vpack.c.b16 %v7210, %v7201
        %v7337 = vpack.c.b16 %v7211, %v7202
        %v7338 = vpack.c.b16 %v7212, %v7203
        %v7339 = vpack.c.b16 %v7213, %v7204
        %v7340 = vpack.c.b16 %v7214, %v7205
        %v7341 = vpack.c.b16 %v7215, %v7206
        %v7342 = vpack.c.b16 %v7225, %v7216
        %v7343 = vpack.c.b16 %v7226, %v7217
        %v7344 = vpack.c.b16 %v7227, %v7218
        %v7345 = vpack.c.b16 %v7228, %v7219
        %v7346 = vpack.c.b16 %v7229, %v7220
        %v7347 = vpack.c.b16 %v7230, %v7221
        %v7348 = vpack.c.b16 %v7231, %v7222
        %v7349 = vpack.c.b16 %v7232, %v7223
        %v7350 = vpack.c.b16 %v7233, %v7224
        %v7351 = vpack.c.b16 %v7243, %v7234
        %v7352 = vpack.c.b16 %v7244, %v7235
        %v7353 = vpack.c.b16 %v7245, %v7236
        %v7354 = vpack.c.b16 %v7246, %v7237
        %v7355 = vpack.c.b16 %v7247, %v7238
        %v7356 = vpack.c.b16 %v7248, %v7239
        %v7357 = vpack.c.b16 %v7249, %v7240
        %v7358 = vpack.c.b16 %v7250, %v7241
        %v7359 = vpack.c.b16 %v7251, %v7242
        %v7360 = vpack.c.b16 %v7261, %v7252
        %v7361 = vpack.c.b16 %v7262, %v7253
        %v7362 = vpack.c.b16 %v7263, %v7254
        %v7363 = vpack.c.b16 %v7264, %v7255
        %v7364 = vpack.c.b16 %v7265, %v7256
        %v7365 = vpack.c.b16 %v7266, %v7257
        %v7366 = vpack.c.b16 %v7267, %v7258
        %v7367 = vpack.c.b16 %v7268, %v7259
        %v7368 = vpack.c.b16 %v7269, %v7260
        %v7369 = vpack.c.b16 %v7279, %v7270
        %v7370 = vpack.c.b16 %v7280, %v7271
        %v7371 = vpack.c.b16 %v7281, %v7272
        %v7372 = vpack.c.b16 %v7282, %v7273
        %v7373 = vpack.c.b16 %v7283, %v7274
        %v7374 = vpack.c.b16 %v7284, %v7275
        %v7375 = vpack.c.b16 %v7285, %v7276
        %v7376 = vpack.c.b16 %v7286, %v7277
        %v7377 = vpack.c.b16 %v7287, %v7278
        %v7378 = vpack.c.b16 %v7297, %v7288
        %v7379 = vpack.c.b16 %v7298, %v7289
        %v7380 = vpack.c.b16 %v7299, %v7290
        %v7381 = vpack.c.b16 %v7300, %v7291
        %v7382 = vpack.c.b16 %v7301, %v7292
        %v7383 = vpack.c.b16 %v7302, %v7293
        %v7384 = vpack.c.b16 %v7303, %v7294
        %v7385 = vpack.c.b16 %v7304, %v7295
        %v7386 = vpack.c.b16 %v7305, %v7296
        %v7387 = vpack.c.b16 %v7315, %v7306
        %v7388 = vpack.c.b16 %v7316, %v7307
        %v7389 = vpack.c.b16 %v7317, %v7308
        %v7390 = vpack.c.b16 %v7318, %v7309
        %v7391 = vpack.c.b16 %v7319, %v7310
        %v7392 = vpack.c.b16 %v7320, %v7311
        %v7393 = vpack.c.b16 %v7321, %v7312
        %v7394 = vpack.c.b16 %v7322, %v7313
        %v7395 = vpack.c.b16 %v7323, %v7314
        %v7612 = vunpack.c.l.b16 %v6949
        %v7613 = vunpack.c.l.b16 %v6950
        %v7614 = vunpack.c.l.b16 %v6951
        %v7615 = vunpack.c.l.b16 %v6952
        %v7616 = vunpack.c.l.b16 %v6953
        %v7617 = vunpack.c.l.b16 %v6954
        %v7618 = vunpack.c.l.b16 %v6955
        %v7619 = vunpack.c.l.b16 %v6956
        %v7620 = vunpack.c.l.b16 %v6957
        %v7621 = vunpack.c.l.b16 %v6958
        %v7622 = vunpack.c.l.b16 %v6959
        %v7623 = vunpack.c.l.b16 %v6960
        %v7624 = vunpack.c.l.b16 %v6961
        %v7625 = vunpack.c.l.b16 %v6962
        %v7626 = vunpack.c.l.b16 %v6963
        %v7627 = vunpack.c.l.b16 %v6964
        %v7628 = vunpack.c.l.b16 %v6965
        %v7629 = vunpack.c.l.b16 %v6966
        %v7630 = vunpack.c.l.b16 %v6967
        %v7631 = vunpack.c.l.b16 %v6968
        %v7632 = vunpack.c.l.b16 %v6969
        %v7633 = vunpack.c.l.b16 %v6970
        %v7634 = vunpack.c.l.b16 %v6971
        %v7635 = vunpack.c.l.b16 %v6972
        %v7636 = vunpack.c.l.b16 %v6973
        %v7637 = vunpack.c.l.b16 %v6974
        %v7638 = vunpack.c.l.b16 %v6975
        %v7639 = vunpack.c.l.b16 %v6976
        %v7640 = vunpack.c.l.b16 %v6977
        %v7641 = vunpack.c.l.b16 %v6978
        %v7642 = vunpack.c.l.b16 %v6979
        %v7643 = vunpack.c.l.b16 %v6980
        %v7644 = vunpack.c.l.b16 %v6981
        %v7645 = vunpack.c.l.b16 %v6982
        %v7646 = vunpack.c.l.b16 %v6983
        %v7647 = vunpack.c.l.b16 %v6984
        %v7648 = vunpack.c.l.b16 %v6985
        %v7649 = vunpack.c.l.b16 %v6986
        %v7650 = vunpack.c.l.b16 %v6987
        %v7651 = vunpack.c.l.b16 %v6988
        %v7652 = vunpack.c.l.b16 %v6989
        %v7653 = vunpack.c.l.b16 %v6990
        %v7654 = vunpack.c.l.b16 %v6991
        %v7655 = vunpack.c.l.b16 %v6992
        %v7656 = vunpack.c.l.b16 %v6993
        %v7657 = vunpack.c.l.b16 %v6994
        %v7658 = vunpack.c.l.b16 %v6995
        %v7659 = vunpack.c.l.b16 %v6996
        %v7660 = vunpack.c.l.b16 %v6997
        %v7661 = vunpack.c.l.b16 %v6998
        %v7662 = vunpack.c.l.b16 %v6999
        %v7663 = vunpack.c.l.b16 %v7000
        %v7664 = vunpack.c.l.b16 %v7001
        %v7665 = vunpack.c.l.b16 %v7002
        %v7666 = vunpack.c.l.b16 %v7003
        %v7667 = vunpack.c.l.b16 %v7004
        %v7668 = vunpack.c.l.b16 %v7005
        %v7669 = vunpack.c.l.b16 %v7006
        %v7670 = vunpack.c.l.b16 %v7007
        %v7671 = vunpack.c.l.b16 %v7008
        %v7672 = vunpack.c.l.b16 %v7009
        %v7673 = vunpack.c.l.b16 %v7010
        %v7674 = vunpack.c.l.b16 %v7011
        %v7675 = vunpack.c.l.b16 %v7012
        %v7676 = vunpack.c.l.b16 %v7013
        %v7677 = vunpack.c.l.b16 %v7014
        %v7678 = vunpack.c.l.b16 %v7015
        %v7679 = vunpack.c.l.b16 %v7016
        %v7680 = vunpack.c.l.b16 %v7017
        %v7681 = vunpack.c.l.b16 %v7018
        %v7682 = vunpack.c.l.b16 %v7019
        %v7683 = vunpack.c.l.b16 %v7020
        %v7684 = vunpack.c.l.b16 %v7021
        %v7685 = vunpack.c.l.b16 %v7022
        %v7686 = vunpack.c.l.b16 %v7023
        %v7687 = vunpack.c.l.b16 %v7024
        %v7688 = vunpack.c.l.b16 %v7025
        %v7689 = vunpack.c.l.b16 %v7026
        %v7690 = vunpack.c.l.b16 %v7027
        %v7691 = vunpack.c.l.b16 %v7028
        %v7692 = vunpack.c.l.b16 %v7029
        %v7693 = vunpack.c.l.b16 %v7030
        %v7694 = vunpack.c.l.b16 %v7031
        %v7695 = vunpack.c.l.b16 %v7032
        %v7696 = vunpack.c.l.b16 %v7033
        %v7697 = vunpack.c.l.b16 %v7034
        %v7698 = vunpack.c.l.b16 %v7035
        %v7699 = vunpack.c.l.b16 %v7036
        %v7700 = vunpack.c.l.b16 %v7037
        %v7701 = vunpack.c.l.b16 %v7038
        %v7702 = vunpack.c.l.b16 %v7039
        %v7703 = vunpack.c.l.b16 %v7040
        %v7704 = vunpack.c.l.b16 %v7041
        %v7705 = vunpack.c.l.b16 %v7042
        %v7706 = vunpack.c.l.b16 %v7043
        %v7707 = vunpack.c.l.b16 %v7044
        %v7708 = vunpack.c.l.b16 %v7045
        %v7709 = vunpack.c.l.b16 %v7046
        %v7710 = vunpack.c.l.b16 %v7047
        %v7711 = vunpack.c.l.b16 %v7048
        %v7712 = vunpack.c.l.b16 %v7049
        %v7713 = vunpack.c.l.b16 %v7050
        %v7714 = vunpack.c.l.b16 %v7051
        %v7715 = vunpack.c.l.b16 %v7052
        %v7716 = vunpack.c.l.b16 %v7053
        %v7717 = vunpack.c.l.b16 %v7054
        %v7718 = vunpack.c.l.b16 %v7055
        %v7719 = vunpack.c.l.b16 %v7056
        %v7720 = vunpack.c.l.b16 %v7057
        %v7721 = vunpack.c.l.b16 %v7058
        %v7722 = vunpack.c.l.b16 %v7059
        %v7723 = vunpack.c.l.b16 %v7060
        %v7724 = vunpack.c.l.b16 %v7061
        %v7725 = vunpack.c.l.b16 %v7062
        %v7726 = vunpack.c.l.b16 %v7063
        %v7727 = vunpack.c.l.b16 %v7064
        %v7728 = vunpack.c.l.b16 %v7065
        %v7729 = vunpack.c.l.b16 %v7066
        %v7730 = vunpack.c.l.b16 %v7067
        %v7731 = vunpack.c.l.b16 %v7068
        %v7732 = vunpack.c.l.b16 %v7069
        %v7733 = vunpack.c.l.b16 %v7070
        %v7734 = vunpack.c.l.b16 %v7071
        %v7735 = vunpack.c.l.b16 %v7072
        %v7736 = vunpack.c.l.b16 %v7073
        %v7737 = vunpack.c.l.b16 %v7074
        %v7738 = vunpack.c.l.b16 %v7075
        %v7739 = vunpack.c.l.b16 %v7076
        %v7740 = vunpack.c.l.b16 %v7077
        %v7741 = vunpack.c.l.b16 %v7078
        %v7742 = vunpack.c.l.b16 %v7079
        %v7743 = vunpack.c.l.b16 %v7080
        %v7744 = vunpack.c.l.b16 %v7081
        %v7745 = vunpack.c.l.b16 %v7082
        %v7746 = vunpack.c.l.b16 %v7083
        %v7747 = vunpack.c.l.b16 %v7084
        %v7748 = vunpack.c.l.b16 %v7085
        %v7749 = vunpack.c.l.b16 %v7086
        %v7750 = vunpack.c.l.b16 %v7087
        %v7751 = vunpack.c.l.b16 %v7088
        %v7752 = vunpack.c.l.b16 %v7089
        %v7753 = vunpack.c.l.b16 %v7090
        %v7754 = vunpack.c.l.b16 %v7091
        %v7755 = vunpack.c.l.b16 %v7092
        %v7756 = vpack.c.b16 %v7613, %v7612
        %v7757 = vpack.c.b16 %v7615, %v7614
        %v7758 = vpack.c.b16 %v7617, %v7616
        %v7759 = vpack.c.b16 %v7619, %v7618
        %v7760 = vpack.c.b16 %v7621, %v7620
        %v7761 = vpack.c.b16 %v7623, %v7622
        %v7762 = vpack.c.b16 %v7625, %v7624
        %v7763 = vpack.c.b16 %v7627, %v7626
        %v7764 = vpack.c.b16 %v7629, %v7628
        %v7765 = vpack.c.b16 %v7631, %v7630
        %v7766 = vpack.c.b16 %v7633, %v7632
        %v7767 = vpack.c.b16 %v7635, %v7634
        %v7768 = vpack.c.b16 %v7637, %v7636
        %v7769 = vpack.c.b16 %v7639, %v7638
        %v7770 = vpack.c.b16 %v7641, %v7640
        %v7771 = vpack.c.b16 %v7643, %v7642
        %v7772 = vpack.c.b16 %v7645, %v7644
        %v7773 = vpack.c.b16 %v7647, %v7646
        %v7774 = vpack.c.b16 %v7649, %v7648
        %v7775 = vpack.c.b16 %v7651, %v7650
        %v7776 = vpack.c.b16 %v7653, %v7652
        %v7777 = vpack.c.b16 %v7655, %v7654
        %v7778 = vpack.c.b16 %v7657, %v7656
        %v7779 = vpack.c.b16 %v7659, %v7658
        %v7780 = vpack.c.b16 %v7661, %v7660
        %v7781 = vpack.c.b16 %v7663, %v7662
        %v7782 = vpack.c.b16 %v7665, %v7664
        %v7783 = vpack.c.b16 %v7667, %v7666
        %v7784 = vpack.c.b16 %v7669, %v7668
        %v7785 = vpack.c.b16 %v7671, %v7670
        %v7786 = vpack.c.b16 %v7673, %v7672
        %v7787 = vpack.c.b16 %v7675, %v7674
        %v7788 = vpack.c.b16 %v7677, %v7676
        %v7789 = vpack.c.b16 %v7679, %v7678
        %v7790 = vpack.c.b16 %v7681, %v7680
        %v7791 = vpack.c.b16 %v7683, %v7682
        %v7792 = vpack.c.b16 %v7685, %v7684
        %v7793 = vpack.c.b16 %v7687, %v7686
        %v7794 = vpack.c.b16 %v7689, %v7688
        %v7795 = vpack.c.b16 %v7691, %v7690
        %v7796 = vpack.c.b16 %v7693, %v7692
        %v7797 = vpack.c.b16 %v7695, %v7694
        %v7798 = vpack.c.b16 %v7697, %v7696
        %v7799 = vpack.c.b16 %v7699, %v7698
        %v7800 = vpack.c.b16 %v7701, %v7700
        %v7801 = vpack.c.b16 %v7703, %v7702
        %v7802 = vpack.c.b16 %v7705, %v7704
        %v7803 = vpack.c.b16 %v7707, %v7706
        %v7804 = vpack.c.b16 %v7709, %v7708
        %v7805 = vpack.c.b16 %v7711, %v7710
        %v7806 = vpack.c.b16 %v7713, %v7712
        %v7807 = vpack.c.b16 %v7715, %v7714
        %v7808 = vpack.c.b16 %v7717, %v7716
        %v7809 = vpack.c.b16 %v7719, %v7718
        %v7810 = vpack.c.b16 %v7721, %v7720
        %v7811 = vpack.c.b16 %v7723, %v7722
        %v7812 = vpack.c.b16 %v7725, %v7724
        %v7813 = vpack.c.b16 %v7727, %v7726
        %v7814 = vpack.c.b16 %v7729, %v7728
        %v7815 = vpack.c.b16 %v7731, %v7730
        %v7816 = vpack.c.b16 %v7733, %v7732
        %v7817 = vpack.c.b16 %v7735, %v7734
        %v7818 = vpack.c.b16 %v7737, %v7736
        %v7819 = vpack.c.b16 %v7739, %v7738
        %v7820 = vpack.c.b16 %v7741, %v7740
        %v7821 = vpack.c.b16 %v7743, %v7742
        %v7822 = vpack.c.b16 %v7745, %v7744
        %v7823 = vpack.c.b16 %v7747, %v7746
        %v7824 = vpack.c.b16 %v7749, %v7748
        %v7825 = vpack.c.b16 %v7751, %v7750
        %v7826 = vpack.c.b16 %v7753, %v7752
        %v7827 = vpack.c.b16 %v7755, %v7754
        %7900 = vmatprep.subr.bf16.mxu0 0
        %7901 = vmatpush1.bf16.msra.mxu0 %v7763
        %7902 = vmatprep.subr.bf16.mxu0 0
        %7903 = vmatpush1.bf16.msra.mxu0 %v7762
        %7904 = vmatprep.subr.bf16.mxu0 0
        %7905 = vmatpush1.bf16.msra.mxu0 %v7761
        %7906 = vmatprep.subr.bf16.mxu0 0
        %7907 = vmatpush1.bf16.msra.mxu0 %v7760
        %7908 = vmatprep.subr.bf16.mxu0 0
        %7909 = vmatpush1.bf16.msra.mxu0 %v7759
        %7910 = vmatprep.subr.bf16.mxu0 0
        %7911 = vmatpush1.bf16.msra.mxu0 %v7758
        %7912 = vmatprep.subr.bf16.mxu0 0
        %7913 = vmatpush1.bf16.msra.mxu0 %v7757
        %7914 = vmatprep.subr.bf16.mxu0 0
        %7915 = vmatpush1.bf16.msra.mxu0 %v7756
        %7916 = vmatprep.subr.bf16.mxu0 0
        %7917 = vmatpush2.bf16.msra.mxu0 %v7771
        %7918 = vmatprep.subr.bf16.mxu0 0
        %7919 = vmatpush2.bf16.msra.mxu0 %v7770
        %7920 = vmatprep.subr.bf16.mxu0 0
        %7921 = vmatpush2.bf16.msra.mxu0 %v7769
        %7922 = vmatprep.subr.bf16.mxu0 0
        %7923 = vmatpush2.bf16.msra.mxu0 %v7768
        %7924 = vmatprep.subr.bf16.mxu0 0
        %7925 = vmatpush2.bf16.msra.mxu0 %v7767
        %7926 = vmatprep.subr.bf16.mxu0 0
        %7927 = vmatpush2.bf16.msra.mxu0 %v7766
        %7928 = vmatprep.subr.bf16.mxu0 0
        %7929 = vmatpush2.bf16.msra.mxu0 %v7765
        %7930 = vmatprep.subr.bf16.mxu0 0
        %7931 = vmatpush2.bf16.msra.mxu0 %v7764
        %7932 = vmatprep.mubr.bf16.mxu0 %v7325
        %7933 = vmatmul.mubr.bf16.gmra.mxu0 %v7324
        %v7934 = vpop.f32.mrf.mxu0
        %v7935 = vadd.f32 %v7098, %v7934
        %v7936 = vpop.f32.mrf.mxu0
        %v7937 = vpop.f32.mrf.mxu0
        %v7938 = vadd.f32 %v7098, %v7937
        %v7939 = vpop.f32.mrf.mxu0
        %7940 = vmatprep.mubr.bf16.mxu0 %v7334
        %7941 = vmatmul.mubr.bf16.gmra.mxu0 %v7333
        %v7942 = vpop.f32.mrf.mxu0
        %v7943 = vadd.f32 %v7098, %v7942
        %v7944 = vpop.f32.mrf.mxu0
        %v7945 = vpop.f32.mrf.mxu0
        %v7946 = vadd.f32 %v7098, %v7945
        %v7947 = vpop.f32.mrf.mxu0
        %7948 = vmatprep.mubr.bf16.mxu0 %v7343
        %7949 = vmatmul.mubr.bf16.gmra.mxu0 %v7342
        %v7950 = vpop.f32.mrf.mxu0
        %v7951 = vadd.f32 %v7098, %v7950
        %v7952 = vpop.f32.mrf.mxu0
        %v7953 = vpop.f32.mrf.mxu0
        %v7954 = vadd.f32 %v7098, %v7953
        %v7955 = vpop.f32.mrf.mxu0
        %7956 = vmatprep.mubr.bf16.mxu0 %v7352
        %7957 = vmatmul.mubr.bf16.gmra.mxu0 %v7351
        %v7958 = vpop.f32.mrf.mxu0
        %v7959 = vadd.f32 %v7098, %v7958
        %v7960 = vpop.f32.mrf.mxu0
        %v7961 = vpop.f32.mrf.mxu0
        %v7962 = vadd.f32 %v7098, %v7961
        %v7963 = vpop.f32.mrf.mxu0
        %7964 = vmatprep.mubr.bf16.mxu0 %v7361
        %7965 = vmatmul.mubr.bf16.gmra.mxu0 %v7360
        %v7966 = vpop.f32.mrf.mxu0
        %v7967 = vadd.f32 %v7098, %v7966
        %v7968 = vpop.f32.mrf.mxu0
        %v7969 = vpop.f32.mrf.mxu0
        %v7970 = vadd.f32 %v7098, %v7969
        %v7971 = vpop.f32.mrf.mxu0
        %7972 = vmatprep.mubr.bf16.mxu0 %v7370
        %7973 = vmatmul.mubr.bf16.gmra.mxu0 %v7369
        %v7974 = vpop.f32.mrf.mxu0
        %v7975 = vadd.f32 %v7098, %v7974
        %v7976 = vpop.f32.mrf.mxu0
        %v7977 = vpop.f32.mrf.mxu0
        %v7978 = vadd.f32 %v7098, %v7977
        %v7979 = vpop.f32.mrf.mxu0
        %7980 = vmatprep.mubr.bf16.mxu0 %v7379
        %7981 = vmatmul.mubr.bf16.gmra.mxu0 %v7378
        %v7982 = vpop.f32.mrf.mxu0
        %v7983 = vadd.f32 %v7098, %v7982
        %v7984 = vpop.f32.mrf.mxu0
        %v7985 = vpop.f32.mrf.mxu0
        %v7986 = vadd.f32 %v7098, %v7985
        %v7987 = vpop.f32.mrf.mxu0
        %7988 = vmatprep.mubr.bf16.mxu0 %v7388
        %7989 = vmatmul.mubr.bf16.gmra.mxu0 %v7387
        %v7990 = vpop.f32.mrf.mxu0
        %v7991 = vadd.f32 %v7098, %v7990
        %v7992 = vpop.f32.mrf.mxu0
        %v7993 = vpop.f32.mrf.mxu0
        %v7994 = vadd.f32 %v7098, %v7993
        %v7995 = vpop.f32.mrf.mxu0
        %7996 = vdwg.mxu0
        %7997 = vmatprep.subr.bf16.mxu0 0
        %7998 = vmatpush1.bf16.msra.mxu0 %v7779
        %7999 = vmatprep.subr.bf16.mxu0 0
        %8000 = vmatpush1.bf16.msra.mxu0 %v7778
        %8001 = vmatprep.subr.bf16.mxu0 0
        %8002 = vmatpush1.bf16.msra.mxu0 %v7777
        %8003 = vmatprep.subr.bf16.mxu0 0
        %8004 = vmatpush1.bf16.msra.mxu0 %v7776
        %8005 = vmatprep.subr.bf16.mxu0 0
        %8006 = vmatpush1.bf16.msra.mxu0 %v7775
        %8007 = vmatprep.subr.bf16.mxu0 0
        %8008 = vmatpush1.bf16.msra.mxu0 %v7774
        %8009 = vmatprep.subr.bf16.mxu0 0
        %8010 = vmatpush1.bf16.msra.mxu0 %v7773
        %8011 = vmatprep.subr.bf16.mxu0 0
        %8012 = vmatpush1.bf16.msra.mxu0 %v7772
        %8013 = vmatprep.subr.bf16.mxu0 0
        %8014 = vmatpush2.bf16.msra.mxu0 %v7787
        %8015 = vmatprep.subr.bf16.mxu0 0
        %8016 = vmatpush2.bf16.msra.mxu0 %v7786
        %8017 = vmatprep.subr.bf16.mxu0 0
        %8018 = vmatpush2.bf16.msra.mxu0 %v7785
        %8019 = vmatprep.subr.bf16.mxu0 0
        %8020 = vmatpush2.bf16.msra.mxu0 %v7784
        %8021 = vmatprep.subr.bf16.mxu0 0
        %8022 = vmatpush2.bf16.msra.mxu0 %v7783
        %8023 = vmatprep.subr.bf16.mxu0 0
        %8024 = vmatpush2.bf16.msra.mxu0 %v7782
        %8025 = vmatprep.subr.bf16.mxu0 0
        %8026 = vmatpush2.bf16.msra.mxu0 %v7781
        %8027 = vmatprep.subr.bf16.mxu0 0
        %8028 = vmatpush2.bf16.msra.mxu0 %v7780
        %8029 = vmatprep.mubr.bf16.mxu0 %v7327
        %8030 = vmatmul.mubr.bf16.gmra.mxu0 %v7326
        %v8031 = vpop.f32.mrf.mxu0
        %v8032 = vadd.f32 %v7935, %v8031
        %v8033 = vpop.f32.mrf.mxu0
        %v8034 = vpop.f32.mrf.mxu0
        %v8035 = vadd.f32 %v7938, %v8034
        %v8036 = vpop.f32.mrf.mxu0
        %8037 = vmatprep.mubr.bf16.mxu0 %v7336
        %8038 = vmatmul.mubr.bf16.gmra.mxu0 %v7335
        %v8039 = vpop.f32.mrf.mxu0
        %v8040 = vadd.f32 %v7943, %v8039
        %v8041 = vpop.f32.mrf.mxu0
        %v8042 = vpop.f32.mrf.mxu0
        %v8043 = vadd.f32 %v7946, %v8042
        %v8044 = vpop.f32.mrf.mxu0
        %8045 = vmatprep.mubr.bf16.mxu0 %v7345
        %8046 = vmatmul.mubr.bf16.gmra.mxu0 %v7344
        %v8047 = vpop.f32.mrf.mxu0
        %v8048 = vadd.f32 %v7951, %v8047
        %v8049 = vpop.f32.mrf.mxu0
        %v8050 = vpop.f32.mrf.mxu0
        %v8051 = vadd.f32 %v7954, %v8050
        %v8052 = vpop.f32.mrf.mxu0
        %8053 = vmatprep.mubr.bf16.mxu0 %v7354
        %8054 = vmatmul.mubr.bf16.gmra.mxu0 %v7353
        %v8055 = vpop.f32.mrf.mxu0
        %v8056 = vadd.f32 %v7959, %v8055
        %v8057 = vpop.f32.mrf.mxu0
        %v8058 = vpop.f32.mrf.mxu0
        %v8059 = vadd.f32 %v7962, %v8058
        %v8060 = vpop.f32.mrf.mxu0
        %8061 = vmatprep.mubr.bf16.mxu0 %v7363
        %8062 = vmatmul.mubr.bf16.gmra.mxu0 %v7362
        %v8063 = vpop.f32.mrf.mxu0
        %v8064 = vadd.f32 %v7967, %v8063
        %v8065 = vpop.f32.mrf.mxu0
        %v8066 = vpop.f32.mrf.mxu0
        %v8067 = vadd.f32 %v7970, %v8066
        %v8068 = vpop.f32.mrf.mxu0
        %8069 = vmatprep.mubr.bf16.mxu0 %v7372
        %8070 = vmatmul.mubr.bf16.gmra.mxu0 %v7371
        %v8071 = vpop.f32.mrf.mxu0
        %v8072 = vadd.f32 %v7975, %v8071
        %v8073 = vpop.f32.mrf.mxu0
        %v8074 = vpop.f32.mrf.mxu0
        %v8075 = vadd.f32 %v7978, %v8074
        %v8076 = vpop.f32.mrf.mxu0
        %8077 = vmatprep.mubr.bf16.mxu0 %v7381
        %8078 = vmatmul.mubr.bf16.gmra.mxu0 %v7380
        %v8079 = vpop.f32.mrf.mxu0
        %v8080 = vadd.f32 %v7983, %v8079
        %v8081 = vpop.f32.mrf.mxu0
        %v8082 = vpop.f32.mrf.mxu0
        %v8083 = vadd.f32 %v7986, %v8082
        %v8084 = vpop.f32.mrf.mxu0
        %8085 = vmatprep.mubr.bf16.mxu0 %v7390
        %8086 = vmatmul.mubr.bf16.gmra.mxu0 %v7389
        %v8087 = vpop.f32.mrf.mxu0
        %v8088 = vadd.f32 %v7991, %v8087
        %v8089 = vpop.f32.mrf.mxu0
        %v8090 = vpop.f32.mrf.mxu0
        %v8091 = vadd.f32 %v7994, %v8090
        %v8092 = vpop.f32.mrf.mxu0
        %8093 = vdwg.mxu0
        %8094 = vmatprep.subr.bf16.mxu0 0
        %8095 = vmatpush1.bf16.msra.mxu0 %v7795
        %8096 = vmatprep.subr.bf16.mxu0 0
        %8097 = vmatpush1.bf16.msra.mxu0 %v7794
        %8098 = vmatprep.subr.bf16.mxu0 0
        %8099 = vmatpush1.bf16.msra.mxu0 %v7793
        %8100 = vmatprep.subr.bf16.mxu0 0
        %8101 = vmatpush1.bf16.msra.mxu0 %v7792
        %8102 = vmatprep.subr.bf16.mxu0 0
        %8103 = vmatpush1.bf16.msra.mxu0 %v7791
        %8104 = vmatprep.subr.bf16.mxu0 0
        %8105 = vmatpush1.bf16.msra.mxu0 %v7790
        %8106 = vmatprep.subr.bf16.mxu0 0
        %8107 = vmatpush1.bf16.msra.mxu0 %v7789
        %8108 = vmatprep.subr.bf16.mxu0 0
        %8109 = vmatpush1.bf16.msra.mxu0 %v7788
        %8110 = vmatprep.subr.bf16.mxu0 0
        %8111 = vmatpush2.bf16.msra.mxu0 %v7803
        %8112 = vmatprep.subr.bf16.mxu0 0
        %8113 = vmatpush2.bf16.msra.mxu0 %v7802
        %8114 = vmatprep.subr.bf16.mxu0 0
        %8115 = vmatpush2.bf16.msra.mxu0 %v7801
        %8116 = vmatprep.subr.bf16.mxu0 0
        %8117 = vmatpush2.bf16.msra.mxu0 %v7800
        %8118 = vmatprep.subr.bf16.mxu0 0
        %8119 = vmatpush2.bf16.msra.mxu0 %v7799
        %8120 = vmatprep.subr.bf16.mxu0 0
        %8121 = vmatpush2.bf16.msra.mxu0 %v7798
        %8122 = vmatprep.subr.bf16.mxu0 0
        %8123 = vmatpush2.bf16.msra.mxu0 %v7797
        %8124 = vmatprep.subr.bf16.mxu0 0
        %8125 = vmatpush2.bf16.msra.mxu0 %v7796
        %8126 = vmatprep.mubr.bf16.mxu0 %v7329
        %8127 = vmatmul.mubr.bf16.gmra.mxu0 %v7328
        %v8128 = vpop.f32.mrf.mxu0
        %v8129 = vadd.f32 %v8032, %v8128
        %v8130 = vpop.f32.mrf.mxu0
        %v8131 = vpop.f32.mrf.mxu0
        %v8132 = vadd.f32 %v8035, %v8131
        %v8133 = vpop.f32.mrf.mxu0
        %8134 = vmatprep.mubr.bf16.mxu0 %v7338
        %8135 = vmatmul.mubr.bf16.gmra.mxu0 %v7337
        %v8136 = vpop.f32.mrf.mxu0
        %v8137 = vadd.f32 %v8040, %v8136
        %v8138 = vpop.f32.mrf.mxu0
        %v8139 = vpop.f32.mrf.mxu0
        %v8140 = vadd.f32 %v8043, %v8139
        %v8141 = vpop.f32.mrf.mxu0
        %8142 = vmatprep.mubr.bf16.mxu0 %v7347
        %8143 = vmatmul.mubr.bf16.gmra.mxu0 %v7346
        %v8144 = vpop.f32.mrf.mxu0
        %v8145 = vadd.f32 %v8048, %v8144
        %v8146 = vpop.f32.mrf.mxu0
        %v8147 = vpop.f32.mrf.mxu0
        %v8148 = vadd.f32 %v8051, %v8147
        %v8149 = vpop.f32.mrf.mxu0
        %8150 = vmatprep.mubr.bf16.mxu0 %v7356
        %8151 = vmatmul.mubr.bf16.gmra.mxu0 %v7355
        %v8152 = vpop.f32.mrf.mxu0
        %v8153 = vadd.f32 %v8056, %v8152
        %v8154 = vpop.f32.mrf.mxu0
        %v8155 = vpop.f32.mrf.mxu0
        %v8156 = vadd.f32 %v8059, %v8155
        %v8157 = vpop.f32.mrf.mxu0
        %8158 = vmatprep.mubr.bf16.mxu0 %v7365
        %8159 = vmatmul.mubr.bf16.gmra.mxu0 %v7364
        %v8160 = vpop.f32.mrf.mxu0
        %v8161 = vadd.f32 %v8064, %v8160
        %v8162 = vpop.f32.mrf.mxu0
        %v8163 = vpop.f32.mrf.mxu0
        %v8164 = vadd.f32 %v8067, %v8163
        %v8165 = vpop.f32.mrf.mxu0
        %8166 = vmatprep.mubr.bf16.mxu0 %v7374
        %8167 = vmatmul.mubr.bf16.gmra.mxu0 %v7373
        %v8168 = vpop.f32.mrf.mxu0
        %v8169 = vadd.f32 %v8072, %v8168
        %v8170 = vpop.f32.mrf.mxu0
        %v8171 = vpop.f32.mrf.mxu0
        %v8172 = vadd.f32 %v8075, %v8171
        %v8173 = vpop.f32.mrf.mxu0
        %8174 = vmatprep.mubr.bf16.mxu0 %v7383
        %8175 = vmatmul.mubr.bf16.gmra.mxu0 %v7382
        %v8176 = vpop.f32.mrf.mxu0
        %v8177 = vadd.f32 %v8080, %v8176
        %v8178 = vpop.f32.mrf.mxu0
        %v8179 = vpop.f32.mrf.mxu0
        %v8180 = vadd.f32 %v8083, %v8179
        %v8181 = vpop.f32.mrf.mxu0
        %8182 = vmatprep.mubr.bf16.mxu0 %v7392
        %8183 = vmatmul.mubr.bf16.gmra.mxu0 %v7391
        %v8184 = vpop.f32.mrf.mxu0
        %v8185 = vadd.f32 %v8088, %v8184
        %v8186 = vpop.f32.mrf.mxu0
        %v8187 = vpop.f32.mrf.mxu0
        %v8188 = vadd.f32 %v8091, %v8187
        %v8189 = vpop.f32.mrf.mxu0
        %8190 = vdwg.mxu0
        %8191 = vmatprep.subr.bf16.mxu0 0
        %8192 = vmatpush1.bf16.msra.mxu0 %v7811
        %8193 = vmatprep.subr.bf16.mxu0 0
        %8194 = vmatpush1.bf16.msra.mxu0 %v7810
        %8195 = vmatprep.subr.bf16.mxu0 0
        %8196 = vmatpush1.bf16.msra.mxu0 %v7809
        %8197 = vmatprep.subr.bf16.mxu0 0
        %8198 = vmatpush1.bf16.msra.mxu0 %v7808
        %8199 = vmatprep.subr.bf16.mxu0 0
        %8200 = vmatpush1.bf16.msra.mxu0 %v7807
        %8201 = vmatprep.subr.bf16.mxu0 0
        %8202 = vmatpush1.bf16.msra.mxu0 %v7806
        %8203 = vmatprep.subr.bf16.mxu0 0
        %8204 = vmatpush1.bf16.msra.mxu0 %v7805
        %8205 = vmatprep.subr.bf16.mxu0 0
        %8206 = vmatpush1.bf16.msra.mxu0 %v7804
        %8207 = vmatprep.subr.bf16.mxu0 0
        %8208 = vmatpush2.bf16.msra.mxu0 %v7819
        %8209 = vmatprep.subr.bf16.mxu0 0
        %8210 = vmatpush2.bf16.msra.mxu0 %v7818
        %8211 = vmatprep.subr.bf16.mxu0 0
        %8212 = vmatpush2.bf16.msra.mxu0 %v7817
        %8213 = vmatprep.subr.bf16.mxu0 0
        %8214 = vmatpush2.bf16.msra.mxu0 %v7816
        %8215 = vmatprep.subr.bf16.mxu0 0
        %8216 = vmatpush2.bf16.msra.mxu0 %v7815
        %8217 = vmatprep.subr.bf16.mxu0 0
        %8218 = vmatpush2.bf16.msra.mxu0 %v7814
        %8219 = vmatprep.subr.bf16.mxu0 0
        %8220 = vmatpush2.bf16.msra.mxu0 %v7813
        %8221 = vmatprep.subr.bf16.mxu0 0
        %8222 = vmatpush2.bf16.msra.mxu0 %v7812
        %8223 = vmatprep.mubr.bf16.mxu0 %v7331
        %8224 = vmatmul.mubr.bf16.gmra.mxu0 %v7330
        %v8225 = vpop.f32.mrf.mxu0
        %v8226 = vadd.f32 %v8129, %v8225
        %v8227 = vpop.f32.mrf.mxu0
        %v8228 = vpop.f32.mrf.mxu0
        %v8229 = vadd.f32 %v8132, %v8228
        %v8230 = vpop.f32.mrf.mxu0
        %8231 = vmatprep.mubr.bf16.mxu0 %v7340
        %8232 = vmatmul.mubr.bf16.gmra.mxu0 %v7339
        %v8233 = vpop.f32.mrf.mxu0
        %v8234 = vadd.f32 %v8137, %v8233
        %v8235 = vpop.f32.mrf.mxu0
        %v8236 = vpop.f32.mrf.mxu0
        %v8237 = vadd.f32 %v8140, %v8236
        %v8238 = vpop.f32.mrf.mxu0
        %8239 = vmatprep.mubr.bf16.mxu0 %v7349
        %8240 = vmatmul.mubr.bf16.gmra.mxu0 %v7348
        %v8241 = vpop.f32.mrf.mxu0
        %v8242 = vadd.f32 %v8145, %v8241
        %v8243 = vpop.f32.mrf.mxu0
        %v8244 = vpop.f32.mrf.mxu0
        %v8245 = vadd.f32 %v8148, %v8244
        %v8246 = vpop.f32.mrf.mxu0
        %8247 = vmatprep.mubr.bf16.mxu0 %v7358
        %8248 = vmatmul.mubr.bf16.gmra.mxu0 %v7357
        %v8249 = vpop.f32.mrf.mxu0
        %v8250 = vadd.f32 %v8153, %v8249
        %v8251 = vpop.f32.mrf.mxu0
        %v8252 = vpop.f32.mrf.mxu0
        %v8253 = vadd.f32 %v8156, %v8252
        %v8254 = vpop.f32.mrf.mxu0
        %8255 = vmatprep.mubr.bf16.mxu0 %v7367
        %8256 = vmatmul.mubr.bf16.gmra.mxu0 %v7366
        %v8257 = vpop.f32.mrf.mxu0
        %v8258 = vadd.f32 %v8161, %v8257
        %v8259 = vpop.f32.mrf.mxu0
        %v8260 = vpop.f32.mrf.mxu0
        %v8261 = vadd.f32 %v8164, %v8260
        %v8262 = vpop.f32.mrf.mxu0
        %8263 = vmatprep.mubr.bf16.mxu0 %v7376
        %8264 = vmatmul.mubr.bf16.gmra.mxu0 %v7375
        %v8265 = vpop.f32.mrf.mxu0
        %v8266 = vadd.f32 %v8169, %v8265
        %v8267 = vpop.f32.mrf.mxu0
        %v8268 = vpop.f32.mrf.mxu0
        %v8269 = vadd.f32 %v8172, %v8268
        %v8270 = vpop.f32.mrf.mxu0
        %8271 = vmatprep.mubr.bf16.mxu0 %v7385
        %8272 = vmatmul.mubr.bf16.gmra.mxu0 %v7384
        %v8273 = vpop.f32.mrf.mxu0
        %v8274 = vadd.f32 %v8177, %v8273
        %v8275 = vpop.f32.mrf.mxu0
        %v8276 = vpop.f32.mrf.mxu0
        %v8277 = vadd.f32 %v8180, %v8276
        %v8278 = vpop.f32.mrf.mxu0
        %8279 = vmatprep.mubr.bf16.mxu0 %v7394
        %8280 = vmatmul.mubr.bf16.gmra.mxu0 %v7393
        %v8281 = vpop.f32.mrf.mxu0
        %v8282 = vadd.f32 %v8185, %v8281
        %v8283 = vpop.f32.mrf.mxu0
        %v8284 = vpop.f32.mrf.mxu0
        %v8285 = vadd.f32 %v8188, %v8284
        %v8286 = vpop.f32.mrf.mxu0
        %8287 = vdwg.mxu0
        %8288 = vmatprep.subr.bf16.mxu0 0
        %8289 = vmatpush1.bf16.msra.mxu0 %v7827
        %8290 = vmatprep.subr.bf16.mxu0 0
        %8291 = vmatpush1.bf16.msra.mxu0 %v7826
        %8292 = vmatprep.subr.bf16.mxu0 0
        %8293 = vmatpush1.bf16.msra.mxu0 %v7825
        %8294 = vmatprep.subr.bf16.mxu0 0
        %8295 = vmatpush1.bf16.msra.mxu0 %v7824
        %8296 = vmatprep.subr.bf16.mxu0 0
        %8297 = vmatpush1.bf16.msra.mxu0 %v7823
        %8298 = vmatprep.subr.bf16.mxu0 0
        %8299 = vmatpush1.bf16.msra.mxu0 %v7822
        %8300 = vmatprep.subr.bf16.mxu0 0
        %8301 = vmatpush1.bf16.msra.mxu0 %v7821
        %8302 = vmatprep.subr.bf16.mxu0 0
        %8303 = vmatpush1.bf16.msra.mxu0 %v7820
        %8304 = vmatprep.subr.bf16.mxu0 0
        %8305 = vmatpush2.bf16.msra.mxu0 0
        %8306 = vmatprep.subr.bf16.mxu0 0
        %8307 = vmatpush2.bf16.msra.mxu0 0
        %8308 = vmatprep.subr.bf16.mxu0 0
        %8309 = vmatpush2.bf16.msra.mxu0 0
        %8310 = vmatprep.subr.bf16.mxu0 0
        %8311 = vmatpush2.bf16.msra.mxu0 0
        %8312 = vmatprep.subr.bf16.mxu0 0
        %8313 = vmatpush2.bf16.msra.mxu0 0
        %8314 = vmatprep.subr.bf16.mxu0 0
        %8315 = vmatpush2.bf16.msra.mxu0 0
        %8316 = vmatprep.subr.bf16.mxu0 0
        %8317 = vmatpush2.bf16.msra.mxu0 0
        %8318 = vmatprep.subr.bf16.mxu0 0
        %8319 = vmatpush2.bf16.msra.mxu0 0
        %8320 = vmatprep.mubr.bf16.mxu0 0
        %8321 = vmatmul.mubr.bf16.gmra.mxu0 %v7332
        %v8322 = vpop.f32.mrf.mxu0
        %v8323 = vadd.f32 %v8226, %v8322
        %v8324 = vpop.f32.mrf.mxu0
        %v8325 = vpop.f32.mrf.mxu0
        %v8326 = vadd.f32 %v8229, %v8325
        %v8327 = vpop.f32.mrf.mxu0
        %8328 = vmatprep.mubr.bf16.mxu0 0
        %8329 = vmatmul.mubr.bf16.gmra.mxu0 %v7341
        %v8330 = vpop.f32.mrf.mxu0
        %v8331 = vadd.f32 %v8234, %v8330
        %v8332 = vpop.f32.mrf.mxu0
        %v8333 = vpop.f32.mrf.mxu0
        %v8334 = vadd.f32 %v8237, %v8333
        %v8335 = vpop.f32.mrf.mxu0
        %8336 = vmatprep.mubr.bf16.mxu0 0
        %8337 = vmatmul.mubr.bf16.gmra.mxu0 %v7350
        %v8338 = vpop.f32.mrf.mxu0
        %v8339 = vadd.f32 %v8242, %v8338
        %v8340 = vpop.f32.mrf.mxu0
        %v8341 = vpop.f32.mrf.mxu0
        %v8342 = vadd.f32 %v8245, %v8341
        %v8343 = vpop.f32.mrf.mxu0
        %8344 = vmatprep.mubr.bf16.mxu0 0
        %8345 = vmatmul.mubr.bf16.gmra.mxu0 %v7359
        %v8346 = vpop.f32.mrf.mxu0
        %v8347 = vadd.f32 %v8250, %v8346
        %v8348 = vpop.f32.mrf.mxu0
        %v8349 = vpop.f32.mrf.mxu0
        %v8350 = vadd.f32 %v8253, %v8349
        %v8351 = vpop.f32.mrf.mxu0
        %8352 = vmatprep.mubr.bf16.mxu0 0
        %8353 = vmatmul.mubr.bf16.gmra.mxu0 %v7368
        %v8354 = vpop.f32.mrf.mxu0
        %v8355 = vadd.f32 %v8258, %v8354
        %v8356 = vpop.f32.mrf.mxu0
        %v8357 = vpop.f32.mrf.mxu0
        %v8358 = vadd.f32 %v8261, %v8357
        %v8359 = vpop.f32.mrf.mxu0
        %8360 = vmatprep.mubr.bf16.mxu0 0
        %8361 = vmatmul.mubr.bf16.gmra.mxu0 %v7377
        %v8362 = vpop.f32.mrf.mxu0
        %v8363 = vadd.f32 %v8266, %v8362
        %v8364 = vpop.f32.mrf.mxu0
        %v8365 = vpop.f32.mrf.mxu0
        %v8366 = vadd.f32 %v8269, %v8365
        %v8367 = vpop.f32.mrf.mxu0
        %8368 = vmatprep.mubr.bf16.mxu0 0
        %8369 = vmatmul.mubr.bf16.gmra.mxu0 %v7386
        %v8370 = vpop.f32.mrf.mxu0
        %v8371 = vadd.f32 %v8274, %v8370
        %v8372 = vpop.f32.mrf.mxu0
        %v8373 = vpop.f32.mrf.mxu0
        %v8374 = vadd.f32 %v8277, %v8373
        %v8375 = vpop.f32.mrf.mxu0
        %8376 = vmatprep.mubr.bf16.mxu0 0
        %8377 = vmatmul.mubr.bf16.gmra.mxu0 %v7395
        %v8378 = vpop.f32.mrf.mxu0
        %v8379 = vadd.f32 %v8282, %v8378
        %v8380 = vpop.f32.mrf.mxu0
        %v8381 = vpop.f32.mrf.mxu0
        %v8382 = vadd.f32 %v8285, %v8381
        %v8383 = vpop.f32.mrf.mxu0
        %8384 = vdwg.mxu0
        %v8385 = vmax.f32 %v8323, 0.0
        %v8386 = vmax.f32 %v8326, 0.0
        %v8387 = vmax.f32 %v8331, 0.0
        %v8388 = vmax.f32 %v8334, 0.0
        %v8389 = vmax.f32 %v8339, 0.0
        %v8390 = vmax.f32 %v8342, 0.0
        %v8391 = vmax.f32 %v8347, 0.0
        %v8392 = vmax.f32 %v8350, 0.0
        %v8393 = vmax.f32 %v8355, 0.0
        %v8394 = vmax.f32 %v8358, 0.0
        %v8395 = vmax.f32 %v8363, 0.0
        %v8396 = vmax.f32 %v8366, 0.0
        %v8397 = vmax.f32 %v8371, 0.0
        %v8398 = vmax.f32 %v8374, 0.0
        %v8399 = vmax.f32 %v8379, 0.0
        %v8400 = vmax.f32 %v8382, 0.0
        %vm8401 = vcmask 523264
        %8402 = vst.msk [vmem:[#allocation6] sm:$0xff] %vm8401, 0.0
        %8403 = vst.msk [vmem:[#allocation6 + $0x8] sm:$0xff] %vm8401, 0.0
        %vm8404 = vcmask 517120
        %8405 = vst.msk [vmem:[#allocation6 + $0x10] sm:$0x3] %vm8404, 0.0
        %8406 = vst.msk [vmem:[#allocation6 + $0x18] sm:$0xff] %vm8401, 0.0
        %8407 = vst.msk [vmem:[#allocation6 + $0x20] sm:$0xff] %vm8401, 0.0
        %8408 = vst.msk [vmem:[#allocation6 + $0x28] sm:$0x3] %vm8404, 0.0
        %8409 = vst.msk [vmem:[#allocation6 + $0x30] sm:$0xff] %vm8401, 0.0
        %8410 = vst.msk [vmem:[#allocation6 + $0x38] sm:$0xff] %vm8401, 0.0
        %8411 = vst.msk [vmem:[#allocation6 + $0x40] sm:$0x3] %vm8404, 0.0
        %8412 = vst.msk [vmem:[#allocation6 + $0x48] sm:$0xff] %vm8401, 0.0
        %8413 = vst.msk [vmem:[#allocation6 + $0x50] sm:$0xff] %vm8401, 0.0
        %8414 = vst.msk [vmem:[#allocation6 + $0x58] sm:$0x3] %vm8404, 0.0
        %8415 = vst.msk [vmem:[#allocation6 + $0x60] sm:$0xff] %vm8401, 0.0
        %8416 = vst.msk [vmem:[#allocation6 + $0x68] sm:$0xff] %vm8401, 0.0
        %8417 = vst.msk [vmem:[#allocation6 + $0x70] sm:$0x3] %vm8404, 0.0
        %8418 = vst.msk [vmem:[#allocation6 + $0x78] sm:$0xff] %vm8401, 0.0
        %8419 = vst.msk [vmem:[#allocation6 + $0x80] sm:$0xff] %vm8401, 0.0
        %8420 = vst.msk [vmem:[#allocation6 + $0x88] sm:$0x3] %vm8404, 0.0
        %8421 = vst.msk [vmem:[#allocation6 + $0x90] sm:$0xff] %vm8401, 0.0
        %8422 = vst.msk [vmem:[#allocation6 + $0x98] sm:$0xff] %vm8401, 0.0
        %8423 = vst.msk [vmem:[#allocation6 + $0xa0] sm:$0x3] %vm8404, 0.0
        %8424 = vst.msk [vmem:[#allocation6 + $0xa8] sm:$0xff] %vm8401, 0.0
        %8425 = vst.msk [vmem:[#allocation6 + $0xb0] sm:$0xff] %vm8401, 0.0
        %8426 = vst.msk [vmem:[#allocation6 + $0xb8] sm:$0x3] %vm8404, 0.0
        %8427 = vst.msk [vmem:[#allocation6 + $0xc0] sm:$0xff] %vm8401, 0.0
        %8428 = vst.msk [vmem:[#allocation6 + $0xc8] sm:$0xff] %vm8401, 0.0
        %8429 = vst.msk [vmem:[#allocation6 + $0xd0] sm:$0x3] %vm8404, 0.0
        %8430 = vst.msk [vmem:[#allocation6 + $0xd8] sm:$0xff] %vm8401, 0.0
        %8431 = vst.msk [vmem:[#allocation6 + $0xe0] sm:$0xff] %vm8401, 0.0
        %8432 = vst.msk [vmem:[#allocation6 + $0xe8] sm:$0x3] %vm8404, 0.0
        %s8433 = scalar_lea.vmem [#allocation6], 24
        %8434 = vst.msk [vmem:[%s8433 + $0x1] sm:$0xff] %vm8401, %v8385
        %8435 = vst.msk [vmem:[%s8433 + $0x9] sm:$0xff] %vm8401, %v8386
        %8436 = vst.msk [vmem:[%s8433 + $0x19] sm:$0xff] %vm8401, %v8387
        %8437 = vst.msk [vmem:[%s8433 + $0x21] sm:$0xff] %vm8401, %v8388
        %8438 = vst.msk [vmem:[%s8433 + $0x31] sm:$0xff] %vm8401, %v8389
        %8439 = vst.msk [vmem:[%s8433 + $0x39] sm:$0xff] %vm8401, %v8390
        %8440 = vst.msk [vmem:[%s8433 + $0x49] sm:$0xff] %vm8401, %v8391
        %8441 = vst.msk [vmem:[%s8433 + $0x51] sm:$0xff] %vm8401, %v8392
        %8442 = vst.msk [vmem:[%s8433 + $0x61] sm:$0xff] %vm8401, %v8393
        %8443 = vst.msk [vmem:[%s8433 + $0x69] sm:$0xff] %vm8401, %v8394
        %8444 = vst.msk [vmem:[%s8433 + $0x79] sm:$0xff] %vm8401, %v8395
        %8445 = vst.msk [vmem:[%s8433 + $0x81] sm:$0xff] %vm8401, %v8396
        %8446 = vst.msk [vmem:[%s8433 + $0x91] sm:$0xff] %vm8401, %v8397
        %8447 = vst.msk [vmem:[%s8433 + $0x99] sm:$0xff] %vm8401, %v8398
        %8448 = vst.msk [vmem:[%s8433 + $0xa9] sm:$0xff] %vm8401, %v8399
        %8449 = vst.msk [vmem:[%s8433 + $0xb1] sm:$0xff] %vm8401, %v8400
        %v8450 = vld [vmem:[#allocation6] sm:$0xff]
        %v8451 = vld [vmem:[#allocation6 + $0x8] sm:$0xff]
        %v8452 = vld [vmem:[#allocation6 + $0x18] sm:$0xff]
        %v8453 = vld [vmem:[#allocation6 + $0x20] sm:$0xff]
        %v8454 = vld [vmem:[#allocation6 + $0x30] sm:$0xff]
        %v8455 = vld [vmem:[#allocation6 + $0x38] sm:$0xff]
        %v8456 = vld [vmem:[#allocation6 + $0x48] sm:$0xff]
        %v8457 = vld [vmem:[#allocation6 + $0x50] sm:$0xff]
        %v8458 = vld [vmem:[#allocation6 + $0x60] sm:$0xff]
        %v8459 = vld [vmem:[#allocation6 + $0x68] sm:$0xff]
        %v8460 = vld [vmem:[#allocation6 + $0x78] sm:$0xff]
        %v8461 = vld [vmem:[#allocation6 + $0x80] sm:$0xff]
        %v8462 = vld [vmem:[#allocation6 + $0x90] sm:$0xff]
        %v8463 = vld [vmem:[#allocation6 + $0x98] sm:$0xff]
        %v8464 = vld [vmem:[#allocation6 + $0xa8] sm:$0xff]
        %v8465 = vld [vmem:[#allocation6 + $0xb0] sm:$0xff]
        %v8466 = vpack.c.bf16 %v8451, %v8450
        %v8467 = vpack.c.bf16 %v8453, %v8452
        %v8468 = vpack.c.bf16 %v8455, %v8454
        %v8469 = vpack.c.bf16 %v8457, %v8456
        %v8470 = vpack.c.bf16 %v8459, %v8458
        %v8471 = vpack.c.bf16 %v8461, %v8460
        %v8472 = vpack.c.bf16 %v8463, %v8462
        %v8473 = vpack.c.bf16 %v8465, %v8464
        %v8482 = vunpack.c.l.b16 %v8466
        %v8483 = vunpack.c.h.b16 %v8466
        %v8484 = vunpack.c.l.b16 %v8467
        %v8485 = vunpack.c.h.b16 %v8467
        %v8486 = vunpack.c.l.b16 %v8468
        %v8487 = vunpack.c.h.b16 %v8468
        %v8488 = vunpack.c.l.b16 %v8469
        %v8489 = vunpack.c.h.b16 %v8469
        %v8490 = vunpack.c.l.b16 %v8470
        %v8491 = vunpack.c.h.b16 %v8470
        %v8492 = vunpack.c.l.b16 %v8471
        %v8493 = vunpack.c.h.b16 %v8471
        %v8494 = vunpack.c.l.b16 %v8472
        %v8495 = vunpack.c.h.b16 %v8472
        %v8496 = vunpack.c.l.b16 %v8473
        %v8497 = vunpack.c.h.b16 %v8473
        %v8498 = vpack.c.b16 %v8482, %v8482
        %v8499 = vpack.c.b16 %v8483, %v8483
        %v8500 = vpack.c.b16 %v8484, %v8484
        %v8501 = vpack.c.b16 %v8485, %v8485
        %v8502 = vpack.c.b16 %v8486, %v8486
        %v8503 = vpack.c.b16 %v8487, %v8487
        %v8504 = vpack.c.b16 %v8488, %v8488
        %v8505 = vpack.c.b16 %v8489, %v8489
        %v8506 = vpack.c.b16 %v8490, %v8490
        %v8507 = vpack.c.b16 %v8491, %v8491
        %v8508 = vpack.c.b16 %v8492, %v8492
        %v8509 = vpack.c.b16 %v8493, %v8493
        %v8510 = vpack.c.b16 %v8494, %v8494
        %v8511 = vpack.c.b16 %v8495, %v8495
        %v8512 = vpack.c.b16 %v8496, %v8496
        %v8513 = vpack.c.b16 %v8497, %v8497
        %vm8530 = vcmask 519168
        %8531 = vst.msk [vmem:[#allocation7] sm:$0xf] %vm8530, %v8498
        %8532 = vst.msk [vmem:[#allocation7 + $0x14] sm:$0xf] %vm8530, %v8499
        %8533 = vst.msk [vmem:[#allocation7 + $0x28] sm:$0xf] %vm8530, %v8500
        %8534 = vst.msk [vmem:[#allocation7 + $0x3c] sm:$0xf] %vm8530, %v8501
        %8535 = vst.msk [vmem:[#allocation7 + $0x50] sm:$0xf] %vm8530, %v8502
        %8536 = vst.msk [vmem:[#allocation7 + $0x64] sm:$0xf] %vm8530, %v8503
        %8537 = vst.msk [vmem:[#allocation7 + $0x78] sm:$0xf] %vm8530, %v8504
        %8538 = vst.msk [vmem:[#allocation7 + $0x8c] sm:$0xf] %vm8530, %v8505
        %8539 = vst.msk [vmem:[#allocation7 + $0xa0] sm:$0xf] %vm8530, %v8506
        %8540 = vst.msk [vmem:[#allocation7 + $0xb4] sm:$0xf] %vm8530, %v8507
        %8541 = vst.msk [vmem:[#allocation7 + $0xc8] sm:$0xf] %vm8530, %v8508
        %8542 = vst.msk [vmem:[#allocation7 + $0xdc] sm:$0xf] %vm8530, %v8509
        %8543 = vst.msk [vmem:[#allocation7 + $0xf0] sm:$0xf] %vm8530, %v8510
        %8544 = vst.msk [vmem:[#allocation7 + $0x104] sm:$0xf] %vm8530, %v8511
        %8545 = vst.msk [vmem:[#allocation7 + $0x118] sm:$0xf] %vm8530, %v8512
        %8546 = vst.msk [vmem:[#allocation7 + $0x12c] sm:$0xf] %vm8530, %v8513
        %v8547 = vld [vmem:[#allocation6 + $0x1] sm:$0xff]
        %v8548 = vld [vmem:[#allocation6 + $0x9] sm:$0xff]
        %v8549 = vld [vmem:[#allocation6 + $0x19] sm:$0xff]
        %v8550 = vld [vmem:[#allocation6 + $0x21] sm:$0xff]
        %v8551 = vld [vmem:[#allocation6 + $0x31] sm:$0xff]
        %v8552 = vld [vmem:[#allocation6 + $0x39] sm:$0xff]
        %v8553 = vld [vmem:[#allocation6 + $0x49] sm:$0xff]
        %v8554 = vld [vmem:[#allocation6 + $0x51] sm:$0xff]
        %v8555 = vld [vmem:[#allocation6 + $0x61] sm:$0xff]
        %v8556 = vld [vmem:[#allocation6 + $0x69] sm:$0xff]
        %v8557 = vld [vmem:[#allocation6 + $0x79] sm:$0xff]
        %v8558 = vld [vmem:[#allocation6 + $0x81] sm:$0xff]
        %v8559 = vld [vmem:[#allocation6 + $0x91] sm:$0xff]
        %v8560 = vld [vmem:[#allocation6 + $0x99] sm:$0xff]
        %v8561 = vld [vmem:[#allocation6 + $0xa9] sm:$0xff]
        %v8562 = vld [vmem:[#allocation6 + $0xb1] sm:$0xff]
        %v8563 = vpack.c.bf16 %v8548, %v8547
        %v8564 = vpack.c.bf16 %v8550, %v8549
        %v8565 = vpack.c.bf16 %v8552, %v8551
        %v8566 = vpack.c.bf16 %v8554, %v8553
        %v8567 = vpack.c.bf16 %v8556, %v8555
        %v8568 = vpack.c.bf16 %v8558, %v8557
        %v8569 = vpack.c.bf16 %v8560, %v8559
        %v8570 = vpack.c.bf16 %v8562, %v8561
        %v8579 = vunpack.c.l.b16 %v8563
        %v8580 = vunpack.c.h.b16 %v8563
        %v8581 = vunpack.c.l.b16 %v8564
        %v8582 = vunpack.c.h.b16 %v8564
        %v8583 = vunpack.c.l.b16 %v8565
        %v8584 = vunpack.c.h.b16 %v8565
        %v8585 = vunpack.c.l.b16 %v8566
        %v8586 = vunpack.c.h.b16 %v8566
        %v8587 = vunpack.c.l.b16 %v8567
        %v8588 = vunpack.c.h.b16 %v8567
        %v8589 = vunpack.c.l.b16 %v8568
        %v8590 = vunpack.c.h.b16 %v8568
        %v8591 = vunpack.c.l.b16 %v8569
        %v8592 = vunpack.c.h.b16 %v8569
        %v8593 = vunpack.c.l.b16 %v8570
        %v8594 = vunpack.c.h.b16 %v8570
        %v8595 = vpack.c.b16 %v8579, %v8579
        %v8596 = vpack.c.b16 %v8580, %v8580
        %v8597 = vpack.c.b16 %v8581, %v8581
        %v8598 = vpack.c.b16 %v8582, %v8582
        %v8599 = vpack.c.b16 %v8583, %v8583
        %v8600 = vpack.c.b16 %v8584, %v8584
        %v8601 = vpack.c.b16 %v8585, %v8585
        %v8602 = vpack.c.b16 %v8586, %v8586
        %v8603 = vpack.c.b16 %v8587, %v8587
        %v8604 = vpack.c.b16 %v8588, %v8588
        %v8605 = vpack.c.b16 %v8589, %v8589
        %v8606 = vpack.c.b16 %v8590, %v8590
        %v8607 = vpack.c.b16 %v8591, %v8591
        %v8608 = vpack.c.b16 %v8592, %v8592
        %v8609 = vpack.c.b16 %v8593, %v8593
        %v8610 = vpack.c.b16 %v8594, %v8594
        %8611 = vrot.lane.b32.xlu0 %v8595, 64
        %v8612 = vpop.permute.xlu0 %8611
        %8613 = vrot.lane.b32.xlu0 %v8596, 64
        %v8614 = vpop.permute.xlu0 %8613
        %8615 = vrot.lane.b32.xlu0 %v8597, 64
        %v8616 = vpop.permute.xlu0 %8615
        %8617 = vrot.lane.b32.xlu0 %v8598, 64
        %v8618 = vpop.permute.xlu0 %8617
        %8619 = vrot.lane.b32.xlu0 %v8599, 64
        %v8620 = vpop.permute.xlu0 %8619
        %8621 = vrot.lane.b32.xlu0 %v8600, 64
        %v8622 = vpop.permute.xlu0 %8621
        %8623 = vrot.lane.b32.xlu0 %v8601, 64
        %v8624 = vpop.permute.xlu0 %8623
        %8625 = vrot.lane.b32.xlu0 %v8602, 64
        %v8626 = vpop.permute.xlu0 %8625
        %8627 = vrot.lane.b32.xlu0 %v8603, 64
        %v8628 = vpop.permute.xlu0 %8627
        %8629 = vrot.lane.b32.xlu0 %v8604, 64
        %v8630 = vpop.permute.xlu0 %8629
        %8631 = vrot.lane.b32.xlu0 %v8605, 64
        %v8632 = vpop.permute.xlu0 %8631
        %8633 = vrot.lane.b32.xlu0 %v8606, 64
        %v8634 = vpop.permute.xlu0 %8633
        %8635 = vrot.lane.b32.xlu0 %v8607, 64
        %v8636 = vpop.permute.xlu0 %8635
        %8637 = vrot.lane.b32.xlu0 %v8608, 64
        %v8638 = vpop.permute.xlu0 %8637
        %8639 = vrot.lane.b32.xlu0 %v8609, 64
        %v8640 = vpop.permute.xlu0 %8639
        %8641 = vrot.lane.b32.xlu0 %v8610, 64
        %v8642 = vpop.permute.xlu0 %8641
        %vm8659 = vcmask 1043968
        %8660 = vst.msk [vmem:[#allocation7] sm:$0xf] %vm8659, %v8612
        %8661 = vst.msk [vmem:[#allocation7 + $0x14] sm:$0xf] %vm8659, %v8614
        %8662 = vst.msk [vmem:[#allocation7 + $0x28] sm:$0xf] %vm8659, %v8616
        %8663 = vst.msk [vmem:[#allocation7 + $0x3c] sm:$0xf] %vm8659, %v8618
        %8664 = vst.msk [vmem:[#allocation7 + $0x50] sm:$0xf] %vm8659, %v8620
        %8665 = vst.msk [vmem:[#allocation7 + $0x64] sm:$0xf] %vm8659, %v8622
        %8666 = vst.msk [vmem:[#allocation7 + $0x78] sm:$0xf] %vm8659, %v8624
        %8667 = vst.msk [vmem:[#allocation7 + $0x8c] sm:$0xf] %vm8659, %v8626
        %8668 = vst.msk [vmem:[#allocation7 + $0xa0] sm:$0xf] %vm8659, %v8628
        %8669 = vst.msk [vmem:[#allocation7 + $0xb4] sm:$0xf] %vm8659, %v8630
        %8670 = vst.msk [vmem:[#allocation7 + $0xc8] sm:$0xf] %vm8659, %v8632
        %8671 = vst.msk [vmem:[#allocation7 + $0xdc] sm:$0xf] %vm8659, %v8634
        %8672 = vst.msk [vmem:[#allocation7 + $0xf0] sm:$0xf] %vm8659, %v8636
        %8673 = vst.msk [vmem:[#allocation7 + $0x104] sm:$0xf] %vm8659, %v8638
        %8674 = vst.msk [vmem:[#allocation7 + $0x118] sm:$0xf] %vm8659, %v8640
        %8675 = vst.msk [vmem:[#allocation7 + $0x12c] sm:$0xf] %vm8659, %v8642
        %v8676 = vld [vmem:[#allocation6 + $0x2] sm:$0xff]
        %v8677 = vld [vmem:[#allocation6 + $0xa] sm:$0xff]
        %v8678 = vld [vmem:[#allocation6 + $0x1a] sm:$0xff]
        %v8679 = vld [vmem:[#allocation6 + $0x22] sm:$0xff]
        %v8680 = vld [vmem:[#allocation6 + $0x32] sm:$0xff]
        %v8681 = vld [vmem:[#allocation6 + $0x3a] sm:$0xff]
        %v8682 = vld [vmem:[#allocation6 + $0x4a] sm:$0xff]
        %v8683 = vld [vmem:[#allocation6 + $0x52] sm:$0xff]
        %v8684 = vld [vmem:[#allocation6 + $0x62] sm:$0xff]
        %v8685 = vld [vmem:[#allocation6 + $0x6a] sm:$0xff]
        %v8686 = vld [vmem:[#allocation6 + $0x7a] sm:$0xff]
        %v8687 = vld [vmem:[#allocation6 + $0x82] sm:$0xff]
        %v8688 = vld [vmem:[#allocation6 + $0x92] sm:$0xff]
        %v8689 = vld [vmem:[#allocation6 + $0x9a] sm:$0xff]
        %v8690 = vld [vmem:[#allocation6 + $0xaa] sm:$0xff]
        %v8691 = vld [vmem:[#allocation6 + $0xb2] sm:$0xff]
        %v8692 = vpack.c.bf16 %v8677, %v8676
        %v8693 = vpack.c.bf16 %v8679, %v8678
        %v8694 = vpack.c.bf16 %v8681, %v8680
        %v8695 = vpack.c.bf16 %v8683, %v8682
        %v8696 = vpack.c.bf16 %v8685, %v8684
        %v8697 = vpack.c.bf16 %v8687, %v8686
        %v8698 = vpack.c.bf16 %v8689, %v8688
        %v8699 = vpack.c.bf16 %v8691, %v8690
        %v8708 = vunpack.c.l.b16 %v8692
        %v8709 = vunpack.c.h.b16 %v8692
        %v8710 = vunpack.c.l.b16 %v8693
        %v8711 = vunpack.c.h.b16 %v8693
        %v8712 = vunpack.c.l.b16 %v8694
        %v8713 = vunpack.c.h.b16 %v8694
        %v8714 = vunpack.c.l.b16 %v8695
        %v8715 = vunpack.c.h.b16 %v8695
        %v8716 = vunpack.c.l.b16 %v8696
        %v8717 = vunpack.c.h.b16 %v8696
        %v8718 = vunpack.c.l.b16 %v8697
        %v8719 = vunpack.c.h.b16 %v8697
        %v8720 = vunpack.c.l.b16 %v8698
        %v8721 = vunpack.c.h.b16 %v8698
        %v8722 = vunpack.c.l.b16 %v8699
        %v8723 = vunpack.c.h.b16 %v8699
        %v8724 = vpack.c.b16 %v8708, %v8708
        %v8725 = vpack.c.b16 %v8709, %v8709
        %v8726 = vpack.c.b16 %v8710, %v8710
        %v8727 = vpack.c.b16 %v8711, %v8711
        %v8728 = vpack.c.b16 %v8712, %v8712
        %v8729 = vpack.c.b16 %v8713, %v8713
        %v8730 = vpack.c.b16 %v8714, %v8714
        %v8731 = vpack.c.b16 %v8715, %v8715
        %v8732 = vpack.c.b16 %v8716, %v8716
        %v8733 = vpack.c.b16 %v8717, %v8717
        %v8734 = vpack.c.b16 %v8718, %v8718
        %v8735 = vpack.c.b16 %v8719, %v8719
        %v8736 = vpack.c.b16 %v8720, %v8720
        %v8737 = vpack.c.b16 %v8721, %v8721
        %v8738 = vpack.c.b16 %v8722, %v8722
        %v8739 = vpack.c.b16 %v8723, %v8723
        %8756 = vst.msk [vmem:[#allocation7 + $0x4] sm:$0xf] %vm8530, %v8724
        %8757 = vst.msk [vmem:[#allocation7 + $0x18] sm:$0xf] %vm8530, %v8725
        %8758 = vst.msk [vmem:[#allocation7 + $0x2c] sm:$0xf] %vm8530, %v8726
        %8759 = vst.msk [vmem:[#allocation7 + $0x40] sm:$0xf] %vm8530, %v8727
        %8760 = vst.msk [vmem:[#allocation7 + $0x54] sm:$0xf] %vm8530, %v8728
        %8761 = vst.msk [vmem:[#allocation7 + $0x68] sm:$0xf] %vm8530, %v8729
        %8762 = vst.msk [vmem:[#allocation7 + $0x7c] sm:$0xf] %vm8530, %v8730
        %8763 = vst.msk [vmem:[#allocation7 + $0x90] sm:$0xf] %vm8530, %v8731
        %8764 = vst.msk [vmem:[#allocation7 + $0xa4] sm:$0xf] %vm8530, %v8732
        %8765 = vst.msk [vmem:[#allocation7 + $0xb8] sm:$0xf] %vm8530, %v8733
        %8766 = vst.msk [vmem:[#allocation7 + $0xcc] sm:$0xf] %vm8530, %v8734
        %8767 = vst.msk [vmem:[#allocation7 + $0xe0] sm:$0xf] %vm8530, %v8735
        %8768 = vst.msk [vmem:[#allocation7 + $0xf4] sm:$0xf] %vm8530, %v8736
        %8769 = vst.msk [vmem:[#allocation7 + $0x108] sm:$0xf] %vm8530, %v8737
        %8770 = vst.msk [vmem:[#allocation7 + $0x11c] sm:$0xf] %vm8530, %v8738
        %8771 = vst.msk [vmem:[#allocation7 + $0x130] sm:$0xf] %vm8530, %v8739
        %v8772 = vld [vmem:[%s8433] sm:$0xff]
        %v8773 = vld [vmem:[%s8433 + $0x8] sm:$0xff]
        %v8774 = vld [vmem:[%s8433 + $0x18] sm:$0xff]
        %v8775 = vld [vmem:[%s8433 + $0x20] sm:$0xff]
        %v8776 = vld [vmem:[%s8433 + $0x30] sm:$0xff]
        %v8777 = vld [vmem:[%s8433 + $0x38] sm:$0xff]
        %v8778 = vld [vmem:[%s8433 + $0x48] sm:$0xff]
        %v8779 = vld [vmem:[%s8433 + $0x50] sm:$0xff]
        %v8780 = vld [vmem:[%s8433 + $0x60] sm:$0xff]
        %v8781 = vld [vmem:[%s8433 + $0x68] sm:$0xff]
        %v8782 = vld [vmem:[%s8433 + $0x78] sm:$0xff]
        %v8783 = vld [vmem:[%s8433 + $0x80] sm:$0xff]
        %v8784 = vld [vmem:[%s8433 + $0x90] sm:$0xff]
        %v8785 = vld [vmem:[%s8433 + $0x98] sm:$0xff]
        %v8786 = vld [vmem:[%s8433 + $0xa8] sm:$0xff]
        %v8787 = vld [vmem:[%s8433 + $0xb0] sm:$0xff]
        %v8788 = vpack.c.bf16 %v8773, %v8772
        %v8789 = vpack.c.bf16 %v8775, %v8774
        %v8790 = vpack.c.bf16 %v8777, %v8776
        %v8791 = vpack.c.bf16 %v8779, %v8778
        %v8792 = vpack.c.bf16 %v8781, %v8780
        %v8793 = vpack.c.bf16 %v8783, %v8782
        %v8794 = vpack.c.bf16 %v8785, %v8784
        %v8795 = vpack.c.bf16 %v8787, %v8786
        %v8804 = vunpack.c.l.b16 %v8788
        %v8805 = vunpack.c.h.b16 %v8788
        %v8806 = vunpack.c.l.b16 %v8789
        %v8807 = vunpack.c.h.b16 %v8789
        %v8808 = vunpack.c.l.b16 %v8790
        %v8809 = vunpack.c.h.b16 %v8790
        %v8810 = vunpack.c.l.b16 %v8791
        %v8811 = vunpack.c.h.b16 %v8791
        %v8812 = vunpack.c.l.b16 %v8792
        %v8813 = vunpack.c.h.b16 %v8792
        %v8814 = vunpack.c.l.b16 %v8793
        %v8815 = vunpack.c.h.b16 %v8793
        %v8816 = vunpack.c.l.b16 %v8794
        %v8817 = vunpack.c.h.b16 %v8794
        %v8818 = vunpack.c.l.b16 %v8795
        %v8819 = vunpack.c.h.b16 %v8795
        %v8820 = vpack.c.b16 %v8804, %v8804
        %v8821 = vpack.c.b16 %v8805, %v8805
        %v8822 = vpack.c.b16 %v8806, %v8806
        %v8823 = vpack.c.b16 %v8807, %v8807
        %v8824 = vpack.c.b16 %v8808, %v8808
        %v8825 = vpack.c.b16 %v8809, %v8809
        %v8826 = vpack.c.b16 %v8810, %v8810
        %v8827 = vpack.c.b16 %v8811, %v8811
        %v8828 = vpack.c.b16 %v8812, %v8812
        %v8829 = vpack.c.b16 %v8813, %v8813
        %v8830 = vpack.c.b16 %v8814, %v8814
        %v8831 = vpack.c.b16 %v8815, %v8815
        %v8832 = vpack.c.b16 %v8816, %v8816
        %v8833 = vpack.c.b16 %v8817, %v8817
        %v8834 = vpack.c.b16 %v8818, %v8818
        %v8835 = vpack.c.b16 %v8819, %v8819
        %8836 = vrot.lane.b32.xlu0 %v8820, 64
        %v8837 = vpop.permute.xlu0 %8836
        %8838 = vrot.lane.b32.xlu0 %v8821, 64
        %v8839 = vpop.permute.xlu0 %8838
        %8840 = vrot.lane.b32.xlu0 %v8822, 64
        %v8841 = vpop.permute.xlu0 %8840
        %8842 = vrot.lane.b32.xlu0 %v8823, 64
        %v8843 = vpop.permute.xlu0 %8842
        %8844 = vrot.lane.b32.xlu0 %v8824, 64
        %v8845 = vpop.permute.xlu0 %8844
        %8846 = vrot.lane.b32.xlu0 %v8825, 64
        %v8847 = vpop.permute.xlu0 %8846
        %8848 = vrot.lane.b32.xlu0 %v8826, 64
        %v8849 = vpop.permute.xlu0 %8848
        %8850 = vrot.lane.b32.xlu0 %v8827, 64
        %v8851 = vpop.permute.xlu0 %8850
        %8852 = vrot.lane.b32.xlu0 %v8828, 64
        %v8853 = vpop.permute.xlu0 %8852
        %8854 = vrot.lane.b32.xlu0 %v8829, 64
        %v8855 = vpop.permute.xlu0 %8854
        %8856 = vrot.lane.b32.xlu0 %v8830, 64
        %v8857 = vpop.permute.xlu0 %8856
        %8858 = vrot.lane.b32.xlu0 %v8831, 64
        %v8859 = vpop.permute.xlu0 %8858
        %8860 = vrot.lane.b32.xlu0 %v8832, 64
        %v8861 = vpop.permute.xlu0 %8860
        %8862 = vrot.lane.b32.xlu0 %v8833, 64
        %v8863 = vpop.permute.xlu0 %8862
        %8864 = vrot.lane.b32.xlu0 %v8834, 64
        %v8865 = vpop.permute.xlu0 %8864
        %8866 = vrot.lane.b32.xlu0 %v8835, 64
        %v8867 = vpop.permute.xlu0 %8866
        %8884 = vst.msk [vmem:[#allocation7 + $0x4] sm:$0xf] %vm8659, %v8837
        %8885 = vst.msk [vmem:[#allocation7 + $0x18] sm:$0xf] %vm8659, %v8839
        %8886 = vst.msk [vmem:[#allocation7 + $0x2c] sm:$0xf] %vm8659, %v8841
        %8887 = vst.msk [vmem:[#allocation7 + $0x40] sm:$0xf] %vm8659, %v8843
        %8888 = vst.msk [vmem:[#allocation7 + $0x54] sm:$0xf] %vm8659, %v8845
        %8889 = vst.msk [vmem:[#allocation7 + $0x68] sm:$0xf] %vm8659, %v8847
        %8890 = vst.msk [vmem:[#allocation7 + $0x7c] sm:$0xf] %vm8659, %v8849
        %8891 = vst.msk [vmem:[#allocation7 + $0x90] sm:$0xf] %vm8659, %v8851
        %8892 = vst.msk [vmem:[#allocation7 + $0xa4] sm:$0xf] %vm8659, %v8853
        %8893 = vst.msk [vmem:[#allocation7 + $0xb8] sm:$0xf] %vm8659, %v8855
        %8894 = vst.msk [vmem:[#allocation7 + $0xcc] sm:$0xf] %vm8659, %v8857
        %8895 = vst.msk [vmem:[#allocation7 + $0xe0] sm:$0xf] %vm8659, %v8859
        %8896 = vst.msk [vmem:[#allocation7 + $0xf4] sm:$0xf] %vm8659, %v8861
        %8897 = vst.msk [vmem:[#allocation7 + $0x108] sm:$0xf] %vm8659, %v8863
        %8898 = vst.msk [vmem:[#allocation7 + $0x11c] sm:$0xf] %vm8659, %v8865
        %8899 = vst.msk [vmem:[#allocation7 + $0x130] sm:$0xf] %vm8659, %v8867
        %v8900 = vld [vmem:[%s8433 + $0x1] sm:$0xff]
        %v8901 = vld [vmem:[%s8433 + $0x9] sm:$0xff]
        %v8902 = vld [vmem:[%s8433 + $0x19] sm:$0xff]
        %v8903 = vld [vmem:[%s8433 + $0x21] sm:$0xff]
        %v8904 = vld [vmem:[%s8433 + $0x31] sm:$0xff]
        %v8905 = vld [vmem:[%s8433 + $0x39] sm:$0xff]
        %v8906 = vld [vmem:[%s8433 + $0x49] sm:$0xff]
        %v8907 = vld [vmem:[%s8433 + $0x51] sm:$0xff]
        %v8908 = vld [vmem:[%s8433 + $0x61] sm:$0xff]
        %v8909 = vld [vmem:[%s8433 + $0x69] sm:$0xff]
        %v8910 = vld [vmem:[%s8433 + $0x79] sm:$0xff]
        %v8911 = vld [vmem:[%s8433 + $0x81] sm:$0xff]
        %v8912 = vld [vmem:[%s8433 + $0x91] sm:$0xff]
        %v8913 = vld [vmem:[%s8433 + $0x99] sm:$0xff]
        %v8914 = vld [vmem:[%s8433 + $0xa9] sm:$0xff]
        %v8915 = vld [vmem:[%s8433 + $0xb1] sm:$0xff]
        %v8916 = vpack.c.bf16 %v8901, %v8900
        %v8917 = vpack.c.bf16 %v8903, %v8902
        %v8918 = vpack.c.bf16 %v8905, %v8904
        %v8919 = vpack.c.bf16 %v8907, %v8906
        %v8920 = vpack.c.bf16 %v8909, %v8908
        %v8921 = vpack.c.bf16 %v8911, %v8910
        %v8922 = vpack.c.bf16 %v8913, %v8912
        %v8923 = vpack.c.bf16 %v8915, %v8914
        %v8932 = vunpack.c.l.b16 %v8916
        %v8933 = vunpack.c.h.b16 %v8916
        %v8934 = vunpack.c.l.b16 %v8917
        %v8935 = vunpack.c.h.b16 %v8917
        %v8936 = vunpack.c.l.b16 %v8918
        %v8937 = vunpack.c.h.b16 %v8918
        %v8938 = vunpack.c.l.b16 %v8919
        %v8939 = vunpack.c.h.b16 %v8919
        %v8940 = vunpack.c.l.b16 %v8920
        %v8941 = vunpack.c.h.b16 %v8920
        %v8942 = vunpack.c.l.b16 %v8921
        %v8943 = vunpack.c.h.b16 %v8921
        %v8944 = vunpack.c.l.b16 %v8922
        %v8945 = vunpack.c.h.b16 %v8922
        %v8946 = vunpack.c.l.b16 %v8923
        %v8947 = vunpack.c.h.b16 %v8923
        %v8948 = vpack.c.b16 %v8932, %v8932
        %v8949 = vpack.c.b16 %v8933, %v8933
        %v8950 = vpack.c.b16 %v8934, %v8934
        %v8951 = vpack.c.b16 %v8935, %v8935
        %v8952 = vpack.c.b16 %v8936, %v8936
        %v8953 = vpack.c.b16 %v8937, %v8937
        %v8954 = vpack.c.b16 %v8938, %v8938
        %v8955 = vpack.c.b16 %v8939, %v8939
        %v8956 = vpack.c.b16 %v8940, %v8940
        %v8957 = vpack.c.b16 %v8941, %v8941
        %v8958 = vpack.c.b16 %v8942, %v8942
        %v8959 = vpack.c.b16 %v8943, %v8943
        %v8960 = vpack.c.b16 %v8944, %v8944
        %v8961 = vpack.c.b16 %v8945, %v8945
        %v8962 = vpack.c.b16 %v8946, %v8946
        %v8963 = vpack.c.b16 %v8947, %v8947
        %8980 = vst.msk [vmem:[#allocation7 + $0x8] sm:$0xf] %vm8530, %v8948
        %8981 = vst.msk [vmem:[#allocation7 + $0x1c] sm:$0xf] %vm8530, %v8949
        %8982 = vst.msk [vmem:[#allocation7 + $0x30] sm:$0xf] %vm8530, %v8950
        %8983 = vst.msk [vmem:[#allocation7 + $0x44] sm:$0xf] %vm8530, %v8951
        %8984 = vst.msk [vmem:[#allocation7 + $0x58] sm:$0xf] %vm8530, %v8952
        %8985 = vst.msk [vmem:[#allocation7 + $0x6c] sm:$0xf] %vm8530, %v8953
        %8986 = vst.msk [vmem:[#allocation7 + $0x80] sm:$0xf] %vm8530, %v8954
        %8987 = vst.msk [vmem:[#allocation7 + $0x94] sm:$0xf] %vm8530, %v8955
        %8988 = vst.msk [vmem:[#allocation7 + $0xa8] sm:$0xf] %vm8530, %v8956
        %8989 = vst.msk [vmem:[#allocation7 + $0xbc] sm:$0xf] %vm8530, %v8957
        %8990 = vst.msk [vmem:[#allocation7 + $0xd0] sm:$0xf] %vm8530, %v8958
        %8991 = vst.msk [vmem:[#allocation7 + $0xe4] sm:$0xf] %vm8530, %v8959
        %8992 = vst.msk [vmem:[#allocation7 + $0xf8] sm:$0xf] %vm8530, %v8960
        %8993 = vst.msk [vmem:[#allocation7 + $0x10c] sm:$0xf] %vm8530, %v8961
        %8994 = vst.msk [vmem:[#allocation7 + $0x120] sm:$0xf] %vm8530, %v8962
        %8995 = vst.msk [vmem:[#allocation7 + $0x134] sm:$0xf] %vm8530, %v8963
        %v8996 = vld [vmem:[%s8433 + $0x2] sm:$0xff]
        %v8997 = vld [vmem:[%s8433 + $0xa] sm:$0xff]
        %v8998 = vld [vmem:[%s8433 + $0x1a] sm:$0xff]
        %v8999 = vld [vmem:[%s8433 + $0x22] sm:$0xff]
        %v9000 = vld [vmem:[%s8433 + $0x32] sm:$0xff]
        %v9001 = vld [vmem:[%s8433 + $0x3a] sm:$0xff]
        %v9002 = vld [vmem:[%s8433 + $0x4a] sm:$0xff]
        %v9003 = vld [vmem:[%s8433 + $0x52] sm:$0xff]
        %v9004 = vld [vmem:[%s8433 + $0x62] sm:$0xff]
        %v9005 = vld [vmem:[%s8433 + $0x6a] sm:$0xff]
        %v9006 = vld [vmem:[%s8433 + $0x7a] sm:$0xff]
        %v9007 = vld [vmem:[%s8433 + $0x82] sm:$0xff]
        %v9008 = vld [vmem:[%s8433 + $0x92] sm:$0xff]
        %v9009 = vld [vmem:[%s8433 + $0x9a] sm:$0xff]
        %v9010 = vld [vmem:[%s8433 + $0xaa] sm:$0xff]
        %v9011 = vld [vmem:[%s8433 + $0xb2] sm:$0xff]
        %v9012 = vpack.c.bf16 %v8997, %v8996
        %v9013 = vpack.c.bf16 %v8999, %v8998
        %v9014 = vpack.c.bf16 %v9001, %v9000
        %v9015 = vpack.c.bf16 %v9003, %v9002
        %v9016 = vpack.c.bf16 %v9005, %v9004
        %v9017 = vpack.c.bf16 %v9007, %v9006
        %v9018 = vpack.c.bf16 %v9009, %v9008
        %v9019 = vpack.c.bf16 %v9011, %v9010
        %v9028 = vunpack.c.l.b16 %v9012
        %v9029 = vunpack.c.h.b16 %v9012
        %v9030 = vunpack.c.l.b16 %v9013
        %v9031 = vunpack.c.h.b16 %v9013
        %v9032 = vunpack.c.l.b16 %v9014
        %v9033 = vunpack.c.h.b16 %v9014
        %v9034 = vunpack.c.l.b16 %v9015
        %v9035 = vunpack.c.h.b16 %v9015
        %v9036 = vunpack.c.l.b16 %v9016
        %v9037 = vunpack.c.h.b16 %v9016
        %v9038 = vunpack.c.l.b16 %v9017
        %v9039 = vunpack.c.h.b16 %v9017
        %v9040 = vunpack.c.l.b16 %v9018
        %v9041 = vunpack.c.h.b16 %v9018
        %v9042 = vunpack.c.l.b16 %v9019
        %v9043 = vunpack.c.h.b16 %v9019
        %v9044 = vpack.c.b16 %v9028, %v9028
        %v9045 = vpack.c.b16 %v9029, %v9029
        %v9046 = vpack.c.b16 %v9030, %v9030
        %v9047 = vpack.c.b16 %v9031, %v9031
        %v9048 = vpack.c.b16 %v9032, %v9032
        %v9049 = vpack.c.b16 %v9033, %v9033
        %v9050 = vpack.c.b16 %v9034, %v9034
        %v9051 = vpack.c.b16 %v9035, %v9035
        %v9052 = vpack.c.b16 %v9036, %v9036
        %v9053 = vpack.c.b16 %v9037, %v9037
        %v9054 = vpack.c.b16 %v9038, %v9038
        %v9055 = vpack.c.b16 %v9039, %v9039
        %v9056 = vpack.c.b16 %v9040, %v9040
        %v9057 = vpack.c.b16 %v9041, %v9041
        %v9058 = vpack.c.b16 %v9042, %v9042
        %v9059 = vpack.c.b16 %v9043, %v9043
        %9060 = vrot.lane.b32.xlu0 %v9044, 64
        %v9061 = vpop.permute.xlu0 %9060
        %9062 = vrot.lane.b32.xlu0 %v9045, 64
        %v9063 = vpop.permute.xlu0 %9062
        %9064 = vrot.lane.b32.xlu0 %v9046, 64
        %v9065 = vpop.permute.xlu0 %9064
        %9066 = vrot.lane.b32.xlu0 %v9047, 64
        %v9067 = vpop.permute.xlu0 %9066
        %9068 = vrot.lane.b32.xlu0 %v9048, 64
        %v9069 = vpop.permute.xlu0 %9068
        %9070 = vrot.lane.b32.xlu0 %v9049, 64
        %v9071 = vpop.permute.xlu0 %9070
        %9072 = vrot.lane.b32.xlu0 %v9050, 64
        %v9073 = vpop.permute.xlu0 %9072
        %9074 = vrot.lane.b32.xlu0 %v9051, 64
        %v9075 = vpop.permute.xlu0 %9074
        %9076 = vrot.lane.b32.xlu0 %v9052, 64
        %v9077 = vpop.permute.xlu0 %9076
        %9078 = vrot.lane.b32.xlu0 %v9053, 64
        %v9079 = vpop.permute.xlu0 %9078
        %9080 = vrot.lane.b32.xlu0 %v9054, 64
        %v9081 = vpop.permute.xlu0 %9080
        %9082 = vrot.lane.b32.xlu0 %v9055, 64
        %v9083 = vpop.permute.xlu0 %9082
        %9084 = vrot.lane.b32.xlu0 %v9056, 64
        %v9085 = vpop.permute.xlu0 %9084
        %9086 = vrot.lane.b32.xlu0 %v9057, 64
        %v9087 = vpop.permute.xlu0 %9086
        %9088 = vrot.lane.b32.xlu0 %v9058, 64
        %v9089 = vpop.permute.xlu0 %9088
        %9090 = vrot.lane.b32.xlu0 %v9059, 64
        %v9091 = vpop.permute.xlu0 %9090
        %9108 = vst.msk [vmem:[#allocation7 + $0x8] sm:$0xf] %vm8659, %v9061
        %9109 = vst.msk [vmem:[#allocation7 + $0x1c] sm:$0xf] %vm8659, %v9063
        %9110 = vst.msk [vmem:[#allocation7 + $0x30] sm:$0xf] %vm8659, %v9065
        %9111 = vst.msk [vmem:[#allocation7 + $0x44] sm:$0xf] %vm8659, %v9067
        %9112 = vst.msk [vmem:[#allocation7 + $0x58] sm:$0xf] %vm8659, %v9069
        %9113 = vst.msk [vmem:[#allocation7 + $0x6c] sm:$0xf] %vm8659, %v9071
        %9114 = vst.msk [vmem:[#allocation7 + $0x80] sm:$0xf] %vm8659, %v9073
        %9115 = vst.msk [vmem:[#allocation7 + $0x94] sm:$0xf] %vm8659, %v9075
        %9116 = vst.msk [vmem:[#allocation7 + $0xa8] sm:$0xf] %vm8659, %v9077
        %9117 = vst.msk [vmem:[#allocation7 + $0xbc] sm:$0xf] %vm8659, %v9079
        %9118 = vst.msk [vmem:[#allocation7 + $0xd0] sm:$0xf] %vm8659, %v9081
        %9119 = vst.msk [vmem:[#allocation7 + $0xe4] sm:$0xf] %vm8659, %v9083
        %9120 = vst.msk [vmem:[#allocation7 + $0xf8] sm:$0xf] %vm8659, %v9085
        %9121 = vst.msk [vmem:[#allocation7 + $0x10c] sm:$0xf] %vm8659, %v9087
        %9122 = vst.msk [vmem:[#allocation7 + $0x120] sm:$0xf] %vm8659, %v9089
        %9123 = vst.msk [vmem:[#allocation7 + $0x134] sm:$0xf] %vm8659, %v9091
        %s9124 = scalar_lea.vmem [#allocation6], 48
        %v9125 = vld [vmem:[%s9124] sm:$0xff]
        %v9126 = vld [vmem:[%s9124 + $0x8] sm:$0xff]
        %v9127 = vld [vmem:[%s9124 + $0x18] sm:$0xff]
        %v9128 = vld [vmem:[%s9124 + $0x20] sm:$0xff]
        %v9129 = vld [vmem:[%s9124 + $0x30] sm:$0xff]
        %v9130 = vld [vmem:[%s9124 + $0x38] sm:$0xff]
        %v9131 = vld [vmem:[%s9124 + $0x48] sm:$0xff]
        %v9132 = vld [vmem:[%s9124 + $0x50] sm:$0xff]
        %v9133 = vld [vmem:[%s9124 + $0x60] sm:$0xff]
        %v9134 = vld [vmem:[%s9124 + $0x68] sm:$0xff]
        %v9135 = vld [vmem:[%s9124 + $0x78] sm:$0xff]
        %v9136 = vld [vmem:[%s9124 + $0x80] sm:$0xff]
        %v9137 = vld [vmem:[%s9124 + $0x90] sm:$0xff]
        %v9138 = vld [vmem:[%s9124 + $0x98] sm:$0xff]
        %v9139 = vld [vmem:[%s9124 + $0xa8] sm:$0xff]
        %v9140 = vld [vmem:[%s9124 + $0xb0] sm:$0xff]
        %v9141 = vpack.c.bf16 %v9126, %v9125
        %v9142 = vpack.c.bf16 %v9128, %v9127
        %v9143 = vpack.c.bf16 %v9130, %v9129
        %v9144 = vpack.c.bf16 %v9132, %v9131
        %v9145 = vpack.c.bf16 %v9134, %v9133
        %v9146 = vpack.c.bf16 %v9136, %v9135
        %v9147 = vpack.c.bf16 %v9138, %v9137
        %v9148 = vpack.c.bf16 %v9140, %v9139
        %v9157 = vunpack.c.l.b16 %v9141
        %v9158 = vunpack.c.h.b16 %v9141
        %v9159 = vunpack.c.l.b16 %v9142
        %v9160 = vunpack.c.h.b16 %v9142
        %v9161 = vunpack.c.l.b16 %v9143
        %v9162 = vunpack.c.h.b16 %v9143
        %v9163 = vunpack.c.l.b16 %v9144
        %v9164 = vunpack.c.h.b16 %v9144
        %v9165 = vunpack.c.l.b16 %v9145
        %v9166 = vunpack.c.h.b16 %v9145
        %v9167 = vunpack.c.l.b16 %v9146
        %v9168 = vunpack.c.h.b16 %v9146
        %v9169 = vunpack.c.l.b16 %v9147
        %v9170 = vunpack.c.h.b16 %v9147
        %v9171 = vunpack.c.l.b16 %v9148
        %v9172 = vunpack.c.h.b16 %v9148
        %v9173 = vpack.c.b16 %v9157, %v9157
        %v9174 = vpack.c.b16 %v9158, %v9158
        %v9175 = vpack.c.b16 %v9159, %v9159
        %v9176 = vpack.c.b16 %v9160, %v9160
        %v9177 = vpack.c.b16 %v9161, %v9161
        %v9178 = vpack.c.b16 %v9162, %v9162
        %v9179 = vpack.c.b16 %v9163, %v9163
        %v9180 = vpack.c.b16 %v9164, %v9164
        %v9181 = vpack.c.b16 %v9165, %v9165
        %v9182 = vpack.c.b16 %v9166, %v9166
        %v9183 = vpack.c.b16 %v9167, %v9167
        %v9184 = vpack.c.b16 %v9168, %v9168
        %v9185 = vpack.c.b16 %v9169, %v9169
        %v9186 = vpack.c.b16 %v9170, %v9170
        %v9187 = vpack.c.b16 %v9171, %v9171
        %v9188 = vpack.c.b16 %v9172, %v9172
        %9205 = vst.msk [vmem:[#allocation7 + $0xc] sm:$0xf] %vm8530, %v9173
        %9206 = vst.msk [vmem:[#allocation7 + $0x20] sm:$0xf] %vm8530, %v9174
        %9207 = vst.msk [vmem:[#allocation7 + $0x34] sm:$0xf] %vm8530, %v9175
        %9208 = vst.msk [vmem:[#allocation7 + $0x48] sm:$0xf] %vm8530, %v9176
        %9209 = vst.msk [vmem:[#allocation7 + $0x5c] sm:$0xf] %vm8530, %v9177
        %9210 = vst.msk [vmem:[#allocation7 + $0x70] sm:$0xf] %vm8530, %v9178
        %9211 = vst.msk [vmem:[#allocation7 + $0x84] sm:$0xf] %vm8530, %v9179
        %9212 = vst.msk [vmem:[#allocation7 + $0x98] sm:$0xf] %vm8530, %v9180
        %9213 = vst.msk [vmem:[#allocation7 + $0xac] sm:$0xf] %vm8530, %v9181
        %9214 = vst.msk [vmem:[#allocation7 + $0xc0] sm:$0xf] %vm8530, %v9182
        %9215 = vst.msk [vmem:[#allocation7 + $0xd4] sm:$0xf] %vm8530, %v9183
        %9216 = vst.msk [vmem:[#allocation7 + $0xe8] sm:$0xf] %vm8530, %v9184
        %9217 = vst.msk [vmem:[#allocation7 + $0xfc] sm:$0xf] %vm8530, %v9185
        %9218 = vst.msk [vmem:[#allocation7 + $0x110] sm:$0xf] %vm8530, %v9186
        %9219 = vst.msk [vmem:[#allocation7 + $0x124] sm:$0xf] %vm8530, %v9187
        %9220 = vst.msk [vmem:[#allocation7 + $0x138] sm:$0xf] %vm8530, %v9188
        %v9221 = vld [vmem:[%s9124 + $0x1] sm:$0xff]
        %v9222 = vld [vmem:[%s9124 + $0x9] sm:$0xff]
        %v9223 = vld [vmem:[%s9124 + $0x19] sm:$0xff]
        %v9224 = vld [vmem:[%s9124 + $0x21] sm:$0xff]
        %v9225 = vld [vmem:[%s9124 + $0x31] sm:$0xff]
        %v9226 = vld [vmem:[%s9124 + $0x39] sm:$0xff]
        %v9227 = vld [vmem:[%s9124 + $0x49] sm:$0xff]
        %v9228 = vld [vmem:[%s9124 + $0x51] sm:$0xff]
        %v9229 = vld [vmem:[%s9124 + $0x61] sm:$0xff]
        %v9230 = vld [vmem:[%s9124 + $0x69] sm:$0xff]
        %v9231 = vld [vmem:[%s9124 + $0x79] sm:$0xff]
        %v9232 = vld [vmem:[%s9124 + $0x81] sm:$0xff]
        %v9233 = vld [vmem:[%s9124 + $0x91] sm:$0xff]
        %v9234 = vld [vmem:[%s9124 + $0x99] sm:$0xff]
        %v9235 = vld [vmem:[%s9124 + $0xa9] sm:$0xff]
        %v9236 = vld [vmem:[%s9124 + $0xb1] sm:$0xff]
        %v9237 = vpack.c.bf16 %v9222, %v9221
        %v9238 = vpack.c.bf16 %v9224, %v9223
        %v9239 = vpack.c.bf16 %v9226, %v9225
        %v9240 = vpack.c.bf16 %v9228, %v9227
        %v9241 = vpack.c.bf16 %v9230, %v9229
        %v9242 = vpack.c.bf16 %v9232, %v9231
        %v9243 = vpack.c.bf16 %v9234, %v9233
        %v9244 = vpack.c.bf16 %v9236, %v9235
        %v9253 = vunpack.c.l.b16 %v9237
        %v9254 = vunpack.c.h.b16 %v9237
        %v9255 = vunpack.c.l.b16 %v9238
        %v9256 = vunpack.c.h.b16 %v9238
        %v9257 = vunpack.c.l.b16 %v9239
        %v9258 = vunpack.c.h.b16 %v9239
        %v9259 = vunpack.c.l.b16 %v9240
        %v9260 = vunpack.c.h.b16 %v9240
        %v9261 = vunpack.c.l.b16 %v9241
        %v9262 = vunpack.c.h.b16 %v9241
        %v9263 = vunpack.c.l.b16 %v9242
        %v9264 = vunpack.c.h.b16 %v9242
        %v9265 = vunpack.c.l.b16 %v9243
        %v9266 = vunpack.c.h.b16 %v9243
        %v9267 = vunpack.c.l.b16 %v9244
        %v9268 = vunpack.c.h.b16 %v9244
        %v9269 = vpack.c.b16 %v9253, %v9253
        %v9270 = vpack.c.b16 %v9254, %v9254
        %v9271 = vpack.c.b16 %v9255, %v9255
        %v9272 = vpack.c.b16 %v9256, %v9256
        %v9273 = vpack.c.b16 %v9257, %v9257
        %v9274 = vpack.c.b16 %v9258, %v9258
        %v9275 = vpack.c.b16 %v9259, %v9259
        %v9276 = vpack.c.b16 %v9260, %v9260
        %v9277 = vpack.c.b16 %v9261, %v9261
        %v9278 = vpack.c.b16 %v9262, %v9262
        %v9279 = vpack.c.b16 %v9263, %v9263
        %v9280 = vpack.c.b16 %v9264, %v9264
        %v9281 = vpack.c.b16 %v9265, %v9265
        %v9282 = vpack.c.b16 %v9266, %v9266
        %v9283 = vpack.c.b16 %v9267, %v9267
        %v9284 = vpack.c.b16 %v9268, %v9268
        %9285 = vrot.lane.b32.xlu0 %v9269, 64
        %v9286 = vpop.permute.xlu0 %9285
        %9287 = vrot.lane.b32.xlu0 %v9270, 64
        %v9288 = vpop.permute.xlu0 %9287
        %9289 = vrot.lane.b32.xlu0 %v9271, 64
        %v9290 = vpop.permute.xlu0 %9289
        %9291 = vrot.lane.b32.xlu0 %v9272, 64
        %v9292 = vpop.permute.xlu0 %9291
        %9293 = vrot.lane.b32.xlu0 %v9273, 64
        %v9294 = vpop.permute.xlu0 %9293
        %9295 = vrot.lane.b32.xlu0 %v9274, 64
        %v9296 = vpop.permute.xlu0 %9295
        %9297 = vrot.lane.b32.xlu0 %v9275, 64
        %v9298 = vpop.permute.xlu0 %9297
        %9299 = vrot.lane.b32.xlu0 %v9276, 64
        %v9300 = vpop.permute.xlu0 %9299
        %9301 = vrot.lane.b32.xlu0 %v9277, 64
        %v9302 = vpop.permute.xlu0 %9301
        %9303 = vrot.lane.b32.xlu0 %v9278, 64
        %v9304 = vpop.permute.xlu0 %9303
        %9305 = vrot.lane.b32.xlu0 %v9279, 64
        %v9306 = vpop.permute.xlu0 %9305
        %9307 = vrot.lane.b32.xlu0 %v9280, 64
        %v9308 = vpop.permute.xlu0 %9307
        %9309 = vrot.lane.b32.xlu0 %v9281, 64
        %v9310 = vpop.permute.xlu0 %9309
        %9311 = vrot.lane.b32.xlu0 %v9282, 64
        %v9312 = vpop.permute.xlu0 %9311
        %9313 = vrot.lane.b32.xlu0 %v9283, 64
        %v9314 = vpop.permute.xlu0 %9313
        %9315 = vrot.lane.b32.xlu0 %v9284, 64
        %v9316 = vpop.permute.xlu0 %9315
        %9333 = vst.msk [vmem:[#allocation7 + $0xc] sm:$0xf] %vm8659, %v9286
        %9334 = vst.msk [vmem:[#allocation7 + $0x20] sm:$0xf] %vm8659, %v9288
        %9335 = vst.msk [vmem:[#allocation7 + $0x34] sm:$0xf] %vm8659, %v9290
        %9336 = vst.msk [vmem:[#allocation7 + $0x48] sm:$0xf] %vm8659, %v9292
        %9337 = vst.msk [vmem:[#allocation7 + $0x5c] sm:$0xf] %vm8659, %v9294
        %9338 = vst.msk [vmem:[#allocation7 + $0x70] sm:$0xf] %vm8659, %v9296
        %9339 = vst.msk [vmem:[#allocation7 + $0x84] sm:$0xf] %vm8659, %v9298
        %9340 = vst.msk [vmem:[#allocation7 + $0x98] sm:$0xf] %vm8659, %v9300
        %9341 = vst.msk [vmem:[#allocation7 + $0xac] sm:$0xf] %vm8659, %v9302
        %9342 = vst.msk [vmem:[#allocation7 + $0xc0] sm:$0xf] %vm8659, %v9304
        %9343 = vst.msk [vmem:[#allocation7 + $0xd4] sm:$0xf] %vm8659, %v9306
        %9344 = vst.msk [vmem:[#allocation7 + $0xe8] sm:$0xf] %vm8659, %v9308
        %9345 = vst.msk [vmem:[#allocation7 + $0xfc] sm:$0xf] %vm8659, %v9310
        %9346 = vst.msk [vmem:[#allocation7 + $0x110] sm:$0xf] %vm8659, %v9312
        %9347 = vst.msk [vmem:[#allocation7 + $0x124] sm:$0xf] %vm8659, %v9314
        %9348 = vst.msk [vmem:[#allocation7 + $0x138] sm:$0xf] %vm8659, %v9316
        %v9349 = vld [vmem:[%s9124 + $0x2] sm:$0xff]
        %v9350 = vld [vmem:[%s9124 + $0xa] sm:$0xff]
        %v9351 = vld [vmem:[%s9124 + $0x1a] sm:$0xff]
        %v9352 = vld [vmem:[%s9124 + $0x22] sm:$0xff]
        %v9353 = vld [vmem:[%s9124 + $0x32] sm:$0xff]
        %v9354 = vld [vmem:[%s9124 + $0x3a] sm:$0xff]
        %v9355 = vld [vmem:[%s9124 + $0x4a] sm:$0xff]
        %v9356 = vld [vmem:[%s9124 + $0x52] sm:$0xff]
        %v9357 = vld [vmem:[%s9124 + $0x62] sm:$0xff]
        %v9358 = vld [vmem:[%s9124 + $0x6a] sm:$0xff]
        %v9359 = vld [vmem:[%s9124 + $0x7a] sm:$0xff]
        %v9360 = vld [vmem:[%s9124 + $0x82] sm:$0xff]
        %v9361 = vld [vmem:[%s9124 + $0x92] sm:$0xff]
        %v9362 = vld [vmem:[%s9124 + $0x9a] sm:$0xff]
        %v9363 = vld [vmem:[%s9124 + $0xaa] sm:$0xff]
        %v9364 = vld [vmem:[%s9124 + $0xb2] sm:$0xff]
        %v9365 = vpack.c.bf16 %v9350, %v9349
        %v9366 = vpack.c.bf16 %v9352, %v9351
        %v9367 = vpack.c.bf16 %v9354, %v9353
        %v9368 = vpack.c.bf16 %v9356, %v9355
        %v9369 = vpack.c.bf16 %v9358, %v9357
        %v9370 = vpack.c.bf16 %v9360, %v9359
        %v9371 = vpack.c.bf16 %v9362, %v9361
        %v9372 = vpack.c.bf16 %v9364, %v9363
        %v9381 = vunpack.c.l.b16 %v9365
        %v9382 = vunpack.c.h.b16 %v9365
        %v9383 = vunpack.c.l.b16 %v9366
        %v9384 = vunpack.c.h.b16 %v9366
        %v9385 = vunpack.c.l.b16 %v9367
        %v9386 = vunpack.c.h.b16 %v9367
        %v9387 = vunpack.c.l.b16 %v9368
        %v9388 = vunpack.c.h.b16 %v9368
        %v9389 = vunpack.c.l.b16 %v9369
        %v9390 = vunpack.c.h.b16 %v9369
        %v9391 = vunpack.c.l.b16 %v9370
        %v9392 = vunpack.c.h.b16 %v9370
        %v9393 = vunpack.c.l.b16 %v9371
        %v9394 = vunpack.c.h.b16 %v9371
        %v9395 = vunpack.c.l.b16 %v9372
        %v9396 = vunpack.c.h.b16 %v9372
        %v9397 = vpack.c.b16 %v9381, %v9381
        %v9398 = vpack.c.b16 %v9382, %v9382
        %v9399 = vpack.c.b16 %v9383, %v9383
        %v9400 = vpack.c.b16 %v9384, %v9384
        %v9401 = vpack.c.b16 %v9385, %v9385
        %v9402 = vpack.c.b16 %v9386, %v9386
        %v9403 = vpack.c.b16 %v9387, %v9387
        %v9404 = vpack.c.b16 %v9388, %v9388
        %v9405 = vpack.c.b16 %v9389, %v9389
        %v9406 = vpack.c.b16 %v9390, %v9390
        %v9407 = vpack.c.b16 %v9391, %v9391
        %v9408 = vpack.c.b16 %v9392, %v9392
        %v9409 = vpack.c.b16 %v9393, %v9393
        %v9410 = vpack.c.b16 %v9394, %v9394
        %v9411 = vpack.c.b16 %v9395, %v9395
        %v9412 = vpack.c.b16 %v9396, %v9396
        %9429 = vst.msk [vmem:[#allocation7 + $0x10] sm:$0xf] %vm8530, %v9397
        %9430 = vst.msk [vmem:[#allocation7 + $0x24] sm:$0xf] %vm8530, %v9398
        %9431 = vst.msk [vmem:[#allocation7 + $0x38] sm:$0xf] %vm8530, %v9399
        %9432 = vst.msk [vmem:[#allocation7 + $0x4c] sm:$0xf] %vm8530, %v9400
        %9433 = vst.msk [vmem:[#allocation7 + $0x60] sm:$0xf] %vm8530, %v9401
        %9434 = vst.msk [vmem:[#allocation7 + $0x74] sm:$0xf] %vm8530, %v9402
        %9435 = vst.msk [vmem:[#allocation7 + $0x88] sm:$0xf] %vm8530, %v9403
        %9436 = vst.msk [vmem:[#allocation7 + $0x9c] sm:$0xf] %vm8530, %v9404
        %9437 = vst.msk [vmem:[#allocation7 + $0xb0] sm:$0xf] %vm8530, %v9405
        %9438 = vst.msk [vmem:[#allocation7 + $0xc4] sm:$0xf] %vm8530, %v9406
        %9439 = vst.msk [vmem:[#allocation7 + $0xd8] sm:$0xf] %vm8530, %v9407
        %9440 = vst.msk [vmem:[#allocation7 + $0xec] sm:$0xf] %vm8530, %v9408
        %9441 = vst.msk [vmem:[#allocation7 + $0x100] sm:$0xf] %vm8530, %v9409
        %9442 = vst.msk [vmem:[#allocation7 + $0x114] sm:$0xf] %vm8530, %v9410
        %9443 = vst.msk [vmem:[#allocation7 + $0x128] sm:$0xf] %vm8530, %v9411
        %9444 = vst.msk [vmem:[#allocation7 + $0x13c] sm:$0xf] %vm8530, %v9412
        %v9445 = vld [vmem:[#allocation7] sm:$0xff]
        %v9446 = vld [vmem:[#allocation7 + $0x8] sm:$0xff]
        %v9447 = vld [vmem:[#allocation7 + $0x10] sm:$0xf]
        %v9448 = vld [vmem:[#allocation7 + $0x14] sm:$0xff]
        %v9449 = vld [vmem:[#allocation7 + $0x1c] sm:$0xff]
        %v9450 = vld [vmem:[#allocation7 + $0x24] sm:$0xf]
        %v9451 = vld [vmem:[#allocation7 + $0x28] sm:$0xff]
        %v9452 = vld [vmem:[#allocation7 + $0x30] sm:$0xff]
        %v9453 = vld [vmem:[#allocation7 + $0x38] sm:$0xf]
        %v9454 = vld [vmem:[#allocation7 + $0x3c] sm:$0xff]
        %v9455 = vld [vmem:[#allocation7 + $0x44] sm:$0xff]
        %v9456 = vld [vmem:[#allocation7 + $0x4c] sm:$0xf]
        %v9457 = vld [vmem:[#allocation7 + $0x50] sm:$0xff]
        %v9458 = vld [vmem:[#allocation7 + $0x58] sm:$0xff]
        %v9459 = vld [vmem:[#allocation7 + $0x60] sm:$0xf]
        %v9460 = vld [vmem:[#allocation7 + $0x64] sm:$0xff]
        %v9461 = vld [vmem:[#allocation7 + $0x6c] sm:$0xff]
        %v9462 = vld [vmem:[#allocation7 + $0x74] sm:$0xf]
        %v9463 = vld [vmem:[#allocation7 + $0x78] sm:$0xff]
        %v9464 = vld [vmem:[#allocation7 + $0x80] sm:$0xff]
        %v9465 = vld [vmem:[#allocation7 + $0x88] sm:$0xf]
        %v9466 = vld [vmem:[#allocation7 + $0x8c] sm:$0xff]
        %v9467 = vld [vmem:[#allocation7 + $0x94] sm:$0xff]
        %v9468 = vld [vmem:[#allocation7 + $0x9c] sm:$0xf]
        %v9469 = vld [vmem:[#allocation7 + $0xa0] sm:$0xff]
        %v9470 = vld [vmem:[#allocation7 + $0xa8] sm:$0xff]
        %v9471 = vld [vmem:[#allocation7 + $0xb0] sm:$0xf]
        %v9472 = vld [vmem:[#allocation7 + $0xb4] sm:$0xff]
        %v9473 = vld [vmem:[#allocation7 + $0xbc] sm:$0xff]
        %v9474 = vld [vmem:[#allocation7 + $0xc4] sm:$0xf]
        %v9475 = vld [vmem:[#allocation7 + $0xc8] sm:$0xff]
        %v9476 = vld [vmem:[#allocation7 + $0xd0] sm:$0xff]
        %v9477 = vld [vmem:[#allocation7 + $0xd8] sm:$0xf]
        %v9478 = vld [vmem:[#allocation7 + $0xdc] sm:$0xff]
        %v9479 = vld [vmem:[#allocation7 + $0xe4] sm:$0xff]
        %v9480 = vld [vmem:[#allocation7 + $0xec] sm:$0xf]
        %v9481 = vld [vmem:[#allocation7 + $0xf0] sm:$0xff]
        %v9482 = vld [vmem:[#allocation7 + $0xf8] sm:$0xff]
        %v9483 = vld [vmem:[#allocation7 + $0x100] sm:$0xf]
        %v9484 = vld [vmem:[#allocation7 + $0x104] sm:$0xff]
        %v9485 = vld [vmem:[#allocation7 + $0x10c] sm:$0xff]
        %v9486 = vld [vmem:[#allocation7 + $0x114] sm:$0xf]
        %v9487 = vld [vmem:[#allocation7 + $0x118] sm:$0xff]
        %v9488 = vld [vmem:[#allocation7 + $0x120] sm:$0xff]
        %v9489 = vld [vmem:[#allocation7 + $0x128] sm:$0xf]
        %v9490 = vld [vmem:[#allocation7 + $0x12c] sm:$0xff]
        %v9491 = vld [vmem:[#allocation7 + $0x134] sm:$0xff]
        %v9492 = vld [vmem:[#allocation7 + $0x13c] sm:$0xf]
        %v9493 = vld [vmem:[%s5] sm:$0xf]
        %v9494 = vld [vmem:[%s5 + $0x4] sm:$0xf]
        %v9495 = vld [vmem:[%s5 + $0x8] sm:$0xf]
        %v9496 = vld [vmem:[%s5 + $0xc] sm:$0xf]
        %v9497 = vld [vmem:[%s5 + $0x10] sm:$0xf]
        %v9498 = vld [vmem:[%s5 + $0x14] sm:$0xf]
        %v9499 = vld [vmem:[%s5 + $0x18] sm:$0xf]
        %v9500 = vld [vmem:[%s5 + $0x1c] sm:$0xf]
        %v9501 = vld [vmem:[%s5 + $0x20] sm:$0xf]
        %v9502 = vld [vmem:[%s5 + $0x24] sm:$0xf]
        %v9503 = vld [vmem:[%s5 + $0x28] sm:$0xf]
        %v9504 = vld [vmem:[%s5 + $0x2c] sm:$0xf]
        %v9505 = vld [vmem:[%s5 + $0x30] sm:$0xf]
        %v9506 = vld [vmem:[%s5 + $0x34] sm:$0xf]
        %v9507 = vld [vmem:[%s5 + $0x38] sm:$0xf]
        %v9508 = vld [vmem:[%s5 + $0x3c] sm:$0xf]
        %v9509 = vld [vmem:[%s5 + $0x40] sm:$0xf]
        %v9510 = vld [vmem:[%s5 + $0x44] sm:$0xf]
        %v9511 = vld [vmem:[%s5 + $0x48] sm:$0xf]
        %v9512 = vld [vmem:[%s5 + $0x4c] sm:$0xf]
        %v9513 = vld [vmem:[%s5 + $0x50] sm:$0xf]
        %v9514 = vld [vmem:[%s5 + $0x54] sm:$0xf]
        %v9515 = vld [vmem:[%s5 + $0x58] sm:$0xf]
        %v9516 = vld [vmem:[%s5 + $0x5c] sm:$0xf]
        %v9517 = vld [vmem:[%s5 + $0x60] sm:$0xf]
        %v9518 = vld [vmem:[%s5 + $0x64] sm:$0xf]
        %v9519 = vld [vmem:[%s5 + $0x68] sm:$0xf]
        %v9520 = vld [vmem:[%s5 + $0x6c] sm:$0xf]
        %v9521 = vld [vmem:[%s5 + $0x70] sm:$0xf]
        %v9522 = vld [vmem:[%s5 + $0x74] sm:$0xf]
        %v9523 = vld [vmem:[%s5 + $0x78] sm:$0xf]
        %v9524 = vld [vmem:[%s5 + $0x7c] sm:$0xf]
        %v9525 = vld [vmem:[%s5 + $0x80] sm:$0xf]
        %v9526 = vld [vmem:[%s5 + $0x84] sm:$0xf]
        %v9527 = vld [vmem:[%s5 + $0x88] sm:$0xf]
        %v9528 = vld [vmem:[%s5 + $0x8c] sm:$0xf]
        %v9529 = vld [vmem:[%s5 + $0x90] sm:$0xf]
        %v9530 = vld [vmem:[%s5 + $0x94] sm:$0xf]
        %v9531 = vld [vmem:[%s5 + $0x98] sm:$0xf]
        %v9532 = vld [vmem:[%s5 + $0x9c] sm:$0xf]
        %v9533 = vld [vmem:[%s5 + $0xa0] sm:$0xf]
        %v9534 = vld [vmem:[%s5 + $0xa4] sm:$0xf]
        %v9535 = vld [vmem:[%s5 + $0xa8] sm:$0xf]
        %v9536 = vld [vmem:[%s5 + $0xac] sm:$0xf]
        %v9537 = vld [vmem:[%s5 + $0xb0] sm:$0xf]
        %v9538 = vld [vmem:[%s5 + $0xb4] sm:$0xf]
        %v9539 = vld [vmem:[%s5 + $0xb8] sm:$0xf]
        %v9540 = vld [vmem:[%s5 + $0xbc] sm:$0xf]
        %v9541 = vld [vmem:[%s5 + $0xc0] sm:$0xf]
        %v9542 = vld [vmem:[%s5 + $0xc4] sm:$0xf]
        %v9543 = vld [vmem:[%s5 + $0xc8] sm:$0xf]
        %v9544 = vld [vmem:[%s5 + $0xcc] sm:$0xf]
        %v9545 = vld [vmem:[%s5 + $0xd0] sm:$0xf]
        %v9546 = vld [vmem:[%s5 + $0xd4] sm:$0xf]
        %v9547 = vld [vmem:[%s5 + $0xd8] sm:$0xf]
        %v9548 = vld [vmem:[%s5 + $0xdc] sm:$0xf]
        %v9549 = vld [vmem:[%s5 + $0xe0] sm:$0xf]
        %v9550 = vld [vmem:[%s5 + $0xe4] sm:$0xf]
        %v9551 = vld [vmem:[%s5 + $0xe8] sm:$0xf]
        %v9552 = vld [vmem:[%s5 + $0xec] sm:$0xf]
        %v9553 = vld [vmem:[%s5 + $0xf0] sm:$0xf]
        %v9554 = vld [vmem:[%s5 + $0xf4] sm:$0xf]
        %v9555 = vld [vmem:[%s5 + $0xf8] sm:$0xf]
        %v9556 = vld [vmem:[%s5 + $0xfc] sm:$0xf]
        %v9557 = vld [vmem:[%s5 + $0x100] sm:$0xf]
        %v9558 = vld [vmem:[%s5 + $0x104] sm:$0xf]
        %v9559 = vld [vmem:[%s5 + $0x108] sm:$0xf]
        %v9560 = vld [vmem:[%s5 + $0x10c] sm:$0xf]
        %v9561 = vld [vmem:[%s5 + $0x110] sm:$0xf]
        %v9562 = vld [vmem:[%s5 + $0x114] sm:$0xf]
        %v9563 = vld [vmem:[%s5 + $0x118] sm:$0xf]
        %v9564 = vld [vmem:[%s5 + $0x11c] sm:$0xf]
        %v9565 = vld [vmem:[%s6] sm:$0x1]
        %v9567 = vlaneseq
        %v9568 = vshrl.u32 %v9567, 7
        %v9569 = vsub.s32 0, %v9568
        %v9570 = vrot.slane %v9565, %v9569
        %v9620 = vunpack.c.l.b16 %v9445
        %v9621 = vunpack.c.h.b16 %v9445
        %v9622 = vunpack.c.l.b16 %v9446
        %v9623 = vunpack.c.h.b16 %v9446
        %v9624 = vunpack.c.l.b16 %v9447
        %v9625 = vunpack.c.l.b16 %v9448
        %v9626 = vunpack.c.h.b16 %v9448
        %v9627 = vunpack.c.l.b16 %v9449
        %v9628 = vunpack.c.h.b16 %v9449
        %v9629 = vunpack.c.l.b16 %v9450
        %v9630 = vunpack.c.l.b16 %v9451
        %v9631 = vunpack.c.h.b16 %v9451
        %v9632 = vunpack.c.l.b16 %v9452
        %v9633 = vunpack.c.h.b16 %v9452
        %v9634 = vunpack.c.l.b16 %v9453
        %v9635 = vunpack.c.l.b16 %v9454
        %v9636 = vunpack.c.h.b16 %v9454
        %v9637 = vunpack.c.l.b16 %v9455
        %v9638 = vunpack.c.h.b16 %v9455
        %v9639 = vunpack.c.l.b16 %v9456
        %v9640 = vunpack.c.l.b16 %v9457
        %v9641 = vunpack.c.h.b16 %v9457
        %v9642 = vunpack.c.l.b16 %v9458
        %v9643 = vunpack.c.h.b16 %v9458
        %v9644 = vunpack.c.l.b16 %v9459
        %v9645 = vunpack.c.l.b16 %v9460
        %v9646 = vunpack.c.h.b16 %v9460
        %v9647 = vunpack.c.l.b16 %v9461
        %v9648 = vunpack.c.h.b16 %v9461
        %v9649 = vunpack.c.l.b16 %v9462
        %v9650 = vunpack.c.l.b16 %v9463
        %v9651 = vunpack.c.h.b16 %v9463
        %v9652 = vunpack.c.l.b16 %v9464
        %v9653 = vunpack.c.h.b16 %v9464
        %v9654 = vunpack.c.l.b16 %v9465
        %v9655 = vunpack.c.l.b16 %v9466
        %v9656 = vunpack.c.h.b16 %v9466
        %v9657 = vunpack.c.l.b16 %v9467
        %v9658 = vunpack.c.h.b16 %v9467
        %v9659 = vunpack.c.l.b16 %v9468
        %v9660 = vunpack.c.l.b16 %v9469
        %v9661 = vunpack.c.h.b16 %v9469
        %v9662 = vunpack.c.l.b16 %v9470
        %v9663 = vunpack.c.h.b16 %v9470
        %v9664 = vunpack.c.l.b16 %v9471
        %v9665 = vunpack.c.l.b16 %v9472
        %v9666 = vunpack.c.h.b16 %v9472
        %v9667 = vunpack.c.l.b16 %v9473
        %v9668 = vunpack.c.h.b16 %v9473
        %v9669 = vunpack.c.l.b16 %v9474
        %v9670 = vunpack.c.l.b16 %v9475
        %v9671 = vunpack.c.h.b16 %v9475
        %v9672 = vunpack.c.l.b16 %v9476
        %v9673 = vunpack.c.h.b16 %v9476
        %v9674 = vunpack.c.l.b16 %v9477
        %v9675 = vunpack.c.l.b16 %v9478
        %v9676 = vunpack.c.h.b16 %v9478
        %v9677 = vunpack.c.l.b16 %v9479
        %v9678 = vunpack.c.h.b16 %v9479
        %v9679 = vunpack.c.l.b16 %v9480
        %v9680 = vunpack.c.l.b16 %v9481
        %v9681 = vunpack.c.h.b16 %v9481
        %v9682 = vunpack.c.l.b16 %v9482
        %v9683 = vunpack.c.h.b16 %v9482
        %v9684 = vunpack.c.l.b16 %v9483
        %v9685 = vunpack.c.l.b16 %v9484
        %v9686 = vunpack.c.h.b16 %v9484
        %v9687 = vunpack.c.l.b16 %v9485
        %v9688 = vunpack.c.h.b16 %v9485
        %v9689 = vunpack.c.l.b16 %v9486
        %v9690 = vunpack.c.l.b16 %v9487
        %v9691 = vunpack.c.h.b16 %v9487
        %v9692 = vunpack.c.l.b16 %v9488
        %v9693 = vunpack.c.h.b16 %v9488
        %v9694 = vunpack.c.l.b16 %v9489
        %v9695 = vunpack.c.l.b16 %v9490
        %v9696 = vunpack.c.h.b16 %v9490
        %v9697 = vunpack.c.l.b16 %v9491
        %v9698 = vunpack.c.h.b16 %v9491
        %v9699 = vunpack.c.l.b16 %v9492
        %v9700 = vpack.c.b16 %v9625, %v9620
        %v9701 = vpack.c.b16 %v9626, %v9621
        %v9702 = vpack.c.b16 %v9627, %v9622
        %v9703 = vpack.c.b16 %v9628, %v9623
        %v9704 = vpack.c.b16 %v9629, %v9624
        %v9705 = vpack.c.b16 %v9635, %v9630
        %v9706 = vpack.c.b16 %v9636, %v9631
        %v9707 = vpack.c.b16 %v9637, %v9632
        %v9708 = vpack.c.b16 %v9638, %v9633
        %v9709 = vpack.c.b16 %v9639, %v9634
        %v9710 = vpack.c.b16 %v9645, %v9640
        %v9711 = vpack.c.b16 %v9646, %v9641
        %v9712 = vpack.c.b16 %v9647, %v9642
        %v9713 = vpack.c.b16 %v9648, %v9643
        %v9714 = vpack.c.b16 %v9649, %v9644
        %v9715 = vpack.c.b16 %v9655, %v9650
        %v9716 = vpack.c.b16 %v9656, %v9651
        %v9717 = vpack.c.b16 %v9657, %v9652
        %v9718 = vpack.c.b16 %v9658, %v9653
        %v9719 = vpack.c.b16 %v9659, %v9654
        %v9720 = vpack.c.b16 %v9665, %v9660
        %v9721 = vpack.c.b16 %v9666, %v9661
        %v9722 = vpack.c.b16 %v9667, %v9662
        %v9723 = vpack.c.b16 %v9668, %v9663
        %v9724 = vpack.c.b16 %v9669, %v9664
        %v9725 = vpack.c.b16 %v9675, %v9670
        %v9726 = vpack.c.b16 %v9676, %v9671
        %v9727 = vpack.c.b16 %v9677, %v9672
        %v9728 = vpack.c.b16 %v9678, %v9673
        %v9729 = vpack.c.b16 %v9679, %v9674
        %v9730 = vpack.c.b16 %v9685, %v9680
        %v9731 = vpack.c.b16 %v9686, %v9681
        %v9732 = vpack.c.b16 %v9687, %v9682
        %v9733 = vpack.c.b16 %v9688, %v9683
        %v9734 = vpack.c.b16 %v9689, %v9684
        %v9735 = vpack.c.b16 %v9695, %v9690
        %v9736 = vpack.c.b16 %v9696, %v9691
        %v9737 = vpack.c.b16 %v9697, %v9692
        %v9738 = vpack.c.b16 %v9698, %v9693
        %v9739 = vpack.c.b16 %v9699, %v9694
        %v9844 = vunpack.c.l.b16 %v9493
        %v9845 = vunpack.c.l.b16 %v9494
        %v9846 = vunpack.c.l.b16 %v9495
        %v9847 = vunpack.c.l.b16 %v9496
        %v9848 = vunpack.c.l.b16 %v9497
        %v9849 = vunpack.c.l.b16 %v9498
        %v9850 = vunpack.c.l.b16 %v9499
        %v9851 = vunpack.c.l.b16 %v9500
        %v9852 = vunpack.c.l.b16 %v9501
        %v9853 = vunpack.c.l.b16 %v9502
        %v9854 = vunpack.c.l.b16 %v9503
        %v9855 = vunpack.c.l.b16 %v9504
        %v9856 = vunpack.c.l.b16 %v9505
        %v9857 = vunpack.c.l.b16 %v9506
        %v9858 = vunpack.c.l.b16 %v9507
        %v9859 = vunpack.c.l.b16 %v9508
        %v9860 = vunpack.c.l.b16 %v9509
        %v9861 = vunpack.c.l.b16 %v9510
        %v9862 = vunpack.c.l.b16 %v9511
        %v9863 = vunpack.c.l.b16 %v9512
        %v9864 = vunpack.c.l.b16 %v9513
        %v9865 = vunpack.c.l.b16 %v9514
        %v9866 = vunpack.c.l.b16 %v9515
        %v9867 = vunpack.c.l.b16 %v9516
        %v9868 = vunpack.c.l.b16 %v9517
        %v9869 = vunpack.c.l.b16 %v9518
        %v9870 = vunpack.c.l.b16 %v9519
        %v9871 = vunpack.c.l.b16 %v9520
        %v9872 = vunpack.c.l.b16 %v9521
        %v9873 = vunpack.c.l.b16 %v9522
        %v9874 = vunpack.c.l.b16 %v9523
        %v9875 = vunpack.c.l.b16 %v9524
        %v9876 = vunpack.c.l.b16 %v9525
        %v9877 = vunpack.c.l.b16 %v9526
        %v9878 = vunpack.c.l.b16 %v9527
        %v9879 = vunpack.c.l.b16 %v9528
        %v9880 = vunpack.c.l.b16 %v9529
        %v9881 = vunpack.c.l.b16 %v9530
        %v9882 = vunpack.c.l.b16 %v9531
        %v9883 = vunpack.c.l.b16 %v9532
        %v9884 = vunpack.c.l.b16 %v9533
        %v9885 = vunpack.c.l.b16 %v9534
        %v9886 = vunpack.c.l.b16 %v9535
        %v9887 = vunpack.c.l.b16 %v9536
        %v9888 = vunpack.c.l.b16 %v9537
        %v9889 = vunpack.c.l.b16 %v9538
        %v9890 = vunpack.c.l.b16 %v9539
        %v9891 = vunpack.c.l.b16 %v9540
        %v9892 = vunpack.c.l.b16 %v9541
        %v9893 = vunpack.c.l.b16 %v9542
        %v9894 = vunpack.c.l.b16 %v9543
        %v9895 = vunpack.c.l.b16 %v9544
        %v9896 = vunpack.c.l.b16 %v9545
        %v9897 = vunpack.c.l.b16 %v9546
        %v9898 = vunpack.c.l.b16 %v9547
        %v9899 = vunpack.c.l.b16 %v9548
        %v9900 = vunpack.c.l.b16 %v9549
        %v9901 = vunpack.c.l.b16 %v9550
        %v9902 = vunpack.c.l.b16 %v9551
        %v9903 = vunpack.c.l.b16 %v9552
        %v9904 = vunpack.c.l.b16 %v9553
        %v9905 = vunpack.c.l.b16 %v9554
        %v9906 = vunpack.c.l.b16 %v9555
        %v9907 = vunpack.c.l.b16 %v9556
        %v9908 = vunpack.c.l.b16 %v9557
        %v9909 = vunpack.c.l.b16 %v9558
        %v9910 = vunpack.c.l.b16 %v9559
        %v9911 = vunpack.c.l.b16 %v9560
        %v9912 = vunpack.c.l.b16 %v9561
        %v9913 = vunpack.c.l.b16 %v9562
        %v9914 = vunpack.c.l.b16 %v9563
        %v9915 = vunpack.c.l.b16 %v9564
        %v9916 = vpack.c.b16 %v9845, %v9844
        %v9917 = vpack.c.b16 %v9847, %v9846
        %v9918 = vpack.c.b16 %v9849, %v9848
        %v9919 = vpack.c.b16 %v9851, %v9850
        %v9920 = vpack.c.b16 %v9853, %v9852
        %v9921 = vpack.c.b16 %v9855, %v9854
        %v9922 = vpack.c.b16 %v9857, %v9856
        %v9923 = vpack.c.b16 %v9859, %v9858
        %v9924 = vpack.c.b16 %v9861, %v9860
        %v9925 = vpack.c.b16 %v9863, %v9862
        %v9926 = vpack.c.b16 %v9865, %v9864
        %v9927 = vpack.c.b16 %v9867, %v9866
        %v9928 = vpack.c.b16 %v9869, %v9868
        %v9929 = vpack.c.b16 %v9871, %v9870
        %v9930 = vpack.c.b16 %v9873, %v9872
        %v9931 = vpack.c.b16 %v9875, %v9874
        %v9932 = vpack.c.b16 %v9877, %v9876
        %v9933 = vpack.c.b16 %v9879, %v9878
        %v9934 = vpack.c.b16 %v9881, %v9880
        %v9935 = vpack.c.b16 %v9883, %v9882
        %v9936 = vpack.c.b16 %v9885, %v9884
        %v9937 = vpack.c.b16 %v9887, %v9886
        %v9938 = vpack.c.b16 %v9889, %v9888
        %v9939 = vpack.c.b16 %v9891, %v9890
        %v9940 = vpack.c.b16 %v9893, %v9892
        %v9941 = vpack.c.b16 %v9895, %v9894
        %v9942 = vpack.c.b16 %v9897, %v9896
        %v9943 = vpack.c.b16 %v9899, %v9898
        %v9944 = vpack.c.b16 %v9901, %v9900
        %v9945 = vpack.c.b16 %v9903, %v9902
        %v9946 = vpack.c.b16 %v9905, %v9904
        %v9947 = vpack.c.b16 %v9907, %v9906
        %v9948 = vpack.c.b16 %v9909, %v9908
        %v9949 = vpack.c.b16 %v9911, %v9910
        %v9950 = vpack.c.b16 %v9913, %v9912
        %v9951 = vpack.c.b16 %v9915, %v9914
        %v9989 = vsel %vm8401, %v9704, 0
        %v9992 = vsel %vm8401, %v9709, 0
        %v9995 = vsel %vm8401, %v9714, 0
        %v9998 = vsel %vm8401, %v9719, 0
        %v10001 = vsel %vm8401, %v9724, 0
        %v10004 = vsel %vm8401, %v9729, 0
        %v10007 = vsel %vm8401, %v9734, 0
        %v10010 = vsel %vm8401, %v9739, 0
        %10012 = vmatprep.subr.bf16.mxu0 0
        %10013 = vmatpush1.bf16.msra.mxu0 %v9923
        %10014 = vmatprep.subr.bf16.mxu0 0
        %10015 = vmatpush1.bf16.msra.mxu0 %v9922
        %10016 = vmatprep.subr.bf16.mxu0 0
        %10017 = vmatpush1.bf16.msra.mxu0 %v9921
        %10018 = vmatprep.subr.bf16.mxu0 0
        %10019 = vmatpush1.bf16.msra.mxu0 %v9920
        %10020 = vmatprep.subr.bf16.mxu0 0
        %10021 = vmatpush1.bf16.msra.mxu0 %v9919
        %10022 = vmatprep.subr.bf16.mxu0 0
        %10023 = vmatpush1.bf16.msra.mxu0 %v9918
        %10024 = vmatprep.subr.bf16.mxu0 0
        %10025 = vmatpush1.bf16.msra.mxu0 %v9917
        %10026 = vmatprep.subr.bf16.mxu0 0
        %10027 = vmatpush1.bf16.msra.mxu0 %v9916
        %10028 = vmatprep.subr.bf16.mxu0 0
        %10029 = vmatpush2.bf16.msra.mxu0 %v9931
        %10030 = vmatprep.subr.bf16.mxu0 0
        %10031 = vmatpush2.bf16.msra.mxu0 %v9930
        %10032 = vmatprep.subr.bf16.mxu0 0
        %10033 = vmatpush2.bf16.msra.mxu0 %v9929
        %10034 = vmatprep.subr.bf16.mxu0 0
        %10035 = vmatpush2.bf16.msra.mxu0 %v9928
        %10036 = vmatprep.subr.bf16.mxu0 0
        %10037 = vmatpush2.bf16.msra.mxu0 %v9927
        %10038 = vmatprep.subr.bf16.mxu0 0
        %10039 = vmatpush2.bf16.msra.mxu0 %v9926
        %10040 = vmatprep.subr.bf16.mxu0 0
        %10041 = vmatpush2.bf16.msra.mxu0 %v9925
        %10042 = vmatprep.subr.bf16.mxu0 0
        %10043 = vmatpush2.bf16.msra.mxu0 %v9924
        %10044 = vmatprep.mubr.bf16.mxu0 %v9701
        %10045 = vmatmul.mubr.bf16.gmra.mxu0 %v9700
        %v10046 = vpop.f32.mrf.mxu0
        %v10047 = vadd.f32 %v9570, %v10046
        %v10048 = vpop.f32.mrf.mxu0
        %v10049 = vpop.f32.mrf.mxu0
        %v10050 = vadd.f32 %v9570, %v10049
        %v10051 = vpop.f32.mrf.mxu0
        %10052 = vmatprep.mubr.bf16.mxu0 %v9706
        %10053 = vmatmul.mubr.bf16.gmra.mxu0 %v9705
        %v10054 = vpop.f32.mrf.mxu0
        %v10055 = vpop.f32.mrf.mxu0
        %v10056 = vpop.f32.mrf.mxu0
        %v10057 = vpop.f32.mrf.mxu0
        %10058 = vmatprep.mubr.bf16.mxu0 %v9711
        %10059 = vmatmul.mubr.bf16.gmra.mxu0 %v9710
        %v10060 = vpop.f32.mrf.mxu0
        %v10061 = vadd.f32 %v9570, %v10060
        %v10062 = vpop.f32.mrf.mxu0
        %v10063 = vpop.f32.mrf.mxu0
        %v10064 = vadd.f32 %v9570, %v10063
        %v10065 = vpop.f32.mrf.mxu0
        %10066 = vmatprep.mubr.bf16.mxu0 %v9716
        %10067 = vmatmul.mubr.bf16.gmra.mxu0 %v9715
        %v10068 = vpop.f32.mrf.mxu0
        %v10069 = vpop.f32.mrf.mxu0
        %v10070 = vpop.f32.mrf.mxu0
        %v10071 = vpop.f32.mrf.mxu0
        %10072 = vmatprep.mubr.bf16.mxu0 %v9721
        %10073 = vmatmul.mubr.bf16.gmra.mxu0 %v9720
        %v10074 = vpop.f32.mrf.mxu0
        %v10075 = vadd.f32 %v9570, %v10074
        %v10076 = vpop.f32.mrf.mxu0
        %v10077 = vpop.f32.mrf.mxu0
        %v10078 = vadd.f32 %v9570, %v10077
        %v10079 = vpop.f32.mrf.mxu0
        %10080 = vmatprep.mubr.bf16.mxu0 %v9726
        %10081 = vmatmul.mubr.bf16.gmra.mxu0 %v9725
        %v10082 = vpop.f32.mrf.mxu0
        %v10083 = vpop.f32.mrf.mxu0
        %v10084 = vpop.f32.mrf.mxu0
        %v10085 = vpop.f32.mrf.mxu0
        %10086 = vmatprep.mubr.bf16.mxu0 %v9731
        %10087 = vmatmul.mubr.bf16.gmra.mxu0 %v9730
        %v10088 = vpop.f32.mrf.mxu0
        %v10089 = vadd.f32 %v9570, %v10088
        %v10090 = vpop.f32.mrf.mxu0
        %v10091 = vpop.f32.mrf.mxu0
        %v10092 = vadd.f32 %v9570, %v10091
        %v10093 = vpop.f32.mrf.mxu0
        %10094 = vmatprep.mubr.bf16.mxu0 %v9736
        %10095 = vmatmul.mubr.bf16.gmra.mxu0 %v9735
        %v10096 = vpop.f32.mrf.mxu0
        %v10097 = vpop.f32.mrf.mxu0
        %v10098 = vpop.f32.mrf.mxu0
        %v10099 = vpop.f32.mrf.mxu0
        %10100 = vdwg.mxu0
        %10101 = vmatprep.subr.bf16.mxu0 0
        %10102 = vmatpush1.bf16.msra.mxu0 %v9939
        %10103 = vmatprep.subr.bf16.mxu0 0
        %10104 = vmatpush1.bf16.msra.mxu0 %v9938
        %10105 = vmatprep.subr.bf16.mxu0 0
        %10106 = vmatpush1.bf16.msra.mxu0 %v9937
        %10107 = vmatprep.subr.bf16.mxu0 0
        %10108 = vmatpush1.bf16.msra.mxu0 %v9936
        %10109 = vmatprep.subr.bf16.mxu0 0
        %10110 = vmatpush1.bf16.msra.mxu0 %v9935
        %10111 = vmatprep.subr.bf16.mxu0 0
        %10112 = vmatpush1.bf16.msra.mxu0 %v9934
        %10113 = vmatprep.subr.bf16.mxu0 0
        %10114 = vmatpush1.bf16.msra.mxu0 %v9933
        %10115 = vmatprep.subr.bf16.mxu0 0
        %10116 = vmatpush1.bf16.msra.mxu0 %v9932
        %10117 = vmatprep.subr.bf16.mxu0 0
        %10118 = vmatpush2.bf16.msra.mxu0 %v9947
        %10119 = vmatprep.subr.bf16.mxu0 0
        %10120 = vmatpush2.bf16.msra.mxu0 %v9946
        %10121 = vmatprep.subr.bf16.mxu0 0
        %10122 = vmatpush2.bf16.msra.mxu0 %v9945
        %10123 = vmatprep.subr.bf16.mxu0 0
        %10124 = vmatpush2.bf16.msra.mxu0 %v9944
        %10125 = vmatprep.subr.bf16.mxu0 0
        %10126 = vmatpush2.bf16.msra.mxu0 %v9943
        %10127 = vmatprep.subr.bf16.mxu0 0
        %10128 = vmatpush2.bf16.msra.mxu0 %v9942
        %10129 = vmatprep.subr.bf16.mxu0 0
        %10130 = vmatpush2.bf16.msra.mxu0 %v9941
        %10131 = vmatprep.subr.bf16.mxu0 0
        %10132 = vmatpush2.bf16.msra.mxu0 %v9940
        %10133 = vmatprep.mubr.bf16.mxu0 %v9703
        %10134 = vmatmul.mubr.bf16.gmra.mxu0 %v9702
        %v10135 = vpop.f32.mrf.mxu0
        %v10136 = vadd.f32 %v10047, %v10135
        %v10137 = vpop.f32.mrf.mxu0
        %v10138 = vpop.f32.mrf.mxu0
        %v10139 = vadd.f32 %v10050, %v10138
        %v10140 = vpop.f32.mrf.mxu0
        %10141 = vmatprep.mubr.bf16.mxu0 %v9708
        %10142 = vmatmul.mubr.bf16.gmra.mxu0 %v9707
        %v10143 = vpop.f32.mrf.mxu0
        %v10144 = vpop.f32.mrf.mxu0
        %v10145 = vpop.f32.mrf.mxu0
        %v10146 = vpop.f32.mrf.mxu0
        %10147 = vmatprep.mubr.bf16.mxu0 %v9713
        %10148 = vmatmul.mubr.bf16.gmra.mxu0 %v9712
        %v10149 = vpop.f32.mrf.mxu0
        %v10150 = vadd.f32 %v10061, %v10149
        %v10151 = vpop.f32.mrf.mxu0
        %v10152 = vpop.f32.mrf.mxu0
        %v10153 = vadd.f32 %v10064, %v10152
        %v10154 = vpop.f32.mrf.mxu0
        %10155 = vmatprep.mubr.bf16.mxu0 %v9718
        %10156 = vmatmul.mubr.bf16.gmra.mxu0 %v9717
        %v10157 = vpop.f32.mrf.mxu0
        %v10158 = vpop.f32.mrf.mxu0
        %v10159 = vpop.f32.mrf.mxu0
        %v10160 = vpop.f32.mrf.mxu0
        %10161 = vmatprep.mubr.bf16.mxu0 %v9723
        %10162 = vmatmul.mubr.bf16.gmra.mxu0 %v9722
        %v10163 = vpop.f32.mrf.mxu0
        %v10164 = vadd.f32 %v10075, %v10163
        %v10165 = vpop.f32.mrf.mxu0
        %v10166 = vpop.f32.mrf.mxu0
        %v10167 = vadd.f32 %v10078, %v10166
        %v10168 = vpop.f32.mrf.mxu0
        %10169 = vmatprep.mubr.bf16.mxu0 %v9728
        %10170 = vmatmul.mubr.bf16.gmra.mxu0 %v9727
        %v10171 = vpop.f32.mrf.mxu0
        %v10172 = vpop.f32.mrf.mxu0
        %v10173 = vpop.f32.mrf.mxu0
        %v10174 = vpop.f32.mrf.mxu0
        %10175 = vmatprep.mubr.bf16.mxu0 %v9733
        %10176 = vmatmul.mubr.bf16.gmra.mxu0 %v9732
        %v10177 = vpop.f32.mrf.mxu0
        %v10178 = vadd.f32 %v10089, %v10177
        %v10179 = vpop.f32.mrf.mxu0
        %v10180 = vpop.f32.mrf.mxu0
        %v10181 = vadd.f32 %v10092, %v10180
        %v10182 = vpop.f32.mrf.mxu0
        %10183 = vmatprep.mubr.bf16.mxu0 %v9738
        %10184 = vmatmul.mubr.bf16.gmra.mxu0 %v9737
        %v10185 = vpop.f32.mrf.mxu0
        %v10186 = vpop.f32.mrf.mxu0
        %v10187 = vpop.f32.mrf.mxu0
        %v10188 = vpop.f32.mrf.mxu0
        %10189 = vdwg.mxu0
        %10190 = vmatprep.subr.bf16.mxu0 0
        %10191 = vmatpush1.bf16.msra.mxu0 0
        %10192 = vmatprep.subr.bf16.mxu0 0
        %10193 = vmatpush1.bf16.msra.mxu0 0
        %10194 = vmatprep.subr.bf16.mxu0 0
        %10195 = vmatpush1.bf16.msra.mxu0 0
        %10196 = vmatprep.subr.bf16.mxu0 0
        %10197 = vmatpush1.bf16.msra.mxu0 0
        %10198 = vmatprep.subr.bf16.mxu0 0
        %10199 = vmatpush1.bf16.msra.mxu0 %v9951
        %10200 = vmatprep.subr.bf16.mxu0 0
        %10201 = vmatpush1.bf16.msra.mxu0 %v9950
        %10202 = vmatprep.subr.bf16.mxu0 0
        %10203 = vmatpush1.bf16.msra.mxu0 %v9949
        %10204 = vmatprep.subr.bf16.mxu0 0
        %10205 = vmatpush1.bf16.msra.mxu0 %v9948
        %10206 = vmatprep.subr.bf16.mxu0 0
        %10207 = vmatpush2.bf16.msra.mxu0 0
        %10208 = vmatprep.subr.bf16.mxu0 0
        %10209 = vmatpush2.bf16.msra.mxu0 0
        %10210 = vmatprep.subr.bf16.mxu0 0
        %10211 = vmatpush2.bf16.msra.mxu0 0
        %10212 = vmatprep.subr.bf16.mxu0 0
        %10213 = vmatpush2.bf16.msra.mxu0 0
        %10214 = vmatprep.subr.bf16.mxu0 0
        %10215 = vmatpush2.bf16.msra.mxu0 0
        %10216 = vmatprep.subr.bf16.mxu0 0
        %10217 = vmatpush2.bf16.msra.mxu0 0
        %10218 = vmatprep.subr.bf16.mxu0 0
        %10219 = vmatpush2.bf16.msra.mxu0 0
        %10220 = vmatprep.subr.bf16.mxu0 0
        %10221 = vmatpush2.bf16.msra.mxu0 0
        %10222 = vmatprep.mubr.bf16.mxu0 0
        %10223 = vmatmul.mubr.bf16.gmra.mxu0 %v9989
        %v10224 = vpop.f32.mrf.mxu0
        %v10225 = vadd.f32 %v10136, %v10224
        %v10226 = vpop.f32.mrf.mxu0
        %v10227 = vpop.f32.mrf.mxu0
        %v10228 = vadd.f32 %v10139, %v10227
        %v10229 = vpop.f32.mrf.mxu0
        %10230 = vmatprep.mubr.bf16.mxu0 0
        %10231 = vmatmul.mubr.bf16.gmra.mxu0 %v9992
        %v10232 = vpop.f32.mrf.mxu0
        %v10233 = vpop.f32.mrf.mxu0
        %v10234 = vpop.f32.mrf.mxu0
        %v10235 = vpop.f32.mrf.mxu0
        %10236 = vmatprep.mubr.bf16.mxu0 0
        %10237 = vmatmul.mubr.bf16.gmra.mxu0 %v9995
        %v10238 = vpop.f32.mrf.mxu0
        %v10239 = vadd.f32 %v10150, %v10238
        %v10240 = vpop.f32.mrf.mxu0
        %v10241 = vpop.f32.mrf.mxu0
        %v10242 = vadd.f32 %v10153, %v10241
        %v10243 = vpop.f32.mrf.mxu0
        %10244 = vmatprep.mubr.bf16.mxu0 0
        %10245 = vmatmul.mubr.bf16.gmra.mxu0 %v9998
        %v10246 = vpop.f32.mrf.mxu0
        %v10247 = vpop.f32.mrf.mxu0
        %v10248 = vpop.f32.mrf.mxu0
        %v10249 = vpop.f32.mrf.mxu0
        %10250 = vmatprep.mubr.bf16.mxu0 0
        %10251 = vmatmul.mubr.bf16.gmra.mxu0 %v10001
        %v10252 = vpop.f32.mrf.mxu0
        %v10253 = vadd.f32 %v10164, %v10252
        %v10254 = vpop.f32.mrf.mxu0
        %v10255 = vpop.f32.mrf.mxu0
        %v10256 = vadd.f32 %v10167, %v10255
        %v10257 = vpop.f32.mrf.mxu0
        %10258 = vmatprep.mubr.bf16.mxu0 0
        %10259 = vmatmul.mubr.bf16.gmra.mxu0 %v10004
        %v10260 = vpop.f32.mrf.mxu0
        %v10261 = vpop.f32.mrf.mxu0
        %v10262 = vpop.f32.mrf.mxu0
        %v10263 = vpop.f32.mrf.mxu0
        %10264 = vmatprep.mubr.bf16.mxu0 0
        %10265 = vmatmul.mubr.bf16.gmra.mxu0 %v10007
        %v10266 = vpop.f32.mrf.mxu0
        %v10267 = vadd.f32 %v10178, %v10266
        %v10268 = vpop.f32.mrf.mxu0
        %v10269 = vpop.f32.mrf.mxu0
        %v10270 = vadd.f32 %v10181, %v10269
        %v10271 = vpop.f32.mrf.mxu0
        %10272 = vmatprep.mubr.bf16.mxu0 0
        %10273 = vmatmul.mubr.bf16.gmra.mxu0 %v10010
        %v10274 = vpop.f32.mrf.mxu0
        %v10275 = vpop.f32.mrf.mxu0
        %v10276 = vpop.f32.mrf.mxu0
        %v10277 = vpop.f32.mrf.mxu0
        %10278 = vdwg.mxu0
        %v10279 = vmax.f32 %v10225, 0.0
        %v10280 = vmax.f32 %v10228, 0.0
        %v10281 = vmax.f32 %v10239, 0.0
        %v10282 = vmax.f32 %v10242, 0.0
        %v10283 = vmax.f32 %v10253, 0.0
        %v10284 = vmax.f32 %v10256, 0.0
        %v10285 = vmax.f32 %v10267, 0.0
        %v10286 = vmax.f32 %v10270, 0.0
        %v10287 = vlaneseq
        %vm10288 = vcmp.ge.s32.totalorder %v10287, 0
        %vm10289 = vcmp.lt.s32.totalorder %v10287, 32
        %vm10290 = vmand %vm10288, %vm10289
        %10291 = vst.msk [vmem:[#allocation8] sm:$0x1] %vm10290, %v10279
        %v10294 = vunpack.c.l.s4 1966171168
        %v10295 = vunpack.c.0.s8 %v10294
        %v10296 = vlaneseq
        %v10297 = vshrl.u32 %v10296, 7
        %v10298 = vsub.s32 %v10295, %v10297
        %v10299 = vrot.slane %v10279, %v10298
        %v10301 = vunpack.c.l.s4 1966171168
        %v10302 = vunpack.c.0.s8 %v10301
        %v10303 = vlaneseq
        %v10304 = vshrl.u32 %v10303, 7
        %v10305 = vsub.s32 %v10302, %v10304
        %v10306 = vrot.slane %v10299, %v10305
        %v10307 = vcombine.high %v10306, %v10306
        %10308 = vrot.lane.b32.xlu0 %v10307, 32
        %v10309 = vpop.permute.xlu0 %10308
        %vm10311 = vcmp.ge.s32.totalorder %v10287, 32
        %vm10312 = vcmp.lt.s32.totalorder %v10287, 64
        %vm10313 = vmand %vm10311, %vm10312
        %10314 = vst.msk [vmem:[#allocation8] sm:$0x1] %vm10313, %v10309
        %v10315 = vcombine.high %v10279, %v10279
        %v10317 = vunpack.c.l.s4 1966171168
        %v10318 = vunpack.c.0.s8 %v10317
        %v10319 = vlaneseq
        %v10320 = vshrl.u32 %v10319, 7
        %v10321 = vsub.s32 %v10318, %v10320
        %v10322 = vrot.slane %v10315, %v10321
        %v10324 = vunpack.c.l.s4 1966171168
        %v10325 = vunpack.c.0.s8 %v10324
        %v10326 = vlaneseq
        %v10327 = vshrl.u32 %v10326, 7
        %v10328 = vsub.s32 %v10325, %v10327
        %v10329 = vrot.slane %v10322, %v10328
        %10330 = vrot.lane.b32.xlu0 %v10329, 64
        %v10331 = vpop.permute.xlu0 %10330
        %vm10333 = vcmp.ge.s32.totalorder %v10287, 64
        %vm10334 = vcmp.lt.s32.totalorder %v10287, 96
        %vm10335 = vmand %vm10333, %vm10334
        %10336 = vst.msk [vmem:[#allocation8] sm:$0x1] %vm10335, %v10331
        %v10337 = vcombine.high %v10329, %v10329
        %10338 = vrot.lane.b32.xlu0 %v10337, 96
        %v10339 = vpop.permute.xlu0 %10338
        %vm10341 = vcmp.ge.s32.totalorder %v10287, 96
        %vm10342 = vcmp.lt.s32.totalorder %v10287, 128
        %vm10343 = vmand %vm10341, %vm10342
        %10344 = vst.msk [vmem:[#allocation8] sm:$0x1] %vm10343, %v10339
        %10345 = vst.msk [vmem:[#allocation8 + $0x1] sm:$0x1] %vm10290, %v10280
        %v10348 = vunpack.c.l.s4 1966171168
        %v10349 = vunpack.c.0.s8 %v10348
        %v10350 = vlaneseq
        %v10351 = vshrl.u32 %v10350, 7
        %v10352 = vsub.s32 %v10349, %v10351
        %v10353 = vrot.slane %v10280, %v10352
        %v10355 = vunpack.c.l.s4 1966171168
        %v10356 = vunpack.c.0.s8 %v10355
        %v10357 = vlaneseq
        %v10358 = vshrl.u32 %v10357, 7
        %v10359 = vsub.s32 %v10356, %v10358
        %v10360 = vrot.slane %v10353, %v10359
        %v10361 = vcombine.high %v10360, %v10360
        %10362 = vrot.lane.b32.xlu0 %v10361, 32
        %v10363 = vpop.permute.xlu0 %10362
        %10365 = vst.msk [vmem:[#allocation8 + $0x1] sm:$0x1] %vm10313, %v10363
        %v10366 = vcombine.high %v10280, %v10280
        %v10368 = vunpack.c.l.s4 1966171168
        %v10369 = vunpack.c.0.s8 %v10368
        %v10370 = vlaneseq
        %v10371 = vshrl.u32 %v10370, 7
        %v10372 = vsub.s32 %v10369, %v10371
        %v10373 = vrot.slane %v10366, %v10372
        %v10375 = vunpack.c.l.s4 1966171168
        %v10376 = vunpack.c.0.s8 %v10375
        %v10377 = vlaneseq
        %v10378 = vshrl.u32 %v10377, 7
        %v10379 = vsub.s32 %v10376, %v10378
        %v10380 = vrot.slane %v10373, %v10379
        %10381 = vrot.lane.b32.xlu0 %v10380, 64
        %v10382 = vpop.permute.xlu0 %10381
        %10384 = vst.msk [vmem:[#allocation8 + $0x1] sm:$0x1] %vm10335, %v10382
        %v10385 = vcombine.high %v10380, %v10380
        %10386 = vrot.lane.b32.xlu0 %v10385, 96
        %v10387 = vpop.permute.xlu0 %10386
        %10389 = vst.msk [vmem:[#allocation8 + $0x1] sm:$0x1] %vm10343, %v10387
        %10390 = vst.msk [vmem:[#allocation8 + $0x2] sm:$0x1] %vm10290, %v10281
        %v10393 = vunpack.c.l.s4 1966171168
        %v10394 = vunpack.c.0.s8 %v10393
        %v10395 = vlaneseq
        %v10396 = vshrl.u32 %v10395, 7
        %v10397 = vsub.s32 %v10394, %v10396
        %v10398 = vrot.slane %v10281, %v10397
        %v10400 = vunpack.c.l.s4 1966171168
        %v10401 = vunpack.c.0.s8 %v10400
        %v10402 = vlaneseq
        %v10403 = vshrl.u32 %v10402, 7
        %v10404 = vsub.s32 %v10401, %v10403
        %v10405 = vrot.slane %v10398, %v10404
        %v10406 = vcombine.high %v10405, %v10405
        %10407 = vrot.lane.b32.xlu0 %v10406, 32
        %v10408 = vpop.permute.xlu0 %10407
        %10410 = vst.msk [vmem:[#allocation8 + $0x2] sm:$0x1] %vm10313, %v10408
        %v10411 = vcombine.high %v10281, %v10281
        %v10413 = vunpack.c.l.s4 1966171168
        %v10414 = vunpack.c.0.s8 %v10413
        %v10415 = vlaneseq
        %v10416 = vshrl.u32 %v10415, 7
        %v10417 = vsub.s32 %v10414, %v10416
        %v10418 = vrot.slane %v10411, %v10417
        %v10420 = vunpack.c.l.s4 1966171168
        %v10421 = vunpack.c.0.s8 %v10420
        %v10422 = vlaneseq
        %v10423 = vshrl.u32 %v10422, 7
        %v10424 = vsub.s32 %v10421, %v10423
        %v10425 = vrot.slane %v10418, %v10424
        %10426 = vrot.lane.b32.xlu0 %v10425, 64
        %v10427 = vpop.permute.xlu0 %10426
        %10429 = vst.msk [vmem:[#allocation8 + $0x2] sm:$0x1] %vm10335, %v10427
        %v10430 = vcombine.high %v10425, %v10425
        %10431 = vrot.lane.b32.xlu0 %v10430, 96
        %v10432 = vpop.permute.xlu0 %10431
        %10434 = vst.msk [vmem:[#allocation8 + $0x2] sm:$0x1] %vm10343, %v10432
        %10435 = vst.msk [vmem:[#allocation8 + $0x3] sm:$0x1] %vm10290, %v10282
        %v10438 = vunpack.c.l.s4 1966171168
        %v10439 = vunpack.c.0.s8 %v10438
        %v10440 = vlaneseq
        %v10441 = vshrl.u32 %v10440, 7
        %v10442 = vsub.s32 %v10439, %v10441
        %v10443 = vrot.slane %v10282, %v10442
        %v10445 = vunpack.c.l.s4 1966171168
        %v10446 = vunpack.c.0.s8 %v10445
        %v10447 = vlaneseq
        %v10448 = vshrl.u32 %v10447, 7
        %v10449 = vsub.s32 %v10446, %v10448
        %v10450 = vrot.slane %v10443, %v10449
        %v10451 = vcombine.high %v10450, %v10450
        %10452 = vrot.lane.b32.xlu0 %v10451, 32
        %v10453 = vpop.permute.xlu0 %10452
        %10455 = vst.msk [vmem:[#allocation8 + $0x3] sm:$0x1] %vm10313, %v10453
        %v10456 = vcombine.high %v10282, %v10282
        %v10458 = vunpack.c.l.s4 1966171168
        %v10459 = vunpack.c.0.s8 %v10458
        %v10460 = vlaneseq
        %v10461 = vshrl.u32 %v10460, 7
        %v10462 = vsub.s32 %v10459, %v10461
        %v10463 = vrot.slane %v10456, %v10462
        %v10465 = vunpack.c.l.s4 1966171168
        %v10466 = vunpack.c.0.s8 %v10465
        %v10467 = vlaneseq
        %v10468 = vshrl.u32 %v10467, 7
        %v10469 = vsub.s32 %v10466, %v10468
        %v10470 = vrot.slane %v10463, %v10469
        %10471 = vrot.lane.b32.xlu0 %v10470, 64
        %v10472 = vpop.permute.xlu0 %10471
        %10474 = vst.msk [vmem:[#allocation8 + $0x3] sm:$0x1] %vm10335, %v10472
        %v10475 = vcombine.high %v10470, %v10470
        %10476 = vrot.lane.b32.xlu0 %v10475, 96
        %v10477 = vpop.permute.xlu0 %10476
        %10479 = vst.msk [vmem:[#allocation8 + $0x3] sm:$0x1] %vm10343, %v10477
        %10480 = vst.msk [vmem:[#allocation8 + $0x4] sm:$0x1] %vm10290, %v10283
        %v10483 = vunpack.c.l.s4 1966171168
        %v10484 = vunpack.c.0.s8 %v10483
        %v10485 = vlaneseq
        %v10486 = vshrl.u32 %v10485, 7
        %v10487 = vsub.s32 %v10484, %v10486
        %v10488 = vrot.slane %v10283, %v10487
        %v10490 = vunpack.c.l.s4 1966171168
        %v10491 = vunpack.c.0.s8 %v10490
        %v10492 = vlaneseq
        %v10493 = vshrl.u32 %v10492, 7
        %v10494 = vsub.s32 %v10491, %v10493
        %v10495 = vrot.slane %v10488, %v10494
        %v10496 = vcombine.high %v10495, %v10495
        %10497 = vrot.lane.b32.xlu0 %v10496, 32
        %v10498 = vpop.permute.xlu0 %10497
        %10500 = vst.msk [vmem:[#allocation8 + $0x4] sm:$0x1] %vm10313, %v10498
        %v10501 = vcombine.high %v10283, %v10283
        %v10503 = vunpack.c.l.s4 1966171168
        %v10504 = vunpack.c.0.s8 %v10503
        %v10505 = vlaneseq
        %v10506 = vshrl.u32 %v10505, 7
        %v10507 = vsub.s32 %v10504, %v10506
        %v10508 = vrot.slane %v10501, %v10507
        %v10510 = vunpack.c.l.s4 1966171168
        %v10511 = vunpack.c.0.s8 %v10510
        %v10512 = vlaneseq
        %v10513 = vshrl.u32 %v10512, 7
        %v10514 = vsub.s32 %v10511, %v10513
        %v10515 = vrot.slane %v10508, %v10514
        %10516 = vrot.lane.b32.xlu0 %v10515, 64
        %v10517 = vpop.permute.xlu0 %10516
        %10519 = vst.msk [vmem:[#allocation8 + $0x4] sm:$0x1] %vm10335, %v10517
        %v10520 = vcombine.high %v10515, %v10515
        %10521 = vrot.lane.b32.xlu0 %v10520, 96
        %v10522 = vpop.permute.xlu0 %10521
        %10524 = vst.msk [vmem:[#allocation8 + $0x4] sm:$0x1] %vm10343, %v10522
        %10525 = vst.msk [vmem:[#allocation8 + $0x5] sm:$0x1] %vm10290, %v10284
        %v10528 = vunpack.c.l.s4 1966171168
        %v10529 = vunpack.c.0.s8 %v10528
        %v10530 = vlaneseq
        %v10531 = vshrl.u32 %v10530, 7
        %v10532 = vsub.s32 %v10529, %v10531
        %v10533 = vrot.slane %v10284, %v10532
        %v10535 = vunpack.c.l.s4 1966171168
        %v10536 = vunpack.c.0.s8 %v10535
        %v10537 = vlaneseq
        %v10538 = vshrl.u32 %v10537, 7
        %v10539 = vsub.s32 %v10536, %v10538
        %v10540 = vrot.slane %v10533, %v10539
        %v10541 = vcombine.high %v10540, %v10540
        %10542 = vrot.lane.b32.xlu0 %v10541, 32
        %v10543 = vpop.permute.xlu0 %10542
        %10545 = vst.msk [vmem:[#allocation8 + $0x5] sm:$0x1] %vm10313, %v10543
        %v10546 = vcombine.high %v10284, %v10284
        %v10548 = vunpack.c.l.s4 1966171168
        %v10549 = vunpack.c.0.s8 %v10548
        %v10550 = vlaneseq
        %v10551 = vshrl.u32 %v10550, 7
        %v10552 = vsub.s32 %v10549, %v10551
        %v10553 = vrot.slane %v10546, %v10552
        %v10555 = vunpack.c.l.s4 1966171168
        %v10556 = vunpack.c.0.s8 %v10555
        %v10557 = vlaneseq
        %v10558 = vshrl.u32 %v10557, 7
        %v10559 = vsub.s32 %v10556, %v10558
        %v10560 = vrot.slane %v10553, %v10559
        %10561 = vrot.lane.b32.xlu0 %v10560, 64
        %v10562 = vpop.permute.xlu0 %10561
        %10564 = vst.msk [vmem:[#allocation8 + $0x5] sm:$0x1] %vm10335, %v10562
        %v10565 = vcombine.high %v10560, %v10560
        %10566 = vrot.lane.b32.xlu0 %v10565, 96
        %v10567 = vpop.permute.xlu0 %10566
        %10569 = vst.msk [vmem:[#allocation8 + $0x5] sm:$0x1] %vm10343, %v10567
        %10570 = vst.msk [vmem:[#allocation8 + $0x6] sm:$0x1] %vm10290, %v10285
        %v10573 = vunpack.c.l.s4 1966171168
        %v10574 = vunpack.c.0.s8 %v10573
        %v10575 = vlaneseq
        %v10576 = vshrl.u32 %v10575, 7
        %v10577 = vsub.s32 %v10574, %v10576
        %v10578 = vrot.slane %v10285, %v10577
        %v10580 = vunpack.c.l.s4 1966171168
        %v10581 = vunpack.c.0.s8 %v10580
        %v10582 = vlaneseq
        %v10583 = vshrl.u32 %v10582, 7
        %v10584 = vsub.s32 %v10581, %v10583
        %v10585 = vrot.slane %v10578, %v10584
        %v10586 = vcombine.high %v10585, %v10585
        %10587 = vrot.lane.b32.xlu0 %v10586, 32
        %v10588 = vpop.permute.xlu0 %10587
        %10590 = vst.msk [vmem:[#allocation8 + $0x6] sm:$0x1] %vm10313, %v10588
        %v10591 = vcombine.high %v10285, %v10285
        %v10593 = vunpack.c.l.s4 1966171168
        %v10594 = vunpack.c.0.s8 %v10593
        %v10595 = vlaneseq
        %v10596 = vshrl.u32 %v10595, 7
        %v10597 = vsub.s32 %v10594, %v10596
        %v10598 = vrot.slane %v10591, %v10597
        %v10600 = vunpack.c.l.s4 1966171168
        %v10601 = vunpack.c.0.s8 %v10600
        %v10602 = vlaneseq
        %v10603 = vshrl.u32 %v10602, 7
        %v10604 = vsub.s32 %v10601, %v10603
        %v10605 = vrot.slane %v10598, %v10604
        %10606 = vrot.lane.b32.xlu0 %v10605, 64
        %v10607 = vpop.permute.xlu0 %10606
        %10609 = vst.msk [vmem:[#allocation8 + $0x6] sm:$0x1] %vm10335, %v10607
        %v10610 = vcombine.high %v10605, %v10605
        %10611 = vrot.lane.b32.xlu0 %v10610, 96
        %v10612 = vpop.permute.xlu0 %10611
        %10614 = vst.msk [vmem:[#allocation8 + $0x6] sm:$0x1] %vm10343, %v10612
        %10615 = vst.msk [vmem:[#allocation8 + $0x7] sm:$0x1] %vm10290, %v10286
        %v10618 = vunpack.c.l.s4 1966171168
        %v10619 = vunpack.c.0.s8 %v10618
        %v10620 = vlaneseq
        %v10621 = vshrl.u32 %v10620, 7
        %v10622 = vsub.s32 %v10619, %v10621
        %v10623 = vrot.slane %v10286, %v10622
        %v10625 = vunpack.c.l.s4 1966171168
        %v10626 = vunpack.c.0.s8 %v10625
        %v10627 = vlaneseq
        %v10628 = vshrl.u32 %v10627, 7
        %v10629 = vsub.s32 %v10626, %v10628
        %v10630 = vrot.slane %v10623, %v10629
        %v10631 = vcombine.high %v10630, %v10630
        %10632 = vrot.lane.b32.xlu0 %v10631, 32
        %v10633 = vpop.permute.xlu0 %10632
        %10635 = vst.msk [vmem:[#allocation8 + $0x7] sm:$0x1] %vm10313, %v10633
        %v10636 = vcombine.high %v10286, %v10286
        %v10638 = vunpack.c.l.s4 1966171168
        %v10639 = vunpack.c.0.s8 %v10638
        %v10640 = vlaneseq
        %v10641 = vshrl.u32 %v10640, 7
        %v10642 = vsub.s32 %v10639, %v10641
        %v10643 = vrot.slane %v10636, %v10642
        %v10645 = vunpack.c.l.s4 1966171168
        %v10646 = vunpack.c.0.s8 %v10645
        %v10647 = vlaneseq
        %v10648 = vshrl.u32 %v10647, 7
        %v10649 = vsub.s32 %v10646, %v10648
        %v10650 = vrot.slane %v10643, %v10649
        %10651 = vrot.lane.b32.xlu0 %v10650, 64
        %v10652 = vpop.permute.xlu0 %10651
        %10654 = vst.msk [vmem:[#allocation8 + $0x7] sm:$0x1] %vm10335, %v10652
        %v10655 = vcombine.high %v10650, %v10650
        %10656 = vrot.lane.b32.xlu0 %v10655, 96
        %v10657 = vpop.permute.xlu0 %10656
        %10659 = vst.msk [vmem:[#allocation8 + $0x7] sm:$0x1] %vm10343, %v10657
        %v10660 = vld [vmem:[#allocation8] sm:$0xff]
        %v10662 = vlaneseq
        %v10663 = vshrl.u32 %v10662, 7
        %v10664 = vsub.s32 0, %v10663
        %v10665 = vrot.slane %v10660, %v10664
        %v10666 = vlaneseq
        %v10667 = vshrl.u32 %v10666, 7
        %v10668 = vsub.s32 1, %v10667
        %v10669 = vrot.slane %v10660, %v10668
        %v10670 = vlaneseq
        %v10671 = vshrl.u32 %v10670, 7
        %v10672 = vsub.s32 2, %v10671
        %v10673 = vrot.slane %v10660, %v10672
        %v10674 = vlaneseq
        %v10675 = vshrl.u32 %v10674, 7
        %v10676 = vsub.s32 3, %v10675
        %v10677 = vrot.slane %v10660, %v10676
        %v10678 = vlaneseq
        %v10679 = vshrl.u32 %v10678, 7
        %v10680 = vsub.s32 4, %v10679
        %v10681 = vrot.slane %v10660, %v10680
        %v10682 = vlaneseq
        %v10683 = vshrl.u32 %v10682, 7
        %v10684 = vsub.s32 5, %v10683
        %v10685 = vrot.slane %v10660, %v10684
        %v10686 = vlaneseq
        %v10687 = vshrl.u32 %v10686, 7
        %v10688 = vsub.s32 6, %v10687
        %v10689 = vrot.slane %v10660, %v10688
        %v10690 = vlaneseq
        %v10691 = vshrl.u32 %v10690, 7
        %v10692 = vsub.s32 7, %v10691
        %v10693 = vrot.slane %v10660, %v10692
        %v10702 = vpack.c.bf16 %v10665, %v10665
        %v10703 = vpack.c.bf16 %v10669, %v10669
        %v10704 = vpack.c.bf16 %v10673, %v10673
        %v10705 = vpack.c.bf16 %v10677, %v10677
        %v10706 = vpack.c.bf16 %v10681, %v10681
        %v10707 = vpack.c.bf16 %v10685, %v10685
        %v10708 = vpack.c.bf16 %v10689, %v10689
        %v10709 = vpack.c.bf16 %v10693, %v10693
        %v10710 = vld [vmem:[#allocation12] sm:$0xf]
        %v10711 = vld [vmem:[#allocation12 + $0x4] sm:$0xf]
        %v10712 = vld [vmem:[#allocation12 + $0x8] sm:$0xf]
        %v10713 = vld [vmem:[#allocation12 + $0xc] sm:$0xf]
        %v10714 = vld [vmem:[#allocation12 + $0x10] sm:$0xf]
        %v10715 = vld [vmem:[#allocation12 + $0x14] sm:$0xf]
        %v10716 = vld [vmem:[#allocation12 + $0x18] sm:$0xf]
        %v10717 = vld [vmem:[#allocation12 + $0x1c] sm:$0xf]
        %v10718 = vld [vmem:[#allocation12 + $0x20] sm:$0xf]
        %v10719 = vld [vmem:[#allocation12 + $0x24] sm:$0xf]
        %v10720 = vld [vmem:[#allocation12 + $0x28] sm:$0xf]
        %v10721 = vld [vmem:[#allocation12 + $0x2c] sm:$0xf]
        %v10722 = vld [vmem:[#allocation12 + $0x30] sm:$0xf]
        %v10723 = vld [vmem:[#allocation12 + $0x34] sm:$0xf]
        %v10724 = vld [vmem:[#allocation12 + $0x38] sm:$0xf]
        %v10725 = vld [vmem:[#allocation12 + $0x3c] sm:$0xf]
        %v10726 = vld [vmem:[#allocation12 + $0x40] sm:$0xf]
        %v10727 = vld [vmem:[#allocation12 + $0x44] sm:$0xf]
        %v10728 = vld [vmem:[#allocation12 + $0x48] sm:$0xf]
        %v10729 = vld [vmem:[#allocation12 + $0x4c] sm:$0xf]
        %v10730 = vld [vmem:[#allocation12 + $0x50] sm:$0xf]
        %v10731 = vld [vmem:[#allocation12 + $0x54] sm:$0xf]
        %v10732 = vld [vmem:[#allocation12 + $0x58] sm:$0xf]
        %v10733 = vld [vmem:[#allocation12 + $0x5c] sm:$0xf]
        %v10734 = vld [vmem:[#allocation12 + $0x60] sm:$0xf]
        %v10735 = vld [vmem:[#allocation12 + $0x64] sm:$0xf]
        %v10736 = vld [vmem:[#allocation12 + $0x68] sm:$0xf]
        %v10737 = vld [vmem:[#allocation12 + $0x6c] sm:$0xf]
        %v10738 = vld [vmem:[#allocation12 + $0x70] sm:$0xf]
        %v10739 = vld [vmem:[#allocation12 + $0x74] sm:$0xf]
        %v10740 = vld [vmem:[#allocation12 + $0x78] sm:$0xf]
        %v10741 = vld [vmem:[#allocation12 + $0x7c] sm:$0xf]
        %v10742 = vld [vmem:[#allocation12 + $0x80] sm:$0xf]
        %v10743 = vld [vmem:[#allocation12 + $0x84] sm:$0xf]
        %v10744 = vld [vmem:[#allocation12 + $0x88] sm:$0xf]
        %v10745 = vld [vmem:[#allocation12 + $0x8c] sm:$0xf]
        %v10746 = vld [vmem:[#allocation12 + $0x90] sm:$0xf]
        %v10747 = vld [vmem:[#allocation12 + $0x94] sm:$0xf]
        %v10748 = vld [vmem:[#allocation12 + $0x98] sm:$0xf]
        %v10749 = vld [vmem:[#allocation12 + $0x9c] sm:$0xf]
        %v10750 = vld [vmem:[#allocation12 + $0xa0] sm:$0xf]
        %v10751 = vld [vmem:[#allocation12 + $0xa4] sm:$0xf]
        %v10752 = vld [vmem:[#allocation12 + $0xa8] sm:$0xf]
        %v10753 = vld [vmem:[#allocation12 + $0xac] sm:$0xf]
        %v10754 = vld [vmem:[#allocation12 + $0xb0] sm:$0xf]
        %v10755 = vld [vmem:[#allocation12 + $0xb4] sm:$0xf]
        %v10756 = vld [vmem:[#allocation12 + $0xb8] sm:$0xf]
        %v10757 = vld [vmem:[#allocation12 + $0xbc] sm:$0xf]
        %v10758 = vld [vmem:[#allocation12 + $0xc0] sm:$0xf]
        %v10759 = vld [vmem:[#allocation12 + $0xc4] sm:$0xf]
        %v10760 = vld [vmem:[#allocation12 + $0xc8] sm:$0xf]
        %v10761 = vld [vmem:[#allocation12 + $0xcc] sm:$0xf]
        %v10762 = vld [vmem:[#allocation12 + $0xd0] sm:$0xf]
        %v10763 = vld [vmem:[#allocation12 + $0xd4] sm:$0xf]
        %v10764 = vld [vmem:[#allocation12 + $0xd8] sm:$0xf]
        %v10765 = vld [vmem:[#allocation12 + $0xdc] sm:$0xf]
        %v10766 = vld [vmem:[#allocation12 + $0xe0] sm:$0xf]
        %v10767 = vld [vmem:[#allocation12 + $0xe4] sm:$0xf]
        %v10768 = vld [vmem:[#allocation12 + $0xe8] sm:$0xf]
        %v10769 = vld [vmem:[#allocation12 + $0xec] sm:$0xf]
        %v10770 = vld [vmem:[#allocation12 + $0xf0] sm:$0xf]
        %v10771 = vld [vmem:[#allocation12 + $0xf4] sm:$0xf]
        %v10772 = vld [vmem:[#allocation12 + $0xf8] sm:$0xf]
        %v10773 = vld [vmem:[#allocation12 + $0xfc] sm:$0xf]
        %v10774 = vld [vmem:[#allocation12 + $0x100] sm:$0xf]
        %v10775 = vld [vmem:[#allocation12 + $0x104] sm:$0xf]
        %v10776 = vld [vmem:[#allocation12 + $0x108] sm:$0xf]
        %v10777 = vld [vmem:[#allocation12 + $0x10c] sm:$0xf]
        %v10778 = vld [vmem:[#allocation12 + $0x110] sm:$0xf]
        %v10779 = vld [vmem:[#allocation12 + $0x114] sm:$0xf]
        %v10780 = vld [vmem:[#allocation12 + $0x118] sm:$0xf]
        %v10781 = vld [vmem:[#allocation12 + $0x11c] sm:$0xf]
        %v10782 = vld [vmem:[#allocation12 + $0x120] sm:$0xf]
        %v10783 = vld [vmem:[#allocation12 + $0x124] sm:$0xf]
        %v10784 = vld [vmem:[#allocation12 + $0x128] sm:$0xf]
        %v10785 = vld [vmem:[#allocation12 + $0x12c] sm:$0xf]
        %v10786 = vld [vmem:[#allocation12 + $0x130] sm:$0xf]
        %v10787 = vld [vmem:[#allocation12 + $0x134] sm:$0xf]
        %v10788 = vld [vmem:[#allocation12 + $0x138] sm:$0xf]
        %v10789 = vld [vmem:[#allocation12 + $0x13c] sm:$0xf]
        %v10790 = vld [vmem:[#allocation12 + $0x140] sm:$0xf]
        %v10791 = vld [vmem:[#allocation12 + $0x144] sm:$0xf]
        %v10792 = vld [vmem:[#allocation12 + $0x148] sm:$0xf]
        %v10793 = vld [vmem:[#allocation12 + $0x14c] sm:$0xf]
        %v10794 = vld [vmem:[#allocation12 + $0x150] sm:$0xf]
        %v10795 = vld [vmem:[#allocation12 + $0x154] sm:$0xf]
        %v10796 = vld [vmem:[#allocation12 + $0x158] sm:$0xf]
        %v10797 = vld [vmem:[#allocation12 + $0x15c] sm:$0xf]
        %v10798 = vld [vmem:[#allocation12 + $0x160] sm:$0xf]
        %v10799 = vld [vmem:[#allocation12 + $0x164] sm:$0xf]
        %v10800 = vld [vmem:[#allocation12 + $0x168] sm:$0xf]
        %v10801 = vld [vmem:[#allocation12 + $0x16c] sm:$0xf]
        %v10802 = vld [vmem:[#allocation12 + $0x170] sm:$0xf]
        %v10803 = vld [vmem:[#allocation12 + $0x174] sm:$0xf]
        %v10804 = vld [vmem:[#allocation12 + $0x178] sm:$0xf]
        %v10805 = vld [vmem:[#allocation12 + $0x17c] sm:$0xf]
        %v10806 = vld [vmem:[#allocation12 + $0x180] sm:$0xf]
        %v10807 = vld [vmem:[#allocation12 + $0x184] sm:$0xf]
        %v10808 = vld [vmem:[#allocation12 + $0x188] sm:$0xf]
        %v10809 = vld [vmem:[#allocation12 + $0x18c] sm:$0xf]
        %v10810 = vld [vmem:[#allocation12 + $0x190] sm:$0xf]
        %v10811 = vld [vmem:[#allocation12 + $0x194] sm:$0xf]
        %v10812 = vld [vmem:[#allocation12 + $0x198] sm:$0xf]
        %v10813 = vld [vmem:[#allocation12 + $0x19c] sm:$0xf]
        %v10814 = vld [vmem:[#allocation12 + $0x1a0] sm:$0xf]
        %v10815 = vld [vmem:[#allocation12 + $0x1a4] sm:$0xf]
        %v10816 = vld [vmem:[#allocation12 + $0x1a8] sm:$0xf]
        %v10817 = vld [vmem:[#allocation12 + $0x1ac] sm:$0xf]
        %v10818 = vld [vmem:[#allocation12 + $0x1b0] sm:$0xf]
        %v10819 = vld [vmem:[#allocation12 + $0x1b4] sm:$0xf]
        %v10820 = vld [vmem:[#allocation12 + $0x1b8] sm:$0xf]
        %v10821 = vld [vmem:[#allocation12 + $0x1bc] sm:$0xf]
        %v10822 = vld [vmem:[#allocation12 + $0x1c0] sm:$0xf]
        %v10823 = vld [vmem:[#allocation12 + $0x1c4] sm:$0xf]
        %v10824 = vld [vmem:[#allocation12 + $0x1c8] sm:$0xf]
        %v10825 = vld [vmem:[#allocation12 + $0x1cc] sm:$0xf]
        %v10826 = vld [vmem:[#allocation12 + $0x1d0] sm:$0xf]
        %v10827 = vld [vmem:[#allocation12 + $0x1d4] sm:$0xf]
        %v10828 = vld [vmem:[#allocation12 + $0x1d8] sm:$0xf]
        %v10829 = vld [vmem:[#allocation12 + $0x1dc] sm:$0xf]
        %v10830 = vld [vmem:[#allocation12 + $0x1e0] sm:$0xf]
        %v10831 = vld [vmem:[#allocation12 + $0x1e4] sm:$0xf]
        %v10832 = vld [vmem:[#allocation12 + $0x1e8] sm:$0xf]
        %v10833 = vld [vmem:[#allocation12 + $0x1ec] sm:$0xf]
        %v10834 = vld [vmem:[#allocation12 + $0x1f0] sm:$0xf]
        %v10835 = vld [vmem:[#allocation12 + $0x1f4] sm:$0xf]
        %v10836 = vld [vmem:[#allocation12 + $0x1f8] sm:$0xf]
        %v10837 = vld [vmem:[#allocation12 + $0x1fc] sm:$0xf]
        %v10838 = vld [vmem:[%s8] sm:$0x1]
        %v10967 = vunpack.c.l.b16 %v10710
        %v10968 = vunpack.c.l.b16 %v10711
        %v10969 = vunpack.c.l.b16 %v10712
        %v10970 = vunpack.c.l.b16 %v10713
        %v10971 = vunpack.c.l.b16 %v10714
        %v10972 = vunpack.c.l.b16 %v10715
        %v10973 = vunpack.c.l.b16 %v10716
        %v10974 = vunpack.c.l.b16 %v10717
        %v10975 = vunpack.c.l.b16 %v10718
        %v10976 = vunpack.c.l.b16 %v10719
        %v10977 = vunpack.c.l.b16 %v10720
        %v10978 = vunpack.c.l.b16 %v10721
        %v10979 = vunpack.c.l.b16 %v10722
        %v10980 = vunpack.c.l.b16 %v10723
        %v10981 = vunpack.c.l.b16 %v10724
        %v10982 = vunpack.c.l.b16 %v10725
        %v10983 = vunpack.c.l.b16 %v10726
        %v10984 = vunpack.c.l.b16 %v10727
        %v10985 = vunpack.c.l.b16 %v10728
        %v10986 = vunpack.c.l.b16 %v10729
        %v10987 = vunpack.c.l.b16 %v10730
        %v10988 = vunpack.c.l.b16 %v10731
        %v10989 = vunpack.c.l.b16 %v10732
        %v10990 = vunpack.c.l.b16 %v10733
        %v10991 = vunpack.c.l.b16 %v10734
        %v10992 = vunpack.c.l.b16 %v10735
        %v10993 = vunpack.c.l.b16 %v10736
        %v10994 = vunpack.c.l.b16 %v10737
        %v10995 = vunpack.c.l.b16 %v10738
        %v10996 = vunpack.c.l.b16 %v10739
        %v10997 = vunpack.c.l.b16 %v10740
        %v10998 = vunpack.c.l.b16 %v10741
        %v10999 = vunpack.c.l.b16 %v10742
        %v11000 = vunpack.c.l.b16 %v10743
        %v11001 = vunpack.c.l.b16 %v10744
        %v11002 = vunpack.c.l.b16 %v10745
        %v11003 = vunpack.c.l.b16 %v10746
        %v11004 = vunpack.c.l.b16 %v10747
        %v11005 = vunpack.c.l.b16 %v10748
        %v11006 = vunpack.c.l.b16 %v10749
        %v11007 = vunpack.c.l.b16 %v10750
        %v11008 = vunpack.c.l.b16 %v10751
        %v11009 = vunpack.c.l.b16 %v10752
        %v11010 = vunpack.c.l.b16 %v10753
        %v11011 = vunpack.c.l.b16 %v10754
        %v11012 = vunpack.c.l.b16 %v10755
        %v11013 = vunpack.c.l.b16 %v10756
        %v11014 = vunpack.c.l.b16 %v10757
        %v11015 = vunpack.c.l.b16 %v10758
        %v11016 = vunpack.c.l.b16 %v10759
        %v11017 = vunpack.c.l.b16 %v10760
        %v11018 = vunpack.c.l.b16 %v10761
        %v11019 = vunpack.c.l.b16 %v10762
        %v11020 = vunpack.c.l.b16 %v10763
        %v11021 = vunpack.c.l.b16 %v10764
        %v11022 = vunpack.c.l.b16 %v10765
        %v11023 = vunpack.c.l.b16 %v10766
        %v11024 = vunpack.c.l.b16 %v10767
        %v11025 = vunpack.c.l.b16 %v10768
        %v11026 = vunpack.c.l.b16 %v10769
        %v11027 = vunpack.c.l.b16 %v10770
        %v11028 = vunpack.c.l.b16 %v10771
        %v11029 = vunpack.c.l.b16 %v10772
        %v11030 = vunpack.c.l.b16 %v10773
        %v11031 = vunpack.c.l.b16 %v10774
        %v11032 = vunpack.c.l.b16 %v10775
        %v11033 = vunpack.c.l.b16 %v10776
        %v11034 = vunpack.c.l.b16 %v10777
        %v11035 = vunpack.c.l.b16 %v10778
        %v11036 = vunpack.c.l.b16 %v10779
        %v11037 = vunpack.c.l.b16 %v10780
        %v11038 = vunpack.c.l.b16 %v10781
        %v11039 = vunpack.c.l.b16 %v10782
        %v11040 = vunpack.c.l.b16 %v10783
        %v11041 = vunpack.c.l.b16 %v10784
        %v11042 = vunpack.c.l.b16 %v10785
        %v11043 = vunpack.c.l.b16 %v10786
        %v11044 = vunpack.c.l.b16 %v10787
        %v11045 = vunpack.c.l.b16 %v10788
        %v11046 = vunpack.c.l.b16 %v10789
        %v11047 = vunpack.c.l.b16 %v10790
        %v11048 = vunpack.c.l.b16 %v10791
        %v11049 = vunpack.c.l.b16 %v10792
        %v11050 = vunpack.c.l.b16 %v10793
        %v11051 = vunpack.c.l.b16 %v10794
        %v11052 = vunpack.c.l.b16 %v10795
        %v11053 = vunpack.c.l.b16 %v10796
        %v11054 = vunpack.c.l.b16 %v10797
        %v11055 = vunpack.c.l.b16 %v10798
        %v11056 = vunpack.c.l.b16 %v10799
        %v11057 = vunpack.c.l.b16 %v10800
        %v11058 = vunpack.c.l.b16 %v10801
        %v11059 = vunpack.c.l.b16 %v10802
        %v11060 = vunpack.c.l.b16 %v10803
        %v11061 = vunpack.c.l.b16 %v10804
        %v11062 = vunpack.c.l.b16 %v10805
        %v11063 = vunpack.c.l.b16 %v10806
        %v11064 = vunpack.c.l.b16 %v10807
        %v11065 = vunpack.c.l.b16 %v10808
        %v11066 = vunpack.c.l.b16 %v10809
        %v11067 = vunpack.c.l.b16 %v10810
        %v11068 = vunpack.c.l.b16 %v10811
        %v11069 = vunpack.c.l.b16 %v10812
        %v11070 = vunpack.c.l.b16 %v10813
        %v11071 = vunpack.c.l.b16 %v10814
        %v11072 = vunpack.c.l.b16 %v10815
        %v11073 = vunpack.c.l.b16 %v10816
        %v11074 = vunpack.c.l.b16 %v10817
        %v11075 = vunpack.c.l.b16 %v10818
        %v11076 = vunpack.c.l.b16 %v10819
        %v11077 = vunpack.c.l.b16 %v10820
        %v11078 = vunpack.c.l.b16 %v10821
        %v11079 = vunpack.c.l.b16 %v10822
        %v11080 = vunpack.c.l.b16 %v10823
        %v11081 = vunpack.c.l.b16 %v10824
        %v11082 = vunpack.c.l.b16 %v10825
        %v11083 = vunpack.c.l.b16 %v10826
        %v11084 = vunpack.c.l.b16 %v10827
        %v11085 = vunpack.c.l.b16 %v10828
        %v11086 = vunpack.c.l.b16 %v10829
        %v11087 = vunpack.c.l.b16 %v10830
        %v11088 = vunpack.c.l.b16 %v10831
        %v11089 = vunpack.c.l.b16 %v10832
        %v11090 = vunpack.c.l.b16 %v10833
        %v11091 = vunpack.c.l.b16 %v10834
        %v11092 = vunpack.c.l.b16 %v10835
        %v11093 = vunpack.c.l.b16 %v10836
        %v11094 = vunpack.c.l.b16 %v10837
        %v11095 = vpack.c.b16 %v10968, %v10967
        %v11096 = vpack.c.b16 %v10970, %v10969
        %v11097 = vpack.c.b16 %v10972, %v10971
        %v11098 = vpack.c.b16 %v10974, %v10973
        %v11099 = vpack.c.b16 %v10976, %v10975
        %v11100 = vpack.c.b16 %v10978, %v10977
        %v11101 = vpack.c.b16 %v10980, %v10979
        %v11102 = vpack.c.b16 %v10982, %v10981
        %v11103 = vpack.c.b16 %v10984, %v10983
        %v11104 = vpack.c.b16 %v10986, %v10985
        %v11105 = vpack.c.b16 %v10988, %v10987
        %v11106 = vpack.c.b16 %v10990, %v10989
        %v11107 = vpack.c.b16 %v10992, %v10991
        %v11108 = vpack.c.b16 %v10994, %v10993
        %v11109 = vpack.c.b16 %v10996, %v10995
        %v11110 = vpack.c.b16 %v10998, %v10997
        %v11111 = vpack.c.b16 %v11000, %v10999
        %v11112 = vpack.c.b16 %v11002, %v11001
        %v11113 = vpack.c.b16 %v11004, %v11003
        %v11114 = vpack.c.b16 %v11006, %v11005
        %v11115 = vpack.c.b16 %v11008, %v11007
        %v11116 = vpack.c.b16 %v11010, %v11009
        %v11117 = vpack.c.b16 %v11012, %v11011
        %v11118 = vpack.c.b16 %v11014, %v11013
        %v11119 = vpack.c.b16 %v11016, %v11015
        %v11120 = vpack.c.b16 %v11018, %v11017
        %v11121 = vpack.c.b16 %v11020, %v11019
        %v11122 = vpack.c.b16 %v11022, %v11021
        %v11123 = vpack.c.b16 %v11024, %v11023
        %v11124 = vpack.c.b16 %v11026, %v11025
        %v11125 = vpack.c.b16 %v11028, %v11027
        %v11126 = vpack.c.b16 %v11030, %v11029
        %v11127 = vpack.c.b16 %v11032, %v11031
        %v11128 = vpack.c.b16 %v11034, %v11033
        %v11129 = vpack.c.b16 %v11036, %v11035
        %v11130 = vpack.c.b16 %v11038, %v11037
        %v11131 = vpack.c.b16 %v11040, %v11039
        %v11132 = vpack.c.b16 %v11042, %v11041
        %v11133 = vpack.c.b16 %v11044, %v11043
        %v11134 = vpack.c.b16 %v11046, %v11045
        %v11135 = vpack.c.b16 %v11048, %v11047
        %v11136 = vpack.c.b16 %v11050, %v11049
        %v11137 = vpack.c.b16 %v11052, %v11051
        %v11138 = vpack.c.b16 %v11054, %v11053
        %v11139 = vpack.c.b16 %v11056, %v11055
        %v11140 = vpack.c.b16 %v11058, %v11057
        %v11141 = vpack.c.b16 %v11060, %v11059
        %v11142 = vpack.c.b16 %v11062, %v11061
        %v11143 = vpack.c.b16 %v11064, %v11063
        %v11144 = vpack.c.b16 %v11066, %v11065
        %v11145 = vpack.c.b16 %v11068, %v11067
        %v11146 = vpack.c.b16 %v11070, %v11069
        %v11147 = vpack.c.b16 %v11072, %v11071
        %v11148 = vpack.c.b16 %v11074, %v11073
        %v11149 = vpack.c.b16 %v11076, %v11075
        %v11150 = vpack.c.b16 %v11078, %v11077
        %v11151 = vpack.c.b16 %v11080, %v11079
        %v11152 = vpack.c.b16 %v11082, %v11081
        %v11153 = vpack.c.b16 %v11084, %v11083
        %v11154 = vpack.c.b16 %v11086, %v11085
        %v11155 = vpack.c.b16 %v11088, %v11087
        %v11156 = vpack.c.b16 %v11090, %v11089
        %v11157 = vpack.c.b16 %v11092, %v11091
        %v11158 = vpack.c.b16 %v11094, %v11093
        %11223 = vmatprep.subr.bf16.mxu0 0
        %11224 = vmatpush1.bf16.msra.mxu0 %v11102
        %11225 = vmatprep.subr.bf16.mxu0 0
        %11226 = vmatpush1.bf16.msra.mxu0 %v11101
        %11227 = vmatprep.subr.bf16.mxu0 0
        %11228 = vmatpush1.bf16.msra.mxu0 %v11100
        %11229 = vmatprep.subr.bf16.mxu0 0
        %11230 = vmatpush1.bf16.msra.mxu0 %v11099
        %11231 = vmatprep.subr.bf16.mxu0 0
        %11232 = vmatpush1.bf16.msra.mxu0 %v11098
        %11233 = vmatprep.subr.bf16.mxu0 0
        %11234 = vmatpush1.bf16.msra.mxu0 %v11097
        %11235 = vmatprep.subr.bf16.mxu0 0
        %11236 = vmatpush1.bf16.msra.mxu0 %v11096
        %11237 = vmatprep.subr.bf16.mxu0 0
        %11238 = vmatpush1.bf16.msra.mxu0 %v11095
        %11239 = vmatprep.subr.bf16.mxu0 0
        %11240 = vmatpush2.bf16.msra.mxu0 %v11110
        %11241 = vmatprep.subr.bf16.mxu0 0
        %11242 = vmatpush2.bf16.msra.mxu0 %v11109
        %11243 = vmatprep.subr.bf16.mxu0 0
        %11244 = vmatpush2.bf16.msra.mxu0 %v11108
        %11245 = vmatprep.subr.bf16.mxu0 0
        %11246 = vmatpush2.bf16.msra.mxu0 %v11107
        %11247 = vmatprep.subr.bf16.mxu0 0
        %11248 = vmatpush2.bf16.msra.mxu0 %v11106
        %11249 = vmatprep.subr.bf16.mxu0 0
        %11250 = vmatpush2.bf16.msra.mxu0 %v11105
        %11251 = vmatprep.subr.bf16.mxu0 0
        %11252 = vmatpush2.bf16.msra.mxu0 %v11104
        %11253 = vmatprep.subr.bf16.mxu0 0
        %11254 = vmatpush2.bf16.msra.mxu0 %v11103
        %11255 = vmatprep.mubr.bf16.mxu0 %v10703
        %11256 = vmatmul.mubr.bf16.gmra.mxu0 %v10702
        %v11257 = vpop.f32.mrf.mxu0
        %v11258 = vadd.f32 %v10838, %v11257
        %v11259 = vpop.f32.mrf.mxu0
        %v11260 = vpop.f32.mrf.mxu0
        %v11261 = vpop.f32.mrf.mxu0
        %11262 = vdwg.mxu0
        %11263 = vmatprep.subr.bf16.mxu0 0
        %11264 = vmatpush1.bf16.msra.mxu0 %v11118
        %11265 = vmatprep.subr.bf16.mxu0 0
        %11266 = vmatpush1.bf16.msra.mxu0 %v11117
        %11267 = vmatprep.subr.bf16.mxu0 0
        %11268 = vmatpush1.bf16.msra.mxu0 %v11116
        %11269 = vmatprep.subr.bf16.mxu0 0
        %11270 = vmatpush1.bf16.msra.mxu0 %v11115
        %11271 = vmatprep.subr.bf16.mxu0 0
        %11272 = vmatpush1.bf16.msra.mxu0 %v11114
        %11273 = vmatprep.subr.bf16.mxu0 0
        %11274 = vmatpush1.bf16.msra.mxu0 %v11113
        %11275 = vmatprep.subr.bf16.mxu0 0
        %11276 = vmatpush1.bf16.msra.mxu0 %v11112
        %11277 = vmatprep.subr.bf16.mxu0 0
        %11278 = vmatpush1.bf16.msra.mxu0 %v11111
        %11279 = vmatprep.subr.bf16.mxu0 0
        %11280 = vmatpush2.bf16.msra.mxu0 %v11126
        %11281 = vmatprep.subr.bf16.mxu0 0
        %11282 = vmatpush2.bf16.msra.mxu0 %v11125
        %11283 = vmatprep.subr.bf16.mxu0 0
        %11284 = vmatpush2.bf16.msra.mxu0 %v11124
        %11285 = vmatprep.subr.bf16.mxu0 0
        %11286 = vmatpush2.bf16.msra.mxu0 %v11123
        %11287 = vmatprep.subr.bf16.mxu0 0
        %11288 = vmatpush2.bf16.msra.mxu0 %v11122
        %11289 = vmatprep.subr.bf16.mxu0 0
        %11290 = vmatpush2.bf16.msra.mxu0 %v11121
        %11291 = vmatprep.subr.bf16.mxu0 0
        %11292 = vmatpush2.bf16.msra.mxu0 %v11120
        %11293 = vmatprep.subr.bf16.mxu0 0
        %11294 = vmatpush2.bf16.msra.mxu0 %v11119
        %11295 = vmatprep.mubr.bf16.mxu0 %v10705
        %11296 = vmatmul.mubr.bf16.gmra.mxu0 %v10704
        %v11297 = vpop.f32.mrf.mxu0
        %v11298 = vadd.f32 %v11258, %v11297
        %v11299 = vpop.f32.mrf.mxu0
        %v11300 = vpop.f32.mrf.mxu0
        %v11301 = vpop.f32.mrf.mxu0
        %11302 = vdwg.mxu0
        %11303 = vmatprep.subr.bf16.mxu0 0
        %11304 = vmatpush1.bf16.msra.mxu0 %v11134
        %11305 = vmatprep.subr.bf16.mxu0 0
        %11306 = vmatpush1.bf16.msra.mxu0 %v11133
        %11307 = vmatprep.subr.bf16.mxu0 0
        %11308 = vmatpush1.bf16.msra.mxu0 %v11132
        %11309 = vmatprep.subr.bf16.mxu0 0
        %11310 = vmatpush1.bf16.msra.mxu0 %v11131
        %11311 = vmatprep.subr.bf16.mxu0 0
        %11312 = vmatpush1.bf16.msra.mxu0 %v11130
        %11313 = vmatprep.subr.bf16.mxu0 0
        %11314 = vmatpush1.bf16.msra.mxu0 %v11129
        %11315 = vmatprep.subr.bf16.mxu0 0
        %11316 = vmatpush1.bf16.msra.mxu0 %v11128
        %11317 = vmatprep.subr.bf16.mxu0 0
        %11318 = vmatpush1.bf16.msra.mxu0 %v11127
        %11319 = vmatprep.subr.bf16.mxu0 0
        %11320 = vmatpush2.bf16.msra.mxu0 %v11142
        %11321 = vmatprep.subr.bf16.mxu0 0
        %11322 = vmatpush2.bf16.msra.mxu0 %v11141
        %11323 = vmatprep.subr.bf16.mxu0 0
        %11324 = vmatpush2.bf16.msra.mxu0 %v11140
        %11325 = vmatprep.subr.bf16.mxu0 0
        %11326 = vmatpush2.bf16.msra.mxu0 %v11139
        %11327 = vmatprep.subr.bf16.mxu0 0
        %11328 = vmatpush2.bf16.msra.mxu0 %v11138
        %11329 = vmatprep.subr.bf16.mxu0 0
        %11330 = vmatpush2.bf16.msra.mxu0 %v11137
        %11331 = vmatprep.subr.bf16.mxu0 0
        %11332 = vmatpush2.bf16.msra.mxu0 %v11136
        %11333 = vmatprep.subr.bf16.mxu0 0
        %11334 = vmatpush2.bf16.msra.mxu0 %v11135
        %11335 = vmatprep.mubr.bf16.mxu0 %v10707
        %11336 = vmatmul.mubr.bf16.gmra.mxu0 %v10706
        %v11337 = vpop.f32.mrf.mxu0
        %v11338 = vadd.f32 %v11298, %v11337
        %v11339 = vpop.f32.mrf.mxu0
        %v11340 = vpop.f32.mrf.mxu0
        %v11341 = vpop.f32.mrf.mxu0
        %11342 = vdwg.mxu0
        %11343 = vmatprep.subr.bf16.mxu0 0
        %11344 = vmatpush1.bf16.msra.mxu0 %v11150
        %11345 = vmatprep.subr.bf16.mxu0 0
        %11346 = vmatpush1.bf16.msra.mxu0 %v11149
        %11347 = vmatprep.subr.bf16.mxu0 0
        %11348 = vmatpush1.bf16.msra.mxu0 %v11148
        %11349 = vmatprep.subr.bf16.mxu0 0
        %11350 = vmatpush1.bf16.msra.mxu0 %v11147
        %11351 = vmatprep.subr.bf16.mxu0 0
        %11352 = vmatpush1.bf16.msra.mxu0 %v11146
        %11353 = vmatprep.subr.bf16.mxu0 0
        %11354 = vmatpush1.bf16.msra.mxu0 %v11145
        %11355 = vmatprep.subr.bf16.mxu0 0
        %11356 = vmatpush1.bf16.msra.mxu0 %v11144
        %11357 = vmatprep.subr.bf16.mxu0 0
        %11358 = vmatpush1.bf16.msra.mxu0 %v11143
        %11359 = vmatprep.subr.bf16.mxu0 0
        %11360 = vmatpush2.bf16.msra.mxu0 %v11158
        %11361 = vmatprep.subr.bf16.mxu0 0
        %11362 = vmatpush2.bf16.msra.mxu0 %v11157
        %11363 = vmatprep.subr.bf16.mxu0 0
        %11364 = vmatpush2.bf16.msra.mxu0 %v11156
        %11365 = vmatprep.subr.bf16.mxu0 0
        %11366 = vmatpush2.bf16.msra.mxu0 %v11155
        %11367 = vmatprep.subr.bf16.mxu0 0
        %11368 = vmatpush2.bf16.msra.mxu0 %v11154
        %11369 = vmatprep.subr.bf16.mxu0 0
        %11370 = vmatpush2.bf16.msra.mxu0 %v11153
        %11371 = vmatprep.subr.bf16.mxu0 0
        %11372 = vmatpush2.bf16.msra.mxu0 %v11152
        %11373 = vmatprep.subr.bf16.mxu0 0
        %11374 = vmatpush2.bf16.msra.mxu0 %v11151
        %11375 = vmatprep.mubr.bf16.mxu0 %v10709
        %11376 = vmatmul.mubr.bf16.gmra.mxu0 %v10708
        %v11377 = vpop.f32.mrf.mxu0
        %v11378 = vadd.f32 %v11338, %v11377
        %v11379 = vpop.f32.mrf.mxu0
        %v11380 = vpop.f32.mrf.mxu0
        %v11381 = vpop.f32.mrf.mxu0
        %11382 = vdwg.mxu0
        %v11383 = vmax.f32 %v11378, 0.0
        %v11384 = vpack.c.bf16 %v11383, %v11383
        %v11385 = vld [vmem:[%s9] sm:$0xf]
        %v11386 = vld [vmem:[%s9 + $0x4] sm:$0xf]
        %v11387 = vld [vmem:[%s9 + $0x8] sm:$0xf]
        %v11388 = vld [vmem:[%s9 + $0xc] sm:$0xf]
        %v11389 = vld [vmem:[%s9 + $0x10] sm:$0xf]
        %v11390 = vld [vmem:[%s9 + $0x14] sm:$0xf]
        %v11391 = vld [vmem:[%s9 + $0x18] sm:$0xf]
        %v11392 = vld [vmem:[%s9 + $0x1c] sm:$0xf]
        %v11393 = vld [vmem:[%s9 + $0x20] sm:$0xf]
        %v11394 = vld [vmem:[%s9 + $0x24] sm:$0xf]
        %v11395 = vld [vmem:[%s9 + $0x28] sm:$0xf]
        %v11396 = vld [vmem:[%s9 + $0x2c] sm:$0xf]
        %v11397 = vld [vmem:[%s9 + $0x30] sm:$0xf]
        %v11398 = vld [vmem:[%s9 + $0x34] sm:$0xf]
        %v11399 = vld [vmem:[%s9 + $0x38] sm:$0xf]
        %v11400 = vld [vmem:[%s9 + $0x3c] sm:$0xf]
        %v11401 = vld [vmem:[%s10] sm:$0x1]
        %v11418 = vunpack.c.l.b16 %v11385
        %v11419 = vunpack.c.l.b16 %v11386
        %v11420 = vunpack.c.l.b16 %v11387
        %v11421 = vunpack.c.l.b16 %v11388
        %v11422 = vunpack.c.l.b16 %v11389
        %v11423 = vunpack.c.l.b16 %v11390
        %v11424 = vunpack.c.l.b16 %v11391
        %v11425 = vunpack.c.l.b16 %v11392
        %v11426 = vunpack.c.l.b16 %v11393
        %v11427 = vunpack.c.l.b16 %v11394
        %v11428 = vunpack.c.l.b16 %v11395
        %v11429 = vunpack.c.l.b16 %v11396
        %v11430 = vunpack.c.l.b16 %v11397
        %v11431 = vunpack.c.l.b16 %v11398
        %v11432 = vunpack.c.l.b16 %v11399
        %v11433 = vunpack.c.l.b16 %v11400
        %v11434 = vpack.c.b16 %v11419, %v11418
        %v11435 = vpack.c.b16 %v11421, %v11420
        %v11436 = vpack.c.b16 %v11423, %v11422
        %v11437 = vpack.c.b16 %v11425, %v11424
        %v11438 = vpack.c.b16 %v11427, %v11426
        %v11439 = vpack.c.b16 %v11429, %v11428
        %v11440 = vpack.c.b16 %v11431, %v11430
        %v11441 = vpack.c.b16 %v11433, %v11432
        %11450 = vmatprep.subr.bf16.mxu0 0
        %11451 = vmatpush1.bf16.msra.mxu0 %v11441
        %11452 = vmatprep.subr.bf16.mxu0 0
        %11453 = vmatpush1.bf16.msra.mxu0 %v11440
        %11454 = vmatprep.subr.bf16.mxu0 0
        %11455 = vmatpush1.bf16.msra.mxu0 %v11439
        %11456 = vmatprep.subr.bf16.mxu0 0
        %11457 = vmatpush1.bf16.msra.mxu0 %v11438
        %11458 = vmatprep.subr.bf16.mxu0 0
        %11459 = vmatpush1.bf16.msra.mxu0 %v11437
        %11460 = vmatprep.subr.bf16.mxu0 0
        %11461 = vmatpush1.bf16.msra.mxu0 %v11436
        %11462 = vmatprep.subr.bf16.mxu0 0
        %11463 = vmatpush1.bf16.msra.mxu0 %v11435
        %11464 = vmatprep.subr.bf16.mxu0 0
        %11465 = vmatpush1.bf16.msra.mxu0 %v11434
        %11466 = vmatprep.subr.bf16.mxu0 0
        %11467 = vmatpush2.bf16.msra.mxu0 0
        %11468 = vmatprep.subr.bf16.mxu0 0
        %11469 = vmatpush2.bf16.msra.mxu0 0
        %11470 = vmatprep.subr.bf16.mxu0 0
        %11471 = vmatpush2.bf16.msra.mxu0 0
        %11472 = vmatprep.subr.bf16.mxu0 0
        %11473 = vmatpush2.bf16.msra.mxu0 0
        %11474 = vmatprep.subr.bf16.mxu0 0
        %11475 = vmatpush2.bf16.msra.mxu0 0
        %11476 = vmatprep.subr.bf16.mxu0 0
        %11477 = vmatpush2.bf16.msra.mxu0 0
        %11478 = vmatprep.subr.bf16.mxu0 0
        %11479 = vmatpush2.bf16.msra.mxu0 0
        %11480 = vmatprep.subr.bf16.mxu0 0
        %11481 = vmatpush2.bf16.msra.mxu0 0
        %11482 = vmatprep.mubr.bf16.mxu0 0
        %11483 = vmatmul.mubr.bf16.gmra.mxu0 %v11384
        %v11484 = vpop.f32.mrf.mxu0
        %v11485 = vadd.f32 %v11401, %v11484
        %v11486 = vpop.f32.mrf.mxu0
        %v11487 = vpop.f32.mrf.mxu0
        %v11488 = vpop.f32.mrf.mxu0
        %11489 = vdwg.mxu0
        %v11490 = vsub.f32 0.0, %v11485
        %v11491 = vmul.f32 %v11490, 1.442695
        %v11492 = vpow.pop %v11491
        %v11493 = vadd.f32 %v11492, 1.0
        %v11494 = vrcp.pop %v11493
        %v11495 = vmul.f32 1.0, %v11494
        %vm11496 = vcmask 8192
        %11497 = vst.msk [vmem:[%s418] sm:$0x1] %vm11496, %v11495
        %s11498 = sand.u32 %s273, 1
        %s11499 = scalar_lea.sflag [#allocation11], %s11498
        %s11500 = sand.u32 %s273, 1
        %s11501 = scalar_lea.vmem [#allocation14], %s11500
        // Predicated region
        $region73: #{decoder_forward.1} parent=63 // pred_check
          %p11502 = pneg %p283
        $region74: #{decoder_forward.1} parent=63 // pred_check_branch
          %11504 = sbr.rel (%p11502) target = $region76
        $region75: #{decoder_forward.1} parent=63 // pred_region
          %s11506 = ssub.s32 16, 16
          %11507 = vsyncadd %s11499, %s11506
          %s11508 = smul.addr %s29, 16
          %s11509 = scalar_lea.hbm %s11, %s11508
          %s11511 = sshll.u32 %s11501, 4
          %s11512 = int_to_ptr.vmem [resolvable:$true] %s11511
          %11514 = dma.vmem_to_hbm [thread:$0]  %s11512, 16, %s11509, %s11499
        $region76: #{decoder_forward.1} parent=63 // pred_fallthru
          _
      $region64: #{decoder_forward.1} parent=5 // pred_fallthru
        _
      %p11515 = scmp.le.s32.totalorder 2, %s24
      // Predicated region
      $region77: #{decoder_forward.1} parent=5 // pred_check
        %p11516 = pneg %p11515
      $region78: #{decoder_forward.1} parent=5 // pred_check_branch
        %11518 = sbr.rel (%p11516) target = $region80
      $region79: #{decoder_forward.1} parent=5 // pred_region
        %s11519 = ssub.s32 %s24, 2
        // Predicated region
        $region81: #{decoder_forward.1} parent=79 // pred_check
          %p11520 = pneg %p289
        $region82: #{decoder_forward.1} parent=79 // pred_check_branch
          %11522 = sbr.rel (%p11520) target = $region84
        $region83: #{decoder_forward.1} parent=79 // pred_region
          %s11523 = sand.u32 %s274, 1
          %s11524 = scalar_lea.sflag [#allocation11], %s11523
          %s11525 = sand.u32 %s274, 1
          %s11526 = scalar_lea.vmem [#allocation14], %s11525
          %11527 = dma.done %s11524, 16
        $region84: #{decoder_forward.1} parent=79 // pred_fallthru
          _
      $region80: #{decoder_forward.1} parent=5 // pred_fallthru
        _
    $region6: #{decoder_forward.1} parent=1 // loop_footer
      %s28 = sadd.s32 1, %s24
    $region7: #{decoder_forward.1} parent=1 // loop_footer_branch
      %23 = sbr.rel target = $region3
    $region8: #{decoder_forward.1} parent=1 // loop_exit
      _
    %11528 = vsyncpa [#allocation10], 1
    %s11529 = scalar_lea.sflag [#allocation10], 1
    %11530 = vsyncpa %s11529, 1
    %11531 = vsyncpa [#allocation13], 1
    %11532 = vsyncpa [#allocation11], 1
    %s11533 = scalar_lea.sflag [#allocation11], 1
    %11534 = vsyncpa %s11533, 1

</llo_original>
